<compile_context>
chip_gen: v6e
topology: v6e:2x2x1
jax: 0.10.0
libtpu: 0.0.40
codegen_flags: <defaults>
</compile_context>

<pallas_src>
import numpy as np

import jax
import jax.numpy as jnp
from jax import lax
from jax.experimental import pallas as pl
from jax.experimental.pallas import tpu as pltpu

_SLAB_W = 256  # lane width of the packed parameter slab (2 x 128)


# --------------------------- parameter packing ------------------------------

class _SlabBuilder:
    """Packs [W | b] blocks (and constants) into one (R, 256) f32 slab."""

    def __init__(self):
        self._blocks = []
        self._row = 0
        self.meta = {}   # name -> (row0, cout, cin)

    def add(self, name, w, b=None):
        w = np.asarray(w, np.float32)
        co, ci = w.shape
        width = ci + (1 if b is not None else 0)
        assert width <= _SLAB_W, (name, w.shape)
        rows = ((co + 7) // 8) * 8          # keep every block 8-sublane aligned
        blk = np.zeros((rows, _SLAB_W), np.float32)
        blk[:co, :ci] = w
        if b is not None:
            blk[:co, ci] = np.asarray(b, np.float32).reshape(co)
        self._blocks.append(blk)
        self.meta[name] = (self._row, co, ci)
        self._row += rows

    def finish(self):
        slab = np.concatenate(self._blocks, axis=0)
        return jnp.asarray(slab), self.meta


def _rand_linear(key, cout, cin):
    kw, kb = jax.random.split(key)
    w = np.asarray(jax.random.normal(kw, (cout, cin), jnp.float32)) * (cin ** -0.5)
    b = np.asarray(jax.random.normal(kb, (cout,), jnp.float32)) * 0.02
    return w, b


def _rand_bn(key, c):
    # inference-mode BatchNorm folded to a per-channel affine y = x*s + t
    ks, kt = jax.random.split(key)
    s = np.asarray(jax.random.uniform(ks, (c,), jnp.float32, 0.5, 1.5))
    t = np.asarray(jax.random.normal(kt, (c,), jnp.float32)) * 0.05
    return s, t


def _fold_bn(w, b, s, t):
    # (W x + b) * s + t  ==  (s*W) x + (s*b + t)
    return w * s[:, None], b * s + t


def _add_stn(sb, prefix, key, k):
    keys = jax.random.split(key, 11)
    dims = [(12, k), (24, 12), (192, 24), (96, 192), (48, 96), (k * k, 48)]
    names = ["c1", "c2", "c3", "f1", "f2", "f3"]
    bns = [_rand_bn(keys[6 + i], c) for i, c in enumerate([12, 24, 192, 96, 48])]
    for i, (name, (co, ci)) in enumerate(zip(names, dims)):
        w, b = _rand_linear(keys[i], co, ci)
        if i < 5:                                  # fc3 has no BatchNorm
            w, b = _fold_bn(w, b, *bns[i])
        sb.add(f"{prefix}_{name}", w, b)

    # constants for the (k*k, 1) -> (k, k) "unflatten" (done as two tiny
    # matmuls instead of an in-kernel minor-dim reshape), plus the identity.
    kk = k * k
    m = np.arange(kk)
    row_sel = (m[None, :] // k == np.arange(k)[:, None]).astype(np.float32)   # (k, kk)
    col_mask = (m[:, None] % k == np.arange(k)[None, :]).astype(np.float32)   # (kk, k)
    sb.add(f"{prefix}_row_sel", row_sel)
    sb.add(f"{prefix}_col_mask", col_mask)
    sb.add(f"{prefix}_row_sel_t", col_mask.T.copy())      # builds trans^T directly
    sb.add(f"{prefix}_col_mask_t", row_sel.T.copy())
    sb.add(f"{prefix}_eye", np.eye(k, dtype=np.float32))


def _add_main(sb, key):
    km = jax.random.split(key, 14)
    bns = [_rand_bn(km[8 + i], c) for i, c in enumerate([12, 24, 192, 96, 48, 24])]

    w1, b1 = _fold_bn(*_rand_linear(km[0], 12, 5), *bns[0])
    w2, b2 = _fold_bn(*_rand_linear(km[1], 24, 12), *bns[1])
    w3, b3 = _fold_bn(*_rand_linear(km[2], 192, 24), *bns[2])
    w4, b4 = _fold_bn(*_rand_linear(km[3], 96, 204), *bns[3])
    w5, b5 = _fold_bn(*_rand_linear(km[4], 48, 96), *bns[4])
    w6, b6 = _fold_bn(*_rand_linear(km[5], 24, 48), *bns[5])
    a1w, a1b = _rand_linear(km[6], 48, 192)
    a2w, a2b = _rand_linear(km[7], 1, 48)

    sb.add("m_c1", w1, b1)
    sb.add("m_c2", w2, b2)
    sb.add("m_c3", w3, b3)
    sb.add("m_c4a", w4[:, :12], b4)   # conv4 split: point-feature part (+ bias)
    sb.add("m_c4b", w4[:, 12:])       # conv4 split: broadcast global part
    sb.add("m_c5", w5, b5)
    sb.add("m_c6", w6, b6)
    # attn2(attn1(.)) is linear-linear -> fold into one (1, 192) row + scalar
    a_comb = a2w @ a1w                # (1, 192)
    a_cb = a2w @ a1b + a2b            # (1,)
    sb.add("m_attn", a_comb, a_cb)


def build_packed_params(key):
    sb = _SlabBuilder()
    k_s5, k_s12, k_main = jax.random.split(key, 3)
    _add_stn(sb, "s5", k_s5, 5)
    _add_stn(sb, "s12", k_s12, 12)
    _add_main(sb, k_main)
    return sb.finish()


# -------------------------------- kernel ------------------------------------

def _make_kernel(meta, bt):
    def wslice(ref, name):
        r0, co, ci = meta[name]
        return ref[pl.ds(r0, co), pl.ds(0, ci)]

    def bslice(ref, name):
        r0, co, ci = meta[name]
        return ref[pl.ds(r0, co), pl.ds(ci, 1)]

    def kernel(x_ref, slab_ref, out_x_ref, trans_ref, tfeat_ref, attn_ref):
        def lin(name, h):
            w = wslice(slab_ref, name)                        # (Cout, Cin)
            b = bslice(slab_ref, name)                        # (Cout, 1)
            return jnp.dot(w, h, preferred_element_type=jnp.float32) + b

        def relu(v):
            return jnp.maximum(v, 0.0)

        def run_stn(prefix, pts):
            h = relu(lin(f"{prefix}_c1", pts))
            h = relu(lin(f"{prefix}_c2", h))
            h = relu(lin(f"{prefix}_c3", h))                  # (192, N)
            g = jnp.max(h, axis=1, keepdims=True)             # (192, 1) max over points
            g = relu(lin(f"{prefix}_f1", g))                  # (96, 1)
            g = relu(lin(f"{prefix}_f2", g))                  # (48, 1)
            g = lin(f"{prefix}_f3", g)                        # (k*k, 1)
            row_sel = wslice(slab_ref, f"{prefix}_row_sel")
            col_mask = wslice(slab_ref, f"{prefix}_col_mask")
            row_sel_t = wslice(slab_ref, f"{prefix}_row_sel_t")
            col_mask_t = wslice(slab_ref, f"{prefix}_col_mask_t")
            eye = wslice(slab_ref, f"{prefix}_eye")
            tr = jnp.dot(row_sel, g * col_mask,
                         preferred_element_type=jnp.float32) + eye      # (k, k)
            tr_t = jnp.dot(row_sel_t, g * col_mask_t,
                           preferred_element_type=jnp.float32) + eye    # (k, k)^T
            return tr, tr_t

        # Static loop over the batch tile: per-batch reductions stay segmented.
        for b in range(bt):
            pts = x_ref[b]                                    # (5, N)

            # ---- input transform (STN k=5): x' = trans^T @ x (channel-major)
            trans, trans_t = run_stn("s5", pts)
            pts = jnp.dot(trans_t, pts, preferred_element_type=jnp.float32)

            h = relu(lin("m_c1", pts))                        # (12, N)

            # ---- feature transform (STN k=12)
            tfeat, tfeat_t = run_stn("s12", h)
            h = jnp.dot(tfeat_t, h, preferred_element_type=jnp.float32)
            pointfeat = h                                     # (12, N)

            h = relu(lin("m_c2", h))                          # (24, N)
            h3 = lin("m_c3", h)                               # (192, N), bn3 only

            # ---- attention pooling over points (softmax along the lane axis)
            logits = lin("m_attn", h3)                        # (1, N), lane-dense
            logits = logits - jnp.max(logits, axis=1, keepdims=True)
            ex = jnp.exp(logits)
            aw = ex * pl.reciprocal(jnp.sum(ex, axis=1, keepdims=True),
                                    approx=True)              # (1, N)
            # attn_vec[c] = sum_n h3[c, n] * aw[0, n]   (MXU, rhs transposed)
            attn_vec = lax.dot_general(h3, aw, (((1,), (1,)), ((), ())),
                                       preferred_element_type=jnp.float32)  # (192,1)

            # ---- conv4 on concat([pointfeat, broadcast(global)])
            w4a = wslice(slab_ref, "m_c4a")
            b4 = bslice(slab_ref, "m_c4a")
            w4b = wslice(slab_ref, "m_c4b")
            gvec = jnp.dot(w4b, attn_vec, preferred_element_type=jnp.float32)  # (96,1)
            h4 = relu(jnp.dot(w4a, pointfeat, preferred_element_type=jnp.float32)
                      + gvec + b4)                            # (96, N)
            h5 = relu(lin("m_c5", h4))                        # (48, N)
            h6 = relu(lin("m_c6", h5))                        # (24, N)

            # lane-dense stores: N on the 128-lane axis
            out_x_ref[b] = h6
            trans_ref[b] = trans
            tfeat_ref[b] = tfeat
            attn_ref[b] = aw

    return kernel


# -------------------------------- wrapper ------------------------------------

def pointnet_feat(x, slab, meta, *, batch_tile=None):
    """x: (B, 5, N) like the PyTorch module. Returns (out_x, trans, trans_feat, attn)."""
    b, c, n = x.shape
    assert c == 5
    bt = batch_tile if batch_tile is not None else min(b, 8)
    assert b % bt == 0
    grid = (b // bt,)

    kernel = _make_kernel(meta, bt)
    out_shape = (
        jax.ShapeDtypeStruct((b, 24, n), jnp.float32),   # per-point features (B,24,N)
        jax.ShapeDtypeStruct((b, 5, 5), jnp.float32),    # trans
        jax.ShapeDtypeStruct((b, 12, 12), jnp.float32),  # trans_feat
        jax.ShapeDtypeStruct((b, 1, n), jnp.float32),    # attn weights (lane-dense)
    )
    fn = pl.pallas_call(
        kernel,
        out_shape=out_shape,
        grid=grid,
        in_specs=[
            pl.BlockSpec((bt, 5, n), lambda i: (i, 0, 0)),
            pl.BlockSpec(slab.shape, lambda i: (0, 0)),     # packed params, one DMA
        ],
        out_specs=(
            pl.BlockSpec((bt, 24, n), lambda i: (i, 0, 0)),
            pl.BlockSpec((bt, 5, 5), lambda i: (i, 0, 0)),
            pl.BlockSpec((bt, 12, 12), lambda i: (i, 0, 0)),
            pl.BlockSpec((bt, 1, n), lambda i: (i, 0, 0)),
        ),
        compiler_params=pltpu.CompilerParams(
            dimension_semantics=("parallel",)),              # shards batch tiles on v7x
    )
    out_x, trans, trans_feat, attn_cn = fn(x.astype(jnp.float32), slab)
    # tiny glue: return attention weights in the PyTorch (B, N, 1) layout
    attn = jnp.transpose(attn_cn, (0, 2, 1))
    return out_x, trans, trans_feat, attn


# ---------------------------------- main -------------------------------------

if __name__ == "__main__":
    key = jax.random.PRNGKey(0)
    k_x, k_p = jax.random.split(key)
    B, C, N = 2, 5, 128
    x = jax.random.normal(k_x, (B, C, N), jnp.float32)
    slab, meta = build_packed_params(k_p)

    out_x, trans, trans_feat, attn_w = pointnet_feat(x, slab, meta)
    jax.block_until_ready((out_x, trans, trans_feat, attn_w))

    assert out_x.shape == (B, 24, N)
    assert trans.shape == (B, 5, 5)
    assert trans_feat.shape == (B, 12, 12)
    assert attn_w.shape == (B, N, 1)
    assert bool(jnp.all(jnp.isfinite(out_x)))
    assert bool(jnp.all(jnp.isfinite(attn_w)))
    # softmax attention weights must sum to ~1 per batch element
    s = jnp.sum(attn_w[:, :, 0], axis=1)
    assert bool(jnp.all(jnp.abs(s - 1.0) < 1e-2))
    print("KERNEL_OK")
</pallas_src>

<mosaic_0001>
module attributes {stable_mosaic.version = 11 : i64} {
  func.func @kernel(%arg0: i32, %arg1: memref<2x5x128xf32, #tpu.memory_space<vmem>>, %arg2: memref<1856x256xf32, #tpu.memory_space<vmem>>, %arg3: memref<2x24x128xf32, #tpu.memory_space<vmem>>, %arg4: memref<2x5x5xf32, #tpu.memory_space<vmem>>, %arg5: memref<2x12x12xf32, #tpu.memory_space<vmem>>, %arg6: memref<2x1x128xf32, #tpu.memory_space<vmem>>) attributes {dimension_semantics = [#tpu.dimension_semantics<parallel>], iteration_bounds = array<i64: 1>, scalar_prefetch = 0 : i64, scratch_operands = 0 : i64, tpu.core_type = #tpu.core_type<tc>, window_params = [{transform_indices = @transform_0, window_bounds = array<i64: 2, 5, 128>}, {pipeline_mode = #tpu.pipeline_mode<synchronous>, transform_indices = @transform_1, window_bounds = array<i64: 1856, 256>}, {transform_indices = @transform_2, window_bounds = array<i64: 2, 24, 128>}, {transform_indices = @transform_3, window_bounds = array<i64: 2, 5, 5>}, {transform_indices = @transform_4, window_bounds = array<i64: 2, 12, 12>}, {transform_indices = @transform_5, window_bounds = array<i64: 2, 1, 128>}]} {
    %c0 = arith.constant 0 : index
    %c0_0 = arith.constant 0 : index
    %c0_1 = arith.constant 0 : index
    %0 = vector.load %arg1[%c0, %c0_0, %c0_1] : memref<2x5x128xf32, #tpu.memory_space<vmem>>, vector<1x5x128xf32>
    %1 = vector.shape_cast %0 : vector<1x5x128xf32> to vector<5x128xf32>
    %c0_2 = arith.constant 0 : index
    %c0_3 = arith.constant 0 : index
    %2 = vector.load %arg2[%c0_2, %c0_3] : memref<1856x256xf32, #tpu.memory_space<vmem>>, vector<12x5xf32>
    %c0_4 = arith.constant 0 : index
    %c5 = arith.constant 5 : index
    %3 = vector.load %arg2[%c0_4, %c5] : memref<1856x256xf32, #tpu.memory_space<vmem>>, vector<12x1xf32>
    %cst = arith.constant dense<0.000000e+00> : vector<12x128xf32>
    %4 = tpu.matmul %2, %1, %cst {dimension_numbers = #tpu.dot_dimension_numbers<[1], [0], [0], [1], [0, 0, 1, 1], [], []>} : vector<12x5xf32>, vector<5x128xf32>, vector<12x128xf32> -> vector<12x128xf32>
    %5 = vector.broadcast %3 : vector<12x1xf32> to vector<12x128xf32>
    %6 = arith.addf %4, %5 : vector<12x128xf32>
    %cst_5 = arith.constant 0.000000e+00 : f32
    %7 = vector.broadcast %cst_5 : f32 to vector<12x128xf32>
    %8 = arith.maximumf %6, %7 : vector<12x128xf32>
    %c16 = arith.constant 16 : index
    %c0_6 = arith.constant 0 : index
    %9 = vector.load %arg2[%c16, %c0_6] : memref<1856x256xf32, #tpu.memory_space<vmem>>, vector<24x12xf32>
    %c16_7 = arith.constant 16 : index
    %c12 = arith.constant 12 : index
    %10 = vector.load %arg2[%c16_7, %c12] : memref<1856x256xf32, #tpu.memory_space<vmem>>, vector<24x1xf32>
    %cst_8 = arith.constant dense<0.000000e+00> : vector<24x128xf32>
    %11 = tpu.matmul %9, %8, %cst_8 {dimension_numbers = #tpu.dot_dimension_numbers<[1], [0], [0], [1], [0, 0, 1, 1], [], []>} : vector<24x12xf32>, vector<12x128xf32>, vector<24x128xf32> -> vector<24x128xf32>
    %12 = vector.broadcast %10 : vector<24x1xf32> to vector<24x128xf32>
    %13 = arith.addf %11, %12 : vector<24x128xf32>
    %cst_9 = arith.constant 0.000000e+00 : f32
    %14 = vector.broadcast %cst_9 : f32 to vector<24x128xf32>
    %15 = arith.maximumf %13, %14 : vector<24x128xf32>
    %c40 = arith.constant 40 : index
    %c0_10 = arith.constant 0 : index
    %16 = vector.load %arg2[%c40, %c0_10] : memref<1856x256xf32, #tpu.memory_space<vmem>>, vector<192x24xf32>
    %c40_11 = arith.constant 40 : index
    %c24 = arith.constant 24 : index
    %17 = vector.load %arg2[%c40_11, %c24] : memref<1856x256xf32, #tpu.memory_space<vmem>>, vector<192x1xf32>
    %cst_12 = arith.constant dense<0.000000e+00> : vector<192x128xf32>
    %18 = tpu.matmul %16, %15, %cst_12 {dimension_numbers = #tpu.dot_dimension_numbers<[1], [0], [0], [1], [0, 0, 1, 1], [], []>} : vector<192x24xf32>, vector<24x128xf32>, vector<192x128xf32> -> vector<192x128xf32>
    %19 = vector.broadcast %17 : vector<192x1xf32> to vector<192x128xf32>
    %20 = arith.addf %18, %19 : vector<192x128xf32>
    %cst_13 = arith.constant 0.000000e+00 : f32
    %21 = vector.broadcast %cst_13 : f32 to vector<192x128xf32>
    %22 = arith.maximumf %20, %21 : vector<192x128xf32>
    %cst_14 = arith.constant dense<0xFF800000> : vector<192xf32>
    %23 = vector.multi_reduction <maximumf>, %22, %cst_14 [1] : vector<192x128xf32> to vector<192xf32>
    %24 = vector.shape_cast %23 : vector<192xf32> to vector<192x1xf32>
    %c232 = arith.constant 232 : index
    %c0_15 = arith.constant 0 : index
    %25 = vector.load %arg2[%c232, %c0_15] : memref<1856x256xf32, #tpu.memory_space<vmem>>, vector<96x192xf32>
    %c232_16 = arith.constant 232 : index
    %c192 = arith.constant 192 : index
    %26 = vector.load %arg2[%c232_16, %c192] : memref<1856x256xf32, #tpu.memory_space<vmem>>, vector<96x1xf32>
    %cst_17 = arith.constant dense<0.000000e+00> : vector<96x1xf32>
    %27 = tpu.matmul %25, %24, %cst_17 {dimension_numbers = #tpu.dot_dimension_numbers<[1], [0], [0], [1], [0, 0, 1, 1], [], []>} : vector<96x192xf32>, vector<192x1xf32>, vector<96x1xf32> -> vector<96x1xf32>
    %28 = arith.addf %27, %26 : vector<96x1xf32>
    %cst_18 = arith.constant 0.000000e+00 : f32
    %29 = vector.broadcast %cst_18 : f32 to vector<96x1xf32>
    %30 = arith.maximumf %28, %29 : vector<96x1xf32>
    %c328 = arith.constant 328 : index
    %c0_19 = arith.constant 0 : index
    %31 = vector.load %arg2[%c328, %c0_19] : memref<1856x256xf32, #tpu.memory_space<vmem>>, vector<48x96xf32>
    %c328_20 = arith.constant 328 : index
    %c96 = arith.constant 96 : index
    %32 = vector.load %arg2[%c328_20, %c96] : memref<1856x256xf32, #tpu.memory_space<vmem>>, vector<48x1xf32>
    %cst_21 = arith.constant dense<0.000000e+00> : vector<48x1xf32>
    %33 = tpu.matmul %31, %30, %cst_21 {dimension_numbers = #tpu.dot_dimension_numbers<[1], [0], [0], [1], [0, 0, 1, 1], [], []>} : vector<48x96xf32>, vector<96x1xf32>, vector<48x1xf32> -> vector<48x1xf32>
    %34 = arith.addf %33, %32 : vector<48x1xf32>
    %cst_22 = arith.constant 0.000000e+00 : f32
    %35 = vector.broadcast %cst_22 : f32 to vector<48x1xf32>
    %36 = arith.maximumf %34, %35 : vector<48x1xf32>
    %c376 = arith.constant 376 : index
    %c0_23 = arith.constant 0 : index
    %37 = vector.load %arg2[%c376, %c0_23] : memref<1856x256xf32, #tpu.memory_space<vmem>>, vector<25x48xf32>
    %c376_24 = arith.constant 376 : index
    %c48 = arith.constant 48 : index
    %38 = vector.load %arg2[%c376_24, %c48] : memref<1856x256xf32, #tpu.memory_space<vmem>>, vector<25x1xf32>
    %cst_25 = arith.constant dense<0.000000e+00> : vector<25x1xf32>
    %39 = tpu.matmul %37, %36, %cst_25 {dimension_numbers = #tpu.dot_dimension_numbers<[1], [0], [0], [1], [0, 0, 1, 1], [], []>} : vector<25x48xf32>, vector<48x1xf32>, vector<25x1xf32> -> vector<25x1xf32>
    %40 = arith.addf %39, %38 : vector<25x1xf32>
    %c408 = arith.constant 408 : index
    %c0_26 = arith.constant 0 : index
    %41 = vector.load %arg2[%c408, %c0_26] : memref<1856x256xf32, #tpu.memory_space<vmem>>, vector<5x25xf32>
    %c416 = arith.constant 416 : index
    %c0_27 = arith.constant 0 : index
    %42 = vector.load %arg2[%c416, %c0_27] : memref<1856x256xf32, #tpu.memory_space<vmem>>, vector<25x5xf32>
    %c448 = arith.constant 448 : index
    %c0_28 = arith.constant 0 : index
    %43 = vector.load %arg2[%c448, %c0_28] : memref<1856x256xf32, #tpu.memory_space<vmem>>, vector<5x25xf32>
    %c456 = arith.constant 456 : index
    %c0_29 = arith.constant 0 : index
    %44 = vector.load %arg2[%c456, %c0_29] : memref<1856x256xf32, #tpu.memory_space<vmem>>, vector<25x5xf32>
    %c488 = arith.constant 488 : index
    %c0_30 = arith.constant 0 : index
    %45 = vector.load %arg2[%c488, %c0_30] : memref<1856x256xf32, #tpu.memory_space<vmem>>, vector<5x5xf32>
    %46 = vector.broadcast %40 : vector<25x1xf32> to vector<25x5xf32>
    %47 = arith.mulf %46, %42 : vector<25x5xf32>
    %cst_31 = arith.constant dense<0.000000e+00> : vector<5x5xf32>
    %48 = tpu.matmul %41, %47, %cst_31 {dimension_numbers = #tpu.dot_dimension_numbers<[1], [0], [0], [1], [0, 0, 1, 1], [], []>} : vector<5x25xf32>, vector<25x5xf32>, vector<5x5xf32> -> vector<5x5xf32>
    %49 = arith.addf %48, %45 : vector<5x5xf32>
    %50 = vector.broadcast %40 : vector<25x1xf32> to vector<25x5xf32>
    %51 = arith.mulf %50, %44 : vector<25x5xf32>
    %cst_32 = arith.constant dense<0.000000e+00> : vector<5x5xf32>
    %52 = tpu.matmul %43, %51, %cst_32 {dimension_numbers = #tpu.dot_dimension_numbers<[1], [0], [0], [1], [0, 0, 1, 1], [], []>} : vector<5x25xf32>, vector<25x5xf32>, vector<5x5xf32> -> vector<5x5xf32>
    %53 = arith.addf %52, %45 : vector<5x5xf32>
    %cst_33 = arith.constant dense<0.000000e+00> : vector<5x128xf32>
    %54 = tpu.matmul %53, %1, %cst_33 {dimension_numbers = #tpu.dot_dimension_numbers<[1], [0], [0], [1], [0, 0, 1, 1], [], []>} : vector<5x5xf32>, vector<5x128xf32>, vector<5x128xf32> -> vector<5x128xf32>
    %c1352 = arith.constant 1352 : index
    %c0_34 = arith.constant 0 : index
    %55 = vector.load %arg2[%c1352, %c0_34] : memref<1856x256xf32, #tpu.memory_space<vmem>>, vector<12x5xf32>
    %c1352_35 = arith.constant 1352 : index
    %c5_36 = arith.constant 5 : index
    %56 = vector.load %arg2[%c1352_35, %c5_36] : memref<1856x256xf32, #tpu.memory_space<vmem>>, vector<12x1xf32>
    %cst_37 = arith.constant dense<0.000000e+00> : vector<12x128xf32>
    %57 = tpu.matmul %55, %54, %cst_37 {dimension_numbers = #tpu.dot_dimension_numbers<[1], [0], [0], [1], [0, 0, 1, 1], [], []>} : vector<12x5xf32>, vector<5x128xf32>, vector<12x128xf32> -> vector<12x128xf32>
    %58 = vector.broadcast %56 : vector<12x1xf32> to vector<12x128xf32>
    %59 = arith.addf %57, %58 : vector<12x128xf32>
    %cst_38 = arith.constant 0.000000e+00 : f32
    %60 = vector.broadcast %cst_38 : f32 to vector<12x128xf32>
    %61 = arith.maximumf %59, %60 : vector<12x128xf32>
    %c496 = arith.constant 496 : index
    %c0_39 = arith.constant 0 : index
    %62 = vector.load %arg2[%c496, %c0_39] : memref<1856x256xf32, #tpu.memory_space<vmem>>, vector<12x12xf32>
    %c496_40 = arith.constant 496 : index
    %c12_41 = arith.constant 12 : index
    %63 = vector.load %arg2[%c496_40, %c12_41] : memref<1856x256xf32, #tpu.memory_space<vmem>>, vector<12x1xf32>
    %cst_42 = arith.constant dense<0.000000e+00> : vector<12x128xf32>
    %64 = tpu.matmul %62, %61, %cst_42 {dimension_numbers = #tpu.dot_dimension_numbers<[1], [0], [0], [1], [0, 0, 1, 1], [], []>} : vector<12x12xf32>, vector<12x128xf32>, vector<12x128xf32> -> vector<12x128xf32>
    %65 = vector.broadcast %63 : vector<12x1xf32> to vector<12x128xf32>
    %66 = arith.addf %64, %65 : vector<12x128xf32>
    %cst_43 = arith.constant 0.000000e+00 : f32
    %67 = vector.broadcast %cst_43 : f32 to vector<12x128xf32>
    %68 = arith.maximumf %66, %67 : vector<12x128xf32>
    %c512 = arith.constant 512 : index
    %c0_44 = arith.constant 0 : index
    %69 = vector.load %arg2[%c512, %c0_44] : memref<1856x256xf32, #tpu.memory_space<vmem>>, vector<24x12xf32>
    %c512_45 = arith.constant 512 : index
    %c12_46 = arith.constant 12 : index
    %70 = vector.load %arg2[%c512_45, %c12_46] : memref<1856x256xf32, #tpu.memory_space<vmem>>, vector<24x1xf32>
    %cst_47 = arith.constant dense<0.000000e+00> : vector<24x128xf32>
    %71 = tpu.matmul %69, %68, %cst_47 {dimension_numbers = #tpu.dot_dimension_numbers<[1], [0], [0], [1], [0, 0, 1, 1], [], []>} : vector<24x12xf32>, vector<12x128xf32>, vector<24x128xf32> -> vector<24x128xf32>
    %72 = vector.broadcast %70 : vector<24x1xf32> to vector<24x128xf32>
    %73 = arith.addf %71, %72 : vector<24x128xf32>
    %cst_48 = arith.constant 0.000000e+00 : f32
    %74 = vector.broadcast %cst_48 : f32 to vector<24x128xf32>
    %75 = arith.maximumf %73, %74 : vector<24x128xf32>
    %c536 = arith.constant 536 : index
    %c0_49 = arith.constant 0 : index
    %76 = vector.load %arg2[%c536, %c0_49] : memref<1856x256xf32, #tpu.memory_space<vmem>>, vector<192x24xf32>
    %c536_50 = arith.constant 536 : index
    %c24_51 = arith.constant 24 : index
    %77 = vector.load %arg2[%c536_50, %c24_51] : memref<1856x256xf32, #tpu.memory_space<vmem>>, vector<192x1xf32>
    %cst_52 = arith.constant dense<0.000000e+00> : vector<192x128xf32>
    %78 = tpu.matmul %76, %75, %cst_52 {dimension_numbers = #tpu.dot_dimension_numbers<[1], [0], [0], [1], [0, 0, 1, 1], [], []>} : vector<192x24xf32>, vector<24x128xf32>, vector<192x128xf32> -> vector<192x128xf32>
    %79 = vector.broadcast %77 : vector<192x1xf32> to vector<192x128xf32>
    %80 = arith.addf %78, %79 : vector<192x128xf32>
    %cst_53 = arith.constant 0.000000e+00 : f32
    %81 = vector.broadcast %cst_53 : f32 to vector<192x128xf32>
    %82 = arith.maximumf %80, %81 : vector<192x128xf32>
    %cst_54 = arith.constant dense<0xFF800000> : vector<192xf32>
    %83 = vector.multi_reduction <maximumf>, %82, %cst_54 [1] : vector<192x128xf32> to vector<192xf32>
    %84 = vector.shape_cast %83 : vector<192xf32> to vector<192x1xf32>
    %c728 = arith.constant 728 : index
    %c0_55 = arith.constant 0 : index
    %85 = vector.load %arg2[%c728, %c0_55] : memref<1856x256xf32, #tpu.memory_space<vmem>>, vector<96x192xf32>
    %c728_56 = arith.constant 728 : index
    %c192_57 = arith.constant 192 : index
    %86 = vector.load %arg2[%c728_56, %c192_57] : memref<1856x256xf32, #tpu.memory_space<vmem>>, vector<96x1xf32>
    %cst_58 = arith.constant dense<0.000000e+00> : vector<96x1xf32>
    %87 = tpu.matmul %85, %84, %cst_58 {dimension_numbers = #tpu.dot_dimension_numbers<[1], [0], [0], [1], [0, 0, 1, 1], [], []>} : vector<96x192xf32>, vector<192x1xf32>, vector<96x1xf32> -> vector<96x1xf32>
    %88 = arith.addf %87, %86 : vector<96x1xf32>
    %cst_59 = arith.constant 0.000000e+00 : f32
    %89 = vector.broadcast %cst_59 : f32 to vector<96x1xf32>
    %90 = arith.maximumf %88, %89 : vector<96x1xf32>
    %c824 = arith.constant 824 : index
    %c0_60 = arith.constant 0 : index
    %91 = vector.load %arg2[%c824, %c0_60] : memref<1856x256xf32, #tpu.memory_space<vmem>>, vector<48x96xf32>
    %c824_61 = arith.constant 824 : index
    %c96_62 = arith.constant 96 : index
    %92 = vector.load %arg2[%c824_61, %c96_62] : memref<1856x256xf32, #tpu.memory_space<vmem>>, vector<48x1xf32>
    %cst_63 = arith.constant dense<0.000000e+00> : vector<48x1xf32>
    %93 = tpu.matmul %91, %90, %cst_63 {dimension_numbers = #tpu.dot_dimension_numbers<[1], [0], [0], [1], [0, 0, 1, 1], [], []>} : vector<48x96xf32>, vector<96x1xf32>, vector<48x1xf32> -> vector<48x1xf32>
    %94 = arith.addf %93, %92 : vector<48x1xf32>
    %cst_64 = arith.constant 0.000000e+00 : f32
    %95 = vector.broadcast %cst_64 : f32 to vector<48x1xf32>
    %96 = arith.maximumf %94, %95 : vector<48x1xf32>
    %c872 = arith.constant 872 : index
    %c0_65 = arith.constant 0 : index
    %97 = vector.load %arg2[%c872, %c0_65] : memref<1856x256xf32, #tpu.memory_space<vmem>>, vector<144x48xf32>
    %c872_66 = arith.constant 872 : index
    %c48_67 = arith.constant 48 : index
    %98 = vector.load %arg2[%c872_66, %c48_67] : memref<1856x256xf32, #tpu.memory_space<vmem>>, vector<144x1xf32>
    %cst_68 = arith.constant dense<0.000000e+00> : vector<144x1xf32>
    %99 = tpu.matmul %97, %96, %cst_68 {dimension_numbers = #tpu.dot_dimension_numbers<[1], [0], [0], [1], [0, 0, 1, 1], [], []>} : vector<144x48xf32>, vector<48x1xf32>, vector<144x1xf32> -> vector<144x1xf32>
    %100 = arith.addf %99, %98 : vector<144x1xf32>
    %c1016 = arith.constant 1016 : index
    %c0_69 = arith.constant 0 : index
    %101 = vector.load %arg2[%c1016, %c0_69] : memref<1856x256xf32, #tpu.memory_space<vmem>>, vector<12x144xf32>
    %c1032 = arith.constant 1032 : index
    %c0_70 = arith.constant 0 : index
    %102 = vector.load %arg2[%c1032, %c0_70] : memref<1856x256xf32, #tpu.memory_space<vmem>>, vector<144x12xf32>
    %c1176 = arith.constant 1176 : index
    %c0_71 = arith.constant 0 : index
    %103 = vector.load %arg2[%c1176, %c0_71] : memref<1856x256xf32, #tpu.memory_space<vmem>>, vector<12x144xf32>
    %c1192 = arith.constant 1192 : index
    %c0_72 = arith.constant 0 : index
    %104 = vector.load %arg2[%c1192, %c0_72] : memref<1856x256xf32, #tpu.memory_space<vmem>>, vector<144x12xf32>
    %c1336 = arith.constant 1336 : index
    %c0_73 = arith.constant 0 : index
    %105 = vector.load %arg2[%c1336, %c0_73] : memref<1856x256xf32, #tpu.memory_space<vmem>>, vector<12x12xf32>
    %106 = vector.broadcast %100 : vector<144x1xf32> to vector<144x12xf32>
    %107 = arith.mulf %106, %102 : vector<144x12xf32>
    %cst_74 = arith.constant dense<0.000000e+00> : vector<12x12xf32>
    %108 = tpu.matmul %101, %107, %cst_74 {dimension_numbers = #tpu.dot_dimension_numbers<[1], [0], [0], [1], [0, 0, 1, 1], [], []>} : vector<12x144xf32>, vector<144x12xf32>, vector<12x12xf32> -> vector<12x12xf32>
    %109 = arith.addf %108, %105 : vector<12x12xf32>
    %110 = vector.broadcast %100 : vector<144x1xf32> to vector<144x12xf32>
    %111 = arith.mulf %110, %104 : vector<144x12xf32>
    %cst_75 = arith.constant dense<0.000000e+00> : vector<12x12xf32>
    %112 = tpu.matmul %103, %111, %cst_75 {dimension_numbers = #tpu.dot_dimension_numbers<[1], [0], [0], [1], [0, 0, 1, 1], [], []>} : vector<12x144xf32>, vector<144x12xf32>, vector<12x12xf32> -> vector<12x12xf32>
    %113 = arith.addf %112, %105 : vector<12x12xf32>
    %cst_76 = arith.constant dense<0.000000e+00> : vector<12x128xf32>
    %114 = tpu.matmul %113, %61, %cst_76 {dimension_numbers = #tpu.dot_dimension_numbers<[1], [0], [0], [1], [0, 0, 1, 1], [], []>} : vector<12x12xf32>, vector<12x128xf32>, vector<12x128xf32> -> vector<12x128xf32>
    %c1368 = arith.constant 1368 : index
    %c0_77 = arith.constant 0 : index
    %115 = vector.load %arg2[%c1368, %c0_77] : memref<1856x256xf32, #tpu.memory_space<vmem>>, vector<24x12xf32>
    %c1368_78 = arith.constant 1368 : index
    %c12_79 = arith.constant 12 : index
    %116 = vector.load %arg2[%c1368_78, %c12_79] : memref<1856x256xf32, #tpu.memory_space<vmem>>, vector<24x1xf32>
    %cst_80 = arith.constant dense<0.000000e+00> : vector<24x128xf32>
    %117 = tpu.matmul %115, %114, %cst_80 {dimension_numbers = #tpu.dot_dimension_numbers<[1], [0], [0], [1], [0, 0, 1, 1], [], []>} : vector<24x12xf32>, vector<12x128xf32>, vector<24x128xf32> -> vector<24x128xf32>
    %118 = vector.broadcast %116 : vector<24x1xf32> to vector<24x128xf32>
    %119 = arith.addf %117, %118 : vector<24x128xf32>
    %cst_81 = arith.constant 0.000000e+00 : f32
    %120 = vector.broadcast %cst_81 : f32 to vector<24x128xf32>
    %121 = arith.maximumf %119, %120 : vector<24x128xf32>
    %c1392 = arith.constant 1392 : index
    %c0_82 = arith.constant 0 : index
    %122 = vector.load %arg2[%c1392, %c0_82] : memref<1856x256xf32, #tpu.memory_space<vmem>>, vector<192x24xf32>
    %c1392_83 = arith.constant 1392 : index
    %c24_84 = arith.constant 24 : index
    %123 = vector.load %arg2[%c1392_83, %c24_84] : memref<1856x256xf32, #tpu.memory_space<vmem>>, vector<192x1xf32>
    %cst_85 = arith.constant dense<0.000000e+00> : vector<192x128xf32>
    %124 = tpu.matmul %122, %121, %cst_85 {dimension_numbers = #tpu.dot_dimension_numbers<[1], [0], [0], [1], [0, 0, 1, 1], [], []>} : vector<192x24xf32>, vector<24x128xf32>, vector<192x128xf32> -> vector<192x128xf32>
    %125 = vector.broadcast %123 : vector<192x1xf32> to vector<192x128xf32>
    %126 = arith.addf %124, %125 : vector<192x128xf32>
    %c1848 = arith.constant 1848 : index
    %c0_86 = arith.constant 0 : index
    %127 = vector.load %arg2[%c1848, %c0_86] : memref<1856x256xf32, #tpu.memory_space<vmem>>, vector<1x192xf32>
    %c1848_87 = arith.constant 1848 : index
    %c192_88 = arith.constant 192 : index
    %128 = vector.load %arg2[%c1848_87, %c192_88] : memref<1856x256xf32, #tpu.memory_space<vmem>>, vector<1x1xf32>
    %cst_89 = arith.constant dense<0.000000e+00> : vector<1x128xf32>
    %129 = tpu.matmul %127, %126, %cst_89 {dimension_numbers = #tpu.dot_dimension_numbers<[1], [0], [0], [1], [0, 0, 1, 1], [], []>} : vector<1x192xf32>, vector<192x128xf32>, vector<1x128xf32> -> vector<1x128xf32>
    %130 = vector.broadcast %128 : vector<1x1xf32> to vector<1x128xf32>
    %131 = arith.addf %129, %130 : vector<1x128xf32>
    %cst_90 = arith.constant dense<0xFF800000> : vector<1xf32>
    %132 = vector.multi_reduction <maximumf>, %131, %cst_90 [1] : vector<1x128xf32> to vector<1xf32>
    %133 = vector.shape_cast %132 : vector<1xf32> to vector<1x1xf32>
    %134 = vector.broadcast %133 : vector<1x1xf32> to vector<1x128xf32>
    %135 = arith.subf %131, %134 : vector<1x128xf32>
    %136 = math.exp %135 : vector<1x128xf32>
    %cst_91 = arith.constant dense<0.000000e+00> : vector<1xf32>
    %137 = vector.multi_reduction <add>, %136, %cst_91 [1] : vector<1x128xf32> to vector<1xf32>
    %138 = vector.shape_cast %137 : vector<1xf32> to vector<1x1xf32>
    %139 = tpu.reciprocal %138 {approx = true} : vector<1x1xf32> -> vector<1x1xf32>
    %140 = vector.broadcast %139 : vector<1x1xf32> to vector<1x128xf32>
    %141 = arith.mulf %136, %140 : vector<1x128xf32>
    %cst_92 = arith.constant dense<0.000000e+00> : vector<192x1xf32>
    %142 = tpu.matmul %126, %141, %cst_92 {dimension_numbers = #tpu.dot_dimension_numbers<[1], [1], [0], [0], [0, 0, 1, 0], [], []>} : vector<192x128xf32>, vector<1x128xf32>, vector<192x1xf32> -> vector<192x1xf32>
    %c1584 = arith.constant 1584 : index
    %c0_93 = arith.constant 0 : index
    %143 = vector.load %arg2[%c1584, %c0_93] : memref<1856x256xf32, #tpu.memory_space<vmem>>, vector<96x12xf32>
    %c1584_94 = arith.constant 1584 : index
    %c12_95 = arith.constant 12 : index
    %144 = vector.load %arg2[%c1584_94, %c12_95] : memref<1856x256xf32, #tpu.memory_space<vmem>>, vector<96x1xf32>
    %c1680 = arith.constant 1680 : index
    %c0_96 = arith.constant 0 : index
    %145 = vector.load %arg2[%c1680, %c0_96] : memref<1856x256xf32, #tpu.memory_space<vmem>>, vector<96x192xf32>
    %cst_97 = arith.constant dense<0.000000e+00> : vector<96x1xf32>
    %146 = tpu.matmul %145, %142, %cst_97 {dimension_numbers = #tpu.dot_dimension_numbers<[1], [0], [0], [1], [0, 0, 1, 1], [], []>} : vector<96x192xf32>, vector<192x1xf32>, vector<96x1xf32> -> vector<96x1xf32>
    %cst_98 = arith.constant dense<0.000000e+00> : vector<96x128xf32>
    %147 = tpu.matmul %143, %114, %cst_98 {dimension_numbers = #tpu.dot_dimension_numbers<[1], [0], [0], [1], [0, 0, 1, 1], [], []>} : vector<96x12xf32>, vector<12x128xf32>, vector<96x128xf32> -> vector<96x128xf32>
    %148 = vector.broadcast %146 : vector<96x1xf32> to vector<96x128xf32>
    %149 = arith.addf %147, %148 : vector<96x128xf32>
    %150 = vector.broadcast %144 : vector<96x1xf32> to vector<96x128xf32>
    %151 = arith.addf %149, %150 : vector<96x128xf32>
    %cst_99 = arith.constant 0.000000e+00 : f32
    %152 = vector.broadcast %cst_99 : f32 to vector<96x128xf32>
    %153 = arith.maximumf %151, %152 : vector<96x128xf32>
    %c1776 = arith.constant 1776 : index
    %c0_100 = arith.constant 0 : index
    %154 = vector.load %arg2[%c1776, %c0_100] : memref<1856x256xf32, #tpu.memory_space<vmem>>, vector<48x96xf32>
    %c1776_101 = arith.constant 1776 : index
    %c96_102 = arith.constant 96 : index
    %155 = vector.load %arg2[%c1776_101, %c96_102] : memref<1856x256xf32, #tpu.memory_space<vmem>>, vector<48x1xf32>
    %cst_103 = arith.constant dense<0.000000e+00> : vector<48x128xf32>
    %156 = tpu.matmul %154, %153, %cst_103 {dimension_numbers = #tpu.dot_dimension_numbers<[1], [0], [0], [1], [0, 0, 1, 1], [], []>} : vector<48x96xf32>, vector<96x128xf32>, vector<48x128xf32> -> vector<48x128xf32>
    %157 = vector.broadcast %155 : vector<48x1xf32> to vector<48x128xf32>
    %158 = arith.addf %156, %157 : vector<48x128xf32>
    %cst_104 = arith.constant 0.000000e+00 : f32
    %159 = vector.broadcast %cst_104 : f32 to vector<48x128xf32>
    %160 = arith.maximumf %158, %159 : vector<48x128xf32>
    %c1824 = arith.constant 1824 : index
    %c0_105 = arith.constant 0 : index
    %161 = vector.load %arg2[%c1824, %c0_105] : memref<1856x256xf32, #tpu.memory_space<vmem>>, vector<24x48xf32>
    %c1824_106 = arith.constant 1824 : index
    %c48_107 = arith.constant 48 : index
    %162 = vector.load %arg2[%c1824_106, %c48_107] : memref<1856x256xf32, #tpu.memory_space<vmem>>, vector<24x1xf32>
    %cst_108 = arith.constant dense<0.000000e+00> : vector<24x128xf32>
    %163 = tpu.matmul %161, %160, %cst_108 {dimension_numbers = #tpu.dot_dimension_numbers<[1], [0], [0], [1], [0, 0, 1, 1], [], []>} : vector<24x48xf32>, vector<48x128xf32>, vector<24x128xf32> -> vector<24x128xf32>
    %164 = vector.broadcast %162 : vector<24x1xf32> to vector<24x128xf32>
    %165 = arith.addf %163, %164 : vector<24x128xf32>
    %cst_109 = arith.constant 0.000000e+00 : f32
    %166 = vector.broadcast %cst_109 : f32 to vector<24x128xf32>
    %167 = arith.maximumf %165, %166 : vector<24x128xf32>
    %c0_110 = arith.constant 0 : index
    %c0_111 = arith.constant 0 : index
    %c0_112 = arith.constant 0 : index
    %168 = vector.load %arg3[%c0_110, %c0_111, %c0_112] : memref<2x24x128xf32, #tpu.memory_space<vmem>>, vector<1x24x128xf32>
    %169 = vector.shape_cast %168 : vector<1x24x128xf32> to vector<24x128xf32>
    %170 = vector.shape_cast %167 : vector<24x128xf32> to vector<1x24x128xf32>
    tpu.vector_store %arg3[%c0_110, %c0_111, %c0_112], %170 {strides = array<i32>} : memref<2x24x128xf32, #tpu.memory_space<vmem>>, vector<1x24x128xf32>,
    %c0_113 = arith.constant 0 : index
    %c0_114 = arith.constant 0 : index
    %c0_115 = arith.constant 0 : index
    %171 = vector.load %arg4[%c0_113, %c0_114, %c0_115] : memref<2x5x5xf32, #tpu.memory_space<vmem>>, vector<1x5x5xf32>
    %172 = vector.shape_cast %171 : vector<1x5x5xf32> to vector<5x5xf32>
    %173 = vector.shape_cast %49 : vector<5x5xf32> to vector<1x5x5xf32>
    tpu.vector_store %arg4[%c0_113, %c0_114, %c0_115], %173 {strides = array<i32>} : memref<2x5x5xf32, #tpu.memory_space<vmem>>, vector<1x5x5xf32>,
    %c0_116 = arith.constant 0 : index
    %c0_117 = arith.constant 0 : index
    %c0_118 = arith.constant 0 : index
    %174 = vector.load %arg5[%c0_116, %c0_117, %c0_118] : memref<2x12x12xf32, #tpu.memory_space<vmem>>, vector<1x12x12xf32>
    %175 = vector.shape_cast %174 : vector<1x12x12xf32> to vector<12x12xf32>
    %176 = vector.shape_cast %109 : vector<12x12xf32> to vector<1x12x12xf32>
    tpu.vector_store %arg5[%c0_116, %c0_117, %c0_118], %176 {strides = array<i32>} : memref<2x12x12xf32, #tpu.memory_space<vmem>>, vector<1x12x12xf32>,
    %c0_119 = arith.constant 0 : index
    %c0_120 = arith.constant 0 : index
    %c0_121 = arith.constant 0 : index
    %177 = vector.load %arg6[%c0_119, %c0_120, %c0_121] : memref<2x1x128xf32, #tpu.memory_space<vmem>>, vector<1x1x128xf32>
    %178 = vector.shape_cast %177 : vector<1x1x128xf32> to vector<1x128xf32>
    %179 = vector.shape_cast %141 : vector<1x128xf32> to vector<1x1x128xf32>
    tpu.vector_store %arg6[%c0_119, %c0_120, %c0_121], %179 {strides = array<i32>} : memref<2x1x128xf32, #tpu.memory_space<vmem>>, vector<1x1x128xf32>,
    %c1 = arith.constant 1 : index
    %c0_122 = arith.constant 0 : index
    %c0_123 = arith.constant 0 : index
    %180 = vector.load %arg1[%c1, %c0_122, %c0_123] : memref<2x5x128xf32, #tpu.memory_space<vmem>>, vector<1x5x128xf32>
    %181 = vector.shape_cast %180 : vector<1x5x128xf32> to vector<5x128xf32>
    %c0_124 = arith.constant 0 : index
    %c0_125 = arith.constant 0 : index
    %182 = vector.load %arg2[%c0_124, %c0_125] : memref<1856x256xf32, #tpu.memory_space<vmem>>, vector<12x5xf32>
    %c0_126 = arith.constant 0 : index
    %c5_127 = arith.constant 5 : index
    %183 = vector.load %arg2[%c0_126, %c5_127] : memref<1856x256xf32, #tpu.memory_space<vmem>>, vector<12x1xf32>
    %cst_128 = arith.constant dense<0.000000e+00> : vector<12x128xf32>
    %184 = tpu.matmul %182, %181, %cst_128 {dimension_numbers = #tpu.dot_dimension_numbers<[1], [0], [0], [1], [0, 0, 1, 1], [], []>} : vector<12x5xf32>, vector<5x128xf32>, vector<12x128xf32> -> vector<12x128xf32>
    %185 = vector.broadcast %183 : vector<12x1xf32> to vector<12x128xf32>
    %186 = arith.addf %184, %185 : vector<12x128xf32>
    %cst_129 = arith.constant 0.000000e+00 : f32
    %187 = vector.broadcast %cst_129 : f32 to vector<12x128xf32>
    %188 = arith.maximumf %186, %187 : vector<12x128xf32>
    %c16_130 = arith.constant 16 : index
    %c0_131 = arith.constant 0 : index
    %189 = vector.load %arg2[%c16_130, %c0_131] : memref<1856x256xf32, #tpu.memory_space<vmem>>, vector<24x12xf32>
    %c16_132 = arith.constant 16 : index
    %c12_133 = arith.constant 12 : index
    %190 = vector.load %arg2[%c16_132, %c12_133] : memref<1856x256xf32, #tpu.memory_space<vmem>>, vector<24x1xf32>
    %cst_134 = arith.constant dense<0.000000e+00> : vector<24x128xf32>
    %191 = tpu.matmul %189, %188, %cst_134 {dimension_numbers = #tpu.dot_dimension_numbers<[1], [0], [0], [1], [0, 0, 1, 1], [], []>} : vector<24x12xf32>, vector<12x128xf32>, vector<24x128xf32> -> vector<24x128xf32>
    %192 = vector.broadcast %190 : vector<24x1xf32> to vector<24x128xf32>
    %193 = arith.addf %191, %192 : vector<24x128xf32>
    %cst_135 = arith.constant 0.000000e+00 : f32
    %194 = vector.broadcast %cst_135 : f32 to vector<24x128xf32>
    %195 = arith.maximumf %193, %194 : vector<24x128xf32>
    %c40_136 = arith.constant 40 : index
    %c0_137 = arith.constant 0 : index
    %196 = vector.load %arg2[%c40_136, %c0_137] : memref<1856x256xf32, #tpu.memory_space<vmem>>, vector<192x24xf32>
    %c40_138 = arith.constant 40 : index
    %c24_139 = arith.constant 24 : index
    %197 = vector.load %arg2[%c40_138, %c24_139] : memref<1856x256xf32, #tpu.memory_space<vmem>>, vector<192x1xf32>
    %cst_140 = arith.constant dense<0.000000e+00> : vector<192x128xf32>
    %198 = tpu.matmul %196, %195, %cst_140 {dimension_numbers = #tpu.dot_dimension_numbers<[1], [0], [0], [1], [0, 0, 1, 1], [], []>} : vector<192x24xf32>, vector<24x128xf32>, vector<192x128xf32> -> vector<192x128xf32>
    %199 = vector.broadcast %197 : vector<192x1xf32> to vector<192x128xf32>
    %200 = arith.addf %198, %199 : vector<192x128xf32>
    %cst_141 = arith.constant 0.000000e+00 : f32
    %201 = vector.broadcast %cst_141 : f32 to vector<192x128xf32>
    %202 = arith.maximumf %200, %201 : vector<192x128xf32>
    %cst_142 = arith.constant dense<0xFF800000> : vector<192xf32>
    %203 = vector.multi_reduction <maximumf>, %202, %cst_142 [1] : vector<192x128xf32> to vector<192xf32>
    %204 = vector.shape_cast %203 : vector<192xf32> to vector<192x1xf32>
    %c232_143 = arith.constant 232 : index
    %c0_144 = arith.constant 0 : index
    %205 = vector.load %arg2[%c232_143, %c0_144] : memref<1856x256xf32, #tpu.memory_space<vmem>>, vector<96x192xf32>
    %c232_145 = arith.constant 232 : index
    %c192_146 = arith.constant 192 : index
    %206 = vector.load %arg2[%c232_145, %c192_146] : memref<1856x256xf32, #tpu.memory_space<vmem>>, vector<96x1xf32>
    %cst_147 = arith.constant dense<0.000000e+00> : vector<96x1xf32>
    %207 = tpu.matmul %205, %204, %cst_147 {dimension_numbers = #tpu.dot_dimension_numbers<[1], [0], [0], [1], [0, 0, 1, 1], [], []>} : vector<96x192xf32>, vector<192x1xf32>, vector<96x1xf32> -> vector<96x1xf32>
    %208 = arith.addf %207, %206 : vector<96x1xf32>
    %cst_148 = arith.constant 0.000000e+00 : f32
    %209 = vector.broadcast %cst_148 : f32 to vector<96x1xf32>
    %210 = arith.maximumf %208, %209 : vector<96x1xf32>
    %c328_149 = arith.constant 328 : index
    %c0_150 = arith.constant 0 : index
    %211 = vector.load %arg2[%c328_149, %c0_150] : memref<1856x256xf32, #tpu.memory_space<vmem>>, vector<48x96xf32>
    %c328_151 = arith.constant 328 : index
    %c96_152 = arith.constant 96 : index
    %212 = vector.load %arg2[%c328_151, %c96_152] : memref<1856x256xf32, #tpu.memory_space<vmem>>, vector<48x1xf32>
    %cst_153 = arith.constant dense<0.000000e+00> : vector<48x1xf32>
    %213 = tpu.matmul %211, %210, %cst_153 {dimension_numbers = #tpu.dot_dimension_numbers<[1], [0], [0], [1], [0, 0, 1, 1], [], []>} : vector<48x96xf32>, vector<96x1xf32>, vector<48x1xf32> -> vector<48x1xf32>
    %214 = arith.addf %213, %212 : vector<48x1xf32>
    %cst_154 = arith.constant 0.000000e+00 : f32
    %215 = vector.broadcast %cst_154 : f32 to vector<48x1xf32>
    %216 = arith.maximumf %214, %215 : vector<48x1xf32>
    %c376_155 = arith.constant 376 : index
    %c0_156 = arith.constant 0 : index
    %217 = vector.load %arg2[%c376_155, %c0_156] : memref<1856x256xf32, #tpu.memory_space<vmem>>, vector<25x48xf32>
    %c376_157 = arith.constant 376 : index
    %c48_158 = arith.constant 48 : index
    %218 = vector.load %arg2[%c376_157, %c48_158] : memref<1856x256xf32, #tpu.memory_space<vmem>>, vector<25x1xf32>
    %cst_159 = arith.constant dense<0.000000e+00> : vector<25x1xf32>
    %219 = tpu.matmul %217, %216, %cst_159 {dimension_numbers = #tpu.dot_dimension_numbers<[1], [0], [0], [1], [0, 0, 1, 1], [], []>} : vector<25x48xf32>, vector<48x1xf32>, vector<25x1xf32> -> vector<25x1xf32>
    %220 = arith.addf %219, %218 : vector<25x1xf32>
    %c408_160 = arith.constant 408 : index
    %c0_161 = arith.constant 0 : index
    %221 = vector.load %arg2[%c408_160, %c0_161] : memref<1856x256xf32, #tpu.memory_space<vmem>>, vector<5x25xf32>
    %c416_162 = arith.constant 416 : index
    %c0_163 = arith.constant 0 : index
    %222 = vector.load %arg2[%c416_162, %c0_163] : memref<1856x256xf32, #tpu.memory_space<vmem>>, vector<25x5xf32>
    %c448_164 = arith.constant 448 : index
    %c0_165 = arith.constant 0 : index
    %223 = vector.load %arg2[%c448_164, %c0_165] : memref<1856x256xf32, #tpu.memory_space<vmem>>, vector<5x25xf32>
    %c456_166 = arith.constant 456 : index
    %c0_167 = arith.constant 0 : index
    %224 = vector.load %arg2[%c456_166, %c0_167] : memref<1856x256xf32, #tpu.memory_space<vmem>>, vector<25x5xf32>
    %c488_168 = arith.constant 488 : index
    %c0_169 = arith.constant 0 : index
    %225 = vector.load %arg2[%c488_168, %c0_169] : memref<1856x256xf32, #tpu.memory_space<vmem>>, vector<5x5xf32>
    %226 = vector.broadcast %220 : vector<25x1xf32> to vector<25x5xf32>
    %227 = arith.mulf %226, %222 : vector<25x5xf32>
    %cst_170 = arith.constant dense<0.000000e+00> : vector<5x5xf32>
    %228 = tpu.matmul %221, %227, %cst_170 {dimension_numbers = #tpu.dot_dimension_numbers<[1], [0], [0], [1], [0, 0, 1, 1], [], []>} : vector<5x25xf32>, vector<25x5xf32>, vector<5x5xf32> -> vector<5x5xf32>
    %229 = arith.addf %228, %225 : vector<5x5xf32>
    %230 = vector.broadcast %220 : vector<25x1xf32> to vector<25x5xf32>
    %231 = arith.mulf %230, %224 : vector<25x5xf32>
    %cst_171 = arith.constant dense<0.000000e+00> : vector<5x5xf32>
    %232 = tpu.matmul %223, %231, %cst_171 {dimension_numbers = #tpu.dot_dimension_numbers<[1], [0], [0], [1], [0, 0, 1, 1], [], []>} : vector<5x25xf32>, vector<25x5xf32>, vector<5x5xf32> -> vector<5x5xf32>
    %233 = arith.addf %232, %225 : vector<5x5xf32>
    %cst_172 = arith.constant dense<0.000000e+00> : vector<5x128xf32>
    %234 = tpu.matmul %233, %181, %cst_172 {dimension_numbers = #tpu.dot_dimension_numbers<[1], [0], [0], [1], [0, 0, 1, 1], [], []>} : vector<5x5xf32>, vector<5x128xf32>, vector<5x128xf32> -> vector<5x128xf32>
    %c1352_173 = arith.constant 1352 : index
    %c0_174 = arith.constant 0 : index
    %235 = vector.load %arg2[%c1352_173, %c0_174] : memref<1856x256xf32, #tpu.memory_space<vmem>>, vector<12x5xf32>
    %c1352_175 = arith.constant 1352 : index
    %c5_176 = arith.constant 5 : index
    %236 = vector.load %arg2[%c1352_175, %c5_176] : memref<1856x256xf32, #tpu.memory_space<vmem>>, vector<12x1xf32>
    %cst_177 = arith.constant dense<0.000000e+00> : vector<12x128xf32>
    %237 = tpu.matmul %235, %234, %cst_177 {dimension_numbers = #tpu.dot_dimension_numbers<[1], [0], [0], [1], [0, 0, 1, 1], [], []>} : vector<12x5xf32>, vector<5x128xf32>, vector<12x128xf32> -> vector<12x128xf32>
    %238 = vector.broadcast %236 : vector<12x1xf32> to vector<12x128xf32>
    %239 = arith.addf %237, %238 : vector<12x128xf32>
    %cst_178 = arith.constant 0.000000e+00 : f32
    %240 = vector.broadcast %cst_178 : f32 to vector<12x128xf32>
    %241 = arith.maximumf %239, %240 : vector<12x128xf32>
    %c496_179 = arith.constant 496 : index
    %c0_180 = arith.constant 0 : index
    %242 = vector.load %arg2[%c496_179, %c0_180] : memref<1856x256xf32, #tpu.memory_space<vmem>>, vector<12x12xf32>
    %c496_181 = arith.constant 496 : index
    %c12_182 = arith.constant 12 : index
    %243 = vector.load %arg2[%c496_181, %c12_182] : memref<1856x256xf32, #tpu.memory_space<vmem>>, vector<12x1xf32>
    %cst_183 = arith.constant dense<0.000000e+00> : vector<12x128xf32>
    %244 = tpu.matmul %242, %241, %cst_183 {dimension_numbers = #tpu.dot_dimension_numbers<[1], [0], [0], [1], [0, 0, 1, 1], [], []>} : vector<12x12xf32>, vector<12x128xf32>, vector<12x128xf32> -> vector<12x128xf32>
    %245 = vector.broadcast %243 : vector<12x1xf32> to vector<12x128xf32>
    %246 = arith.addf %244, %245 : vector<12x128xf32>
    %cst_184 = arith.constant 0.000000e+00 : f32
    %247 = vector.broadcast %cst_184 : f32 to vector<12x128xf32>
    %248 = arith.maximumf %246, %247 : vector<12x128xf32>
    %c512_185 = arith.constant 512 : index
    %c0_186 = arith.constant 0 : index
    %249 = vector.load %arg2[%c512_185, %c0_186] : memref<1856x256xf32, #tpu.memory_space<vmem>>, vector<24x12xf32>
    %c512_187 = arith.constant 512 : index
    %c12_188 = arith.constant 12 : index
    %250 = vector.load %arg2[%c512_187, %c12_188] : memref<1856x256xf32, #tpu.memory_space<vmem>>, vector<24x1xf32>
    %cst_189 = arith.constant dense<0.000000e+00> : vector<24x128xf32>
    %251 = tpu.matmul %249, %248, %cst_189 {dimension_numbers = #tpu.dot_dimension_numbers<[1], [0], [0], [1], [0, 0, 1, 1], [], []>} : vector<24x12xf32>, vector<12x128xf32>, vector<24x128xf32> -> vector<24x128xf32>
    %252 = vector.broadcast %250 : vector<24x1xf32> to vector<24x128xf32>
    %253 = arith.addf %251, %252 : vector<24x128xf32>
    %cst_190 = arith.constant 0.000000e+00 : f32
    %254 = vector.broadcast %cst_190 : f32 to vector<24x128xf32>
    %255 = arith.maximumf %253, %254 : vector<24x128xf32>
    %c536_191 = arith.constant 536 : index
    %c0_192 = arith.constant 0 : index
    %256 = vector.load %arg2[%c536_191, %c0_192] : memref<1856x256xf32, #tpu.memory_space<vmem>>, vector<192x24xf32>
    %c536_193 = arith.constant 536 : index
    %c24_194 = arith.constant 24 : index
    %257 = vector.load %arg2[%c536_193, %c24_194] : memref<1856x256xf32, #tpu.memory_space<vmem>>, vector<192x1xf32>
    %cst_195 = arith.constant dense<0.000000e+00> : vector<192x128xf32>
    %258 = tpu.matmul %256, %255, %cst_195 {dimension_numbers = #tpu.dot_dimension_numbers<[1], [0], [0], [1], [0, 0, 1, 1], [], []>} : vector<192x24xf32>, vector<24x128xf32>, vector<192x128xf32> -> vector<192x128xf32>
    %259 = vector.broadcast %257 : vector<192x1xf32> to vector<192x128xf32>
    %260 = arith.addf %258, %259 : vector<192x128xf32>
    %cst_196 = arith.constant 0.000000e+00 : f32
    %261 = vector.broadcast %cst_196 : f32 to vector<192x128xf32>
    %262 = arith.maximumf %260, %261 : vector<192x128xf32>
    %cst_197 = arith.constant dense<0xFF800000> : vector<192xf32>
    %263 = vector.multi_reduction <maximumf>, %262, %cst_197 [1] : vector<192x128xf32> to vector<192xf32>
    %264 = vector.shape_cast %263 : vector<192xf32> to vector<192x1xf32>
    %c728_198 = arith.constant 728 : index
    %c0_199 = arith.constant 0 : index
    %265 = vector.load %arg2[%c728_198, %c0_199] : memref<1856x256xf32, #tpu.memory_space<vmem>>, vector<96x192xf32>
    %c728_200 = arith.constant 728 : index
    %c192_201 = arith.constant 192 : index
    %266 = vector.load %arg2[%c728_200, %c192_201] : memref<1856x256xf32, #tpu.memory_space<vmem>>, vector<96x1xf32>
    %cst_202 = arith.constant dense<0.000000e+00> : vector<96x1xf32>
    %267 = tpu.matmul %265, %264, %cst_202 {dimension_numbers = #tpu.dot_dimension_numbers<[1], [0], [0], [1], [0, 0, 1, 1], [], []>} : vector<96x192xf32>, vector<192x1xf32>, vector<96x1xf32> -> vector<96x1xf32>
    %268 = arith.addf %267, %266 : vector<96x1xf32>
    %cst_203 = arith.constant 0.000000e+00 : f32
    %269 = vector.broadcast %cst_203 : f32 to vector<96x1xf32>
    %270 = arith.maximumf %268, %269 : vector<96x1xf32>
    %c824_204 = arith.constant 824 : index
    %c0_205 = arith.constant 0 : index
    %271 = vector.load %arg2[%c824_204, %c0_205] : memref<1856x256xf32, #tpu.memory_space<vmem>>, vector<48x96xf32>
    %c824_206 = arith.constant 824 : index
    %c96_207 = arith.constant 96 : index
    %272 = vector.load %arg2[%c824_206, %c96_207] : memref<1856x256xf32, #tpu.memory_space<vmem>>, vector<48x1xf32>
    %cst_208 = arith.constant dense<0.000000e+00> : vector<48x1xf32>
    %273 = tpu.matmul %271, %270, %cst_208 {dimension_numbers = #tpu.dot_dimension_numbers<[1], [0], [0], [1], [0, 0, 1, 1], [], []>} : vector<48x96xf32>, vector<96x1xf32>, vector<48x1xf32> -> vector<48x1xf32>
    %274 = arith.addf %273, %272 : vector<48x1xf32>
    %cst_209 = arith.constant 0.000000e+00 : f32
    %275 = vector.broadcast %cst_209 : f32 to vector<48x1xf32>
    %276 = arith.maximumf %274, %275 : vector<48x1xf32>
    %c872_210 = arith.constant 872 : index
    %c0_211 = arith.constant 0 : index
    %277 = vector.load %arg2[%c872_210, %c0_211] : memref<1856x256xf32, #tpu.memory_space<vmem>>, vector<144x48xf32>
    %c872_212 = arith.constant 872 : index
    %c48_213 = arith.constant 48 : index
    %278 = vector.load %arg2[%c872_212, %c48_213] : memref<1856x256xf32, #tpu.memory_space<vmem>>, vector<144x1xf32>
    %cst_214 = arith.constant dense<0.000000e+00> : vector<144x1xf32>
    %279 = tpu.matmul %277, %276, %cst_214 {dimension_numbers = #tpu.dot_dimension_numbers<[1], [0], [0], [1], [0, 0, 1, 1], [], []>} : vector<144x48xf32>, vector<48x1xf32>, vector<144x1xf32> -> vector<144x1xf32>
    %280 = arith.addf %279, %278 : vector<144x1xf32>
    %c1016_215 = arith.constant 1016 : index
    %c0_216 = arith.constant 0 : index
    %281 = vector.load %arg2[%c1016_215, %c0_216] : memref<1856x256xf32, #tpu.memory_space<vmem>>, vector<12x144xf32>
    %c1032_217 = arith.constant 1032 : index
    %c0_218 = arith.constant 0 : index
    %282 = vector.load %arg2[%c1032_217, %c0_218] : memref<1856x256xf32, #tpu.memory_space<vmem>>, vector<144x12xf32>
    %c1176_219 = arith.constant 1176 : index
    %c0_220 = arith.constant 0 : index
    %283 = vector.load %arg2[%c1176_219, %c0_220] : memref<1856x256xf32, #tpu.memory_space<vmem>>, vector<12x144xf32>
    %c1192_221 = arith.constant 1192 : index
    %c0_222 = arith.constant 0 : index
    %284 = vector.load %arg2[%c1192_221, %c0_222] : memref<1856x256xf32, #tpu.memory_space<vmem>>, vector<144x12xf32>
    %c1336_223 = arith.constant 1336 : index
    %c0_224 = arith.constant 0 : index
    %285 = vector.load %arg2[%c1336_223, %c0_224] : memref<1856x256xf32, #tpu.memory_space<vmem>>, vector<12x12xf32>
    %286 = vector.broadcast %280 : vector<144x1xf32> to vector<144x12xf32>
    %287 = arith.mulf %286, %282 : vector<144x12xf32>
    %cst_225 = arith.constant dense<0.000000e+00> : vector<12x12xf32>
    %288 = tpu.matmul %281, %287, %cst_225 {dimension_numbers = #tpu.dot_dimension_numbers<[1], [0], [0], [1], [0, 0, 1, 1], [], []>} : vector<12x144xf32>, vector<144x12xf32>, vector<12x12xf32> -> vector<12x12xf32>
    %289 = arith.addf %288, %285 : vector<12x12xf32>
    %290 = vector.broadcast %280 : vector<144x1xf32> to vector<144x12xf32>
    %291 = arith.mulf %290, %284 : vector<144x12xf32>
    %cst_226 = arith.constant dense<0.000000e+00> : vector<12x12xf32>
    %292 = tpu.matmul %283, %291, %cst_226 {dimension_numbers = #tpu.dot_dimension_numbers<[1], [0], [0], [1], [0, 0, 1, 1], [], []>} : vector<12x144xf32>, vector<144x12xf32>, vector<12x12xf32> -> vector<12x12xf32>
    %293 = arith.addf %292, %285 : vector<12x12xf32>
    %cst_227 = arith.constant dense<0.000000e+00> : vector<12x128xf32>
    %294 = tpu.matmul %293, %241, %cst_227 {dimension_numbers = #tpu.dot_dimension_numbers<[1], [0], [0], [1], [0, 0, 1, 1], [], []>} : vector<12x12xf32>, vector<12x128xf32>, vector<12x128xf32> -> vector<12x128xf32>
    %c1368_228 = arith.constant 1368 : index
    %c0_229 = arith.constant 0 : index
    %295 = vector.load %arg2[%c1368_228, %c0_229] : memref<1856x256xf32, #tpu.memory_space<vmem>>, vector<24x12xf32>
    %c1368_230 = arith.constant 1368 : index
    %c12_231 = arith.constant 12 : index
    %296 = vector.load %arg2[%c1368_230, %c12_231] : memref<1856x256xf32, #tpu.memory_space<vmem>>, vector<24x1xf32>
    %cst_232 = arith.constant dense<0.000000e+00> : vector<24x128xf32>
    %297 = tpu.matmul %295, %294, %cst_232 {dimension_numbers = #tpu.dot_dimension_numbers<[1], [0], [0], [1], [0, 0, 1, 1], [], []>} : vector<24x12xf32>, vector<12x128xf32>, vector<24x128xf32> -> vector<24x128xf32>
    %298 = vector.broadcast %296 : vector<24x1xf32> to vector<24x128xf32>
    %299 = arith.addf %297, %298 : vector<24x128xf32>
    %cst_233 = arith.constant 0.000000e+00 : f32
    %300 = vector.broadcast %cst_233 : f32 to vector<24x128xf32>
    %301 = arith.maximumf %299, %300 : vector<24x128xf32>
    %c1392_234 = arith.constant 1392 : index
    %c0_235 = arith.constant 0 : index
    %302 = vector.load %arg2[%c1392_234, %c0_235] : memref<1856x256xf32, #tpu.memory_space<vmem>>, vector<192x24xf32>
    %c1392_236 = arith.constant 1392 : index
    %c24_237 = arith.constant 24 : index
    %303 = vector.load %arg2[%c1392_236, %c24_237] : memref<1856x256xf32, #tpu.memory_space<vmem>>, vector<192x1xf32>
    %cst_238 = arith.constant dense<0.000000e+00> : vector<192x128xf32>
    %304 = tpu.matmul %302, %301, %cst_238 {dimension_numbers = #tpu.dot_dimension_numbers<[1], [0], [0], [1], [0, 0, 1, 1], [], []>} : vector<192x24xf32>, vector<24x128xf32>, vector<192x128xf32> -> vector<192x128xf32>
    %305 = vector.broadcast %303 : vector<192x1xf32> to vector<192x128xf32>
    %306 = arith.addf %304, %305 : vector<192x128xf32>
    %c1848_239 = arith.constant 1848 : index
    %c0_240 = arith.constant 0 : index
    %307 = vector.load %arg2[%c1848_239, %c0_240] : memref<1856x256xf32, #tpu.memory_space<vmem>>, vector<1x192xf32>
    %c1848_241 = arith.constant 1848 : index
    %c192_242 = arith.constant 192 : index
    %308 = vector.load %arg2[%c1848_241, %c192_242] : memref<1856x256xf32, #tpu.memory_space<vmem>>, vector<1x1xf32>
    %cst_243 = arith.constant dense<0.000000e+00> : vector<1x128xf32>
    %309 = tpu.matmul %307, %306, %cst_243 {dimension_numbers = #tpu.dot_dimension_numbers<[1], [0], [0], [1], [0, 0, 1, 1], [], []>} : vector<1x192xf32>, vector<192x128xf32>, vector<1x128xf32> -> vector<1x128xf32>
    %310 = vector.broadcast %308 : vector<1x1xf32> to vector<1x128xf32>
    %311 = arith.addf %309, %310 : vector<1x128xf32>
    %cst_244 = arith.constant dense<0xFF800000> : vector<1xf32>
    %312 = vector.multi_reduction <maximumf>, %311, %cst_244 [1] : vector<1x128xf32> to vector<1xf32>
    %313 = vector.shape_cast %312 : vector<1xf32> to vector<1x1xf32>
    %314 = vector.broadcast %313 : vector<1x1xf32> to vector<1x128xf32>
    %315 = arith.subf %311, %314 : vector<1x128xf32>
    %316 = math.exp %315 : vector<1x128xf32>
    %cst_245 = arith.constant dense<0.000000e+00> : vector<1xf32>
    %317 = vector.multi_reduction <add>, %316, %cst_245 [1] : vector<1x128xf32> to vector<1xf32>
    %318 = vector.shape_cast %317 : vector<1xf32> to vector<1x1xf32>
    %319 = tpu.reciprocal %318 {approx = true} : vector<1x1xf32> -> vector<1x1xf32>
    %320 = vector.broadcast %319 : vector<1x1xf32> to vector<1x128xf32>
    %321 = arith.mulf %316, %320 : vector<1x128xf32>
    %cst_246 = arith.constant dense<0.000000e+00> : vector<192x1xf32>
    %322 = tpu.matmul %306, %321, %cst_246 {dimension_numbers = #tpu.dot_dimension_numbers<[1], [1], [0], [0], [0, 0, 1, 0], [], []>} : vector<192x128xf32>, vector<1x128xf32>, vector<192x1xf32> -> vector<192x1xf32>
    %c1584_247 = arith.constant 1584 : index
    %c0_248 = arith.constant 0 : index
    %323 = vector.load %arg2[%c1584_247, %c0_248] : memref<1856x256xf32, #tpu.memory_space<vmem>>, vector<96x12xf32>
    %c1584_249 = arith.constant 1584 : index
    %c12_250 = arith.constant 12 : index
    %324 = vector.load %arg2[%c1584_249, %c12_250] : memref<1856x256xf32, #tpu.memory_space<vmem>>, vector<96x1xf32>
    %c1680_251 = arith.constant 1680 : index
    %c0_252 = arith.constant 0 : index
    %325 = vector.load %arg2[%c1680_251, %c0_252] : memref<1856x256xf32, #tpu.memory_space<vmem>>, vector<96x192xf32>
    %cst_253 = arith.constant dense<0.000000e+00> : vector<96x1xf32>
    %326 = tpu.matmul %325, %322, %cst_253 {dimension_numbers = #tpu.dot_dimension_numbers<[1], [0], [0], [1], [0, 0, 1, 1], [], []>} : vector<96x192xf32>, vector<192x1xf32>, vector<96x1xf32> -> vector<96x1xf32>
    %cst_254 = arith.constant dense<0.000000e+00> : vector<96x128xf32>
    %327 = tpu.matmul %323, %294, %cst_254 {dimension_numbers = #tpu.dot_dimension_numbers<[1], [0], [0], [1], [0, 0, 1, 1], [], []>} : vector<96x12xf32>, vector<12x128xf32>, vector<96x128xf32> -> vector<96x128xf32>
    %328 = vector.broadcast %326 : vector<96x1xf32> to vector<96x128xf32>
    %329 = arith.addf %327, %328 : vector<96x128xf32>
    %330 = vector.broadcast %324 : vector<96x1xf32> to vector<96x128xf32>
    %331 = arith.addf %329, %330 : vector<96x128xf32>
    %cst_255 = arith.constant 0.000000e+00 : f32
    %332 = vector.broadcast %cst_255 : f32 to vector<96x128xf32>
    %333 = arith.maximumf %331, %332 : vector<96x128xf32>
    %c1776_256 = arith.constant 1776 : index
    %c0_257 = arith.constant 0 : index
    %334 = vector.load %arg2[%c1776_256, %c0_257] : memref<1856x256xf32, #tpu.memory_space<vmem>>, vector<48x96xf32>
    %c1776_258 = arith.constant 1776 : index
    %c96_259 = arith.constant 96 : index
    %335 = vector.load %arg2[%c1776_258, %c96_259] : memref<1856x256xf32, #tpu.memory_space<vmem>>, vector<48x1xf32>
    %cst_260 = arith.constant dense<0.000000e+00> : vector<48x128xf32>
    %336 = tpu.matmul %334, %333, %cst_260 {dimension_numbers = #tpu.dot_dimension_numbers<[1], [0], [0], [1], [0, 0, 1, 1], [], []>} : vector<48x96xf32>, vector<96x128xf32>, vector<48x128xf32> -> vector<48x128xf32>
    %337 = vector.broadcast %335 : vector<48x1xf32> to vector<48x128xf32>
    %338 = arith.addf %336, %337 : vector<48x128xf32>
    %cst_261 = arith.constant 0.000000e+00 : f32
    %339 = vector.broadcast %cst_261 : f32 to vector<48x128xf32>
    %340 = arith.maximumf %338, %339 : vector<48x128xf32>
    %c1824_262 = arith.constant 1824 : index
    %c0_263 = arith.constant 0 : index
    %341 = vector.load %arg2[%c1824_262, %c0_263] : memref<1856x256xf32, #tpu.memory_space<vmem>>, vector<24x48xf32>
    %c1824_264 = arith.constant 1824 : index
    %c48_265 = arith.constant 48 : index
    %342 = vector.load %arg2[%c1824_264, %c48_265] : memref<1856x256xf32, #tpu.memory_space<vmem>>, vector<24x1xf32>
    %cst_266 = arith.constant dense<0.000000e+00> : vector<24x128xf32>
    %343 = tpu.matmul %341, %340, %cst_266 {dimension_numbers = #tpu.dot_dimension_numbers<[1], [0], [0], [1], [0, 0, 1, 1], [], []>} : vector<24x48xf32>, vector<48x128xf32>, vector<24x128xf32> -> vector<24x128xf32>
    %344 = vector.broadcast %342 : vector<24x1xf32> to vector<24x128xf32>
    %345 = arith.addf %343, %344 : vector<24x128xf32>
    %cst_267 = arith.constant 0.000000e+00 : f32
    %346 = vector.broadcast %cst_267 : f32 to vector<24x128xf32>
    %347 = arith.maximumf %345, %346 : vector<24x128xf32>
    %c1_268 = arith.constant 1 : index
    %c0_269 = arith.constant 0 : index
    %c0_270 = arith.constant 0 : index
    %348 = vector.load %arg3[%c1_268, %c0_269, %c0_270] : memref<2x24x128xf32, #tpu.memory_space<vmem>>, vector<1x24x128xf32>
    %349 = vector.shape_cast %348 : vector<1x24x128xf32> to vector<24x128xf32>
    %350 = vector.shape_cast %347 : vector<24x128xf32> to vector<1x24x128xf32>
    tpu.vector_store %arg3[%c1_268, %c0_269, %c0_270], %350 {strides = array<i32>} : memref<2x24x128xf32, #tpu.memory_space<vmem>>, vector<1x24x128xf32>,
    %c1_271 = arith.constant 1 : index
    %c0_272 = arith.constant 0 : index
    %c0_273 = arith.constant 0 : index
    %351 = vector.load %arg4[%c1_271, %c0_272, %c0_273] : memref<2x5x5xf32, #tpu.memory_space<vmem>>, vector<1x5x5xf32>
    %352 = vector.shape_cast %351 : vector<1x5x5xf32> to vector<5x5xf32>
    %353 = vector.shape_cast %229 : vector<5x5xf32> to vector<1x5x5xf32>
    tpu.vector_store %arg4[%c1_271, %c0_272, %c0_273], %353 {strides = array<i32>} : memref<2x5x5xf32, #tpu.memory_space<vmem>>, vector<1x5x5xf32>,
    %c1_274 = arith.constant 1 : index
    %c0_275 = arith.constant 0 : index
    %c0_276 = arith.constant 0 : index
    %354 = vector.load %arg5[%c1_274, %c0_275, %c0_276] : memref<2x12x12xf32, #tpu.memory_space<vmem>>, vector<1x12x12xf32>
    %355 = vector.shape_cast %354 : vector<1x12x12xf32> to vector<12x12xf32>
    %356 = vector.shape_cast %289 : vector<12x12xf32> to vector<1x12x12xf32>
    tpu.vector_store %arg5[%c1_274, %c0_275, %c0_276], %356 {strides = array<i32>} : memref<2x12x12xf32, #tpu.memory_space<vmem>>, vector<1x12x12xf32>,
    %c1_277 = arith.constant 1 : index
    %c0_278 = arith.constant 0 : index
    %c0_279 = arith.constant 0 : index
    %357 = vector.load %arg6[%c1_277, %c0_278, %c0_279] : memref<2x1x128xf32, #tpu.memory_space<vmem>>, vector<1x1x128xf32>
    %358 = vector.shape_cast %357 : vector<1x1x128xf32> to vector<1x128xf32>
    %359 = vector.shape_cast %321 : vector<1x128xf32> to vector<1x1x128xf32>
    tpu.vector_store %arg6[%c1_277, %c0_278, %c0_279], %359 {strides = array<i32>} : memref<2x1x128xf32, #tpu.memory_space<vmem>>, vector<1x1x128xf32>,
    return
  }
  func.func @transform_0(%arg0: i32) -> (i32, i32, i32) {
    %c0_i32 = arith.constant 0 : i32
    %c0_i32_0 = arith.constant 0 : i32
    %c0_i32_1 = arith.constant 0 : i32
    return %arg0, %c0_i32, %c0_i32_0 : i32, i32, i32
  }
  func.func @transform_1(%arg0: i32) -> (i32, i32) {
    %c0_i32 = arith.constant 0 : i32
    %c0_i32_0 = arith.constant 0 : i32
    %c0_i32_1 = arith.constant 0 : i32
    return %c0_i32, %c0_i32_0 : i32, i32
  }
  func.func @transform_2(%arg0: i32) -> (i32, i32, i32) {
    %c0_i32 = arith.constant 0 : i32
    %c0_i32_0 = arith.constant 0 : i32
    %c0_i32_1 = arith.constant 0 : i32
    return %arg0, %c0_i32, %c0_i32_0 : i32, i32, i32
  }
  func.func @transform_3(%arg0: i32) -> (i32, i32, i32) {
    %c0_i32 = arith.constant 0 : i32
    %c0_i32_0 = arith.constant 0 : i32
    %c0_i32_1 = arith.constant 0 : i32
    return %arg0, %c0_i32, %c0_i32_0 : i32, i32, i32
  }
  func.func @transform_4(%arg0: i32) -> (i32, i32, i32) {
    %c0_i32 = arith.constant 0 : i32
    %c0_i32_0 = arith.constant 0 : i32
    %c0_i32_1 = arith.constant 0 : i32
    return %arg0, %c0_i32, %c0_i32_0 : i32, i32, i32
  }
  func.func @transform_5(%arg0: i32) -> (i32, i32, i32) {
    %c0_i32 = arith.constant 0 : i32
    %c0_i32_0 = arith.constant 0 : i32
    %c0_i32_1 = arith.constant 0 : i32
    return %arg0, %c0_i32, %c0_i32_0 : i32, i32, i32
  }
}

</mosaic_0001>

<llo_original>
// kernel: tpu_custom_call.1
$region0: #{tpu_custom_call.1}
  #allocation0 [shape = 'u32[]', space=smem, size = 0x4, offset = 0x4, fixed_abs, tag = 'smem constant byte address 0x4 - core index']
  #allocation1 [shape = 'u32[144,128]{1,0:T(1,128)}', space=vmem, size = 0x12000, scoped, tag = 'internal scratch']
  %s0 = inlined_call_operand.vmem [shape: f32[2,5,128], index: 0, kind: input, shape index: {}]
  %s1 = inlined_call_operand.hbm [shape: f32[1856,256], index: 1, kind: input, shape index: {}]
  %s2 = inlined_call_operand.hbm [shape: f32[2,24,128], index: 2, kind: output, shape index: {0}]
  %s3 = inlined_call_operand.vmem [shape: f32[2,5,5], index: 3, kind: output, shape index: {1}]
  %s4 = inlined_call_operand.vmem [shape: f32[2,12,12], index: 4, kind: output, shape index: {2}]
  %s5 = inlined_call_operand.hbm [shape: f32[2,1,128], index: 5, kind: output, shape index: {3}]
  %6 = xla_tuple %s2, %s3, %s4, %s5
  %s7 = sld [smem:[#allocation0]]
  $region46: #{tpu_custom_call.1} parent=0
    _
  %s9 = ssub.s32 1, %s7
  %s10 = scalar_select 0, %s9, %s7
  $region1: #{tpu_custom_call.1} parent=0
    #allocation2 [shape = 'u8[1900544]{0}', space=vmem, size = 0x1d0000, scoped, tag = 'input window, operand 1, single buffered']
    #allocation3 [shape = 's32[1]{0}', space=sflag, size = 0x4, scoped, tag = 'scoped memory for tpu_custom_call.1']
    #allocation4 [shape = 's32[1]{0}', space=sflag, size = 0x4, scoped, tag = 'scoped memory for tpu_custom_call.1']
    #allocation5 [shape = 'u8[24576]{0}', space=vmem, size = 0x6000, scoped, tag = 'output window, operand 0, single buffered']
    #allocation6 [shape = 'u8[1024]{0}', space=vmem, size = 0x400, scoped, tag = 'output window, operand 3, single buffered']
    #allocation7 [shape = 's32[1]{0}', space=sflag, size = 0x4, scoped, tag = 'scoped memory for tpu_custom_call.1']
    %11 = vsyncpa [#allocation3], 0
    %12 = vsyncpa [#allocation4], 0
    %13 = vsyncpa [#allocation7], 0
    // Predicated region
    $region2: #{tpu_custom_call.1} parent=1 // pred_check
      _
    $region3: #{tpu_custom_call.1} parent=1 // pred_check_branch
      %15 = sbr.rel (0) target = $region5
    $region4: #{tpu_custom_call.1} parent=1 // pred_region
      _
    $region5: #{tpu_custom_call.1} parent=1 // pred_fallthru
      _
    // Predicated region
    $region6: #{tpu_custom_call.1} parent=1 // pred_check
      _
    $region7: #{tpu_custom_call.1} parent=1 // pred_check_branch
      %17 = sbr.rel (0) target = $region9
    $region8: #{tpu_custom_call.1} parent=1 // pred_region
      %s19 = ssub.s32 59392, 59392
      %20 = vsyncadd [#allocation3], %s19
      %s21 = sshll.u32 [#allocation2], 4
      %s22 = int_to_ptr.vmem [resolvable:$true] %s21
      %27 = dma.hbm_to_vmem [thread:$0]  %s1, 59392, %s22, [#allocation3], 256, 256, 16
    $region9: #{tpu_custom_call.1} parent=1 // pred_fallthru
      _
    // Predicated region
    $region10: #{tpu_custom_call.1} parent=1 // pred_check
      _
    $region11: #{tpu_custom_call.1} parent=1 // pred_check_branch
      %29 = sbr.rel (0) target = $region13
    $region12: #{tpu_custom_call.1} parent=1 // pred_region
      %30 = dma.done [#allocation3], 59392
    $region13: #{tpu_custom_call.1} parent=1 // pred_fallthru
      _
    %v31 = vld [vmem:[%s0] sm:$0x1f]
    %v32 = vld [vmem:[#allocation2] sm:$0xff]
    %v33 = vld [vmem:[#allocation2 + $0x10] sm:$0xf]
    %35 = vset.pattern.permute.xlu0 5
    %36 = vperm.xlu0 %35, %v32
    %v37 = vpop.permute.xlu0 %36
    %40 = vset.pattern.permute.xlu0 5
    %41 = vperm.xlu0 %40, %v33
    %v42 = vpop.permute.xlu0 %41
    %vm44 = vcmask 39936
    %v45 = vsel %vm44, %v32, 0
    %v47 = vsel %vm44, %v33, 0
    %vm49 = vcmask 1044480
    %v51 = vsel %vm49, %v31, 0
    %53 = vmatprep.subr.mxu0 0.0
    %54 = vmatpush1.msra.mxu0 0.0
    %55 = vmatprep.subr.mxu0 0.0
    %56 = vmatpush1.msra.mxu0 0.0
    %57 = vmatprep.subr.mxu0 0.0
    %58 = vmatpush1.msra.mxu0 0.0
    %59 = vmatprep.subr.mxu0 0.0
    %60 = vmatpush1.msra.mxu0 0.0
    %61 = vmatprep.subr.mxu0 0.0
    %62 = vmatpush1.msra.mxu0 0.0
    %63 = vmatprep.subr.mxu0 0.0
    %64 = vmatpush1.msra.mxu0 0.0
    %65 = vmatprep.subr.mxu0 0.0
    %66 = vmatpush1.msra.mxu0 0.0
    %67 = vmatprep.subr.mxu0 0.0
    %68 = vmatpush1.msra.mxu0 0.0
    %69 = vmatprep.subr.mxu0 0.0
    %70 = vmatpush1.msra.mxu0 0.0
    %71 = vmatprep.subr.mxu0 0.0
    %72 = vmatpush1.msra.mxu0 0.0
    %73 = vmatprep.subr.mxu0 0.0
    %74 = vmatpush1.msra.mxu0 0.0
    %75 = vmatprep.subr.mxu0 0.0
    %76 = vmatpush1.msra.mxu0 0.0
    %77 = vmatprep.subr.mxu0 0.0
    %78 = vmatpush1.msra.mxu0 0.0
    %79 = vmatprep.subr.mxu0 0.0
    %80 = vmatpush1.msra.mxu0 0.0
    %81 = vmatprep.subr.mxu0 0.0
    %82 = vmatpush1.msra.mxu0 0.0
    %83 = vmatprep.subr.mxu0 0.0
    %84 = vmatpush1.msra.mxu0 %v51
    %85 = vmatprep.subr.mxu0 0.0
    %86 = vmatpush2.msra.mxu0 0.0
    %87 = vmatprep.subr.mxu0 0.0
    %88 = vmatpush2.msra.mxu0 0.0
    %89 = vmatprep.subr.mxu0 0.0
    %90 = vmatpush2.msra.mxu0 0.0
    %91 = vmatprep.subr.mxu0 0.0
    %92 = vmatpush2.msra.mxu0 0.0
    %93 = vmatprep.subr.mxu0 0.0
    %94 = vmatpush2.msra.mxu0 0.0
    %95 = vmatprep.subr.mxu0 0.0
    %96 = vmatpush2.msra.mxu0 0.0
    %97 = vmatprep.subr.mxu0 0.0
    %98 = vmatpush2.msra.mxu0 0.0
    %99 = vmatprep.subr.mxu0 0.0
    %100 = vmatpush2.msra.mxu0 0.0
    %101 = vmatprep.subr.mxu0 0.0
    %102 = vmatpush2.msra.mxu0 0.0
    %103 = vmatprep.subr.mxu0 0.0
    %104 = vmatpush2.msra.mxu0 0.0
    %105 = vmatprep.subr.mxu0 0.0
    %106 = vmatpush2.msra.mxu0 0.0
    %107 = vmatprep.subr.mxu0 0.0
    %108 = vmatpush2.msra.mxu0 0.0
    %109 = vmatprep.subr.mxu0 0.0
    %110 = vmatpush2.msra.mxu0 0.0
    %111 = vmatprep.subr.mxu0 0.0
    %112 = vmatpush2.msra.mxu0 0.0
    %113 = vmatprep.subr.mxu0 0.0
    %114 = vmatpush2.msra.mxu0 0.0
    %115 = vmatprep.subr.mxu0 0.0
    %116 = vmatpush2.msra.mxu0 0.0
    %117 = vmatprep.mubr.f32.mxu0 0.0
    %118 = vmatmul.mubr.f32.gmra.mxu0 %v45
    %v119 = vpop.f32.mrf.mxu0
    %v120 = vadd.f32 %v37, %v119
    %v121 = vpop.f32.mrf.mxu0
    %122 = vmatprep.mubr.f32.mxu0 0.0
    %123 = vmatmul.mubr.f32.gmra.mxu0 %v47
    %v124 = vpop.f32.mrf.mxu0
    %v125 = vadd.f32 %v42, %v124
    %v126 = vpop.f32.mrf.mxu0
    %127 = vdwg.mxu0
    %v128 = vmax.f32 %v120, 0.0
    %v129 = vmax.f32 %v125, 0.0
    %v130 = vld [vmem:[#allocation2 + $0x20] sm:$0xff]
    %v131 = vld [vmem:[#allocation2 + $0x30] sm:$0xff]
    %v132 = vld [vmem:[#allocation2 + $0x40] sm:$0xff]
    %134 = vset.pattern.permute.xlu0 12
    %135 = vperm.xlu0 %134, %v130
    %v136 = vpop.permute.xlu0 %135
    %139 = vset.pattern.permute.xlu0 12
    %140 = vperm.xlu0 %139, %v131
    %v141 = vpop.permute.xlu0 %140
    %144 = vset.pattern.permute.xlu0 12
    %145 = vperm.xlu0 %144, %v132
    %v146 = vpop.permute.xlu0 %145
    %vm148 = vcmask 97280
    %v149 = vsel %vm148, %v130, 0
    %v151 = vsel %vm148, %v131, 0
    %v153 = vsel %vm148, %v132, 0
    %vm155 = vcmask 1043456
    %v157 = vsel %vm155, %v129, 0
    %159 = vmatprep.subr.mxu0 0.0
    %160 = vmatpush1.msra.mxu0 0.0
    %161 = vmatprep.subr.mxu0 0.0
    %162 = vmatpush1.msra.mxu0 0.0
    %163 = vmatprep.subr.mxu0 0.0
    %164 = vmatpush1.msra.mxu0 0.0
    %165 = vmatprep.subr.mxu0 0.0
    %166 = vmatpush1.msra.mxu0 0.0
    %167 = vmatprep.subr.mxu0 0.0
    %168 = vmatpush1.msra.mxu0 0.0
    %169 = vmatprep.subr.mxu0 0.0
    %170 = vmatpush1.msra.mxu0 0.0
    %171 = vmatprep.subr.mxu0 0.0
    %172 = vmatpush1.msra.mxu0 0.0
    %173 = vmatprep.subr.mxu0 0.0
    %174 = vmatpush1.msra.mxu0 0.0
    %175 = vmatprep.subr.mxu0 0.0
    %176 = vmatpush1.msra.mxu0 0.0
    %177 = vmatprep.subr.mxu0 0.0
    %178 = vmatpush1.msra.mxu0 0.0
    %179 = vmatprep.subr.mxu0 0.0
    %180 = vmatpush1.msra.mxu0 0.0
    %181 = vmatprep.subr.mxu0 0.0
    %182 = vmatpush1.msra.mxu0 0.0
    %183 = vmatprep.subr.mxu0 0.0
    %184 = vmatpush1.msra.mxu0 0.0
    %185 = vmatprep.subr.mxu0 0.0
    %186 = vmatpush1.msra.mxu0 0.0
    %187 = vmatprep.subr.mxu0 0.0
    %188 = vmatpush1.msra.mxu0 %v157
    %189 = vmatprep.subr.mxu0 0.0
    %190 = vmatpush1.msra.mxu0 %v128
    %191 = vmatprep.subr.mxu0 0.0
    %192 = vmatpush2.msra.mxu0 0.0
    %193 = vmatprep.subr.mxu0 0.0
    %194 = vmatpush2.msra.mxu0 0.0
    %195 = vmatprep.subr.mxu0 0.0
    %196 = vmatpush2.msra.mxu0 0.0
    %197 = vmatprep.subr.mxu0 0.0
    %198 = vmatpush2.msra.mxu0 0.0
    %199 = vmatprep.subr.mxu0 0.0
    %200 = vmatpush2.msra.mxu0 0.0
    %201 = vmatprep.subr.mxu0 0.0
    %202 = vmatpush2.msra.mxu0 0.0
    %203 = vmatprep.subr.mxu0 0.0
    %204 = vmatpush2.msra.mxu0 0.0
    %205 = vmatprep.subr.mxu0 0.0
    %206 = vmatpush2.msra.mxu0 0.0
    %207 = vmatprep.subr.mxu0 0.0
    %208 = vmatpush2.msra.mxu0 0.0
    %209 = vmatprep.subr.mxu0 0.0
    %210 = vmatpush2.msra.mxu0 0.0
    %211 = vmatprep.subr.mxu0 0.0
    %212 = vmatpush2.msra.mxu0 0.0
    %213 = vmatprep.subr.mxu0 0.0
    %214 = vmatpush2.msra.mxu0 0.0
    %215 = vmatprep.subr.mxu0 0.0
    %216 = vmatpush2.msra.mxu0 0.0
    %217 = vmatprep.subr.mxu0 0.0
    %218 = vmatpush2.msra.mxu0 0.0
    %219 = vmatprep.subr.mxu0 0.0
    %220 = vmatpush2.msra.mxu0 0.0
    %221 = vmatprep.subr.mxu0 0.0
    %222 = vmatpush2.msra.mxu0 0.0
    %223 = vmatprep.mubr.f32.mxu0 0.0
    %224 = vmatmul.mubr.f32.gmra.mxu0 %v149
    %v225 = vpop.f32.mrf.mxu0
    %v226 = vadd.f32 %v136, %v225
    %v227 = vpop.f32.mrf.mxu0
    %228 = vmatprep.mubr.f32.mxu0 0.0
    %229 = vmatmul.mubr.f32.gmra.mxu0 %v151
    %v230 = vpop.f32.mrf.mxu0
    %v231 = vadd.f32 %v141, %v230
    %v232 = vpop.f32.mrf.mxu0
    %233 = vmatprep.mubr.f32.mxu0 0.0
    %234 = vmatmul.mubr.f32.gmra.mxu0 %v153
    %v235 = vpop.f32.mrf.mxu0
    %v236 = vadd.f32 %v146, %v235
    %v237 = vpop.f32.mrf.mxu0
    %238 = vdwg.mxu0
    %v239 = vmax.f32 %v226, 0.0
    %v240 = vmax.f32 %v231, 0.0
    %v241 = vmax.f32 %v236, 0.0
    %v242 = vld [vmem:[#allocation2 + $0x50] sm:$0xff]
    %v243 = vld [vmem:[#allocation2 + $0x60] sm:$0xff]
    %v244 = vld [vmem:[#allocation2 + $0x70] sm:$0xff]
    %v245 = vld [vmem:[#allocation2 + $0x80] sm:$0xff]
    %v246 = vld [vmem:[#allocation2 + $0x90] sm:$0xff]
    %v247 = vld [vmem:[#allocation2 + $0xa0] sm:$0xff]
    %v248 = vld [vmem:[#allocation2 + $0xb0] sm:$0xff]
    %v249 = vld [vmem:[#allocation2 + $0xc0] sm:$0xff]
    %v250 = vld [vmem:[#allocation2 + $0xd0] sm:$0xff]
    %v251 = vld [vmem:[#allocation2 + $0xe0] sm:$0xff]
    %v252 = vld [vmem:[#allocation2 + $0xf0] sm:$0xff]
    %v253 = vld [vmem:[#allocation2 + $0x100] sm:$0xff]
    %v254 = vld [vmem:[#allocation2 + $0x110] sm:$0xff]
    %v255 = vld [vmem:[#allocation2 + $0x120] sm:$0xff]
    %v256 = vld [vmem:[#allocation2 + $0x130] sm:$0xff]
    %v257 = vld [vmem:[#allocation2 + $0x140] sm:$0xff]
    %v258 = vld [vmem:[#allocation2 + $0x150] sm:$0xff]
    %v259 = vld [vmem:[#allocation2 + $0x160] sm:$0xff]
    %v260 = vld [vmem:[#allocation2 + $0x170] sm:$0xff]
    %v261 = vld [vmem:[#allocation2 + $0x180] sm:$0xff]
    %v262 = vld [vmem:[#allocation2 + $0x190] sm:$0xff]
    %v263 = vld [vmem:[#allocation2 + $0x1a0] sm:$0xff]
    %v264 = vld [vmem:[#allocation2 + $0x1b0] sm:$0xff]
    %v265 = vld [vmem:[#allocation2 + $0x1c0] sm:$0xff]
    %267 = vset.pattern.permute.xlu0 24
    %268 = vperm.xlu0 %267, %v242
    %v269 = vpop.permute.xlu0 %268
    %272 = vset.pattern.permute.xlu0 24
    %273 = vperm.xlu0 %272, %v243
    %v274 = vpop.permute.xlu0 %273
    %277 = vset.pattern.permute.xlu0 24
    %278 = vperm.xlu0 %277, %v244
    %v279 = vpop.permute.xlu0 %278
    %282 = vset.pattern.permute.xlu0 24
    %283 = vperm.xlu0 %282, %v245
    %v284 = vpop.permute.xlu0 %283
    %287 = vset.pattern.permute.xlu0 24
    %288 = vperm.xlu0 %287, %v246
    %v289 = vpop.permute.xlu0 %288
    %292 = vset.pattern.permute.xlu0 24
    %293 = vperm.xlu0 %292, %v247
    %v294 = vpop.permute.xlu0 %293
    %297 = vset.pattern.permute.xlu0 24
    %298 = vperm.xlu0 %297, %v248
    %v299 = vpop.permute.xlu0 %298
    %302 = vset.pattern.permute.xlu0 24
    %303 = vperm.xlu0 %302, %v249
    %v304 = vpop.permute.xlu0 %303
    %307 = vset.pattern.permute.xlu0 24
    %308 = vperm.xlu0 %307, %v250
    %v309 = vpop.permute.xlu0 %308
    %312 = vset.pattern.permute.xlu0 24
    %313 = vperm.xlu0 %312, %v251
    %v314 = vpop.permute.xlu0 %313
    %317 = vset.pattern.permute.xlu0 24
    %318 = vperm.xlu0 %317, %v252
    %v319 = vpop.permute.xlu0 %318
    %322 = vset.pattern.permute.xlu0 24
    %323 = vperm.xlu0 %322, %v253
    %v324 = vpop.permute.xlu0 %323
    %327 = vset.pattern.permute.xlu0 24
    %328 = vperm.xlu0 %327, %v254
    %v329 = vpop.permute.xlu0 %328
    %332 = vset.pattern.permute.xlu0 24
    %333 = vperm.xlu0 %332, %v255
    %v334 = vpop.permute.xlu0 %333
    %337 = vset.pattern.permute.xlu0 24
    %338 = vperm.xlu0 %337, %v256
    %v339 = vpop.permute.xlu0 %338
    %342 = vset.pattern.permute.xlu0 24
    %343 = vperm.xlu0 %342, %v257
    %v344 = vpop.permute.xlu0 %343
    %347 = vset.pattern.permute.xlu0 24
    %348 = vperm.xlu0 %347, %v258
    %v349 = vpop.permute.xlu0 %348
    %352 = vset.pattern.permute.xlu0 24
    %353 = vperm.xlu0 %352, %v259
    %v354 = vpop.permute.xlu0 %353
    %357 = vset.pattern.permute.xlu0 24
    %358 = vperm.xlu0 %357, %v260
    %v359 = vpop.permute.xlu0 %358
    %362 = vset.pattern.permute.xlu0 24
    %363 = vperm.xlu0 %362, %v261
    %v364 = vpop.permute.xlu0 %363
    %367 = vset.pattern.permute.xlu0 24
    %368 = vperm.xlu0 %367, %v262
    %v369 = vpop.permute.xlu0 %368
    %372 = vset.pattern.permute.xlu0 24
    %373 = vperm.xlu0 %372, %v263
    %v374 = vpop.permute.xlu0 %373
    %377 = vset.pattern.permute.xlu0 24
    %378 = vperm.xlu0 %377, %v264
    %v379 = vpop.permute.xlu0 %378
    %382 = vset.pattern.permute.xlu0 24
    %383 = vperm.xlu0 %382, %v265
    %v384 = vpop.permute.xlu0 %383
    %vm386 = vcmask 195584
    %v387 = vsel %vm386, %v242, 0
    %v389 = vsel %vm386, %v243, 0
    %v391 = vsel %vm386, %v244, 0
    %v393 = vsel %vm386, %v245, 0
    %v395 = vsel %vm386, %v246, 0
    %v397 = vsel %vm386, %v247, 0
    %v399 = vsel %vm386, %v248, 0
    %v401 = vsel %vm386, %v249, 0
    %v403 = vsel %vm386, %v250, 0
    %v405 = vsel %vm386, %v251, 0
    %v407 = vsel %vm386, %v252, 0
    %v409 = vsel %vm386, %v253, 0
    %v411 = vsel %vm386, %v254, 0
    %v413 = vsel %vm386, %v255, 0
    %v415 = vsel %vm386, %v256, 0
    %v417 = vsel %vm386, %v257, 0
    %v419 = vsel %vm386, %v258, 0
    %v421 = vsel %vm386, %v259, 0
    %v423 = vsel %vm386, %v260, 0
    %v425 = vsel %vm386, %v261, 0
    %v427 = vsel %vm386, %v262, 0
    %v429 = vsel %vm386, %v263, 0
    %v431 = vsel %vm386, %v264, 0
    %v433 = vsel %vm386, %v265, 0
    %435 = vmatprep.subr.mxu0 0.0
    %436 = vmatpush1.msra.mxu0 0.0
    %437 = vmatprep.subr.mxu0 0.0
    %438 = vmatpush1.msra.mxu0 0.0
    %439 = vmatprep.subr.mxu0 0.0
    %440 = vmatpush1.msra.mxu0 0.0
    %441 = vmatprep.subr.mxu0 0.0
    %442 = vmatpush1.msra.mxu0 0.0
    %443 = vmatprep.subr.mxu0 0.0
    %444 = vmatpush1.msra.mxu0 0.0
    %445 = vmatprep.subr.mxu0 0.0
    %446 = vmatpush1.msra.mxu0 0.0
    %447 = vmatprep.subr.mxu0 0.0
    %448 = vmatpush1.msra.mxu0 0.0
    %449 = vmatprep.subr.mxu0 0.0
    %450 = vmatpush1.msra.mxu0 0.0
    %451 = vmatprep.subr.mxu0 0.0
    %452 = vmatpush1.msra.mxu0 0.0
    %453 = vmatprep.subr.mxu0 0.0
    %454 = vmatpush1.msra.mxu0 0.0
    %455 = vmatprep.subr.mxu0 0.0
    %456 = vmatpush1.msra.mxu0 0.0
    %457 = vmatprep.subr.mxu0 0.0
    %458 = vmatpush1.msra.mxu0 0.0
    %459 = vmatprep.subr.mxu0 0.0
    %460 = vmatpush1.msra.mxu0 0.0
    %461 = vmatprep.subr.mxu0 0.0
    %462 = vmatpush1.msra.mxu0 %v241
    %463 = vmatprep.subr.mxu0 0.0
    %464 = vmatpush1.msra.mxu0 %v240
    %465 = vmatprep.subr.mxu0 0.0
    %466 = vmatpush1.msra.mxu0 %v239
    %467 = vmatprep.subr.mxu0 0.0
    %468 = vmatpush2.msra.mxu0 0.0
    %469 = vmatprep.subr.mxu0 0.0
    %470 = vmatpush2.msra.mxu0 0.0
    %471 = vmatprep.subr.mxu0 0.0
    %472 = vmatpush2.msra.mxu0 0.0
    %473 = vmatprep.subr.mxu0 0.0
    %474 = vmatpush2.msra.mxu0 0.0
    %475 = vmatprep.subr.mxu0 0.0
    %476 = vmatpush2.msra.mxu0 0.0
    %477 = vmatprep.subr.mxu0 0.0
    %478 = vmatpush2.msra.mxu0 0.0
    %479 = vmatprep.subr.mxu0 0.0
    %480 = vmatpush2.msra.mxu0 0.0
    %481 = vmatprep.subr.mxu0 0.0
    %482 = vmatpush2.msra.mxu0 0.0
    %483 = vmatprep.subr.mxu0 0.0
    %484 = vmatpush2.msra.mxu0 0.0
    %485 = vmatprep.subr.mxu0 0.0
    %486 = vmatpush2.msra.mxu0 0.0
    %487 = vmatprep.subr.mxu0 0.0
    %488 = vmatpush2.msra.mxu0 0.0
    %489 = vmatprep.subr.mxu0 0.0
    %490 = vmatpush2.msra.mxu0 0.0
    %491 = vmatprep.subr.mxu0 0.0
    %492 = vmatpush2.msra.mxu0 0.0
    %493 = vmatprep.subr.mxu0 0.0
    %494 = vmatpush2.msra.mxu0 0.0
    %495 = vmatprep.subr.mxu0 0.0
    %496 = vmatpush2.msra.mxu0 0.0
    %497 = vmatprep.subr.mxu0 0.0
    %498 = vmatpush2.msra.mxu0 0.0
    %499 = vmatprep.mubr.f32.mxu0 0.0
    %500 = vmatmul.mubr.f32.gmra.mxu0 %v387
    %v501 = vpop.f32.mrf.mxu0
    %v502 = vadd.f32 %v269, %v501
    %v503 = vpop.f32.mrf.mxu0
    %504 = vmatprep.mubr.f32.mxu0 0.0
    %505 = vmatmul.mubr.f32.gmra.mxu0 %v389
    %v506 = vpop.f32.mrf.mxu0
    %v507 = vadd.f32 %v274, %v506
    %v508 = vpop.f32.mrf.mxu0
    %509 = vmatprep.mubr.f32.mxu0 0.0
    %510 = vmatmul.mubr.f32.gmra.mxu0 %v391
    %v511 = vpop.f32.mrf.mxu0
    %v512 = vadd.f32 %v279, %v511
    %v513 = vpop.f32.mrf.mxu0
    %514 = vmatprep.mubr.f32.mxu0 0.0
    %515 = vmatmul.mubr.f32.gmra.mxu0 %v393
    %v516 = vpop.f32.mrf.mxu0
    %v517 = vadd.f32 %v284, %v516
    %v518 = vpop.f32.mrf.mxu0
    %519 = vmatprep.mubr.f32.mxu0 0.0
    %520 = vmatmul.mubr.f32.gmra.mxu0 %v395
    %v521 = vpop.f32.mrf.mxu0
    %v522 = vadd.f32 %v289, %v521
    %v523 = vpop.f32.mrf.mxu0
    %524 = vmatprep.mubr.f32.mxu0 0.0
    %525 = vmatmul.mubr.f32.gmra.mxu0 %v397
    %v526 = vpop.f32.mrf.mxu0
    %v527 = vadd.f32 %v294, %v526
    %v528 = vpop.f32.mrf.mxu0
    %529 = vmatprep.mubr.f32.mxu0 0.0
    %530 = vmatmul.mubr.f32.gmra.mxu0 %v399
    %v531 = vpop.f32.mrf.mxu0
    %v532 = vadd.f32 %v299, %v531
    %v533 = vpop.f32.mrf.mxu0
    %534 = vmatprep.mubr.f32.mxu0 0.0
    %535 = vmatmul.mubr.f32.gmra.mxu0 %v401
    %v536 = vpop.f32.mrf.mxu0
    %v537 = vadd.f32 %v304, %v536
    %v538 = vpop.f32.mrf.mxu0
    %539 = vmatprep.mubr.f32.mxu0 0.0
    %540 = vmatmul.mubr.f32.gmra.mxu0 %v403
    %v541 = vpop.f32.mrf.mxu0
    %v542 = vadd.f32 %v309, %v541
    %v543 = vpop.f32.mrf.mxu0
    %544 = vmatprep.mubr.f32.mxu0 0.0
    %545 = vmatmul.mubr.f32.gmra.mxu0 %v405
    %v546 = vpop.f32.mrf.mxu0
    %v547 = vadd.f32 %v314, %v546
    %v548 = vpop.f32.mrf.mxu0
    %549 = vmatprep.mubr.f32.mxu0 0.0
    %550 = vmatmul.mubr.f32.gmra.mxu0 %v407
    %v551 = vpop.f32.mrf.mxu0
    %v552 = vadd.f32 %v319, %v551
    %v553 = vpop.f32.mrf.mxu0
    %554 = vmatprep.mubr.f32.mxu0 0.0
    %555 = vmatmul.mubr.f32.gmra.mxu0 %v409
    %v556 = vpop.f32.mrf.mxu0
    %v557 = vadd.f32 %v324, %v556
    %v558 = vpop.f32.mrf.mxu0
    %559 = vmatprep.mubr.f32.mxu0 0.0
    %560 = vmatmul.mubr.f32.gmra.mxu0 %v411
    %v561 = vpop.f32.mrf.mxu0
    %v562 = vadd.f32 %v329, %v561
    %v563 = vpop.f32.mrf.mxu0
    %564 = vmatprep.mubr.f32.mxu0 0.0
    %565 = vmatmul.mubr.f32.gmra.mxu0 %v413
    %v566 = vpop.f32.mrf.mxu0
    %v567 = vadd.f32 %v334, %v566
    %v568 = vpop.f32.mrf.mxu0
    %569 = vmatprep.mubr.f32.mxu0 0.0
    %570 = vmatmul.mubr.f32.gmra.mxu0 %v415
    %v571 = vpop.f32.mrf.mxu0
    %v572 = vadd.f32 %v339, %v571
    %v573 = vpop.f32.mrf.mxu0
    %574 = vmatprep.mubr.f32.mxu0 0.0
    %575 = vmatmul.mubr.f32.gmra.mxu0 %v417
    %v576 = vpop.f32.mrf.mxu0
    %v577 = vadd.f32 %v344, %v576
    %v578 = vpop.f32.mrf.mxu0
    %579 = vmatprep.mubr.f32.mxu0 0.0
    %580 = vmatmul.mubr.f32.gmra.mxu0 %v419
    %v581 = vpop.f32.mrf.mxu0
    %v582 = vadd.f32 %v349, %v581
    %v583 = vpop.f32.mrf.mxu0
    %584 = vmatprep.mubr.f32.mxu0 0.0
    %585 = vmatmul.mubr.f32.gmra.mxu0 %v421
    %v586 = vpop.f32.mrf.mxu0
    %v587 = vadd.f32 %v354, %v586
    %v588 = vpop.f32.mrf.mxu0
    %589 = vmatprep.mubr.f32.mxu0 0.0
    %590 = vmatmul.mubr.f32.gmra.mxu0 %v423
    %v591 = vpop.f32.mrf.mxu0
    %v592 = vadd.f32 %v359, %v591
    %v593 = vpop.f32.mrf.mxu0
    %594 = vmatprep.mubr.f32.mxu0 0.0
    %595 = vmatmul.mubr.f32.gmra.mxu0 %v425
    %v596 = vpop.f32.mrf.mxu0
    %v597 = vadd.f32 %v364, %v596
    %v598 = vpop.f32.mrf.mxu0
    %599 = vmatprep.mubr.f32.mxu0 0.0
    %600 = vmatmul.mubr.f32.gmra.mxu0 %v427
    %v601 = vpop.f32.mrf.mxu0
    %v602 = vadd.f32 %v369, %v601
    %v603 = vpop.f32.mrf.mxu0
    %604 = vmatprep.mubr.f32.mxu0 0.0
    %605 = vmatmul.mubr.f32.gmra.mxu0 %v429
    %v606 = vpop.f32.mrf.mxu0
    %v607 = vadd.f32 %v374, %v606
    %v608 = vpop.f32.mrf.mxu0
    %609 = vmatprep.mubr.f32.mxu0 0.0
    %610 = vmatmul.mubr.f32.gmra.mxu0 %v431
    %v611 = vpop.f32.mrf.mxu0
    %v612 = vadd.f32 %v379, %v611
    %v613 = vpop.f32.mrf.mxu0
    %614 = vmatprep.mubr.f32.mxu0 0.0
    %615 = vmatmul.mubr.f32.gmra.mxu0 %v433
    %v616 = vpop.f32.mrf.mxu0
    %v617 = vadd.f32 %v384, %v616
    %v618 = vpop.f32.mrf.mxu0
    %619 = vdwg.mxu0
    %v620 = vmax.f32 %v502, 0.0
    %v621 = vmax.f32 %v507, 0.0
    %v622 = vmax.f32 %v512, 0.0
    %v623 = vmax.f32 %v517, 0.0
    %v624 = vmax.f32 %v522, 0.0
    %v625 = vmax.f32 %v527, 0.0
    %v626 = vmax.f32 %v532, 0.0
    %v627 = vmax.f32 %v537, 0.0
    %v628 = vmax.f32 %v542, 0.0
    %v629 = vmax.f32 %v547, 0.0
    %v630 = vmax.f32 %v552, 0.0
    %v631 = vmax.f32 %v557, 0.0
    %v632 = vmax.f32 %v562, 0.0
    %v633 = vmax.f32 %v567, 0.0
    %v634 = vmax.f32 %v572, 0.0
    %v635 = vmax.f32 %v577, 0.0
    %v636 = vmax.f32 %v582, 0.0
    %v637 = vmax.f32 %v587, 0.0
    %v638 = vmax.f32 %v592, 0.0
    %v639 = vmax.f32 %v597, 0.0
    %v640 = vmax.f32 %v602, 0.0
    %v641 = vmax.f32 %v607, 0.0
    %v642 = vmax.f32 %v612, 0.0
    %v643 = vmax.f32 %v617, 0.0
    %644 = vmax.xlane.f32.xlu0 %v620
    %v645 = vpop.xlane.xlu0 %644
    %646 = vmax.xlane.f32.xlu0 %v621
    %v647 = vpop.xlane.xlu0 %646
    %648 = vmax.xlane.f32.xlu0 %v622
    %v649 = vpop.xlane.xlu0 %648
    %650 = vmax.xlane.f32.xlu0 %v623
    %v651 = vpop.xlane.xlu0 %650
    %652 = vmax.xlane.f32.xlu0 %v624
    %v653 = vpop.xlane.xlu0 %652
    %654 = vmax.xlane.f32.xlu0 %v625
    %v655 = vpop.xlane.xlu0 %654
    %656 = vmax.xlane.f32.xlu0 %v626
    %v657 = vpop.xlane.xlu0 %656
    %658 = vmax.xlane.f32.xlu0 %v627
    %v659 = vpop.xlane.xlu0 %658
    %660 = vmax.xlane.f32.xlu0 %v628
    %v661 = vpop.xlane.xlu0 %660
    %662 = vmax.xlane.f32.xlu0 %v629
    %v663 = vpop.xlane.xlu0 %662
    %664 = vmax.xlane.f32.xlu0 %v630
    %v665 = vpop.xlane.xlu0 %664
    %666 = vmax.xlane.f32.xlu0 %v631
    %v667 = vpop.xlane.xlu0 %666
    %668 = vmax.xlane.f32.xlu0 %v632
    %v669 = vpop.xlane.xlu0 %668
    %670 = vmax.xlane.f32.xlu0 %v633
    %v671 = vpop.xlane.xlu0 %670
    %672 = vmax.xlane.f32.xlu0 %v634
    %v673 = vpop.xlane.xlu0 %672
    %674 = vmax.xlane.f32.xlu0 %v635
    %v675 = vpop.xlane.xlu0 %674
    %676 = vmax.xlane.f32.xlu0 %v636
    %v677 = vpop.xlane.xlu0 %676
    %678 = vmax.xlane.f32.xlu0 %v637
    %v679 = vpop.xlane.xlu0 %678
    %680 = vmax.xlane.f32.xlu0 %v638
    %v681 = vpop.xlane.xlu0 %680
    %682 = vmax.xlane.f32.xlu0 %v639
    %v683 = vpop.xlane.xlu0 %682
    %684 = vmax.xlane.f32.xlu0 %v640
    %v685 = vpop.xlane.xlu0 %684
    %686 = vmax.xlane.f32.xlu0 %v641
    %v687 = vpop.xlane.xlu0 %686
    %688 = vmax.xlane.f32.xlu0 %v642
    %v689 = vpop.xlane.xlu0 %688
    %690 = vmax.xlane.f32.xlu0 %v643
    %v691 = vpop.xlane.xlu0 %690
    %v692 = vld [vmem:[#allocation2 + $0x1d0] sm:$0xff]
    %v693 = vld [vmem:[#allocation2 + $0x1d8] sm:$0xff]
    %v694 = vld [vmem:[#allocation2 + $0x1e0] sm:$0xff]
    %v695 = vld [vmem:[#allocation2 + $0x1e8] sm:$0xff]
    %v696 = vld [vmem:[#allocation2 + $0x1f0] sm:$0xff]
    %v697 = vld [vmem:[#allocation2 + $0x1f8] sm:$0xff]
    %v698 = vld [vmem:[#allocation2 + $0x200] sm:$0xff]
    %v699 = vld [vmem:[#allocation2 + $0x208] sm:$0xff]
    %v700 = vld [vmem:[#allocation2 + $0x210] sm:$0xff]
    %v701 = vld [vmem:[#allocation2 + $0x218] sm:$0xff]
    %v702 = vld [vmem:[#allocation2 + $0x220] sm:$0xff]
    %v703 = vld [vmem:[#allocation2 + $0x228] sm:$0xff]
    %v704 = vld [vmem:[#allocation2 + $0x230] sm:$0xff]
    %v705 = vld [vmem:[#allocation2 + $0x238] sm:$0xff]
    %v706 = vld [vmem:[#allocation2 + $0x240] sm:$0xff]
    %v707 = vld [vmem:[#allocation2 + $0x248] sm:$0xff]
    %v708 = vld [vmem:[#allocation2 + $0x250] sm:$0xff]
    %v709 = vld [vmem:[#allocation2 + $0x258] sm:$0xff]
    %v710 = vld [vmem:[#allocation2 + $0x260] sm:$0xff]
    %v711 = vld [vmem:[#allocation2 + $0x268] sm:$0xff]
    %v712 = vld [vmem:[#allocation2 + $0x270] sm:$0xff]
    %v713 = vld [vmem:[#allocation2 + $0x278] sm:$0xff]
    %v714 = vld [vmem:[#allocation2 + $0x280] sm:$0xff]
    %v715 = vld [vmem:[#allocation2 + $0x288] sm:$0xff]
    %728 = vrot.lane.b32.xlu0 %v693, 64
    %v729 = vpop.permute.xlu0 %728
    %730 = vrot.lane.b32.xlu0 %v695, 64
    %v731 = vpop.permute.xlu0 %730
    %732 = vrot.lane.b32.xlu0 %v697, 64
    %v733 = vpop.permute.xlu0 %732
    %734 = vrot.lane.b32.xlu0 %v699, 64
    %v735 = vpop.permute.xlu0 %734
    %736 = vrot.lane.b32.xlu0 %v701, 64
    %v737 = vpop.permute.xlu0 %736
    %738 = vrot.lane.b32.xlu0 %v703, 64
    %v739 = vpop.permute.xlu0 %738
    %740 = vrot.lane.b32.xlu0 %v705, 64
    %v741 = vpop.permute.xlu0 %740
    %742 = vrot.lane.b32.xlu0 %v707, 64
    %v743 = vpop.permute.xlu0 %742
    %744 = vrot.lane.b32.xlu0 %v709, 64
    %v745 = vpop.permute.xlu0 %744
    %746 = vrot.lane.b32.xlu0 %v711, 64
    %v747 = vpop.permute.xlu0 %746
    %748 = vrot.lane.b32.xlu0 %v713, 64
    %v749 = vpop.permute.xlu0 %748
    %750 = vrot.lane.b32.xlu0 %v715, 64
    %v751 = vpop.permute.xlu0 %750
    %vm764 = vcmask 523264
    %v765 = vsel %vm764, %v693, 0
    %v767 = vsel %vm764, %v695, 0
    %v769 = vsel %vm764, %v697, 0
    %v771 = vsel %vm764, %v699, 0
    %v773 = vsel %vm764, %v701, 0
    %v775 = vsel %vm764, %v703, 0
    %v777 = vsel %vm764, %v705, 0
    %v779 = vsel %vm764, %v707, 0
    %v781 = vsel %vm764, %v709, 0
    %v783 = vsel %vm764, %v711, 0
    %v785 = vsel %vm764, %v713, 0
    %v787 = vsel %vm764, %v715, 0
    %789 = vmatprep.subr.mxu0 0.0
    %790 = vmatpush1.msra.mxu0 %v675
    %791 = vmatprep.subr.mxu0 0.0
    %792 = vmatpush1.msra.mxu0 %v673
    %793 = vmatprep.subr.mxu0 0.0
    %794 = vmatpush1.msra.mxu0 %v671
    %795 = vmatprep.subr.mxu0 0.0
    %796 = vmatpush1.msra.mxu0 %v669
    %797 = vmatprep.subr.mxu0 0.0
    %798 = vmatpush1.msra.mxu0 %v667
    %799 = vmatprep.subr.mxu0 0.0
    %800 = vmatpush1.msra.mxu0 %v665
    %801 = vmatprep.subr.mxu0 0.0
    %802 = vmatpush1.msra.mxu0 %v663
    %803 = vmatprep.subr.mxu0 0.0
    %804 = vmatpush1.msra.mxu0 %v661
    %805 = vmatprep.subr.mxu0 0.0
    %806 = vmatpush1.msra.mxu0 %v659
    %807 = vmatprep.subr.mxu0 0.0
    %808 = vmatpush1.msra.mxu0 %v657
    %809 = vmatprep.subr.mxu0 0.0
    %810 = vmatpush1.msra.mxu0 %v655
    %811 = vmatprep.subr.mxu0 0.0
    %812 = vmatpush1.msra.mxu0 %v653
    %813 = vmatprep.subr.mxu0 0.0
    %814 = vmatpush1.msra.mxu0 %v651
    %815 = vmatprep.subr.mxu0 0.0
    %816 = vmatpush1.msra.mxu0 %v649
    %817 = vmatprep.subr.mxu0 0.0
    %818 = vmatpush1.msra.mxu0 %v647
    %819 = vmatprep.subr.mxu0 0.0
    %820 = vmatpush1.msra.mxu0 %v645
    %821 = vmatprep.subr.mxu0 0.0
    %822 = vmatpush2.msra.mxu0 0.0
    %823 = vmatprep.subr.mxu0 0.0
    %824 = vmatpush2.msra.mxu0 0.0
    %825 = vmatprep.subr.mxu0 0.0
    %826 = vmatpush2.msra.mxu0 0.0
    %827 = vmatprep.subr.mxu0 0.0
    %828 = vmatpush2.msra.mxu0 0.0
    %829 = vmatprep.subr.mxu0 0.0
    %830 = vmatpush2.msra.mxu0 0.0
    %831 = vmatprep.subr.mxu0 0.0
    %832 = vmatpush2.msra.mxu0 0.0
    %833 = vmatprep.subr.mxu0 0.0
    %834 = vmatpush2.msra.mxu0 0.0
    %835 = vmatprep.subr.mxu0 0.0
    %836 = vmatpush2.msra.mxu0 0.0
    %837 = vmatprep.subr.mxu0 0.0
    %838 = vmatpush2.msra.mxu0 %v691
    %839 = vmatprep.subr.mxu0 0.0
    %840 = vmatpush2.msra.mxu0 %v689
    %841 = vmatprep.subr.mxu0 0.0
    %842 = vmatpush2.msra.mxu0 %v687
    %843 = vmatprep.subr.mxu0 0.0
    %844 = vmatpush2.msra.mxu0 %v685
    %845 = vmatprep.subr.mxu0 0.0
    %846 = vmatpush2.msra.mxu0 %v683
    %847 = vmatprep.subr.mxu0 0.0
    %848 = vmatpush2.msra.mxu0 %v681
    %849 = vmatprep.subr.mxu0 0.0
    %850 = vmatpush2.msra.mxu0 %v679
    %851 = vmatprep.subr.mxu0 0.0
    %852 = vmatpush2.msra.mxu0 %v677
    %853 = vmatprep.mubr.f32.mxu0 %v765
    %854 = vmatmul.mubr.f32.gmra.mxu0 %v692
    %v855 = vpop.f32.mrf.mxu0
    %v856 = vadd.f32 %v729, %v855
    %v857 = vpop.f32.mrf.mxu0
    %858 = vmatprep.mubr.f32.mxu0 %v767
    %859 = vmatmul.mubr.f32.gmra.mxu0 %v694
    %v860 = vpop.f32.mrf.mxu0
    %v861 = vadd.f32 %v731, %v860
    %v862 = vpop.f32.mrf.mxu0
    %863 = vmatprep.mubr.f32.mxu0 %v769
    %864 = vmatmul.mubr.f32.gmra.mxu0 %v696
    %v865 = vpop.f32.mrf.mxu0
    %v866 = vadd.f32 %v733, %v865
    %v867 = vpop.f32.mrf.mxu0
    %868 = vmatprep.mubr.f32.mxu0 %v771
    %869 = vmatmul.mubr.f32.gmra.mxu0 %v698
    %v870 = vpop.f32.mrf.mxu0
    %v871 = vadd.f32 %v735, %v870
    %v872 = vpop.f32.mrf.mxu0
    %873 = vmatprep.mubr.f32.mxu0 %v773
    %874 = vmatmul.mubr.f32.gmra.mxu0 %v700
    %v875 = vpop.f32.mrf.mxu0
    %v876 = vadd.f32 %v737, %v875
    %v877 = vpop.f32.mrf.mxu0
    %878 = vmatprep.mubr.f32.mxu0 %v775
    %879 = vmatmul.mubr.f32.gmra.mxu0 %v702
    %v880 = vpop.f32.mrf.mxu0
    %v881 = vadd.f32 %v739, %v880
    %v882 = vpop.f32.mrf.mxu0
    %883 = vmatprep.mubr.f32.mxu0 %v777
    %884 = vmatmul.mubr.f32.gmra.mxu0 %v704
    %v885 = vpop.f32.mrf.mxu0
    %v886 = vadd.f32 %v741, %v885
    %v887 = vpop.f32.mrf.mxu0
    %888 = vmatprep.mubr.f32.mxu0 %v779
    %889 = vmatmul.mubr.f32.gmra.mxu0 %v706
    %v890 = vpop.f32.mrf.mxu0
    %v891 = vadd.f32 %v743, %v890
    %v892 = vpop.f32.mrf.mxu0
    %893 = vmatprep.mubr.f32.mxu0 %v781
    %894 = vmatmul.mubr.f32.gmra.mxu0 %v708
    %v895 = vpop.f32.mrf.mxu0
    %v896 = vadd.f32 %v745, %v895
    %v897 = vpop.f32.mrf.mxu0
    %898 = vmatprep.mubr.f32.mxu0 %v783
    %899 = vmatmul.mubr.f32.gmra.mxu0 %v710
    %v900 = vpop.f32.mrf.mxu0
    %v901 = vadd.f32 %v747, %v900
    %v902 = vpop.f32.mrf.mxu0
    %903 = vmatprep.mubr.f32.mxu0 %v785
    %904 = vmatmul.mubr.f32.gmra.mxu0 %v712
    %v905 = vpop.f32.mrf.mxu0
    %v906 = vadd.f32 %v749, %v905
    %v907 = vpop.f32.mrf.mxu0
    %908 = vmatprep.mubr.f32.mxu0 %v787
    %909 = vmatmul.mubr.f32.gmra.mxu0 %v714
    %v910 = vpop.f32.mrf.mxu0
    %v911 = vadd.f32 %v751, %v910
    %v912 = vpop.f32.mrf.mxu0
    %913 = vdwg.mxu0
    %v914 = vmax.f32 %v856, 0.0
    %v915 = vmax.f32 %v861, 0.0
    %v916 = vmax.f32 %v866, 0.0
    %v917 = vmax.f32 %v871, 0.0
    %v918 = vmax.f32 %v876, 0.0
    %v919 = vmax.f32 %v881, 0.0
    %v920 = vmax.f32 %v886, 0.0
    %v921 = vmax.f32 %v891, 0.0
    %v922 = vmax.f32 %v896, 0.0
    %v923 = vmax.f32 %v901, 0.0
    %v924 = vmax.f32 %v906, 0.0
    %v925 = vmax.f32 %v911, 0.0
    %v926 = vld [vmem:[#allocation2 + $0x290] sm:$0xff]
    %v927 = vld [vmem:[#allocation2 + $0x2a0] sm:$0xff]
    %v928 = vld [vmem:[#allocation2 + $0x2b0] sm:$0xff]
    %v929 = vld [vmem:[#allocation2 + $0x2c0] sm:$0xff]
    %v930 = vld [vmem:[#allocation2 + $0x2d0] sm:$0xff]
    %v931 = vld [vmem:[#allocation2 + $0x2e0] sm:$0xff]
    %938 = vrot.lane.b32.xlu0 %v926, 32
    %v939 = vpop.permute.xlu0 %938
    %940 = vrot.lane.b32.xlu0 %v927, 32
    %v941 = vpop.permute.xlu0 %940
    %942 = vrot.lane.b32.xlu0 %v928, 32
    %v943 = vpop.permute.xlu0 %942
    %944 = vrot.lane.b32.xlu0 %v929, 32
    %v945 = vpop.permute.xlu0 %944
    %946 = vrot.lane.b32.xlu0 %v930, 32
    %v947 = vpop.permute.xlu0 %946
    %948 = vrot.lane.b32.xlu0 %v931, 32
    %v949 = vpop.permute.xlu0 %948
    %vm956 = vcmask 785408
    %v957 = vsel %vm956, %v926, 0
    %v959 = vsel %vm956, %v927, 0
    %v961 = vsel %vm956, %v928, 0
    %v963 = vsel %vm956, %v929, 0
    %v965 = vsel %vm956, %v930, 0
    %v967 = vsel %vm956, %v931, 0
    %969 = vmatprep.subr.mxu0 0.0
    %970 = vmatpush1.msra.mxu0 0.0
    %971 = vmatprep.subr.mxu0 0.0
    %972 = vmatpush1.msra.mxu0 0.0
    %973 = vmatprep.subr.mxu0 0.0
    %974 = vmatpush1.msra.mxu0 0.0
    %975 = vmatprep.subr.mxu0 0.0
    %976 = vmatpush1.msra.mxu0 0.0
    %977 = vmatprep.subr.mxu0 0.0
    %978 = vmatpush1.msra.mxu0 %v925
    %979 = vmatprep.subr.mxu0 0.0
    %980 = vmatpush1.msra.mxu0 %v924
    %981 = vmatprep.subr.mxu0 0.0
    %982 = vmatpush1.msra.mxu0 %v923
    %983 = vmatprep.subr.mxu0 0.0
    %984 = vmatpush1.msra.mxu0 %v922
    %985 = vmatprep.subr.mxu0 0.0
    %986 = vmatpush1.msra.mxu0 %v921
    %987 = vmatprep.subr.mxu0 0.0
    %988 = vmatpush1.msra.mxu0 %v920
    %989 = vmatprep.subr.mxu0 0.0
    %990 = vmatpush1.msra.mxu0 %v919
    %991 = vmatprep.subr.mxu0 0.0
    %992 = vmatpush1.msra.mxu0 %v918
    %993 = vmatprep.subr.mxu0 0.0
    %994 = vmatpush1.msra.mxu0 %v917
    %995 = vmatprep.subr.mxu0 0.0
    %996 = vmatpush1.msra.mxu0 %v916
    %997 = vmatprep.subr.mxu0 0.0
    %998 = vmatpush1.msra.mxu0 %v915
    %999 = vmatprep.subr.mxu0 0.0
    %1000 = vmatpush1.msra.mxu0 %v914
    %1001 = vmatprep.subr.mxu0 0.0
    %1002 = vmatpush2.msra.mxu0 0.0
    %1003 = vmatprep.subr.mxu0 0.0
    %1004 = vmatpush2.msra.mxu0 0.0
    %1005 = vmatprep.subr.mxu0 0.0
    %1006 = vmatpush2.msra.mxu0 0.0
    %1007 = vmatprep.subr.mxu0 0.0
    %1008 = vmatpush2.msra.mxu0 0.0
    %1009 = vmatprep.subr.mxu0 0.0
    %1010 = vmatpush2.msra.mxu0 0.0
    %1011 = vmatprep.subr.mxu0 0.0
    %1012 = vmatpush2.msra.mxu0 0.0
    %1013 = vmatprep.subr.mxu0 0.0
    %1014 = vmatpush2.msra.mxu0 0.0
    %1015 = vmatprep.subr.mxu0 0.0
    %1016 = vmatpush2.msra.mxu0 0.0
    %1017 = vmatprep.subr.mxu0 0.0
    %1018 = vmatpush2.msra.mxu0 0.0
    %1019 = vmatprep.subr.mxu0 0.0
    %1020 = vmatpush2.msra.mxu0 0.0
    %1021 = vmatprep.subr.mxu0 0.0
    %1022 = vmatpush2.msra.mxu0 0.0
    %1023 = vmatprep.subr.mxu0 0.0
    %1024 = vmatpush2.msra.mxu0 0.0
    %1025 = vmatprep.subr.mxu0 0.0
    %1026 = vmatpush2.msra.mxu0 0.0
    %1027 = vmatprep.subr.mxu0 0.0
    %1028 = vmatpush2.msra.mxu0 0.0
    %1029 = vmatprep.subr.mxu0 0.0
    %1030 = vmatpush2.msra.mxu0 0.0
    %1031 = vmatprep.subr.mxu0 0.0
    %1032 = vmatpush2.msra.mxu0 0.0
    %1033 = vmatprep.mubr.f32.mxu0 0.0
    %1034 = vmatmul.mubr.f32.gmra.mxu0 %v957
    %v1035 = vpop.f32.mrf.mxu0
    %v1036 = vadd.f32 %v939, %v1035
    %v1037 = vpop.f32.mrf.mxu0
    %1038 = vmatprep.mubr.f32.mxu0 0.0
    %1039 = vmatmul.mubr.f32.gmra.mxu0 %v959
    %v1040 = vpop.f32.mrf.mxu0
    %v1041 = vadd.f32 %v941, %v1040
    %v1042 = vpop.f32.mrf.mxu0
    %1043 = vmatprep.mubr.f32.mxu0 0.0
    %1044 = vmatmul.mubr.f32.gmra.mxu0 %v961
    %v1045 = vpop.f32.mrf.mxu0
    %v1046 = vadd.f32 %v943, %v1045
    %v1047 = vpop.f32.mrf.mxu0
    %1048 = vmatprep.mubr.f32.mxu0 0.0
    %1049 = vmatmul.mubr.f32.gmra.mxu0 %v963
    %v1050 = vpop.f32.mrf.mxu0
    %v1051 = vadd.f32 %v945, %v1050
    %v1052 = vpop.f32.mrf.mxu0
    %1053 = vmatprep.mubr.f32.mxu0 0.0
    %1054 = vmatmul.mubr.f32.gmra.mxu0 %v965
    %v1055 = vpop.f32.mrf.mxu0
    %v1056 = vadd.f32 %v947, %v1055
    %v1057 = vpop.f32.mrf.mxu0
    %1058 = vmatprep.mubr.f32.mxu0 0.0
    %1059 = vmatmul.mubr.f32.gmra.mxu0 %v967
    %v1060 = vpop.f32.mrf.mxu0
    %v1061 = vadd.f32 %v949, %v1060
    %v1062 = vpop.f32.mrf.mxu0
    %1063 = vdwg.mxu0
    %v1064 = vmax.f32 %v1036, 0.0
    %v1065 = vmax.f32 %v1041, 0.0
    %v1066 = vmax.f32 %v1046, 0.0
    %v1067 = vmax.f32 %v1051, 0.0
    %v1068 = vmax.f32 %v1056, 0.0
    %v1069 = vmax.f32 %v1061, 0.0
    %v1070 = vld [vmem:[#allocation2 + $0x2f0] sm:$0xff]
    %v1071 = vld [vmem:[#allocation2 + $0x300] sm:$0xff]
    %v1072 = vld [vmem:[#allocation2 + $0x310] sm:$0xff]
    %v1073 = vld [vmem:[#allocation2 + $0x320] sm:$0x1]
    %1078 = vrot.lane.b32.xlu0 %v1070, 80
    %v1079 = vpop.permute.xlu0 %1078
    %1080 = vrot.lane.b32.xlu0 %v1071, 80
    %v1081 = vpop.permute.xlu0 %1080
    %1082 = vrot.lane.b32.xlu0 %v1072, 80
    %v1083 = vpop.permute.xlu0 %1082
    %1084 = vrot.lane.b32.xlu0 %v1073, 80
    %v1085 = vpop.permute.xlu0 %1084
    %vm1090 = vcmask 392192
    %v1091 = vsel %vm1090, %v1070, 0
    %v1093 = vsel %vm1090, %v1071, 0
    %v1095 = vsel %vm1090, %v1072, 0
    %v1097 = vsel %vm1090, %v1073, 0
    %1099 = vmatprep.subr.mxu0 0.0
    %1100 = vmatpush1.msra.mxu0 0.0
    %1101 = vmatprep.subr.mxu0 0.0
    %1102 = vmatpush1.msra.mxu0 0.0
    %1103 = vmatprep.subr.mxu0 0.0
    %1104 = vmatpush1.msra.mxu0 0.0
    %1105 = vmatprep.subr.mxu0 0.0
    %1106 = vmatpush1.msra.mxu0 0.0
    %1107 = vmatprep.subr.mxu0 0.0
    %1108 = vmatpush1.msra.mxu0 0.0
    %1109 = vmatprep.subr.mxu0 0.0
    %1110 = vmatpush1.msra.mxu0 0.0
    %1111 = vmatprep.subr.mxu0 0.0
    %1112 = vmatpush1.msra.mxu0 0.0
    %1113 = vmatprep.subr.mxu0 0.0
    %1114 = vmatpush1.msra.mxu0 0.0
    %1115 = vmatprep.subr.mxu0 0.0
    %1116 = vmatpush1.msra.mxu0 0.0
    %1117 = vmatprep.subr.mxu0 0.0
    %1118 = vmatpush1.msra.mxu0 0.0
    %1119 = vmatprep.subr.mxu0 0.0
    %1120 = vmatpush1.msra.mxu0 %v1069
    %1121 = vmatprep.subr.mxu0 0.0
    %1122 = vmatpush1.msra.mxu0 %v1068
    %1123 = vmatprep.subr.mxu0 0.0
    %1124 = vmatpush1.msra.mxu0 %v1067
    %1125 = vmatprep.subr.mxu0 0.0
    %1126 = vmatpush1.msra.mxu0 %v1066
    %1127 = vmatprep.subr.mxu0 0.0
    %1128 = vmatpush1.msra.mxu0 %v1065
    %1129 = vmatprep.subr.mxu0 0.0
    %1130 = vmatpush1.msra.mxu0 %v1064
    %1131 = vmatprep.subr.mxu0 0.0
    %1132 = vmatpush2.msra.mxu0 0.0
    %1133 = vmatprep.subr.mxu0 0.0
    %1134 = vmatpush2.msra.mxu0 0.0
    %1135 = vmatprep.subr.mxu0 0.0
    %1136 = vmatpush2.msra.mxu0 0.0
    %1137 = vmatprep.subr.mxu0 0.0
    %1138 = vmatpush2.msra.mxu0 0.0
    %1139 = vmatprep.subr.mxu0 0.0
    %1140 = vmatpush2.msra.mxu0 0.0
    %1141 = vmatprep.subr.mxu0 0.0
    %1142 = vmatpush2.msra.mxu0 0.0
    %1143 = vmatprep.subr.mxu0 0.0
    %1144 = vmatpush2.msra.mxu0 0.0
    %1145 = vmatprep.subr.mxu0 0.0
    %1146 = vmatpush2.msra.mxu0 0.0
    %1147 = vmatprep.subr.mxu0 0.0
    %1148 = vmatpush2.msra.mxu0 0.0
    %1149 = vmatprep.subr.mxu0 0.0
    %1150 = vmatpush2.msra.mxu0 0.0
    %1151 = vmatprep.subr.mxu0 0.0
    %1152 = vmatpush2.msra.mxu0 0.0
    %1153 = vmatprep.subr.mxu0 0.0
    %1154 = vmatpush2.msra.mxu0 0.0
    %1155 = vmatprep.subr.mxu0 0.0
    %1156 = vmatpush2.msra.mxu0 0.0
    %1157 = vmatprep.subr.mxu0 0.0
    %1158 = vmatpush2.msra.mxu0 0.0
    %1159 = vmatprep.subr.mxu0 0.0
    %1160 = vmatpush2.msra.mxu0 0.0
    %1161 = vmatprep.subr.mxu0 0.0
    %1162 = vmatpush2.msra.mxu0 0.0
    %1163 = vmatprep.mubr.f32.mxu0 0.0
    %1164 = vmatmul.mubr.f32.gmra.mxu0 %v1091
    %v1165 = vpop.f32.mrf.mxu0
    %v1166 = vadd.f32 %v1079, %v1165
    %v1167 = vpop.f32.mrf.mxu0
    %1168 = vmatprep.mubr.f32.mxu0 0.0
    %1169 = vmatmul.mubr.f32.gmra.mxu0 %v1093
    %v1170 = vpop.f32.mrf.mxu0
    %v1171 = vadd.f32 %v1081, %v1170
    %v1172 = vpop.f32.mrf.mxu0
    %1173 = vmatprep.mubr.f32.mxu0 0.0
    %1174 = vmatmul.mubr.f32.gmra.mxu0 %v1095
    %v1175 = vpop.f32.mrf.mxu0
    %v1176 = vadd.f32 %v1083, %v1175
    %v1177 = vpop.f32.mrf.mxu0
    %1178 = vmatprep.mubr.f32.mxu0 0.0
    %1179 = vmatmul.mubr.f32.gmra.mxu0 %v1097
    %v1180 = vpop.f32.mrf.mxu0
    %v1181 = vadd.f32 %v1085, %v1180
    %v1182 = vpop.f32.mrf.mxu0
    %1183 = vdwg.mxu0
    %v1184 = vld [vmem:[#allocation2 + $0x330] sm:$0x1f]
    %v1185 = vld [vmem:[#allocation2 + $0x340] sm:$0xff]
    %v1186 = vld [vmem:[#allocation2 + $0x350] sm:$0xff]
    %v1187 = vld [vmem:[#allocation2 + $0x360] sm:$0xff]
    %v1188 = vld [vmem:[#allocation2 + $0x370] sm:$0x1]
    %v1189 = vld [vmem:[#allocation2 + $0x380] sm:$0x1f]
    %v1190 = vld [vmem:[#allocation2 + $0x390] sm:$0xff]
    %v1191 = vld [vmem:[#allocation2 + $0x3a0] sm:$0xff]
    %v1192 = vld [vmem:[#allocation2 + $0x3b0] sm:$0xff]
    %v1193 = vld [vmem:[#allocation2 + $0x3c0] sm:$0x1]
    %v1194 = vld [vmem:[#allocation2 + $0x3d0] sm:$0x1f]
    %1196 = vset.pattern.permute.xlu0 0
    %1197 = vperm.xlu0 %1196, %v1166
    %v1198 = vpop.permute.xlu0 %1197
    %1201 = vset.pattern.permute.xlu0 0
    %1202 = vperm.xlu0 %1201, %v1171
    %v1203 = vpop.permute.xlu0 %1202
    %1206 = vset.pattern.permute.xlu0 0
    %1207 = vperm.xlu0 %1206, %v1176
    %v1208 = vpop.permute.xlu0 %1207
    %1211 = vset.pattern.permute.xlu0 0
    %1212 = vperm.xlu0 %1211, %v1181
    %v1213 = vpop.permute.xlu0 %1212
    %v1215 = vmul.f32 %v1198, %v1185
    %v1216 = vmul.f32 %v1203, %v1186
    %v1217 = vmul.f32 %v1208, %v1187
    %v1218 = vmul.f32 %v1213, %v1188
    %vm1219 = vcmask 203776
    %v1221 = vsel %vm1219, %v1184, 0
    %vm1223 = vcmask 1040384
    %v1225 = vsel %vm1223, %v1218, 0
    %1227 = vmatprep.subr.mxu0 0.0
    %1228 = vmatpush1.msra.mxu0 0.0
    %1229 = vmatprep.subr.mxu0 0.0
    %1230 = vmatpush1.msra.mxu0 0.0
    %1231 = vmatprep.subr.mxu0 0.0
    %1232 = vmatpush1.msra.mxu0 0.0
    %1233 = vmatprep.subr.mxu0 0.0
    %1234 = vmatpush1.msra.mxu0 0.0
    %1235 = vmatprep.subr.mxu0 0.0
    %1236 = vmatpush1.msra.mxu0 0.0
    %1237 = vmatprep.subr.mxu0 0.0
    %1238 = vmatpush1.msra.mxu0 0.0
    %1239 = vmatprep.subr.mxu0 0.0
    %1240 = vmatpush1.msra.mxu0 0.0
    %1241 = vmatprep.subr.mxu0 0.0
    %1242 = vmatpush1.msra.mxu0 0.0
    %1243 = vmatprep.subr.mxu0 0.0
    %1244 = vmatpush1.msra.mxu0 0.0
    %1245 = vmatprep.subr.mxu0 0.0
    %1246 = vmatpush1.msra.mxu0 0.0
    %1247 = vmatprep.subr.mxu0 0.0
    %1248 = vmatpush1.msra.mxu0 0.0
    %1249 = vmatprep.subr.mxu0 0.0
    %1250 = vmatpush1.msra.mxu0 0.0
    %1251 = vmatprep.subr.mxu0 0.0
    %1252 = vmatpush1.msra.mxu0 %v1225
    %1253 = vmatprep.subr.mxu0 0.0
    %1254 = vmatpush1.msra.mxu0 %v1217
    %1255 = vmatprep.subr.mxu0 0.0
    %1256 = vmatpush1.msra.mxu0 %v1216
    %1257 = vmatprep.subr.mxu0 0.0
    %1258 = vmatpush1.msra.mxu0 %v1215
    %1259 = vmatprep.subr.mxu0 0.0
    %1260 = vmatpush2.msra.mxu0 0.0
    %1261 = vmatprep.subr.mxu0 0.0
    %1262 = vmatpush2.msra.mxu0 0.0
    %1263 = vmatprep.subr.mxu0 0.0
    %1264 = vmatpush2.msra.mxu0 0.0
    %1265 = vmatprep.subr.mxu0 0.0
    %1266 = vmatpush2.msra.mxu0 0.0
    %1267 = vmatprep.subr.mxu0 0.0
    %1268 = vmatpush2.msra.mxu0 0.0
    %1269 = vmatprep.subr.mxu0 0.0
    %1270 = vmatpush2.msra.mxu0 0.0
    %1271 = vmatprep.subr.mxu0 0.0
    %1272 = vmatpush2.msra.mxu0 0.0
    %1273 = vmatprep.subr.mxu0 0.0
    %1274 = vmatpush2.msra.mxu0 0.0
    %1275 = vmatprep.subr.mxu0 0.0
    %1276 = vmatpush2.msra.mxu0 0.0
    %1277 = vmatprep.subr.mxu0 0.0
    %1278 = vmatpush2.msra.mxu0 0.0
    %1279 = vmatprep.subr.mxu0 0.0
    %1280 = vmatpush2.msra.mxu0 0.0
    %1281 = vmatprep.subr.mxu0 0.0
    %1282 = vmatpush2.msra.mxu0 0.0
    %1283 = vmatprep.subr.mxu0 0.0
    %1284 = vmatpush2.msra.mxu0 0.0
    %1285 = vmatprep.subr.mxu0 0.0
    %1286 = vmatpush2.msra.mxu0 0.0
    %1287 = vmatprep.subr.mxu0 0.0
    %1288 = vmatpush2.msra.mxu0 0.0
    %1289 = vmatprep.subr.mxu0 0.0
    %1290 = vmatpush2.msra.mxu0 0.0
    %1291 = vmatprep.mubr.f32.mxu0 0.0
    %1292 = vmatmul.mubr.f32.gmra.mxu0 %v1221
    %v1293 = vpop.f32.mrf.mxu0
    %v1294 = vadd.f32 %v1194, %v1293
    %v1295 = vpop.f32.mrf.mxu0
    %1296 = vdwg.mxu0
    %v1297 = vmul.f32 %v1198, %v1190
    %v1298 = vmul.f32 %v1203, %v1191
    %v1299 = vmul.f32 %v1208, %v1192
    %v1300 = vmul.f32 %v1213, %v1193
    %v1302 = vsel %vm1219, %v1189, 0
    %v1305 = vsel %vm1223, %v1300, 0
    %1307 = vmatprep.subr.mxu0 0.0
    %1308 = vmatpush1.msra.mxu0 0.0
    %1309 = vmatprep.subr.mxu0 0.0
    %1310 = vmatpush1.msra.mxu0 0.0
    %1311 = vmatprep.subr.mxu0 0.0
    %1312 = vmatpush1.msra.mxu0 0.0
    %1313 = vmatprep.subr.mxu0 0.0
    %1314 = vmatpush1.msra.mxu0 0.0
    %1315 = vmatprep.subr.mxu0 0.0
    %1316 = vmatpush1.msra.mxu0 0.0
    %1317 = vmatprep.subr.mxu0 0.0
    %1318 = vmatpush1.msra.mxu0 0.0
    %1319 = vmatprep.subr.mxu0 0.0
    %1320 = vmatpush1.msra.mxu0 0.0
    %1321 = vmatprep.subr.mxu0 0.0
    %1322 = vmatpush1.msra.mxu0 0.0
    %1323 = vmatprep.subr.mxu0 0.0
    %1324 = vmatpush1.msra.mxu0 0.0
    %1325 = vmatprep.subr.mxu0 0.0
    %1326 = vmatpush1.msra.mxu0 0.0
    %1327 = vmatprep.subr.mxu0 0.0
    %1328 = vmatpush1.msra.mxu0 0.0
    %1329 = vmatprep.subr.mxu0 0.0
    %1330 = vmatpush1.msra.mxu0 0.0
    %1331 = vmatprep.subr.mxu0 0.0
    %1332 = vmatpush1.msra.mxu0 %v1305
    %1333 = vmatprep.subr.mxu0 0.0
    %1334 = vmatpush1.msra.mxu0 %v1299
    %1335 = vmatprep.subr.mxu0 0.0
    %1336 = vmatpush1.msra.mxu0 %v1298
    %1337 = vmatprep.subr.mxu0 0.0
    %1338 = vmatpush1.msra.mxu0 %v1297
    %1339 = vmatprep.subr.mxu0 0.0
    %1340 = vmatpush2.msra.mxu0 0.0
    %1341 = vmatprep.subr.mxu0 0.0
    %1342 = vmatpush2.msra.mxu0 0.0
    %1343 = vmatprep.subr.mxu0 0.0
    %1344 = vmatpush2.msra.mxu0 0.0
    %1345 = vmatprep.subr.mxu0 0.0
    %1346 = vmatpush2.msra.mxu0 0.0
    %1347 = vmatprep.subr.mxu0 0.0
    %1348 = vmatpush2.msra.mxu0 0.0
    %1349 = vmatprep.subr.mxu0 0.0
    %1350 = vmatpush2.msra.mxu0 0.0
    %1351 = vmatprep.subr.mxu0 0.0
    %1352 = vmatpush2.msra.mxu0 0.0
    %1353 = vmatprep.subr.mxu0 0.0
    %1354 = vmatpush2.msra.mxu0 0.0
    %1355 = vmatprep.subr.mxu0 0.0
    %1356 = vmatpush2.msra.mxu0 0.0
    %1357 = vmatprep.subr.mxu0 0.0
    %1358 = vmatpush2.msra.mxu0 0.0
    %1359 = vmatprep.subr.mxu0 0.0
    %1360 = vmatpush2.msra.mxu0 0.0
    %1361 = vmatprep.subr.mxu0 0.0
    %1362 = vmatpush2.msra.mxu0 0.0
    %1363 = vmatprep.subr.mxu0 0.0
    %1364 = vmatpush2.msra.mxu0 0.0
    %1365 = vmatprep.subr.mxu0 0.0
    %1366 = vmatpush2.msra.mxu0 0.0
    %1367 = vmatprep.subr.mxu0 0.0
    %1368 = vmatpush2.msra.mxu0 0.0
    %1369 = vmatprep.subr.mxu0 0.0
    %1370 = vmatpush2.msra.mxu0 0.0
    %1371 = vmatprep.mubr.f32.mxu0 0.0
    %1372 = vmatmul.mubr.f32.gmra.mxu0 %v1302
    %v1373 = vpop.f32.mrf.mxu0
    %v1374 = vadd.f32 %v1194, %v1373
    %v1375 = vpop.f32.mrf.mxu0
    %1376 = vdwg.mxu0
    %v1378 = vsel %vm44, %v1374, 0
    %1380 = vmatprep.subr.mxu0 0.0
    %1381 = vmatpush1.msra.mxu0 0.0
    %1382 = vmatprep.subr.mxu0 0.0
    %1383 = vmatpush1.msra.mxu0 0.0
    %1384 = vmatprep.subr.mxu0 0.0
    %1385 = vmatpush1.msra.mxu0 0.0
    %1386 = vmatprep.subr.mxu0 0.0
    %1387 = vmatpush1.msra.mxu0 0.0
    %1388 = vmatprep.subr.mxu0 0.0
    %1389 = vmatpush1.msra.mxu0 0.0
    %1390 = vmatprep.subr.mxu0 0.0
    %1391 = vmatpush1.msra.mxu0 0.0
    %1392 = vmatprep.subr.mxu0 0.0
    %1393 = vmatpush1.msra.mxu0 0.0
    %1394 = vmatprep.subr.mxu0 0.0
    %1395 = vmatpush1.msra.mxu0 0.0
    %1396 = vmatprep.subr.mxu0 0.0
    %1397 = vmatpush1.msra.mxu0 0.0
    %1398 = vmatprep.subr.mxu0 0.0
    %1399 = vmatpush1.msra.mxu0 0.0
    %1400 = vmatprep.subr.mxu0 0.0
    %1401 = vmatpush1.msra.mxu0 0.0
    %1402 = vmatprep.subr.mxu0 0.0
    %1403 = vmatpush1.msra.mxu0 0.0
    %1404 = vmatprep.subr.mxu0 0.0
    %1405 = vmatpush1.msra.mxu0 0.0
    %1406 = vmatprep.subr.mxu0 0.0
    %1407 = vmatpush1.msra.mxu0 0.0
    %1408 = vmatprep.subr.mxu0 0.0
    %1409 = vmatpush1.msra.mxu0 0.0
    %1410 = vmatprep.subr.mxu0 0.0
    %1411 = vmatpush1.msra.mxu0 %v51
    %1412 = vmatprep.subr.mxu0 0.0
    %1413 = vmatpush2.msra.mxu0 0.0
    %1414 = vmatprep.subr.mxu0 0.0
    %1415 = vmatpush2.msra.mxu0 0.0
    %1416 = vmatprep.subr.mxu0 0.0
    %1417 = vmatpush2.msra.mxu0 0.0
    %1418 = vmatprep.subr.mxu0 0.0
    %1419 = vmatpush2.msra.mxu0 0.0
    %1420 = vmatprep.subr.mxu0 0.0
    %1421 = vmatpush2.msra.mxu0 0.0
    %1422 = vmatprep.subr.mxu0 0.0
    %1423 = vmatpush2.msra.mxu0 0.0
    %1424 = vmatprep.subr.mxu0 0.0
    %1425 = vmatpush2.msra.mxu0 0.0
    %1426 = vmatprep.subr.mxu0 0.0
    %1427 = vmatpush2.msra.mxu0 0.0
    %1428 = vmatprep.subr.mxu0 0.0
    %1429 = vmatpush2.msra.mxu0 0.0
    %1430 = vmatprep.subr.mxu0 0.0
    %1431 = vmatpush2.msra.mxu0 0.0
    %1432 = vmatprep.subr.mxu0 0.0
    %1433 = vmatpush2.msra.mxu0 0.0
    %1434 = vmatprep.subr.mxu0 0.0
    %1435 = vmatpush2.msra.mxu0 0.0
    %1436 = vmatprep.subr.mxu0 0.0
    %1437 = vmatpush2.msra.mxu0 0.0
    %1438 = vmatprep.subr.mxu0 0.0
    %1439 = vmatpush2.msra.mxu0 0.0
    %1440 = vmatprep.subr.mxu0 0.0
    %1441 = vmatpush2.msra.mxu0 0.0
    %1442 = vmatprep.subr.mxu0 0.0
    %1443 = vmatpush2.msra.mxu0 0.0
    %1444 = vmatprep.mubr.f32.mxu0 0.0
    %1445 = vmatmul.mubr.f32.gmra.mxu0 %v1378
    %v1446 = vpop.f32.mrf.mxu0
    %v1447 = vadd.f32 0.0, %v1446
    %v1448 = vpop.f32.mrf.mxu0
    %1449 = vdwg.mxu0
    %v1450 = vld [vmem:[#allocation2 + $0xa90] sm:$0xff]
    %v1451 = vld [vmem:[#allocation2 + $0xaa0] sm:$0xf]
    %1453 = vset.pattern.permute.xlu0 5
    %1454 = vperm.xlu0 %1453, %v1450
    %v1455 = vpop.permute.xlu0 %1454
    %1458 = vset.pattern.permute.xlu0 5
    %1459 = vperm.xlu0 %1458, %v1451
    %v1460 = vpop.permute.xlu0 %1459
    %v1462 = vsel %vm44, %v1450, 0
    %v1464 = vsel %vm44, %v1451, 0
    %v1467 = vsel %vm49, %v1447, 0
    %1469 = vmatprep.subr.mxu0 0.0
    %1470 = vmatpush1.msra.mxu0 0.0
    %1471 = vmatprep.subr.mxu0 0.0
    %1472 = vmatpush1.msra.mxu0 0.0
    %1473 = vmatprep.subr.mxu0 0.0
    %1474 = vmatpush1.msra.mxu0 0.0
    %1475 = vmatprep.subr.mxu0 0.0
    %1476 = vmatpush1.msra.mxu0 0.0
    %1477 = vmatprep.subr.mxu0 0.0
    %1478 = vmatpush1.msra.mxu0 0.0
    %1479 = vmatprep.subr.mxu0 0.0
    %1480 = vmatpush1.msra.mxu0 0.0
    %1481 = vmatprep.subr.mxu0 0.0
    %1482 = vmatpush1.msra.mxu0 0.0
    %1483 = vmatprep.subr.mxu0 0.0
    %1484 = vmatpush1.msra.mxu0 0.0
    %1485 = vmatprep.subr.mxu0 0.0
    %1486 = vmatpush1.msra.mxu0 0.0
    %1487 = vmatprep.subr.mxu0 0.0
    %1488 = vmatpush1.msra.mxu0 0.0
    %1489 = vmatprep.subr.mxu0 0.0
    %1490 = vmatpush1.msra.mxu0 0.0
    %1491 = vmatprep.subr.mxu0 0.0
    %1492 = vmatpush1.msra.mxu0 0.0
    %1493 = vmatprep.subr.mxu0 0.0
    %1494 = vmatpush1.msra.mxu0 0.0
    %1495 = vmatprep.subr.mxu0 0.0
    %1496 = vmatpush1.msra.mxu0 0.0
    %1497 = vmatprep.subr.mxu0 0.0
    %1498 = vmatpush1.msra.mxu0 0.0
    %1499 = vmatprep.subr.mxu0 0.0
    %1500 = vmatpush1.msra.mxu0 %v1467
    %1501 = vmatprep.subr.mxu0 0.0
    %1502 = vmatpush2.msra.mxu0 0.0
    %1503 = vmatprep.subr.mxu0 0.0
    %1504 = vmatpush2.msra.mxu0 0.0
    %1505 = vmatprep.subr.mxu0 0.0
    %1506 = vmatpush2.msra.mxu0 0.0
    %1507 = vmatprep.subr.mxu0 0.0
    %1508 = vmatpush2.msra.mxu0 0.0
    %1509 = vmatprep.subr.mxu0 0.0
    %1510 = vmatpush2.msra.mxu0 0.0
    %1511 = vmatprep.subr.mxu0 0.0
    %1512 = vmatpush2.msra.mxu0 0.0
    %1513 = vmatprep.subr.mxu0 0.0
    %1514 = vmatpush2.msra.mxu0 0.0
    %1515 = vmatprep.subr.mxu0 0.0
    %1516 = vmatpush2.msra.mxu0 0.0
    %1517 = vmatprep.subr.mxu0 0.0
    %1518 = vmatpush2.msra.mxu0 0.0
    %1519 = vmatprep.subr.mxu0 0.0
    %1520 = vmatpush2.msra.mxu0 0.0
    %1521 = vmatprep.subr.mxu0 0.0
    %1522 = vmatpush2.msra.mxu0 0.0
    %1523 = vmatprep.subr.mxu0 0.0
    %1524 = vmatpush2.msra.mxu0 0.0
    %1525 = vmatprep.subr.mxu0 0.0
    %1526 = vmatpush2.msra.mxu0 0.0
    %1527 = vmatprep.subr.mxu0 0.0
    %1528 = vmatpush2.msra.mxu0 0.0
    %1529 = vmatprep.subr.mxu0 0.0
    %1530 = vmatpush2.msra.mxu0 0.0
    %1531 = vmatprep.subr.mxu0 0.0
    %1532 = vmatpush2.msra.mxu0 0.0
    %1533 = vmatprep.mubr.f32.mxu0 0.0
    %1534 = vmatmul.mubr.f32.gmra.mxu0 %v1462
    %v1535 = vpop.f32.mrf.mxu0
    %v1536 = vadd.f32 %v1455, %v1535
    %v1537 = vpop.f32.mrf.mxu0
    %1538 = vmatprep.mubr.f32.mxu0 0.0
    %1539 = vmatmul.mubr.f32.gmra.mxu0 %v1464
    %v1540 = vpop.f32.mrf.mxu0
    %v1541 = vadd.f32 %v1460, %v1540
    %v1542 = vpop.f32.mrf.mxu0
    %1543 = vdwg.mxu0
    %v1544 = vmax.f32 %v1536, 0.0
    %v1545 = vmax.f32 %v1541, 0.0
    %v1546 = vld [vmem:[#allocation2 + $0x3e0] sm:$0xff]
    %v1547 = vld [vmem:[#allocation2 + $0x3f0] sm:$0xf]
    %1549 = vset.pattern.permute.xlu0 12
    %1550 = vperm.xlu0 %1549, %v1546
    %v1551 = vpop.permute.xlu0 %1550
    %1554 = vset.pattern.permute.xlu0 12
    %1555 = vperm.xlu0 %1554, %v1547
    %v1556 = vpop.permute.xlu0 %1555
    %v1558 = vsel %vm148, %v1546, 0
    %v1560 = vsel %vm148, %v1547, 0
    %v1563 = vsel %vm155, %v1545, 0
    %1565 = vmatprep.subr.mxu0 0.0
    %1566 = vmatpush1.msra.mxu0 0.0
    %1567 = vmatprep.subr.mxu0 0.0
    %1568 = vmatpush1.msra.mxu0 0.0
    %1569 = vmatprep.subr.mxu0 0.0
    %1570 = vmatpush1.msra.mxu0 0.0
    %1571 = vmatprep.subr.mxu0 0.0
    %1572 = vmatpush1.msra.mxu0 0.0
    %1573 = vmatprep.subr.mxu0 0.0
    %1574 = vmatpush1.msra.mxu0 0.0
    %1575 = vmatprep.subr.mxu0 0.0
    %1576 = vmatpush1.msra.mxu0 0.0
    %1577 = vmatprep.subr.mxu0 0.0
    %1578 = vmatpush1.msra.mxu0 0.0
    %1579 = vmatprep.subr.mxu0 0.0
    %1580 = vmatpush1.msra.mxu0 0.0
    %1581 = vmatprep.subr.mxu0 0.0
    %1582 = vmatpush1.msra.mxu0 0.0
    %1583 = vmatprep.subr.mxu0 0.0
    %1584 = vmatpush1.msra.mxu0 0.0
    %1585 = vmatprep.subr.mxu0 0.0
    %1586 = vmatpush1.msra.mxu0 0.0
    %1587 = vmatprep.subr.mxu0 0.0
    %1588 = vmatpush1.msra.mxu0 0.0
    %1589 = vmatprep.subr.mxu0 0.0
    %1590 = vmatpush1.msra.mxu0 0.0
    %1591 = vmatprep.subr.mxu0 0.0
    %1592 = vmatpush1.msra.mxu0 0.0
    %1593 = vmatprep.subr.mxu0 0.0
    %1594 = vmatpush1.msra.mxu0 %v1563
    %1595 = vmatprep.subr.mxu0 0.0
    %1596 = vmatpush1.msra.mxu0 %v1544
    %1597 = vmatprep.subr.mxu0 0.0
    %1598 = vmatpush2.msra.mxu0 0.0
    %1599 = vmatprep.subr.mxu0 0.0
    %1600 = vmatpush2.msra.mxu0 0.0
    %1601 = vmatprep.subr.mxu0 0.0
    %1602 = vmatpush2.msra.mxu0 0.0
    %1603 = vmatprep.subr.mxu0 0.0
    %1604 = vmatpush2.msra.mxu0 0.0
    %1605 = vmatprep.subr.mxu0 0.0
    %1606 = vmatpush2.msra.mxu0 0.0
    %1607 = vmatprep.subr.mxu0 0.0
    %1608 = vmatpush2.msra.mxu0 0.0
    %1609 = vmatprep.subr.mxu0 0.0
    %1610 = vmatpush2.msra.mxu0 0.0
    %1611 = vmatprep.subr.mxu0 0.0
    %1612 = vmatpush2.msra.mxu0 0.0
    %1613 = vmatprep.subr.mxu0 0.0
    %1614 = vmatpush2.msra.mxu0 0.0
    %1615 = vmatprep.subr.mxu0 0.0
    %1616 = vmatpush2.msra.mxu0 0.0
    %1617 = vmatprep.subr.mxu0 0.0
    %1618 = vmatpush2.msra.mxu0 0.0
    %1619 = vmatprep.subr.mxu0 0.0
    %1620 = vmatpush2.msra.mxu0 0.0
    %1621 = vmatprep.subr.mxu0 0.0
    %1622 = vmatpush2.msra.mxu0 0.0
    %1623 = vmatprep.subr.mxu0 0.0
    %1624 = vmatpush2.msra.mxu0 0.0
    %1625 = vmatprep.subr.mxu0 0.0
    %1626 = vmatpush2.msra.mxu0 0.0
    %1627 = vmatprep.subr.mxu0 0.0
    %1628 = vmatpush2.msra.mxu0 0.0
    %1629 = vmatprep.mubr.f32.mxu0 0.0
    %1630 = vmatmul.mubr.f32.gmra.mxu0 %v1558
    %v1631 = vpop.f32.mrf.mxu0
    %v1632 = vadd.f32 %v1551, %v1631
    %v1633 = vpop.f32.mrf.mxu0
    %1634 = vmatprep.mubr.f32.mxu0 0.0
    %1635 = vmatmul.mubr.f32.gmra.mxu0 %v1560
    %v1636 = vpop.f32.mrf.mxu0
    %v1637 = vadd.f32 %v1556, %v1636
    %v1638 = vpop.f32.mrf.mxu0
    %1639 = vdwg.mxu0
    %v1640 = vmax.f32 %v1632, 0.0
    %v1641 = vmax.f32 %v1637, 0.0
    %v1642 = vld [vmem:[#allocation2 + $0x400] sm:$0xff]
    %v1643 = vld [vmem:[#allocation2 + $0x410] sm:$0xff]
    %v1644 = vld [vmem:[#allocation2 + $0x420] sm:$0xff]
    %1646 = vset.pattern.permute.xlu0 12
    %1647 = vperm.xlu0 %1646, %v1642
    %v1648 = vpop.permute.xlu0 %1647
    %1651 = vset.pattern.permute.xlu0 12
    %1652 = vperm.xlu0 %1651, %v1643
    %v1653 = vpop.permute.xlu0 %1652
    %1656 = vset.pattern.permute.xlu0 12
    %1657 = vperm.xlu0 %1656, %v1644
    %v1658 = vpop.permute.xlu0 %1657
    %v1660 = vsel %vm148, %v1642, 0
    %v1662 = vsel %vm148, %v1643, 0
    %v1664 = vsel %vm148, %v1644, 0
    %v1667 = vsel %vm155, %v1641, 0
    %1669 = vmatprep.subr.mxu0 0.0
    %1670 = vmatpush1.msra.mxu0 0.0
    %1671 = vmatprep.subr.mxu0 0.0
    %1672 = vmatpush1.msra.mxu0 0.0
    %1673 = vmatprep.subr.mxu0 0.0
    %1674 = vmatpush1.msra.mxu0 0.0
    %1675 = vmatprep.subr.mxu0 0.0
    %1676 = vmatpush1.msra.mxu0 0.0
    %1677 = vmatprep.subr.mxu0 0.0
    %1678 = vmatpush1.msra.mxu0 0.0
    %1679 = vmatprep.subr.mxu0 0.0
    %1680 = vmatpush1.msra.mxu0 0.0
    %1681 = vmatprep.subr.mxu0 0.0
    %1682 = vmatpush1.msra.mxu0 0.0
    %1683 = vmatprep.subr.mxu0 0.0
    %1684 = vmatpush1.msra.mxu0 0.0
    %1685 = vmatprep.subr.mxu0 0.0
    %1686 = vmatpush1.msra.mxu0 0.0
    %1687 = vmatprep.subr.mxu0 0.0
    %1688 = vmatpush1.msra.mxu0 0.0
    %1689 = vmatprep.subr.mxu0 0.0
    %1690 = vmatpush1.msra.mxu0 0.0
    %1691 = vmatprep.subr.mxu0 0.0
    %1692 = vmatpush1.msra.mxu0 0.0
    %1693 = vmatprep.subr.mxu0 0.0
    %1694 = vmatpush1.msra.mxu0 0.0
    %1695 = vmatprep.subr.mxu0 0.0
    %1696 = vmatpush1.msra.mxu0 0.0
    %1697 = vmatprep.subr.mxu0 0.0
    %1698 = vmatpush1.msra.mxu0 %v1667
    %1699 = vmatprep.subr.mxu0 0.0
    %1700 = vmatpush1.msra.mxu0 %v1640
    %1701 = vmatprep.subr.mxu0 0.0
    %1702 = vmatpush2.msra.mxu0 0.0
    %1703 = vmatprep.subr.mxu0 0.0
    %1704 = vmatpush2.msra.mxu0 0.0
    %1705 = vmatprep.subr.mxu0 0.0
    %1706 = vmatpush2.msra.mxu0 0.0
    %1707 = vmatprep.subr.mxu0 0.0
    %1708 = vmatpush2.msra.mxu0 0.0
    %1709 = vmatprep.subr.mxu0 0.0
    %1710 = vmatpush2.msra.mxu0 0.0
    %1711 = vmatprep.subr.mxu0 0.0
    %1712 = vmatpush2.msra.mxu0 0.0
    %1713 = vmatprep.subr.mxu0 0.0
    %1714 = vmatpush2.msra.mxu0 0.0
    %1715 = vmatprep.subr.mxu0 0.0
    %1716 = vmatpush2.msra.mxu0 0.0
    %1717 = vmatprep.subr.mxu0 0.0
    %1718 = vmatpush2.msra.mxu0 0.0
    %1719 = vmatprep.subr.mxu0 0.0
    %1720 = vmatpush2.msra.mxu0 0.0
    %1721 = vmatprep.subr.mxu0 0.0
    %1722 = vmatpush2.msra.mxu0 0.0
    %1723 = vmatprep.subr.mxu0 0.0
    %1724 = vmatpush2.msra.mxu0 0.0
    %1725 = vmatprep.subr.mxu0 0.0
    %1726 = vmatpush2.msra.mxu0 0.0
    %1727 = vmatprep.subr.mxu0 0.0
    %1728 = vmatpush2.msra.mxu0 0.0
    %1729 = vmatprep.subr.mxu0 0.0
    %1730 = vmatpush2.msra.mxu0 0.0
    %1731 = vmatprep.subr.mxu0 0.0
    %1732 = vmatpush2.msra.mxu0 0.0
    %1733 = vmatprep.mubr.f32.mxu0 0.0
    %1734 = vmatmul.mubr.f32.gmra.mxu0 %v1660
    %v1735 = vpop.f32.mrf.mxu0
    %v1736 = vadd.f32 %v1648, %v1735
    %v1737 = vpop.f32.mrf.mxu0
    %1738 = vmatprep.mubr.f32.mxu0 0.0
    %1739 = vmatmul.mubr.f32.gmra.mxu0 %v1662
    %v1740 = vpop.f32.mrf.mxu0
    %v1741 = vadd.f32 %v1653, %v1740
    %v1742 = vpop.f32.mrf.mxu0
    %1743 = vmatprep.mubr.f32.mxu0 0.0
    %1744 = vmatmul.mubr.f32.gmra.mxu0 %v1664
    %v1745 = vpop.f32.mrf.mxu0
    %v1746 = vadd.f32 %v1658, %v1745
    %v1747 = vpop.f32.mrf.mxu0
    %1748 = vdwg.mxu0
    %v1749 = vmax.f32 %v1736, 0.0
    %v1750 = vmax.f32 %v1741, 0.0
    %v1751 = vmax.f32 %v1746, 0.0
    %v1752 = vld [vmem:[#allocation2 + $0x430] sm:$0xff]
    %v1753 = vld [vmem:[#allocation2 + $0x440] sm:$0xff]
    %v1754 = vld [vmem:[#allocation2 + $0x450] sm:$0xff]
    %v1755 = vld [vmem:[#allocation2 + $0x460] sm:$0xff]
    %v1756 = vld [vmem:[#allocation2 + $0x470] sm:$0xff]
    %v1757 = vld [vmem:[#allocation2 + $0x480] sm:$0xff]
    %v1758 = vld [vmem:[#allocation2 + $0x490] sm:$0xff]
    %v1759 = vld [vmem:[#allocation2 + $0x4a0] sm:$0xff]
    %v1760 = vld [vmem:[#allocation2 + $0x4b0] sm:$0xff]
    %v1761 = vld [vmem:[#allocation2 + $0x4c0] sm:$0xff]
    %v1762 = vld [vmem:[#allocation2 + $0x4d0] sm:$0xff]
    %v1763 = vld [vmem:[#allocation2 + $0x4e0] sm:$0xff]
    %v1764 = vld [vmem:[#allocation2 + $0x4f0] sm:$0xff]
    %v1765 = vld [vmem:[#allocation2 + $0x500] sm:$0xff]
    %v1766 = vld [vmem:[#allocation2 + $0x510] sm:$0xff]
    %v1767 = vld [vmem:[#allocation2 + $0x520] sm:$0xff]
    %v1768 = vld [vmem:[#allocation2 + $0x530] sm:$0xff]
    %v1769 = vld [vmem:[#allocation2 + $0x540] sm:$0xff]
    %v1770 = vld [vmem:[#allocation2 + $0x550] sm:$0xff]
    %v1771 = vld [vmem:[#allocation2 + $0x560] sm:$0xff]
    %v1772 = vld [vmem:[#allocation2 + $0x570] sm:$0xff]
    %v1773 = vld [vmem:[#allocation2 + $0x580] sm:$0xff]
    %v1774 = vld [vmem:[#allocation2 + $0x590] sm:$0xff]
    %v1775 = vld [vmem:[#allocation2 + $0x5a0] sm:$0xff]
    %1777 = vset.pattern.permute.xlu0 24
    %1778 = vperm.xlu0 %1777, %v1752
    %v1779 = vpop.permute.xlu0 %1778
    %1782 = vset.pattern.permute.xlu0 24
    %1783 = vperm.xlu0 %1782, %v1753
    %v1784 = vpop.permute.xlu0 %1783
    %1787 = vset.pattern.permute.xlu0 24
    %1788 = vperm.xlu0 %1787, %v1754
    %v1789 = vpop.permute.xlu0 %1788
    %1792 = vset.pattern.permute.xlu0 24
    %1793 = vperm.xlu0 %1792, %v1755
    %v1794 = vpop.permute.xlu0 %1793
    %1797 = vset.pattern.permute.xlu0 24
    %1798 = vperm.xlu0 %1797, %v1756
    %v1799 = vpop.permute.xlu0 %1798
    %1802 = vset.pattern.permute.xlu0 24
    %1803 = vperm.xlu0 %1802, %v1757
    %v1804 = vpop.permute.xlu0 %1803
    %1807 = vset.pattern.permute.xlu0 24
    %1808 = vperm.xlu0 %1807, %v1758
    %v1809 = vpop.permute.xlu0 %1808
    %1812 = vset.pattern.permute.xlu0 24
    %1813 = vperm.xlu0 %1812, %v1759
    %v1814 = vpop.permute.xlu0 %1813
    %1817 = vset.pattern.permute.xlu0 24
    %1818 = vperm.xlu0 %1817, %v1760
    %v1819 = vpop.permute.xlu0 %1818
    %1822 = vset.pattern.permute.xlu0 24
    %1823 = vperm.xlu0 %1822, %v1761
    %v1824 = vpop.permute.xlu0 %1823
    %1827 = vset.pattern.permute.xlu0 24
    %1828 = vperm.xlu0 %1827, %v1762
    %v1829 = vpop.permute.xlu0 %1828
    %1832 = vset.pattern.permute.xlu0 24
    %1833 = vperm.xlu0 %1832, %v1763
    %v1834 = vpop.permute.xlu0 %1833
    %1837 = vset.pattern.permute.xlu0 24
    %1838 = vperm.xlu0 %1837, %v1764
    %v1839 = vpop.permute.xlu0 %1838
    %1842 = vset.pattern.permute.xlu0 24
    %1843 = vperm.xlu0 %1842, %v1765
    %v1844 = vpop.permute.xlu0 %1843
    %1847 = vset.pattern.permute.xlu0 24
    %1848 = vperm.xlu0 %1847, %v1766
    %v1849 = vpop.permute.xlu0 %1848
    %1852 = vset.pattern.permute.xlu0 24
    %1853 = vperm.xlu0 %1852, %v1767
    %v1854 = vpop.permute.xlu0 %1853
    %1857 = vset.pattern.permute.xlu0 24
    %1858 = vperm.xlu0 %1857, %v1768
    %v1859 = vpop.permute.xlu0 %1858
    %1862 = vset.pattern.permute.xlu0 24
    %1863 = vperm.xlu0 %1862, %v1769
    %v1864 = vpop.permute.xlu0 %1863
    %1867 = vset.pattern.permute.xlu0 24
    %1868 = vperm.xlu0 %1867, %v1770
    %v1869 = vpop.permute.xlu0 %1868
    %1872 = vset.pattern.permute.xlu0 24
    %1873 = vperm.xlu0 %1872, %v1771
    %v1874 = vpop.permute.xlu0 %1873
    %1877 = vset.pattern.permute.xlu0 24
    %1878 = vperm.xlu0 %1877, %v1772
    %v1879 = vpop.permute.xlu0 %1878
    %1882 = vset.pattern.permute.xlu0 24
    %1883 = vperm.xlu0 %1882, %v1773
    %v1884 = vpop.permute.xlu0 %1883
    %1887 = vset.pattern.permute.xlu0 24
    %1888 = vperm.xlu0 %1887, %v1774
    %v1889 = vpop.permute.xlu0 %1888
    %1892 = vset.pattern.permute.xlu0 24
    %1893 = vperm.xlu0 %1892, %v1775
    %v1894 = vpop.permute.xlu0 %1893
    %v1896 = vsel %vm386, %v1752, 0
    %v1898 = vsel %vm386, %v1753, 0
    %v1900 = vsel %vm386, %v1754, 0
    %v1902 = vsel %vm386, %v1755, 0
    %v1904 = vsel %vm386, %v1756, 0
    %v1906 = vsel %vm386, %v1757, 0
    %v1908 = vsel %vm386, %v1758, 0
    %v1910 = vsel %vm386, %v1759, 0
    %v1912 = vsel %vm386, %v1760, 0
    %v1914 = vsel %vm386, %v1761, 0
    %v1916 = vsel %vm386, %v1762, 0
    %v1918 = vsel %vm386, %v1763, 0
    %v1920 = vsel %vm386, %v1764, 0
    %v1922 = vsel %vm386, %v1765, 0
    %v1924 = vsel %vm386, %v1766, 0
    %v1926 = vsel %vm386, %v1767, 0
    %v1928 = vsel %vm386, %v1768, 0
    %v1930 = vsel %vm386, %v1769, 0
    %v1932 = vsel %vm386, %v1770, 0
    %v1934 = vsel %vm386, %v1771, 0
    %v1936 = vsel %vm386, %v1772, 0
    %v1938 = vsel %vm386, %v1773, 0
    %v1940 = vsel %vm386, %v1774, 0
    %v1942 = vsel %vm386, %v1775, 0
    %1944 = vmatprep.subr.mxu0 0.0
    %1945 = vmatpush1.msra.mxu0 0.0
    %1946 = vmatprep.subr.mxu0 0.0
    %1947 = vmatpush1.msra.mxu0 0.0
    %1948 = vmatprep.subr.mxu0 0.0
    %1949 = vmatpush1.msra.mxu0 0.0
    %1950 = vmatprep.subr.mxu0 0.0
    %1951 = vmatpush1.msra.mxu0 0.0
    %1952 = vmatprep.subr.mxu0 0.0
    %1953 = vmatpush1.msra.mxu0 0.0
    %1954 = vmatprep.subr.mxu0 0.0
    %1955 = vmatpush1.msra.mxu0 0.0
    %1956 = vmatprep.subr.mxu0 0.0
    %1957 = vmatpush1.msra.mxu0 0.0
    %1958 = vmatprep.subr.mxu0 0.0
    %1959 = vmatpush1.msra.mxu0 0.0
    %1960 = vmatprep.subr.mxu0 0.0
    %1961 = vmatpush1.msra.mxu0 0.0
    %1962 = vmatprep.subr.mxu0 0.0
    %1963 = vmatpush1.msra.mxu0 0.0
    %1964 = vmatprep.subr.mxu0 0.0
    %1965 = vmatpush1.msra.mxu0 0.0
    %1966 = vmatprep.subr.mxu0 0.0
    %1967 = vmatpush1.msra.mxu0 0.0
    %1968 = vmatprep.subr.mxu0 0.0
    %1969 = vmatpush1.msra.mxu0 0.0
    %1970 = vmatprep.subr.mxu0 0.0
    %1971 = vmatpush1.msra.mxu0 %v1751
    %1972 = vmatprep.subr.mxu0 0.0
    %1973 = vmatpush1.msra.mxu0 %v1750
    %1974 = vmatprep.subr.mxu0 0.0
    %1975 = vmatpush1.msra.mxu0 %v1749
    %1976 = vmatprep.subr.mxu0 0.0
    %1977 = vmatpush2.msra.mxu0 0.0
    %1978 = vmatprep.subr.mxu0 0.0
    %1979 = vmatpush2.msra.mxu0 0.0
    %1980 = vmatprep.subr.mxu0 0.0
    %1981 = vmatpush2.msra.mxu0 0.0
    %1982 = vmatprep.subr.mxu0 0.0
    %1983 = vmatpush2.msra.mxu0 0.0
    %1984 = vmatprep.subr.mxu0 0.0
    %1985 = vmatpush2.msra.mxu0 0.0
    %1986 = vmatprep.subr.mxu0 0.0
    %1987 = vmatpush2.msra.mxu0 0.0
    %1988 = vmatprep.subr.mxu0 0.0
    %1989 = vmatpush2.msra.mxu0 0.0
    %1990 = vmatprep.subr.mxu0 0.0
    %1991 = vmatpush2.msra.mxu0 0.0
    %1992 = vmatprep.subr.mxu0 0.0
    %1993 = vmatpush2.msra.mxu0 0.0
    %1994 = vmatprep.subr.mxu0 0.0
    %1995 = vmatpush2.msra.mxu0 0.0
    %1996 = vmatprep.subr.mxu0 0.0
    %1997 = vmatpush2.msra.mxu0 0.0
    %1998 = vmatprep.subr.mxu0 0.0
    %1999 = vmatpush2.msra.mxu0 0.0
    %2000 = vmatprep.subr.mxu0 0.0
    %2001 = vmatpush2.msra.mxu0 0.0
    %2002 = vmatprep.subr.mxu0 0.0
    %2003 = vmatpush2.msra.mxu0 0.0
    %2004 = vmatprep.subr.mxu0 0.0
    %2005 = vmatpush2.msra.mxu0 0.0
    %2006 = vmatprep.subr.mxu0 0.0
    %2007 = vmatpush2.msra.mxu0 0.0
    %2008 = vmatprep.mubr.f32.mxu0 0.0
    %2009 = vmatmul.mubr.f32.gmra.mxu0 %v1896
    %v2010 = vpop.f32.mrf.mxu0
    %v2011 = vadd.f32 %v1779, %v2010
    %v2012 = vpop.f32.mrf.mxu0
    %2013 = vmatprep.mubr.f32.mxu0 0.0
    %2014 = vmatmul.mubr.f32.gmra.mxu0 %v1898
    %v2015 = vpop.f32.mrf.mxu0
    %v2016 = vadd.f32 %v1784, %v2015
    %v2017 = vpop.f32.mrf.mxu0
    %2018 = vmatprep.mubr.f32.mxu0 0.0
    %2019 = vmatmul.mubr.f32.gmra.mxu0 %v1900
    %v2020 = vpop.f32.mrf.mxu0
    %v2021 = vadd.f32 %v1789, %v2020
    %v2022 = vpop.f32.mrf.mxu0
    %2023 = vmatprep.mubr.f32.mxu0 0.0
    %2024 = vmatmul.mubr.f32.gmra.mxu0 %v1902
    %v2025 = vpop.f32.mrf.mxu0
    %v2026 = vadd.f32 %v1794, %v2025
    %v2027 = vpop.f32.mrf.mxu0
    %2028 = vmatprep.mubr.f32.mxu0 0.0
    %2029 = vmatmul.mubr.f32.gmra.mxu0 %v1904
    %v2030 = vpop.f32.mrf.mxu0
    %v2031 = vadd.f32 %v1799, %v2030
    %v2032 = vpop.f32.mrf.mxu0
    %2033 = vmatprep.mubr.f32.mxu0 0.0
    %2034 = vmatmul.mubr.f32.gmra.mxu0 %v1906
    %v2035 = vpop.f32.mrf.mxu0
    %v2036 = vadd.f32 %v1804, %v2035
    %v2037 = vpop.f32.mrf.mxu0
    %2038 = vmatprep.mubr.f32.mxu0 0.0
    %2039 = vmatmul.mubr.f32.gmra.mxu0 %v1908
    %v2040 = vpop.f32.mrf.mxu0
    %v2041 = vadd.f32 %v1809, %v2040
    %v2042 = vpop.f32.mrf.mxu0
    %2043 = vmatprep.mubr.f32.mxu0 0.0
    %2044 = vmatmul.mubr.f32.gmra.mxu0 %v1910
    %v2045 = vpop.f32.mrf.mxu0
    %v2046 = vadd.f32 %v1814, %v2045
    %v2047 = vpop.f32.mrf.mxu0
    %2048 = vmatprep.mubr.f32.mxu0 0.0
    %2049 = vmatmul.mubr.f32.gmra.mxu0 %v1912
    %v2050 = vpop.f32.mrf.mxu0
    %v2051 = vadd.f32 %v1819, %v2050
    %v2052 = vpop.f32.mrf.mxu0
    %2053 = vmatprep.mubr.f32.mxu0 0.0
    %2054 = vmatmul.mubr.f32.gmra.mxu0 %v1914
    %v2055 = vpop.f32.mrf.mxu0
    %v2056 = vadd.f32 %v1824, %v2055
    %v2057 = vpop.f32.mrf.mxu0
    %2058 = vmatprep.mubr.f32.mxu0 0.0
    %2059 = vmatmul.mubr.f32.gmra.mxu0 %v1916
    %v2060 = vpop.f32.mrf.mxu0
    %v2061 = vadd.f32 %v1829, %v2060
    %v2062 = vpop.f32.mrf.mxu0
    %2063 = vmatprep.mubr.f32.mxu0 0.0
    %2064 = vmatmul.mubr.f32.gmra.mxu0 %v1918
    %v2065 = vpop.f32.mrf.mxu0
    %v2066 = vadd.f32 %v1834, %v2065
    %v2067 = vpop.f32.mrf.mxu0
    %2068 = vmatprep.mubr.f32.mxu0 0.0
    %2069 = vmatmul.mubr.f32.gmra.mxu0 %v1920
    %v2070 = vpop.f32.mrf.mxu0
    %v2071 = vadd.f32 %v1839, %v2070
    %v2072 = vpop.f32.mrf.mxu0
    %2073 = vmatprep.mubr.f32.mxu0 0.0
    %2074 = vmatmul.mubr.f32.gmra.mxu0 %v1922
    %v2075 = vpop.f32.mrf.mxu0
    %v2076 = vadd.f32 %v1844, %v2075
    %v2077 = vpop.f32.mrf.mxu0
    %2078 = vmatprep.mubr.f32.mxu0 0.0
    %2079 = vmatmul.mubr.f32.gmra.mxu0 %v1924
    %v2080 = vpop.f32.mrf.mxu0
    %v2081 = vadd.f32 %v1849, %v2080
    %v2082 = vpop.f32.mrf.mxu0
    %2083 = vmatprep.mubr.f32.mxu0 0.0
    %2084 = vmatmul.mubr.f32.gmra.mxu0 %v1926
    %v2085 = vpop.f32.mrf.mxu0
    %v2086 = vadd.f32 %v1854, %v2085
    %v2087 = vpop.f32.mrf.mxu0
    %2088 = vmatprep.mubr.f32.mxu0 0.0
    %2089 = vmatmul.mubr.f32.gmra.mxu0 %v1928
    %v2090 = vpop.f32.mrf.mxu0
    %v2091 = vadd.f32 %v1859, %v2090
    %v2092 = vpop.f32.mrf.mxu0
    %2093 = vmatprep.mubr.f32.mxu0 0.0
    %2094 = vmatmul.mubr.f32.gmra.mxu0 %v1930
    %v2095 = vpop.f32.mrf.mxu0
    %v2096 = vadd.f32 %v1864, %v2095
    %v2097 = vpop.f32.mrf.mxu0
    %2098 = vmatprep.mubr.f32.mxu0 0.0
    %2099 = vmatmul.mubr.f32.gmra.mxu0 %v1932
    %v2100 = vpop.f32.mrf.mxu0
    %v2101 = vadd.f32 %v1869, %v2100
    %v2102 = vpop.f32.mrf.mxu0
    %2103 = vmatprep.mubr.f32.mxu0 0.0
    %2104 = vmatmul.mubr.f32.gmra.mxu0 %v1934
    %v2105 = vpop.f32.mrf.mxu0
    %v2106 = vadd.f32 %v1874, %v2105
    %v2107 = vpop.f32.mrf.mxu0
    %2108 = vmatprep.mubr.f32.mxu0 0.0
    %2109 = vmatmul.mubr.f32.gmra.mxu0 %v1936
    %v2110 = vpop.f32.mrf.mxu0
    %v2111 = vadd.f32 %v1879, %v2110
    %v2112 = vpop.f32.mrf.mxu0
    %2113 = vmatprep.mubr.f32.mxu0 0.0
    %2114 = vmatmul.mubr.f32.gmra.mxu0 %v1938
    %v2115 = vpop.f32.mrf.mxu0
    %v2116 = vadd.f32 %v1884, %v2115
    %v2117 = vpop.f32.mrf.mxu0
    %2118 = vmatprep.mubr.f32.mxu0 0.0
    %2119 = vmatmul.mubr.f32.gmra.mxu0 %v1940
    %v2120 = vpop.f32.mrf.mxu0
    %v2121 = vadd.f32 %v1889, %v2120
    %v2122 = vpop.f32.mrf.mxu0
    %2123 = vmatprep.mubr.f32.mxu0 0.0
    %2124 = vmatmul.mubr.f32.gmra.mxu0 %v1942
    %v2125 = vpop.f32.mrf.mxu0
    %v2126 = vadd.f32 %v1894, %v2125
    %v2127 = vpop.f32.mrf.mxu0
    %2128 = vdwg.mxu0
    %v2129 = vmax.f32 %v2011, 0.0
    %v2130 = vmax.f32 %v2016, 0.0
    %v2131 = vmax.f32 %v2021, 0.0
    %v2132 = vmax.f32 %v2026, 0.0
    %v2133 = vmax.f32 %v2031, 0.0
    %v2134 = vmax.f32 %v2036, 0.0
    %v2135 = vmax.f32 %v2041, 0.0
    %v2136 = vmax.f32 %v2046, 0.0
    %v2137 = vmax.f32 %v2051, 0.0
    %v2138 = vmax.f32 %v2056, 0.0
    %v2139 = vmax.f32 %v2061, 0.0
    %v2140 = vmax.f32 %v2066, 0.0
    %v2141 = vmax.f32 %v2071, 0.0
    %v2142 = vmax.f32 %v2076, 0.0
    %v2143 = vmax.f32 %v2081, 0.0
    %v2144 = vmax.f32 %v2086, 0.0
    %v2145 = vmax.f32 %v2091, 0.0
    %v2146 = vmax.f32 %v2096, 0.0
    %v2147 = vmax.f32 %v2101, 0.0
    %v2148 = vmax.f32 %v2106, 0.0
    %v2149 = vmax.f32 %v2111, 0.0
    %v2150 = vmax.f32 %v2116, 0.0
    %v2151 = vmax.f32 %v2121, 0.0
    %v2152 = vmax.f32 %v2126, 0.0
    %2153 = vmax.xlane.f32.xlu0 %v2129
    %v2154 = vpop.xlane.xlu0 %2153
    %2155 = vmax.xlane.f32.xlu0 %v2130
    %v2156 = vpop.xlane.xlu0 %2155
    %2157 = vmax.xlane.f32.xlu0 %v2131
    %v2158 = vpop.xlane.xlu0 %2157
    %2159 = vmax.xlane.f32.xlu0 %v2132
    %v2160 = vpop.xlane.xlu0 %2159
    %2161 = vmax.xlane.f32.xlu0 %v2133
    %v2162 = vpop.xlane.xlu0 %2161
    %2163 = vmax.xlane.f32.xlu0 %v2134
    %v2164 = vpop.xlane.xlu0 %2163
    %2165 = vmax.xlane.f32.xlu0 %v2135
    %v2166 = vpop.xlane.xlu0 %2165
    %2167 = vmax.xlane.f32.xlu0 %v2136
    %v2168 = vpop.xlane.xlu0 %2167
    %2169 = vmax.xlane.f32.xlu0 %v2137
    %v2170 = vpop.xlane.xlu0 %2169
    %2171 = vmax.xlane.f32.xlu0 %v2138
    %v2172 = vpop.xlane.xlu0 %2171
    %2173 = vmax.xlane.f32.xlu0 %v2139
    %v2174 = vpop.xlane.xlu0 %2173
    %2175 = vmax.xlane.f32.xlu0 %v2140
    %v2176 = vpop.xlane.xlu0 %2175
    %2177 = vmax.xlane.f32.xlu0 %v2141
    %v2178 = vpop.xlane.xlu0 %2177
    %2179 = vmax.xlane.f32.xlu0 %v2142
    %v2180 = vpop.xlane.xlu0 %2179
    %2181 = vmax.xlane.f32.xlu0 %v2143
    %v2182 = vpop.xlane.xlu0 %2181
    %2183 = vmax.xlane.f32.xlu0 %v2144
    %v2184 = vpop.xlane.xlu0 %2183
    %2185 = vmax.xlane.f32.xlu0 %v2145
    %v2186 = vpop.xlane.xlu0 %2185
    %2187 = vmax.xlane.f32.xlu0 %v2146
    %v2188 = vpop.xlane.xlu0 %2187
    %2189 = vmax.xlane.f32.xlu0 %v2147
    %v2190 = vpop.xlane.xlu0 %2189
    %2191 = vmax.xlane.f32.xlu0 %v2148
    %v2192 = vpop.xlane.xlu0 %2191
    %2193 = vmax.xlane.f32.xlu0 %v2149
    %v2194 = vpop.xlane.xlu0 %2193
    %2195 = vmax.xlane.f32.xlu0 %v2150
    %v2196 = vpop.xlane.xlu0 %2195
    %2197 = vmax.xlane.f32.xlu0 %v2151
    %v2198 = vpop.xlane.xlu0 %2197
    %2199 = vmax.xlane.f32.xlu0 %v2152
    %v2200 = vpop.xlane.xlu0 %2199
    %v2201 = vld [vmem:[#allocation2 + $0x5b0] sm:$0xff]
    %v2202 = vld [vmem:[#allocation2 + $0x5b8] sm:$0xff]
    %v2203 = vld [vmem:[#allocation2 + $0x5c0] sm:$0xff]
    %v2204 = vld [vmem:[#allocation2 + $0x5c8] sm:$0xff]
    %v2205 = vld [vmem:[#allocation2 + $0x5d0] sm:$0xff]
    %v2206 = vld [vmem:[#allocation2 + $0x5d8] sm:$0xff]
    %v2207 = vld [vmem:[#allocation2 + $0x5e0] sm:$0xff]
    %v2208 = vld [vmem:[#allocation2 + $0x5e8] sm:$0xff]
    %v2209 = vld [vmem:[#allocation2 + $0x5f0] sm:$0xff]
    %v2210 = vld [vmem:[#allocation2 + $0x5f8] sm:$0xff]
    %v2211 = vld [vmem:[#allocation2 + $0x600] sm:$0xff]
    %v2212 = vld [vmem:[#allocation2 + $0x608] sm:$0xff]
    %v2213 = vld [vmem:[#allocation2 + $0x610] sm:$0xff]
    %v2214 = vld [vmem:[#allocation2 + $0x618] sm:$0xff]
    %v2215 = vld [vmem:[#allocation2 + $0x620] sm:$0xff]
    %v2216 = vld [vmem:[#allocation2 + $0x628] sm:$0xff]
    %v2217 = vld [vmem:[#allocation2 + $0x630] sm:$0xff]
    %v2218 = vld [vmem:[#allocation2 + $0x638] sm:$0xff]
    %v2219 = vld [vmem:[#allocation2 + $0x640] sm:$0xff]
    %v2220 = vld [vmem:[#allocation2 + $0x648] sm:$0xff]
    %v2221 = vld [vmem:[#allocation2 + $0x650] sm:$0xff]
    %v2222 = vld [vmem:[#allocation2 + $0x658] sm:$0xff]
    %v2223 = vld [vmem:[#allocation2 + $0x660] sm:$0xff]
    %v2224 = vld [vmem:[#allocation2 + $0x668] sm:$0xff]
    %2237 = vrot.lane.b32.xlu0 %v2202, 64
    %v2238 = vpop.permute.xlu0 %2237
    %2239 = vrot.lane.b32.xlu0 %v2204, 64
    %v2240 = vpop.permute.xlu0 %2239
    %2241 = vrot.lane.b32.xlu0 %v2206, 64
    %v2242 = vpop.permute.xlu0 %2241
    %2243 = vrot.lane.b32.xlu0 %v2208, 64
    %v2244 = vpop.permute.xlu0 %2243
    %2245 = vrot.lane.b32.xlu0 %v2210, 64
    %v2246 = vpop.permute.xlu0 %2245
    %2247 = vrot.lane.b32.xlu0 %v2212, 64
    %v2248 = vpop.permute.xlu0 %2247
    %2249 = vrot.lane.b32.xlu0 %v2214, 64
    %v2250 = vpop.permute.xlu0 %2249
    %2251 = vrot.lane.b32.xlu0 %v2216, 64
    %v2252 = vpop.permute.xlu0 %2251
    %2253 = vrot.lane.b32.xlu0 %v2218, 64
    %v2254 = vpop.permute.xlu0 %2253
    %2255 = vrot.lane.b32.xlu0 %v2220, 64
    %v2256 = vpop.permute.xlu0 %2255
    %2257 = vrot.lane.b32.xlu0 %v2222, 64
    %v2258 = vpop.permute.xlu0 %2257
    %2259 = vrot.lane.b32.xlu0 %v2224, 64
    %v2260 = vpop.permute.xlu0 %2259
    %v2273 = vsel %vm764, %v2202, 0
    %v2275 = vsel %vm764, %v2204, 0
    %v2277 = vsel %vm764, %v2206, 0
    %v2279 = vsel %vm764, %v2208, 0
    %v2281 = vsel %vm764, %v2210, 0
    %v2283 = vsel %vm764, %v2212, 0
    %v2285 = vsel %vm764, %v2214, 0
    %v2287 = vsel %vm764, %v2216, 0
    %v2289 = vsel %vm764, %v2218, 0
    %v2291 = vsel %vm764, %v2220, 0
    %v2293 = vsel %vm764, %v2222, 0
    %v2295 = vsel %vm764, %v2224, 0
    %2297 = vmatprep.subr.mxu0 0.0
    %2298 = vmatpush1.msra.mxu0 %v2184
    %2299 = vmatprep.subr.mxu0 0.0
    %2300 = vmatpush1.msra.mxu0 %v2182
    %2301 = vmatprep.subr.mxu0 0.0
    %2302 = vmatpush1.msra.mxu0 %v2180
    %2303 = vmatprep.subr.mxu0 0.0
    %2304 = vmatpush1.msra.mxu0 %v2178
    %2305 = vmatprep.subr.mxu0 0.0
    %2306 = vmatpush1.msra.mxu0 %v2176
    %2307 = vmatprep.subr.mxu0 0.0
    %2308 = vmatpush1.msra.mxu0 %v2174
    %2309 = vmatprep.subr.mxu0 0.0
    %2310 = vmatpush1.msra.mxu0 %v2172
    %2311 = vmatprep.subr.mxu0 0.0
    %2312 = vmatpush1.msra.mxu0 %v2170
    %2313 = vmatprep.subr.mxu0 0.0
    %2314 = vmatpush1.msra.mxu0 %v2168
    %2315 = vmatprep.subr.mxu0 0.0
    %2316 = vmatpush1.msra.mxu0 %v2166
    %2317 = vmatprep.subr.mxu0 0.0
    %2318 = vmatpush1.msra.mxu0 %v2164
    %2319 = vmatprep.subr.mxu0 0.0
    %2320 = vmatpush1.msra.mxu0 %v2162
    %2321 = vmatprep.subr.mxu0 0.0
    %2322 = vmatpush1.msra.mxu0 %v2160
    %2323 = vmatprep.subr.mxu0 0.0
    %2324 = vmatpush1.msra.mxu0 %v2158
    %2325 = vmatprep.subr.mxu0 0.0
    %2326 = vmatpush1.msra.mxu0 %v2156
    %2327 = vmatprep.subr.mxu0 0.0
    %2328 = vmatpush1.msra.mxu0 %v2154
    %2329 = vmatprep.subr.mxu0 0.0
    %2330 = vmatpush2.msra.mxu0 0.0
    %2331 = vmatprep.subr.mxu0 0.0
    %2332 = vmatpush2.msra.mxu0 0.0
    %2333 = vmatprep.subr.mxu0 0.0
    %2334 = vmatpush2.msra.mxu0 0.0
    %2335 = vmatprep.subr.mxu0 0.0
    %2336 = vmatpush2.msra.mxu0 0.0
    %2337 = vmatprep.subr.mxu0 0.0
    %2338 = vmatpush2.msra.mxu0 0.0
    %2339 = vmatprep.subr.mxu0 0.0
    %2340 = vmatpush2.msra.mxu0 0.0
    %2341 = vmatprep.subr.mxu0 0.0
    %2342 = vmatpush2.msra.mxu0 0.0
    %2343 = vmatprep.subr.mxu0 0.0
    %2344 = vmatpush2.msra.mxu0 0.0
    %2345 = vmatprep.subr.mxu0 0.0
    %2346 = vmatpush2.msra.mxu0 %v2200
    %2347 = vmatprep.subr.mxu0 0.0
    %2348 = vmatpush2.msra.mxu0 %v2198
    %2349 = vmatprep.subr.mxu0 0.0
    %2350 = vmatpush2.msra.mxu0 %v2196
    %2351 = vmatprep.subr.mxu0 0.0
    %2352 = vmatpush2.msra.mxu0 %v2194
    %2353 = vmatprep.subr.mxu0 0.0
    %2354 = vmatpush2.msra.mxu0 %v2192
    %2355 = vmatprep.subr.mxu0 0.0
    %2356 = vmatpush2.msra.mxu0 %v2190
    %2357 = vmatprep.subr.mxu0 0.0
    %2358 = vmatpush2.msra.mxu0 %v2188
    %2359 = vmatprep.subr.mxu0 0.0
    %2360 = vmatpush2.msra.mxu0 %v2186
    %2361 = vmatprep.mubr.f32.mxu0 %v2273
    %2362 = vmatmul.mubr.f32.gmra.mxu0 %v2201
    %v2363 = vpop.f32.mrf.mxu0
    %v2364 = vadd.f32 %v2238, %v2363
    %v2365 = vpop.f32.mrf.mxu0
    %2366 = vmatprep.mubr.f32.mxu0 %v2275
    %2367 = vmatmul.mubr.f32.gmra.mxu0 %v2203
    %v2368 = vpop.f32.mrf.mxu0
    %v2369 = vadd.f32 %v2240, %v2368
    %v2370 = vpop.f32.mrf.mxu0
    %2371 = vmatprep.mubr.f32.mxu0 %v2277
    %2372 = vmatmul.mubr.f32.gmra.mxu0 %v2205
    %v2373 = vpop.f32.mrf.mxu0
    %v2374 = vadd.f32 %v2242, %v2373
    %v2375 = vpop.f32.mrf.mxu0
    %2376 = vmatprep.mubr.f32.mxu0 %v2279
    %2377 = vmatmul.mubr.f32.gmra.mxu0 %v2207
    %v2378 = vpop.f32.mrf.mxu0
    %v2379 = vadd.f32 %v2244, %v2378
    %v2380 = vpop.f32.mrf.mxu0
    %2381 = vmatprep.mubr.f32.mxu0 %v2281
    %2382 = vmatmul.mubr.f32.gmra.mxu0 %v2209
    %v2383 = vpop.f32.mrf.mxu0
    %v2384 = vadd.f32 %v2246, %v2383
    %v2385 = vpop.f32.mrf.mxu0
    %2386 = vmatprep.mubr.f32.mxu0 %v2283
    %2387 = vmatmul.mubr.f32.gmra.mxu0 %v2211
    %v2388 = vpop.f32.mrf.mxu0
    %v2389 = vadd.f32 %v2248, %v2388
    %v2390 = vpop.f32.mrf.mxu0
    %2391 = vmatprep.mubr.f32.mxu0 %v2285
    %2392 = vmatmul.mubr.f32.gmra.mxu0 %v2213
    %v2393 = vpop.f32.mrf.mxu0
    %v2394 = vadd.f32 %v2250, %v2393
    %v2395 = vpop.f32.mrf.mxu0
    %2396 = vmatprep.mubr.f32.mxu0 %v2287
    %2397 = vmatmul.mubr.f32.gmra.mxu0 %v2215
    %v2398 = vpop.f32.mrf.mxu0
    %v2399 = vadd.f32 %v2252, %v2398
    %v2400 = vpop.f32.mrf.mxu0
    %2401 = vmatprep.mubr.f32.mxu0 %v2289
    %2402 = vmatmul.mubr.f32.gmra.mxu0 %v2217
    %v2403 = vpop.f32.mrf.mxu0
    %v2404 = vadd.f32 %v2254, %v2403
    %v2405 = vpop.f32.mrf.mxu0
    %2406 = vmatprep.mubr.f32.mxu0 %v2291
    %2407 = vmatmul.mubr.f32.gmra.mxu0 %v2219
    %v2408 = vpop.f32.mrf.mxu0
    %v2409 = vadd.f32 %v2256, %v2408
    %v2410 = vpop.f32.mrf.mxu0
    %2411 = vmatprep.mubr.f32.mxu0 %v2293
    %2412 = vmatmul.mubr.f32.gmra.mxu0 %v2221
    %v2413 = vpop.f32.mrf.mxu0
    %v2414 = vadd.f32 %v2258, %v2413
    %v2415 = vpop.f32.mrf.mxu0
    %2416 = vmatprep.mubr.f32.mxu0 %v2295
    %2417 = vmatmul.mubr.f32.gmra.mxu0 %v2223
    %v2418 = vpop.f32.mrf.mxu0
    %v2419 = vadd.f32 %v2260, %v2418
    %v2420 = vpop.f32.mrf.mxu0
    %2421 = vdwg.mxu0
    %v2422 = vmax.f32 %v2364, 0.0
    %v2423 = vmax.f32 %v2369, 0.0
    %v2424 = vmax.f32 %v2374, 0.0
    %v2425 = vmax.f32 %v2379, 0.0
    %v2426 = vmax.f32 %v2384, 0.0
    %v2427 = vmax.f32 %v2389, 0.0
    %v2428 = vmax.f32 %v2394, 0.0
    %v2429 = vmax.f32 %v2399, 0.0
    %v2430 = vmax.f32 %v2404, 0.0
    %v2431 = vmax.f32 %v2409, 0.0
    %v2432 = vmax.f32 %v2414, 0.0
    %v2433 = vmax.f32 %v2419, 0.0
    %v2434 = vld [vmem:[#allocation2 + $0x670] sm:$0xff]
    %v2435 = vld [vmem:[#allocation2 + $0x680] sm:$0xff]
    %v2436 = vld [vmem:[#allocation2 + $0x690] sm:$0xff]
    %v2437 = vld [vmem:[#allocation2 + $0x6a0] sm:$0xff]
    %v2438 = vld [vmem:[#allocation2 + $0x6b0] sm:$0xff]
    %v2439 = vld [vmem:[#allocation2 + $0x6c0] sm:$0xff]
    %2446 = vrot.lane.b32.xlu0 %v2434, 32
    %v2447 = vpop.permute.xlu0 %2446
    %2448 = vrot.lane.b32.xlu0 %v2435, 32
    %v2449 = vpop.permute.xlu0 %2448
    %2450 = vrot.lane.b32.xlu0 %v2436, 32
    %v2451 = vpop.permute.xlu0 %2450
    %2452 = vrot.lane.b32.xlu0 %v2437, 32
    %v2453 = vpop.permute.xlu0 %2452
    %2454 = vrot.lane.b32.xlu0 %v2438, 32
    %v2455 = vpop.permute.xlu0 %2454
    %2456 = vrot.lane.b32.xlu0 %v2439, 32
    %v2457 = vpop.permute.xlu0 %2456
    %v2464 = vsel %vm956, %v2434, 0
    %v2466 = vsel %vm956, %v2435, 0
    %v2468 = vsel %vm956, %v2436, 0
    %v2470 = vsel %vm956, %v2437, 0
    %v2472 = vsel %vm956, %v2438, 0
    %v2474 = vsel %vm956, %v2439, 0
    %2476 = vmatprep.subr.mxu0 0.0
    %2477 = vmatpush1.msra.mxu0 0.0
    %2478 = vmatprep.subr.mxu0 0.0
    %2479 = vmatpush1.msra.mxu0 0.0
    %2480 = vmatprep.subr.mxu0 0.0
    %2481 = vmatpush1.msra.mxu0 0.0
    %2482 = vmatprep.subr.mxu0 0.0
    %2483 = vmatpush1.msra.mxu0 0.0
    %2484 = vmatprep.subr.mxu0 0.0
    %2485 = vmatpush1.msra.mxu0 %v2433
    %2486 = vmatprep.subr.mxu0 0.0
    %2487 = vmatpush1.msra.mxu0 %v2432
    %2488 = vmatprep.subr.mxu0 0.0
    %2489 = vmatpush1.msra.mxu0 %v2431
    %2490 = vmatprep.subr.mxu0 0.0
    %2491 = vmatpush1.msra.mxu0 %v2430
    %2492 = vmatprep.subr.mxu0 0.0
    %2493 = vmatpush1.msra.mxu0 %v2429
    %2494 = vmatprep.subr.mxu0 0.0
    %2495 = vmatpush1.msra.mxu0 %v2428
    %2496 = vmatprep.subr.mxu0 0.0
    %2497 = vmatpush1.msra.mxu0 %v2427
    %2498 = vmatprep.subr.mxu0 0.0
    %2499 = vmatpush1.msra.mxu0 %v2426
    %2500 = vmatprep.subr.mxu0 0.0
    %2501 = vmatpush1.msra.mxu0 %v2425
    %2502 = vmatprep.subr.mxu0 0.0
    %2503 = vmatpush1.msra.mxu0 %v2424
    %2504 = vmatprep.subr.mxu0 0.0
    %2505 = vmatpush1.msra.mxu0 %v2423
    %2506 = vmatprep.subr.mxu0 0.0
    %2507 = vmatpush1.msra.mxu0 %v2422
    %2508 = vmatprep.subr.mxu0 0.0
    %2509 = vmatpush2.msra.mxu0 0.0
    %2510 = vmatprep.subr.mxu0 0.0
    %2511 = vmatpush2.msra.mxu0 0.0
    %2512 = vmatprep.subr.mxu0 0.0
    %2513 = vmatpush2.msra.mxu0 0.0
    %2514 = vmatprep.subr.mxu0 0.0
    %2515 = vmatpush2.msra.mxu0 0.0
    %2516 = vmatprep.subr.mxu0 0.0
    %2517 = vmatpush2.msra.mxu0 0.0
    %2518 = vmatprep.subr.mxu0 0.0
    %2519 = vmatpush2.msra.mxu0 0.0
    %2520 = vmatprep.subr.mxu0 0.0
    %2521 = vmatpush2.msra.mxu0 0.0
    %2522 = vmatprep.subr.mxu0 0.0
    %2523 = vmatpush2.msra.mxu0 0.0
    %2524 = vmatprep.subr.mxu0 0.0
    %2525 = vmatpush2.msra.mxu0 0.0
    %2526 = vmatprep.subr.mxu0 0.0
    %2527 = vmatpush2.msra.mxu0 0.0
    %2528 = vmatprep.subr.mxu0 0.0
    %2529 = vmatpush2.msra.mxu0 0.0
    %2530 = vmatprep.subr.mxu0 0.0
    %2531 = vmatpush2.msra.mxu0 0.0
    %2532 = vmatprep.subr.mxu0 0.0
    %2533 = vmatpush2.msra.mxu0 0.0
    %2534 = vmatprep.subr.mxu0 0.0
    %2535 = vmatpush2.msra.mxu0 0.0
    %2536 = vmatprep.subr.mxu0 0.0
    %2537 = vmatpush2.msra.mxu0 0.0
    %2538 = vmatprep.subr.mxu0 0.0
    %2539 = vmatpush2.msra.mxu0 0.0
    %2540 = vmatprep.mubr.f32.mxu0 0.0
    %2541 = vmatmul.mubr.f32.gmra.mxu0 %v2464
    %v2542 = vpop.f32.mrf.mxu0
    %v2543 = vadd.f32 %v2447, %v2542
    %v2544 = vpop.f32.mrf.mxu0
    %2545 = vmatprep.mubr.f32.mxu0 0.0
    %2546 = vmatmul.mubr.f32.gmra.mxu0 %v2466
    %v2547 = vpop.f32.mrf.mxu0
    %v2548 = vadd.f32 %v2449, %v2547
    %v2549 = vpop.f32.mrf.mxu0
    %2550 = vmatprep.mubr.f32.mxu0 0.0
    %2551 = vmatmul.mubr.f32.gmra.mxu0 %v2468
    %v2552 = vpop.f32.mrf.mxu0
    %v2553 = vadd.f32 %v2451, %v2552
    %v2554 = vpop.f32.mrf.mxu0
    %2555 = vmatprep.mubr.f32.mxu0 0.0
    %2556 = vmatmul.mubr.f32.gmra.mxu0 %v2470
    %v2557 = vpop.f32.mrf.mxu0
    %v2558 = vadd.f32 %v2453, %v2557
    %v2559 = vpop.f32.mrf.mxu0
    %2560 = vmatprep.mubr.f32.mxu0 0.0
    %2561 = vmatmul.mubr.f32.gmra.mxu0 %v2472
    %v2562 = vpop.f32.mrf.mxu0
    %v2563 = vadd.f32 %v2455, %v2562
    %v2564 = vpop.f32.mrf.mxu0
    %2565 = vmatprep.mubr.f32.mxu0 0.0
    %2566 = vmatmul.mubr.f32.gmra.mxu0 %v2474
    %v2567 = vpop.f32.mrf.mxu0
    %v2568 = vadd.f32 %v2457, %v2567
    %v2569 = vpop.f32.mrf.mxu0
    %2570 = vdwg.mxu0
    %v2571 = vmax.f32 %v2543, 0.0
    %v2572 = vmax.f32 %v2548, 0.0
    %v2573 = vmax.f32 %v2553, 0.0
    %v2574 = vmax.f32 %v2558, 0.0
    %v2575 = vmax.f32 %v2563, 0.0
    %v2576 = vmax.f32 %v2568, 0.0
    %v2577 = vld [vmem:[#allocation2 + $0x6d0] sm:$0xff]
    %v2578 = vld [vmem:[#allocation2 + $0x6e0] sm:$0xff]
    %v2579 = vld [vmem:[#allocation2 + $0x6f0] sm:$0xff]
    %v2580 = vld [vmem:[#allocation2 + $0x700] sm:$0xff]
    %v2581 = vld [vmem:[#allocation2 + $0x710] sm:$0xff]
    %v2582 = vld [vmem:[#allocation2 + $0x720] sm:$0xff]
    %v2583 = vld [vmem:[#allocation2 + $0x730] sm:$0xff]
    %v2584 = vld [vmem:[#allocation2 + $0x740] sm:$0xff]
    %v2585 = vld [vmem:[#allocation2 + $0x750] sm:$0xff]
    %v2586 = vld [vmem:[#allocation2 + $0x760] sm:$0xff]
    %v2587 = vld [vmem:[#allocation2 + $0x770] sm:$0xff]
    %v2588 = vld [vmem:[#allocation2 + $0x780] sm:$0xff]
    %v2589 = vld [vmem:[#allocation2 + $0x790] sm:$0xff]
    %v2590 = vld [vmem:[#allocation2 + $0x7a0] sm:$0xff]
    %v2591 = vld [vmem:[#allocation2 + $0x7b0] sm:$0xff]
    %v2592 = vld [vmem:[#allocation2 + $0x7c0] sm:$0xff]
    %v2593 = vld [vmem:[#allocation2 + $0x7d0] sm:$0xff]
    %v2594 = vld [vmem:[#allocation2 + $0x7e0] sm:$0xff]
    %2613 = vrot.lane.b32.xlu0 %v2577, 80
    %v2614 = vpop.permute.xlu0 %2613
    %2615 = vrot.lane.b32.xlu0 %v2578, 80
    %v2616 = vpop.permute.xlu0 %2615
    %2617 = vrot.lane.b32.xlu0 %v2579, 80
    %v2618 = vpop.permute.xlu0 %2617
    %2619 = vrot.lane.b32.xlu0 %v2580, 80
    %v2620 = vpop.permute.xlu0 %2619
    %2621 = vrot.lane.b32.xlu0 %v2581, 80
    %v2622 = vpop.permute.xlu0 %2621
    %2623 = vrot.lane.b32.xlu0 %v2582, 80
    %v2624 = vpop.permute.xlu0 %2623
    %2625 = vrot.lane.b32.xlu0 %v2583, 80
    %v2626 = vpop.permute.xlu0 %2625
    %2627 = vrot.lane.b32.xlu0 %v2584, 80
    %v2628 = vpop.permute.xlu0 %2627
    %2629 = vrot.lane.b32.xlu0 %v2585, 80
    %v2630 = vpop.permute.xlu0 %2629
    %2631 = vrot.lane.b32.xlu0 %v2586, 80
    %v2632 = vpop.permute.xlu0 %2631
    %2633 = vrot.lane.b32.xlu0 %v2587, 80
    %v2634 = vpop.permute.xlu0 %2633
    %2635 = vrot.lane.b32.xlu0 %v2588, 80
    %v2636 = vpop.permute.xlu0 %2635
    %2637 = vrot.lane.b32.xlu0 %v2589, 80
    %v2638 = vpop.permute.xlu0 %2637
    %2639 = vrot.lane.b32.xlu0 %v2590, 80
    %v2640 = vpop.permute.xlu0 %2639
    %2641 = vrot.lane.b32.xlu0 %v2591, 80
    %v2642 = vpop.permute.xlu0 %2641
    %2643 = vrot.lane.b32.xlu0 %v2592, 80
    %v2644 = vpop.permute.xlu0 %2643
    %2645 = vrot.lane.b32.xlu0 %v2593, 80
    %v2646 = vpop.permute.xlu0 %2645
    %2647 = vrot.lane.b32.xlu0 %v2594, 80
    %v2648 = vpop.permute.xlu0 %2647
    %v2667 = vsel %vm1090, %v2577, 0
    %v2669 = vsel %vm1090, %v2578, 0
    %v2671 = vsel %vm1090, %v2579, 0
    %v2673 = vsel %vm1090, %v2580, 0
    %v2675 = vsel %vm1090, %v2581, 0
    %v2677 = vsel %vm1090, %v2582, 0
    %v2679 = vsel %vm1090, %v2583, 0
    %v2681 = vsel %vm1090, %v2584, 0
    %v2683 = vsel %vm1090, %v2585, 0
    %v2685 = vsel %vm1090, %v2586, 0
    %v2687 = vsel %vm1090, %v2587, 0
    %v2689 = vsel %vm1090, %v2588, 0
    %v2691 = vsel %vm1090, %v2589, 0
    %v2693 = vsel %vm1090, %v2590, 0
    %v2695 = vsel %vm1090, %v2591, 0
    %v2697 = vsel %vm1090, %v2592, 0
    %v2699 = vsel %vm1090, %v2593, 0
    %v2701 = vsel %vm1090, %v2594, 0
    %2703 = vmatprep.subr.mxu0 0.0
    %2704 = vmatpush1.msra.mxu0 0.0
    %2705 = vmatprep.subr.mxu0 0.0
    %2706 = vmatpush1.msra.mxu0 0.0
    %2707 = vmatprep.subr.mxu0 0.0
    %2708 = vmatpush1.msra.mxu0 0.0
    %2709 = vmatprep.subr.mxu0 0.0
    %2710 = vmatpush1.msra.mxu0 0.0
    %2711 = vmatprep.subr.mxu0 0.0
    %2712 = vmatpush1.msra.mxu0 0.0
    %2713 = vmatprep.subr.mxu0 0.0
    %2714 = vmatpush1.msra.mxu0 0.0
    %2715 = vmatprep.subr.mxu0 0.0
    %2716 = vmatpush1.msra.mxu0 0.0
    %2717 = vmatprep.subr.mxu0 0.0
    %2718 = vmatpush1.msra.mxu0 0.0
    %2719 = vmatprep.subr.mxu0 0.0
    %2720 = vmatpush1.msra.mxu0 0.0
    %2721 = vmatprep.subr.mxu0 0.0
    %2722 = vmatpush1.msra.mxu0 0.0
    %2723 = vmatprep.subr.mxu0 0.0
    %2724 = vmatpush1.msra.mxu0 %v2576
    %2725 = vmatprep.subr.mxu0 0.0
    %2726 = vmatpush1.msra.mxu0 %v2575
    %2727 = vmatprep.subr.mxu0 0.0
    %2728 = vmatpush1.msra.mxu0 %v2574
    %2729 = vmatprep.subr.mxu0 0.0
    %2730 = vmatpush1.msra.mxu0 %v2573
    %2731 = vmatprep.subr.mxu0 0.0
    %2732 = vmatpush1.msra.mxu0 %v2572
    %2733 = vmatprep.subr.mxu0 0.0
    %2734 = vmatpush1.msra.mxu0 %v2571
    %2735 = vmatprep.subr.mxu0 0.0
    %2736 = vmatpush2.msra.mxu0 0.0
    %2737 = vmatprep.subr.mxu0 0.0
    %2738 = vmatpush2.msra.mxu0 0.0
    %2739 = vmatprep.subr.mxu0 0.0
    %2740 = vmatpush2.msra.mxu0 0.0
    %2741 = vmatprep.subr.mxu0 0.0
    %2742 = vmatpush2.msra.mxu0 0.0
    %2743 = vmatprep.subr.mxu0 0.0
    %2744 = vmatpush2.msra.mxu0 0.0
    %2745 = vmatprep.subr.mxu0 0.0
    %2746 = vmatpush2.msra.mxu0 0.0
    %2747 = vmatprep.subr.mxu0 0.0
    %2748 = vmatpush2.msra.mxu0 0.0
    %2749 = vmatprep.subr.mxu0 0.0
    %2750 = vmatpush2.msra.mxu0 0.0
    %2751 = vmatprep.subr.mxu0 0.0
    %2752 = vmatpush2.msra.mxu0 0.0
    %2753 = vmatprep.subr.mxu0 0.0
    %2754 = vmatpush2.msra.mxu0 0.0
    %2755 = vmatprep.subr.mxu0 0.0
    %2756 = vmatpush2.msra.mxu0 0.0
    %2757 = vmatprep.subr.mxu0 0.0
    %2758 = vmatpush2.msra.mxu0 0.0
    %2759 = vmatprep.subr.mxu0 0.0
    %2760 = vmatpush2.msra.mxu0 0.0
    %2761 = vmatprep.subr.mxu0 0.0
    %2762 = vmatpush2.msra.mxu0 0.0
    %2763 = vmatprep.subr.mxu0 0.0
    %2764 = vmatpush2.msra.mxu0 0.0
    %2765 = vmatprep.subr.mxu0 0.0
    %2766 = vmatpush2.msra.mxu0 0.0
    %2767 = vmatprep.mubr.f32.mxu0 0.0
    %2768 = vmatmul.mubr.f32.gmra.mxu0 %v2667
    %v2769 = vpop.f32.mrf.mxu0
    %v2770 = vadd.f32 %v2614, %v2769
    %v2771 = vpop.f32.mrf.mxu0
    %2772 = vmatprep.mubr.f32.mxu0 0.0
    %2773 = vmatmul.mubr.f32.gmra.mxu0 %v2669
    %v2774 = vpop.f32.mrf.mxu0
    %v2775 = vadd.f32 %v2616, %v2774
    %v2776 = vpop.f32.mrf.mxu0
    %2777 = vmatprep.mubr.f32.mxu0 0.0
    %2778 = vmatmul.mubr.f32.gmra.mxu0 %v2671
    %v2779 = vpop.f32.mrf.mxu0
    %v2780 = vadd.f32 %v2618, %v2779
    %v2781 = vpop.f32.mrf.mxu0
    %2782 = vmatprep.mubr.f32.mxu0 0.0
    %2783 = vmatmul.mubr.f32.gmra.mxu0 %v2673
    %v2784 = vpop.f32.mrf.mxu0
    %v2785 = vadd.f32 %v2620, %v2784
    %v2786 = vpop.f32.mrf.mxu0
    %2787 = vmatprep.mubr.f32.mxu0 0.0
    %2788 = vmatmul.mubr.f32.gmra.mxu0 %v2675
    %v2789 = vpop.f32.mrf.mxu0
    %v2790 = vadd.f32 %v2622, %v2789
    %v2791 = vpop.f32.mrf.mxu0
    %2792 = vmatprep.mubr.f32.mxu0 0.0
    %2793 = vmatmul.mubr.f32.gmra.mxu0 %v2677
    %v2794 = vpop.f32.mrf.mxu0
    %v2795 = vadd.f32 %v2624, %v2794
    %v2796 = vpop.f32.mrf.mxu0
    %2797 = vmatprep.mubr.f32.mxu0 0.0
    %2798 = vmatmul.mubr.f32.gmra.mxu0 %v2679
    %v2799 = vpop.f32.mrf.mxu0
    %v2800 = vadd.f32 %v2626, %v2799
    %v2801 = vpop.f32.mrf.mxu0
    %2802 = vmatprep.mubr.f32.mxu0 0.0
    %2803 = vmatmul.mubr.f32.gmra.mxu0 %v2681
    %v2804 = vpop.f32.mrf.mxu0
    %v2805 = vadd.f32 %v2628, %v2804
    %v2806 = vpop.f32.mrf.mxu0
    %2807 = vmatprep.mubr.f32.mxu0 0.0
    %2808 = vmatmul.mubr.f32.gmra.mxu0 %v2683
    %v2809 = vpop.f32.mrf.mxu0
    %v2810 = vadd.f32 %v2630, %v2809
    %v2811 = vpop.f32.mrf.mxu0
    %2812 = vmatprep.mubr.f32.mxu0 0.0
    %2813 = vmatmul.mubr.f32.gmra.mxu0 %v2685
    %v2814 = vpop.f32.mrf.mxu0
    %v2815 = vadd.f32 %v2632, %v2814
    %v2816 = vpop.f32.mrf.mxu0
    %2817 = vmatprep.mubr.f32.mxu0 0.0
    %2818 = vmatmul.mubr.f32.gmra.mxu0 %v2687
    %v2819 = vpop.f32.mrf.mxu0
    %v2820 = vadd.f32 %v2634, %v2819
    %v2821 = vpop.f32.mrf.mxu0
    %2822 = vmatprep.mubr.f32.mxu0 0.0
    %2823 = vmatmul.mubr.f32.gmra.mxu0 %v2689
    %v2824 = vpop.f32.mrf.mxu0
    %v2825 = vadd.f32 %v2636, %v2824
    %v2826 = vpop.f32.mrf.mxu0
    %2827 = vmatprep.mubr.f32.mxu0 0.0
    %2828 = vmatmul.mubr.f32.gmra.mxu0 %v2691
    %v2829 = vpop.f32.mrf.mxu0
    %v2830 = vadd.f32 %v2638, %v2829
    %v2831 = vpop.f32.mrf.mxu0
    %2832 = vmatprep.mubr.f32.mxu0 0.0
    %2833 = vmatmul.mubr.f32.gmra.mxu0 %v2693
    %v2834 = vpop.f32.mrf.mxu0
    %v2835 = vadd.f32 %v2640, %v2834
    %v2836 = vpop.f32.mrf.mxu0
    %2837 = vmatprep.mubr.f32.mxu0 0.0
    %2838 = vmatmul.mubr.f32.gmra.mxu0 %v2695
    %v2839 = vpop.f32.mrf.mxu0
    %v2840 = vadd.f32 %v2642, %v2839
    %v2841 = vpop.f32.mrf.mxu0
    %2842 = vmatprep.mubr.f32.mxu0 0.0
    %2843 = vmatmul.mubr.f32.gmra.mxu0 %v2697
    %v2844 = vpop.f32.mrf.mxu0
    %v2845 = vadd.f32 %v2644, %v2844
    %v2846 = vpop.f32.mrf.mxu0
    %2847 = vmatprep.mubr.f32.mxu0 0.0
    %2848 = vmatmul.mubr.f32.gmra.mxu0 %v2699
    %v2849 = vpop.f32.mrf.mxu0
    %v2850 = vadd.f32 %v2646, %v2849
    %v2851 = vpop.f32.mrf.mxu0
    %2852 = vmatprep.mubr.f32.mxu0 0.0
    %2853 = vmatmul.mubr.f32.gmra.mxu0 %v2701
    %v2854 = vpop.f32.mrf.mxu0
    %v2855 = vadd.f32 %v2648, %v2854
    %v2856 = vpop.f32.mrf.mxu0
    %2857 = vdwg.mxu0
    %v2858 = vld [vmem:[#allocation2 + $0x7f0] sm:$0xff]
    %v2859 = vld [vmem:[#allocation2 + $0x7f8] sm:$0xff]
    %v2860 = vld [vmem:[#allocation2 + $0x800] sm:$0xf]
    %v2861 = vld [vmem:[#allocation2 + $0x808] sm:$0xf]
    %v2862 = vld [vmem:[#allocation2 + $0x810] sm:$0xff]
    %v2863 = vld [vmem:[#allocation2 + $0x820] sm:$0xff]
    %v2864 = vld [vmem:[#allocation2 + $0x830] sm:$0xff]
    %v2865 = vld [vmem:[#allocation2 + $0x840] sm:$0xff]
    %v2866 = vld [vmem:[#allocation2 + $0x850] sm:$0xff]
    %v2867 = vld [vmem:[#allocation2 + $0x860] sm:$0xff]
    %v2868 = vld [vmem:[#allocation2 + $0x870] sm:$0xff]
    %v2869 = vld [vmem:[#allocation2 + $0x880] sm:$0xff]
    %v2870 = vld [vmem:[#allocation2 + $0x890] sm:$0xff]
    %v2871 = vld [vmem:[#allocation2 + $0x8a0] sm:$0xff]
    %v2872 = vld [vmem:[#allocation2 + $0x8b0] sm:$0xff]
    %v2873 = vld [vmem:[#allocation2 + $0x8c0] sm:$0xff]
    %v2874 = vld [vmem:[#allocation2 + $0x8d0] sm:$0xff]
    %v2875 = vld [vmem:[#allocation2 + $0x8e0] sm:$0xff]
    %v2876 = vld [vmem:[#allocation2 + $0x8f0] sm:$0xff]
    %v2877 = vld [vmem:[#allocation2 + $0x900] sm:$0xff]
    %v2878 = vld [vmem:[#allocation2 + $0x910] sm:$0xff]
    %v2879 = vld [vmem:[#allocation2 + $0x920] sm:$0xff]
    %v2880 = vld [vmem:[#allocation2 + $0x930] sm:$0xff]
    %v2881 = vld [vmem:[#allocation2 + $0x938] sm:$0xff]
    %v2882 = vld [vmem:[#allocation2 + $0x940] sm:$0xf]
    %v2883 = vld [vmem:[#allocation2 + $0x948] sm:$0xf]
    %v2884 = vld [vmem:[#allocation2 + $0x950] sm:$0xff]
    %v2885 = vld [vmem:[#allocation2 + $0x960] sm:$0xff]
    %v2886 = vld [vmem:[#allocation2 + $0x970] sm:$0xff]
    %v2887 = vld [vmem:[#allocation2 + $0x980] sm:$0xff]
    %v2888 = vld [vmem:[#allocation2 + $0x990] sm:$0xff]
    %v2889 = vld [vmem:[#allocation2 + $0x9a0] sm:$0xff]
    %v2890 = vld [vmem:[#allocation2 + $0x9b0] sm:$0xff]
    %v2891 = vld [vmem:[#allocation2 + $0x9c0] sm:$0xff]
    %v2892 = vld [vmem:[#allocation2 + $0x9d0] sm:$0xff]
    %v2893 = vld [vmem:[#allocation2 + $0x9e0] sm:$0xff]
    %v2894 = vld [vmem:[#allocation2 + $0x9f0] sm:$0xff]
    %v2895 = vld [vmem:[#allocation2 + $0xa00] sm:$0xff]
    %v2896 = vld [vmem:[#allocation2 + $0xa10] sm:$0xff]
    %v2897 = vld [vmem:[#allocation2 + $0xa20] sm:$0xff]
    %v2898 = vld [vmem:[#allocation2 + $0xa30] sm:$0xff]
    %v2899 = vld [vmem:[#allocation2 + $0xa40] sm:$0xff]
    %v2900 = vld [vmem:[#allocation2 + $0xa50] sm:$0xff]
    %v2901 = vld [vmem:[#allocation2 + $0xa60] sm:$0xff]
    %v2902 = vld [vmem:[#allocation2 + $0xa70] sm:$0xff]
    %v2903 = vld [vmem:[#allocation2 + $0xa80] sm:$0xf]
    %2905 = vset.pattern.permute.xlu0 0
    %2906 = vperm.xlu0 %2905, %v2770
    %v2907 = vpop.permute.xlu0 %2906
    %2910 = vset.pattern.permute.xlu0 0
    %2911 = vperm.xlu0 %2910, %v2775
    %v2912 = vpop.permute.xlu0 %2911
    %2915 = vset.pattern.permute.xlu0 0
    %2916 = vperm.xlu0 %2915, %v2780
    %v2917 = vpop.permute.xlu0 %2916
    %2920 = vset.pattern.permute.xlu0 0
    %2921 = vperm.xlu0 %2920, %v2785
    %v2922 = vpop.permute.xlu0 %2921
    %2925 = vset.pattern.permute.xlu0 0
    %2926 = vperm.xlu0 %2925, %v2790
    %v2927 = vpop.permute.xlu0 %2926
    %2930 = vset.pattern.permute.xlu0 0
    %2931 = vperm.xlu0 %2930, %v2795
    %v2932 = vpop.permute.xlu0 %2931
    %2935 = vset.pattern.permute.xlu0 0
    %2936 = vperm.xlu0 %2935, %v2800
    %v2937 = vpop.permute.xlu0 %2936
    %2940 = vset.pattern.permute.xlu0 0
    %2941 = vperm.xlu0 %2940, %v2805
    %v2942 = vpop.permute.xlu0 %2941
    %2945 = vset.pattern.permute.xlu0 0
    %2946 = vperm.xlu0 %2945, %v2810
    %v2947 = vpop.permute.xlu0 %2946
    %2950 = vset.pattern.permute.xlu0 0
    %2951 = vperm.xlu0 %2950, %v2815
    %v2952 = vpop.permute.xlu0 %2951
    %2955 = vset.pattern.permute.xlu0 0
    %2956 = vperm.xlu0 %2955, %v2820
    %v2957 = vpop.permute.xlu0 %2956
    %2960 = vset.pattern.permute.xlu0 0
    %2961 = vperm.xlu0 %2960, %v2825
    %v2962 = vpop.permute.xlu0 %2961
    %2965 = vset.pattern.permute.xlu0 0
    %2966 = vperm.xlu0 %2965, %v2830
    %v2967 = vpop.permute.xlu0 %2966
    %2970 = vset.pattern.permute.xlu0 0
    %2971 = vperm.xlu0 %2970, %v2835
    %v2972 = vpop.permute.xlu0 %2971
    %2975 = vset.pattern.permute.xlu0 0
    %2976 = vperm.xlu0 %2975, %v2840
    %v2977 = vpop.permute.xlu0 %2976
    %2980 = vset.pattern.permute.xlu0 0
    %2981 = vperm.xlu0 %2980, %v2845
    %v2982 = vpop.permute.xlu0 %2981
    %2985 = vset.pattern.permute.xlu0 0
    %2986 = vperm.xlu0 %2985, %v2850
    %v2987 = vpop.permute.xlu0 %2986
    %2990 = vset.pattern.permute.xlu0 0
    %2991 = vperm.xlu0 %2990, %v2855
    %v2992 = vpop.permute.xlu0 %2991
    %v2994 = vmul.f32 %v2907, %v2862
    %v2995 = vmul.f32 %v2912, %v2863
    %v2996 = vmul.f32 %v2917, %v2864
    %v2997 = vmul.f32 %v2922, %v2865
    %v2998 = vmul.f32 %v2927, %v2866
    %v2999 = vmul.f32 %v2932, %v2867
    %v3000 = vmul.f32 %v2937, %v2868
    %v3001 = vmul.f32 %v2942, %v2869
    %v3002 = vmul.f32 %v2947, %v2870
    %v3003 = vmul.f32 %v2952, %v2871
    %v3004 = vmul.f32 %v2957, %v2872
    %v3005 = vmul.f32 %v2962, %v2873
    %v3006 = vmul.f32 %v2967, %v2874
    %v3007 = vmul.f32 %v2972, %v2875
    %v3008 = vmul.f32 %v2977, %v2876
    %v3009 = vmul.f32 %v2982, %v2877
    %v3010 = vmul.f32 %v2987, %v2878
    %v3011 = vmul.f32 %v2992, %v2879
    %vm3012 = vcmask 130048
    %v3014 = vsel %vm3012, %v2859, 0
    %v3017 = vsel %vm3012, %v2861, 0
    %3019 = vmatprep.subr.mxu0 0.0
    %3020 = vmatpush1.msra.mxu0 %v3009
    %3021 = vmatprep.subr.mxu0 0.0
    %3022 = vmatpush1.msra.mxu0 %v3008
    %3023 = vmatprep.subr.mxu0 0.0
    %3024 = vmatpush1.msra.mxu0 %v3007
    %3025 = vmatprep.subr.mxu0 0.0
    %3026 = vmatpush1.msra.mxu0 %v3006
    %3027 = vmatprep.subr.mxu0 0.0
    %3028 = vmatpush1.msra.mxu0 %v3005
    %3029 = vmatprep.subr.mxu0 0.0
    %3030 = vmatpush1.msra.mxu0 %v3004
    %3031 = vmatprep.subr.mxu0 0.0
    %3032 = vmatpush1.msra.mxu0 %v3003
    %3033 = vmatprep.subr.mxu0 0.0
    %3034 = vmatpush1.msra.mxu0 %v3002
    %3035 = vmatprep.subr.mxu0 0.0
    %3036 = vmatpush1.msra.mxu0 %v3001
    %3037 = vmatprep.subr.mxu0 0.0
    %3038 = vmatpush1.msra.mxu0 %v3000
    %3039 = vmatprep.subr.mxu0 0.0
    %3040 = vmatpush1.msra.mxu0 %v2999
    %3041 = vmatprep.subr.mxu0 0.0
    %3042 = vmatpush1.msra.mxu0 %v2998
    %3043 = vmatprep.subr.mxu0 0.0
    %3044 = vmatpush1.msra.mxu0 %v2997
    %3045 = vmatprep.subr.mxu0 0.0
    %3046 = vmatpush1.msra.mxu0 %v2996
    %3047 = vmatprep.subr.mxu0 0.0
    %3048 = vmatpush1.msra.mxu0 %v2995
    %3049 = vmatprep.subr.mxu0 0.0
    %3050 = vmatpush1.msra.mxu0 %v2994
    %3051 = vmatprep.subr.mxu0 0.0
    %3052 = vmatpush2.msra.mxu0 0.0
    %3053 = vmatprep.subr.mxu0 0.0
    %3054 = vmatpush2.msra.mxu0 0.0
    %3055 = vmatprep.subr.mxu0 0.0
    %3056 = vmatpush2.msra.mxu0 0.0
    %3057 = vmatprep.subr.mxu0 0.0
    %3058 = vmatpush2.msra.mxu0 0.0
    %3059 = vmatprep.subr.mxu0 0.0
    %3060 = vmatpush2.msra.mxu0 0.0
    %3061 = vmatprep.subr.mxu0 0.0
    %3062 = vmatpush2.msra.mxu0 0.0
    %3063 = vmatprep.subr.mxu0 0.0
    %3064 = vmatpush2.msra.mxu0 0.0
    %3065 = vmatprep.subr.mxu0 0.0
    %3066 = vmatpush2.msra.mxu0 0.0
    %3067 = vmatprep.subr.mxu0 0.0
    %3068 = vmatpush2.msra.mxu0 0.0
    %3069 = vmatprep.subr.mxu0 0.0
    %3070 = vmatpush2.msra.mxu0 0.0
    %3071 = vmatprep.subr.mxu0 0.0
    %3072 = vmatpush2.msra.mxu0 0.0
    %3073 = vmatprep.subr.mxu0 0.0
    %3074 = vmatpush2.msra.mxu0 0.0
    %3075 = vmatprep.subr.mxu0 0.0
    %3076 = vmatpush2.msra.mxu0 0.0
    %3077 = vmatprep.subr.mxu0 0.0
    %3078 = vmatpush2.msra.mxu0 0.0
    %3079 = vmatprep.subr.mxu0 0.0
    %3080 = vmatpush2.msra.mxu0 %v3011
    %3081 = vmatprep.subr.mxu0 0.0
    %3082 = vmatpush2.msra.mxu0 %v3010
    %3083 = vmatprep.mubr.f32.mxu0 %v3014
    %3084 = vmatmul.mubr.f32.gmra.mxu0 %v2858
    %v3085 = vpop.f32.mrf.mxu0
    %v3086 = vadd.f32 %v2902, %v3085
    %v3087 = vpop.f32.mrf.mxu0
    %3088 = vmatprep.mubr.f32.mxu0 %v3017
    %3089 = vmatmul.mubr.f32.gmra.mxu0 %v2860
    %v3090 = vpop.f32.mrf.mxu0
    %v3091 = vadd.f32 %v2903, %v3090
    %v3092 = vpop.f32.mrf.mxu0
    %3093 = vdwg.mxu0
    %v3094 = vmul.f32 %v2907, %v2884
    %v3095 = vmul.f32 %v2912, %v2885
    %v3096 = vmul.f32 %v2917, %v2886
    %v3097 = vmul.f32 %v2922, %v2887
    %v3098 = vmul.f32 %v2927, %v2888
    %v3099 = vmul.f32 %v2932, %v2889
    %v3100 = vmul.f32 %v2937, %v2890
    %v3101 = vmul.f32 %v2942, %v2891
    %v3102 = vmul.f32 %v2947, %v2892
    %v3103 = vmul.f32 %v2952, %v2893
    %v3104 = vmul.f32 %v2957, %v2894
    %v3105 = vmul.f32 %v2962, %v2895
    %v3106 = vmul.f32 %v2967, %v2896
    %v3107 = vmul.f32 %v2972, %v2897
    %v3108 = vmul.f32 %v2977, %v2898
    %v3109 = vmul.f32 %v2982, %v2899
    %v3110 = vmul.f32 %v2987, %v2900
    %v3111 = vmul.f32 %v2992, %v2901
    %v3113 = vsel %vm3012, %v2881, 0
    %v3116 = vsel %vm3012, %v2883, 0
    %3118 = vmatprep.subr.mxu0 0.0
    %3119 = vmatpush1.msra.mxu0 %v3109
    %3120 = vmatprep.subr.mxu0 0.0
    %3121 = vmatpush1.msra.mxu0 %v3108
    %3122 = vmatprep.subr.mxu0 0.0
    %3123 = vmatpush1.msra.mxu0 %v3107
    %3124 = vmatprep.subr.mxu0 0.0
    %3125 = vmatpush1.msra.mxu0 %v3106
    %3126 = vmatprep.subr.mxu0 0.0
    %3127 = vmatpush1.msra.mxu0 %v3105
    %3128 = vmatprep.subr.mxu0 0.0
    %3129 = vmatpush1.msra.mxu0 %v3104
    %3130 = vmatprep.subr.mxu0 0.0
    %3131 = vmatpush1.msra.mxu0 %v3103
    %3132 = vmatprep.subr.mxu0 0.0
    %3133 = vmatpush1.msra.mxu0 %v3102
    %3134 = vmatprep.subr.mxu0 0.0
    %3135 = vmatpush1.msra.mxu0 %v3101
    %3136 = vmatprep.subr.mxu0 0.0
    %3137 = vmatpush1.msra.mxu0 %v3100
    %3138 = vmatprep.subr.mxu0 0.0
    %3139 = vmatpush1.msra.mxu0 %v3099
    %3140 = vmatprep.subr.mxu0 0.0
    %3141 = vmatpush1.msra.mxu0 %v3098
    %3142 = vmatprep.subr.mxu0 0.0
    %3143 = vmatpush1.msra.mxu0 %v3097
    %3144 = vmatprep.subr.mxu0 0.0
    %3145 = vmatpush1.msra.mxu0 %v3096
    %3146 = vmatprep.subr.mxu0 0.0
    %3147 = vmatpush1.msra.mxu0 %v3095
    %3148 = vmatprep.subr.mxu0 0.0
    %3149 = vmatpush1.msra.mxu0 %v3094
    %3150 = vmatprep.subr.mxu0 0.0
    %3151 = vmatpush2.msra.mxu0 0.0
    %3152 = vmatprep.subr.mxu0 0.0
    %3153 = vmatpush2.msra.mxu0 0.0
    %3154 = vmatprep.subr.mxu0 0.0
    %3155 = vmatpush2.msra.mxu0 0.0
    %3156 = vmatprep.subr.mxu0 0.0
    %3157 = vmatpush2.msra.mxu0 0.0
    %3158 = vmatprep.subr.mxu0 0.0
    %3159 = vmatpush2.msra.mxu0 0.0
    %3160 = vmatprep.subr.mxu0 0.0
    %3161 = vmatpush2.msra.mxu0 0.0
    %3162 = vmatprep.subr.mxu0 0.0
    %3163 = vmatpush2.msra.mxu0 0.0
    %3164 = vmatprep.subr.mxu0 0.0
    %3165 = vmatpush2.msra.mxu0 0.0
    %3166 = vmatprep.subr.mxu0 0.0
    %3167 = vmatpush2.msra.mxu0 0.0
    %3168 = vmatprep.subr.mxu0 0.0
    %3169 = vmatpush2.msra.mxu0 0.0
    %3170 = vmatprep.subr.mxu0 0.0
    %3171 = vmatpush2.msra.mxu0 0.0
    %3172 = vmatprep.subr.mxu0 0.0
    %3173 = vmatpush2.msra.mxu0 0.0
    %3174 = vmatprep.subr.mxu0 0.0
    %3175 = vmatpush2.msra.mxu0 0.0
    %3176 = vmatprep.subr.mxu0 0.0
    %3177 = vmatpush2.msra.mxu0 0.0
    %3178 = vmatprep.subr.mxu0 0.0
    %3179 = vmatpush2.msra.mxu0 %v3111
    %3180 = vmatprep.subr.mxu0 0.0
    %3181 = vmatpush2.msra.mxu0 %v3110
    %3182 = vmatprep.mubr.f32.mxu0 %v3113
    %3183 = vmatmul.mubr.f32.gmra.mxu0 %v2880
    %v3184 = vpop.f32.mrf.mxu0
    %v3185 = vadd.f32 %v2902, %v3184
    %v3186 = vpop.f32.mrf.mxu0
    %3187 = vmatprep.mubr.f32.mxu0 %v3116
    %3188 = vmatmul.mubr.f32.gmra.mxu0 %v2882
    %v3189 = vpop.f32.mrf.mxu0
    %v3190 = vadd.f32 %v2903, %v3189
    %v3191 = vpop.f32.mrf.mxu0
    %3192 = vdwg.mxu0
    %v3194 = vsel %vm148, %v3185, 0
    %v3197 = vsel %vm148, %v3190, 0
    %3199 = vmatprep.subr.mxu0 0.0
    %3200 = vmatpush1.msra.mxu0 0.0
    %3201 = vmatprep.subr.mxu0 0.0
    %3202 = vmatpush1.msra.mxu0 0.0
    %3203 = vmatprep.subr.mxu0 0.0
    %3204 = vmatpush1.msra.mxu0 0.0
    %3205 = vmatprep.subr.mxu0 0.0
    %3206 = vmatpush1.msra.mxu0 0.0
    %3207 = vmatprep.subr.mxu0 0.0
    %3208 = vmatpush1.msra.mxu0 0.0
    %3209 = vmatprep.subr.mxu0 0.0
    %3210 = vmatpush1.msra.mxu0 0.0
    %3211 = vmatprep.subr.mxu0 0.0
    %3212 = vmatpush1.msra.mxu0 0.0
    %3213 = vmatprep.subr.mxu0 0.0
    %3214 = vmatpush1.msra.mxu0 0.0
    %3215 = vmatprep.subr.mxu0 0.0
    %3216 = vmatpush1.msra.mxu0 0.0
    %3217 = vmatprep.subr.mxu0 0.0
    %3218 = vmatpush1.msra.mxu0 0.0
    %3219 = vmatprep.subr.mxu0 0.0
    %3220 = vmatpush1.msra.mxu0 0.0
    %3221 = vmatprep.subr.mxu0 0.0
    %3222 = vmatpush1.msra.mxu0 0.0
    %3223 = vmatprep.subr.mxu0 0.0
    %3224 = vmatpush1.msra.mxu0 0.0
    %3225 = vmatprep.subr.mxu0 0.0
    %3226 = vmatpush1.msra.mxu0 0.0
    %3227 = vmatprep.subr.mxu0 0.0
    %3228 = vmatpush1.msra.mxu0 %v1563
    %3229 = vmatprep.subr.mxu0 0.0
    %3230 = vmatpush1.msra.mxu0 %v1544
    %3231 = vmatprep.subr.mxu0 0.0
    %3232 = vmatpush2.msra.mxu0 0.0
    %3233 = vmatprep.subr.mxu0 0.0
    %3234 = vmatpush2.msra.mxu0 0.0
    %3235 = vmatprep.subr.mxu0 0.0
    %3236 = vmatpush2.msra.mxu0 0.0
    %3237 = vmatprep.subr.mxu0 0.0
    %3238 = vmatpush2.msra.mxu0 0.0
    %3239 = vmatprep.subr.mxu0 0.0
    %3240 = vmatpush2.msra.mxu0 0.0
    %3241 = vmatprep.subr.mxu0 0.0
    %3242 = vmatpush2.msra.mxu0 0.0
    %3243 = vmatprep.subr.mxu0 0.0
    %3244 = vmatpush2.msra.mxu0 0.0
    %3245 = vmatprep.subr.mxu0 0.0
    %3246 = vmatpush2.msra.mxu0 0.0
    %3247 = vmatprep.subr.mxu0 0.0
    %3248 = vmatpush2.msra.mxu0 0.0
    %3249 = vmatprep.subr.mxu0 0.0
    %3250 = vmatpush2.msra.mxu0 0.0
    %3251 = vmatprep.subr.mxu0 0.0
    %3252 = vmatpush2.msra.mxu0 0.0
    %3253 = vmatprep.subr.mxu0 0.0
    %3254 = vmatpush2.msra.mxu0 0.0
    %3255 = vmatprep.subr.mxu0 0.0
    %3256 = vmatpush2.msra.mxu0 0.0
    %3257 = vmatprep.subr.mxu0 0.0
    %3258 = vmatpush2.msra.mxu0 0.0
    %3259 = vmatprep.subr.mxu0 0.0
    %3260 = vmatpush2.msra.mxu0 0.0
    %3261 = vmatprep.subr.mxu0 0.0
    %3262 = vmatpush2.msra.mxu0 0.0
    %3263 = vmatprep.mubr.f32.mxu0 0.0
    %3264 = vmatmul.mubr.f32.gmra.mxu0 %v3194
    %v3265 = vpop.f32.mrf.mxu0
    %v3266 = vadd.f32 0.0, %v3265
    %v3267 = vpop.f32.mrf.mxu0
    %3268 = vmatprep.mubr.f32.mxu0 0.0
    %3269 = vmatmul.mubr.f32.gmra.mxu0 %v3197
    %v3270 = vpop.f32.mrf.mxu0
    %v3271 = vadd.f32 0.0, %v3270
    %v3272 = vpop.f32.mrf.mxu0
    %3273 = vdwg.mxu0
    %v3274 = vld [vmem:[#allocation2 + $0xab0] sm:$0xff]
    %v3275 = vld [vmem:[#allocation2 + $0xac0] sm:$0xff]
    %v3276 = vld [vmem:[#allocation2 + $0xad0] sm:$0xff]
    %3278 = vset.pattern.permute.xlu0 12
    %3279 = vperm.xlu0 %3278, %v3274
    %v3280 = vpop.permute.xlu0 %3279
    %3283 = vset.pattern.permute.xlu0 12
    %3284 = vperm.xlu0 %3283, %v3275
    %v3285 = vpop.permute.xlu0 %3284
    %3288 = vset.pattern.permute.xlu0 12
    %3289 = vperm.xlu0 %3288, %v3276
    %v3290 = vpop.permute.xlu0 %3289
    %v3292 = vsel %vm148, %v3274, 0
    %v3294 = vsel %vm148, %v3275, 0
    %v3296 = vsel %vm148, %v3276, 0
    %v3299 = vsel %vm155, %v3271, 0
    %3301 = vmatprep.subr.mxu0 0.0
    %3302 = vmatpush1.msra.mxu0 0.0
    %3303 = vmatprep.subr.mxu0 0.0
    %3304 = vmatpush1.msra.mxu0 0.0
    %3305 = vmatprep.subr.mxu0 0.0
    %3306 = vmatpush1.msra.mxu0 0.0
    %3307 = vmatprep.subr.mxu0 0.0
    %3308 = vmatpush1.msra.mxu0 0.0
    %3309 = vmatprep.subr.mxu0 0.0
    %3310 = vmatpush1.msra.mxu0 0.0
    %3311 = vmatprep.subr.mxu0 0.0
    %3312 = vmatpush1.msra.mxu0 0.0
    %3313 = vmatprep.subr.mxu0 0.0
    %3314 = vmatpush1.msra.mxu0 0.0
    %3315 = vmatprep.subr.mxu0 0.0
    %3316 = vmatpush1.msra.mxu0 0.0
    %3317 = vmatprep.subr.mxu0 0.0
    %3318 = vmatpush1.msra.mxu0 0.0
    %3319 = vmatprep.subr.mxu0 0.0
    %3320 = vmatpush1.msra.mxu0 0.0
    %3321 = vmatprep.subr.mxu0 0.0
    %3322 = vmatpush1.msra.mxu0 0.0
    %3323 = vmatprep.subr.mxu0 0.0
    %3324 = vmatpush1.msra.mxu0 0.0
    %3325 = vmatprep.subr.mxu0 0.0
    %3326 = vmatpush1.msra.mxu0 0.0
    %3327 = vmatprep.subr.mxu0 0.0
    %3328 = vmatpush1.msra.mxu0 0.0
    %3329 = vmatprep.subr.mxu0 0.0
    %3330 = vmatpush1.msra.mxu0 %v3299
    %3331 = vmatprep.subr.mxu0 0.0
    %3332 = vmatpush1.msra.mxu0 %v3266
    %3333 = vmatprep.subr.mxu0 0.0
    %3334 = vmatpush2.msra.mxu0 0.0
    %3335 = vmatprep.subr.mxu0 0.0
    %3336 = vmatpush2.msra.mxu0 0.0
    %3337 = vmatprep.subr.mxu0 0.0
    %3338 = vmatpush2.msra.mxu0 0.0
    %3339 = vmatprep.subr.mxu0 0.0
    %3340 = vmatpush2.msra.mxu0 0.0
    %3341 = vmatprep.subr.mxu0 0.0
    %3342 = vmatpush2.msra.mxu0 0.0
    %3343 = vmatprep.subr.mxu0 0.0
    %3344 = vmatpush2.msra.mxu0 0.0
    %3345 = vmatprep.subr.mxu0 0.0
    %3346 = vmatpush2.msra.mxu0 0.0
    %3347 = vmatprep.subr.mxu0 0.0
    %3348 = vmatpush2.msra.mxu0 0.0
    %3349 = vmatprep.subr.mxu0 0.0
    %3350 = vmatpush2.msra.mxu0 0.0
    %3351 = vmatprep.subr.mxu0 0.0
    %3352 = vmatpush2.msra.mxu0 0.0
    %3353 = vmatprep.subr.mxu0 0.0
    %3354 = vmatpush2.msra.mxu0 0.0
    %3355 = vmatprep.subr.mxu0 0.0
    %3356 = vmatpush2.msra.mxu0 0.0
    %3357 = vmatprep.subr.mxu0 0.0
    %3358 = vmatpush2.msra.mxu0 0.0
    %3359 = vmatprep.subr.mxu0 0.0
    %3360 = vmatpush2.msra.mxu0 0.0
    %3361 = vmatprep.subr.mxu0 0.0
    %3362 = vmatpush2.msra.mxu0 0.0
    %3363 = vmatprep.subr.mxu0 0.0
    %3364 = vmatpush2.msra.mxu0 0.0
    %3365 = vmatprep.mubr.f32.mxu0 0.0
    %3366 = vmatmul.mubr.f32.gmra.mxu0 %v3292
    %v3367 = vpop.f32.mrf.mxu0
    %v3368 = vadd.f32 %v3280, %v3367
    %v3369 = vpop.f32.mrf.mxu0
    %3370 = vmatprep.mubr.f32.mxu0 0.0
    %3371 = vmatmul.mubr.f32.gmra.mxu0 %v3294
    %v3372 = vpop.f32.mrf.mxu0
    %v3373 = vadd.f32 %v3285, %v3372
    %v3374 = vpop.f32.mrf.mxu0
    %3375 = vmatprep.mubr.f32.mxu0 0.0
    %3376 = vmatmul.mubr.f32.gmra.mxu0 %v3296
    %v3377 = vpop.f32.mrf.mxu0
    %v3378 = vadd.f32 %v3290, %v3377
    %v3379 = vpop.f32.mrf.mxu0
    %3380 = vdwg.mxu0
    %v3381 = vmax.f32 %v3368, 0.0
    %v3382 = vmax.f32 %v3373, 0.0
    %v3383 = vmax.f32 %v3378, 0.0
    %v3384 = vld [vmem:[#allocation2 + $0xae0] sm:$0xff]
    %v3385 = vld [vmem:[#allocation2 + $0xaf0] sm:$0xff]
    %v3386 = vld [vmem:[#allocation2 + $0xb00] sm:$0xff]
    %v3387 = vld [vmem:[#allocation2 + $0xb10] sm:$0xff]
    %v3388 = vld [vmem:[#allocation2 + $0xb20] sm:$0xff]
    %v3389 = vld [vmem:[#allocation2 + $0xb30] sm:$0xff]
    %v3390 = vld [vmem:[#allocation2 + $0xb40] sm:$0xff]
    %v3391 = vld [vmem:[#allocation2 + $0xb50] sm:$0xff]
    %v3392 = vld [vmem:[#allocation2 + $0xb60] sm:$0xff]
    %v3393 = vld [vmem:[#allocation2 + $0xb70] sm:$0xff]
    %v3394 = vld [vmem:[#allocation2 + $0xb80] sm:$0xff]
    %v3395 = vld [vmem:[#allocation2 + $0xb90] sm:$0xff]
    %v3396 = vld [vmem:[#allocation2 + $0xba0] sm:$0xff]
    %v3397 = vld [vmem:[#allocation2 + $0xbb0] sm:$0xff]
    %v3398 = vld [vmem:[#allocation2 + $0xbc0] sm:$0xff]
    %v3399 = vld [vmem:[#allocation2 + $0xbd0] sm:$0xff]
    %v3400 = vld [vmem:[#allocation2 + $0xbe0] sm:$0xff]
    %v3401 = vld [vmem:[#allocation2 + $0xbf0] sm:$0xff]
    %v3402 = vld [vmem:[#allocation2 + $0xc00] sm:$0xff]
    %v3403 = vld [vmem:[#allocation2 + $0xc10] sm:$0xff]
    %v3404 = vld [vmem:[#allocation2 + $0xc20] sm:$0xff]
    %v3405 = vld [vmem:[#allocation2 + $0xc30] sm:$0xff]
    %v3406 = vld [vmem:[#allocation2 + $0xc40] sm:$0xff]
    %v3407 = vld [vmem:[#allocation2 + $0xc50] sm:$0xff]
    %3409 = vset.pattern.permute.xlu0 24
    %3410 = vperm.xlu0 %3409, %v3384
    %v3411 = vpop.permute.xlu0 %3410
    %3414 = vset.pattern.permute.xlu0 24
    %3415 = vperm.xlu0 %3414, %v3385
    %v3416 = vpop.permute.xlu0 %3415
    %3419 = vset.pattern.permute.xlu0 24
    %3420 = vperm.xlu0 %3419, %v3386
    %v3421 = vpop.permute.xlu0 %3420
    %3424 = vset.pattern.permute.xlu0 24
    %3425 = vperm.xlu0 %3424, %v3387
    %v3426 = vpop.permute.xlu0 %3425
    %3429 = vset.pattern.permute.xlu0 24
    %3430 = vperm.xlu0 %3429, %v3388
    %v3431 = vpop.permute.xlu0 %3430
    %3434 = vset.pattern.permute.xlu0 24
    %3435 = vperm.xlu0 %3434, %v3389
    %v3436 = vpop.permute.xlu0 %3435
    %3439 = vset.pattern.permute.xlu0 24
    %3440 = vperm.xlu0 %3439, %v3390
    %v3441 = vpop.permute.xlu0 %3440
    %3444 = vset.pattern.permute.xlu0 24
    %3445 = vperm.xlu0 %3444, %v3391
    %v3446 = vpop.permute.xlu0 %3445
    %3449 = vset.pattern.permute.xlu0 24
    %3450 = vperm.xlu0 %3449, %v3392
    %v3451 = vpop.permute.xlu0 %3450
    %3454 = vset.pattern.permute.xlu0 24
    %3455 = vperm.xlu0 %3454, %v3393
    %v3456 = vpop.permute.xlu0 %3455
    %3459 = vset.pattern.permute.xlu0 24
    %3460 = vperm.xlu0 %3459, %v3394
    %v3461 = vpop.permute.xlu0 %3460
    %3464 = vset.pattern.permute.xlu0 24
    %3465 = vperm.xlu0 %3464, %v3395
    %v3466 = vpop.permute.xlu0 %3465
    %3469 = vset.pattern.permute.xlu0 24
    %3470 = vperm.xlu0 %3469, %v3396
    %v3471 = vpop.permute.xlu0 %3470
    %3474 = vset.pattern.permute.xlu0 24
    %3475 = vperm.xlu0 %3474, %v3397
    %v3476 = vpop.permute.xlu0 %3475
    %3479 = vset.pattern.permute.xlu0 24
    %3480 = vperm.xlu0 %3479, %v3398
    %v3481 = vpop.permute.xlu0 %3480
    %3484 = vset.pattern.permute.xlu0 24
    %3485 = vperm.xlu0 %3484, %v3399
    %v3486 = vpop.permute.xlu0 %3485
    %3489 = vset.pattern.permute.xlu0 24
    %3490 = vperm.xlu0 %3489, %v3400
    %v3491 = vpop.permute.xlu0 %3490
    %3494 = vset.pattern.permute.xlu0 24
    %3495 = vperm.xlu0 %3494, %v3401
    %v3496 = vpop.permute.xlu0 %3495
    %3499 = vset.pattern.permute.xlu0 24
    %3500 = vperm.xlu0 %3499, %v3402
    %v3501 = vpop.permute.xlu0 %3500
    %3504 = vset.pattern.permute.xlu0 24
    %3505 = vperm.xlu0 %3504, %v3403
    %v3506 = vpop.permute.xlu0 %3505
    %3509 = vset.pattern.permute.xlu0 24
    %3510 = vperm.xlu0 %3509, %v3404
    %v3511 = vpop.permute.xlu0 %3510
    %3514 = vset.pattern.permute.xlu0 24
    %3515 = vperm.xlu0 %3514, %v3405
    %v3516 = vpop.permute.xlu0 %3515
    %3519 = vset.pattern.permute.xlu0 24
    %3520 = vperm.xlu0 %3519, %v3406
    %v3521 = vpop.permute.xlu0 %3520
    %3524 = vset.pattern.permute.xlu0 24
    %3525 = vperm.xlu0 %3524, %v3407
    %v3526 = vpop.permute.xlu0 %3525
    %v3528 = vsel %vm386, %v3384, 0
    %v3530 = vsel %vm386, %v3385, 0
    %v3532 = vsel %vm386, %v3386, 0
    %v3534 = vsel %vm386, %v3387, 0
    %v3536 = vsel %vm386, %v3388, 0
    %v3538 = vsel %vm386, %v3389, 0
    %v3540 = vsel %vm386, %v3390, 0
    %v3542 = vsel %vm386, %v3391, 0
    %v3544 = vsel %vm386, %v3392, 0
    %v3546 = vsel %vm386, %v3393, 0
    %v3548 = vsel %vm386, %v3394, 0
    %v3550 = vsel %vm386, %v3395, 0
    %v3552 = vsel %vm386, %v3396, 0
    %v3554 = vsel %vm386, %v3397, 0
    %v3556 = vsel %vm386, %v3398, 0
    %v3558 = vsel %vm386, %v3399, 0
    %v3560 = vsel %vm386, %v3400, 0
    %v3562 = vsel %vm386, %v3401, 0
    %v3564 = vsel %vm386, %v3402, 0
    %v3566 = vsel %vm386, %v3403, 0
    %v3568 = vsel %vm386, %v3404, 0
    %v3570 = vsel %vm386, %v3405, 0
    %v3572 = vsel %vm386, %v3406, 0
    %v3574 = vsel %vm386, %v3407, 0
    %3576 = vmatprep.subr.mxu0 0.0
    %3577 = vmatpush1.msra.mxu0 0.0
    %3578 = vmatprep.subr.mxu0 0.0
    %3579 = vmatpush1.msra.mxu0 0.0
    %3580 = vmatprep.subr.mxu0 0.0
    %3581 = vmatpush1.msra.mxu0 0.0
    %3582 = vmatprep.subr.mxu0 0.0
    %3583 = vmatpush1.msra.mxu0 0.0
    %3584 = vmatprep.subr.mxu0 0.0
    %3585 = vmatpush1.msra.mxu0 0.0
    %3586 = vmatprep.subr.mxu0 0.0
    %3587 = vmatpush1.msra.mxu0 0.0
    %3588 = vmatprep.subr.mxu0 0.0
    %3589 = vmatpush1.msra.mxu0 0.0
    %3590 = vmatprep.subr.mxu0 0.0
    %3591 = vmatpush1.msra.mxu0 0.0
    %3592 = vmatprep.subr.mxu0 0.0
    %3593 = vmatpush1.msra.mxu0 0.0
    %3594 = vmatprep.subr.mxu0 0.0
    %3595 = vmatpush1.msra.mxu0 0.0
    %3596 = vmatprep.subr.mxu0 0.0
    %3597 = vmatpush1.msra.mxu0 0.0
    %3598 = vmatprep.subr.mxu0 0.0
    %3599 = vmatpush1.msra.mxu0 0.0
    %3600 = vmatprep.subr.mxu0 0.0
    %3601 = vmatpush1.msra.mxu0 0.0
    %3602 = vmatprep.subr.mxu0 0.0
    %3603 = vmatpush1.msra.mxu0 %v3383
    %3604 = vmatprep.subr.mxu0 0.0
    %3605 = vmatpush1.msra.mxu0 %v3382
    %3606 = vmatprep.subr.mxu0 0.0
    %3607 = vmatpush1.msra.mxu0 %v3381
    %3608 = vmatprep.subr.mxu0 0.0
    %3609 = vmatpush2.msra.mxu0 0.0
    %3610 = vmatprep.subr.mxu0 0.0
    %3611 = vmatpush2.msra.mxu0 0.0
    %3612 = vmatprep.subr.mxu0 0.0
    %3613 = vmatpush2.msra.mxu0 0.0
    %3614 = vmatprep.subr.mxu0 0.0
    %3615 = vmatpush2.msra.mxu0 0.0
    %3616 = vmatprep.subr.mxu0 0.0
    %3617 = vmatpush2.msra.mxu0 0.0
    %3618 = vmatprep.subr.mxu0 0.0
    %3619 = vmatpush2.msra.mxu0 0.0
    %3620 = vmatprep.subr.mxu0 0.0
    %3621 = vmatpush2.msra.mxu0 0.0
    %3622 = vmatprep.subr.mxu0 0.0
    %3623 = vmatpush2.msra.mxu0 0.0
    %3624 = vmatprep.subr.mxu0 0.0
    %3625 = vmatpush2.msra.mxu0 0.0
    %3626 = vmatprep.subr.mxu0 0.0
    %3627 = vmatpush2.msra.mxu0 0.0
    %3628 = vmatprep.subr.mxu0 0.0
    %3629 = vmatpush2.msra.mxu0 0.0
    %3630 = vmatprep.subr.mxu0 0.0
    %3631 = vmatpush2.msra.mxu0 0.0
    %3632 = vmatprep.subr.mxu0 0.0
    %3633 = vmatpush2.msra.mxu0 0.0
    %3634 = vmatprep.subr.mxu0 0.0
    %3635 = vmatpush2.msra.mxu0 0.0
    %3636 = vmatprep.subr.mxu0 0.0
    %3637 = vmatpush2.msra.mxu0 0.0
    %3638 = vmatprep.subr.mxu0 0.0
    %3639 = vmatpush2.msra.mxu0 0.0
    %3640 = vmatprep.mubr.f32.mxu0 0.0
    %3641 = vmatmul.mubr.f32.gmra.mxu0 %v3528
    %v3642 = vpop.f32.mrf.mxu0
    %v3643 = vadd.f32 %v3411, %v3642
    %v3644 = vpop.f32.mrf.mxu0
    %3645 = vmatprep.mubr.f32.mxu0 0.0
    %3646 = vmatmul.mubr.f32.gmra.mxu0 %v3530
    %v3647 = vpop.f32.mrf.mxu0
    %v3648 = vadd.f32 %v3416, %v3647
    %v3649 = vpop.f32.mrf.mxu0
    %3650 = vmatprep.mubr.f32.mxu0 0.0
    %3651 = vmatmul.mubr.f32.gmra.mxu0 %v3532
    %v3652 = vpop.f32.mrf.mxu0
    %v3653 = vadd.f32 %v3421, %v3652
    %v3654 = vpop.f32.mrf.mxu0
    %3655 = vmatprep.mubr.f32.mxu0 0.0
    %3656 = vmatmul.mubr.f32.gmra.mxu0 %v3534
    %v3657 = vpop.f32.mrf.mxu0
    %v3658 = vadd.f32 %v3426, %v3657
    %v3659 = vpop.f32.mrf.mxu0
    %3660 = vmatprep.mubr.f32.mxu0 0.0
    %3661 = vmatmul.mubr.f32.gmra.mxu0 %v3536
    %v3662 = vpop.f32.mrf.mxu0
    %v3663 = vadd.f32 %v3431, %v3662
    %v3664 = vpop.f32.mrf.mxu0
    %3665 = vmatprep.mubr.f32.mxu0 0.0
    %3666 = vmatmul.mubr.f32.gmra.mxu0 %v3538
    %v3667 = vpop.f32.mrf.mxu0
    %v3668 = vadd.f32 %v3436, %v3667
    %v3669 = vpop.f32.mrf.mxu0
    %3670 = vmatprep.mubr.f32.mxu0 0.0
    %3671 = vmatmul.mubr.f32.gmra.mxu0 %v3540
    %v3672 = vpop.f32.mrf.mxu0
    %v3673 = vadd.f32 %v3441, %v3672
    %v3674 = vpop.f32.mrf.mxu0
    %3675 = vmatprep.mubr.f32.mxu0 0.0
    %3676 = vmatmul.mubr.f32.gmra.mxu0 %v3542
    %v3677 = vpop.f32.mrf.mxu0
    %v3678 = vadd.f32 %v3446, %v3677
    %v3679 = vpop.f32.mrf.mxu0
    %3680 = vmatprep.mubr.f32.mxu0 0.0
    %3681 = vmatmul.mubr.f32.gmra.mxu0 %v3544
    %v3682 = vpop.f32.mrf.mxu0
    %v3683 = vadd.f32 %v3451, %v3682
    %v3684 = vpop.f32.mrf.mxu0
    %3685 = vmatprep.mubr.f32.mxu0 0.0
    %3686 = vmatmul.mubr.f32.gmra.mxu0 %v3546
    %v3687 = vpop.f32.mrf.mxu0
    %v3688 = vadd.f32 %v3456, %v3687
    %v3689 = vpop.f32.mrf.mxu0
    %3690 = vmatprep.mubr.f32.mxu0 0.0
    %3691 = vmatmul.mubr.f32.gmra.mxu0 %v3548
    %v3692 = vpop.f32.mrf.mxu0
    %v3693 = vadd.f32 %v3461, %v3692
    %v3694 = vpop.f32.mrf.mxu0
    %3695 = vmatprep.mubr.f32.mxu0 0.0
    %3696 = vmatmul.mubr.f32.gmra.mxu0 %v3550
    %v3697 = vpop.f32.mrf.mxu0
    %v3698 = vadd.f32 %v3466, %v3697
    %v3699 = vpop.f32.mrf.mxu0
    %3700 = vmatprep.mubr.f32.mxu0 0.0
    %3701 = vmatmul.mubr.f32.gmra.mxu0 %v3552
    %v3702 = vpop.f32.mrf.mxu0
    %v3703 = vadd.f32 %v3471, %v3702
    %v3704 = vpop.f32.mrf.mxu0
    %3705 = vmatprep.mubr.f32.mxu0 0.0
    %3706 = vmatmul.mubr.f32.gmra.mxu0 %v3554
    %v3707 = vpop.f32.mrf.mxu0
    %v3708 = vadd.f32 %v3476, %v3707
    %v3709 = vpop.f32.mrf.mxu0
    %3710 = vmatprep.mubr.f32.mxu0 0.0
    %3711 = vmatmul.mubr.f32.gmra.mxu0 %v3556
    %v3712 = vpop.f32.mrf.mxu0
    %v3713 = vadd.f32 %v3481, %v3712
    %v3714 = vpop.f32.mrf.mxu0
    %3715 = vmatprep.mubr.f32.mxu0 0.0
    %3716 = vmatmul.mubr.f32.gmra.mxu0 %v3558
    %v3717 = vpop.f32.mrf.mxu0
    %v3718 = vadd.f32 %v3486, %v3717
    %v3719 = vpop.f32.mrf.mxu0
    %3720 = vmatprep.mubr.f32.mxu0 0.0
    %3721 = vmatmul.mubr.f32.gmra.mxu0 %v3560
    %v3722 = vpop.f32.mrf.mxu0
    %v3723 = vadd.f32 %v3491, %v3722
    %v3724 = vpop.f32.mrf.mxu0
    %3725 = vmatprep.mubr.f32.mxu0 0.0
    %3726 = vmatmul.mubr.f32.gmra.mxu0 %v3562
    %v3727 = vpop.f32.mrf.mxu0
    %v3728 = vadd.f32 %v3496, %v3727
    %v3729 = vpop.f32.mrf.mxu0
    %3730 = vmatprep.mubr.f32.mxu0 0.0
    %3731 = vmatmul.mubr.f32.gmra.mxu0 %v3564
    %v3732 = vpop.f32.mrf.mxu0
    %v3733 = vadd.f32 %v3501, %v3732
    %v3734 = vpop.f32.mrf.mxu0
    %3735 = vmatprep.mubr.f32.mxu0 0.0
    %3736 = vmatmul.mubr.f32.gmra.mxu0 %v3566
    %v3737 = vpop.f32.mrf.mxu0
    %v3738 = vadd.f32 %v3506, %v3737
    %v3739 = vpop.f32.mrf.mxu0
    %3740 = vmatprep.mubr.f32.mxu0 0.0
    %3741 = vmatmul.mubr.f32.gmra.mxu0 %v3568
    %v3742 = vpop.f32.mrf.mxu0
    %v3743 = vadd.f32 %v3511, %v3742
    %v3744 = vpop.f32.mrf.mxu0
    %3745 = vmatprep.mubr.f32.mxu0 0.0
    %3746 = vmatmul.mubr.f32.gmra.mxu0 %v3570
    %v3747 = vpop.f32.mrf.mxu0
    %v3748 = vadd.f32 %v3516, %v3747
    %v3749 = vpop.f32.mrf.mxu0
    %3750 = vmatprep.mubr.f32.mxu0 0.0
    %3751 = vmatmul.mubr.f32.gmra.mxu0 %v3572
    %v3752 = vpop.f32.mrf.mxu0
    %v3753 = vadd.f32 %v3521, %v3752
    %v3754 = vpop.f32.mrf.mxu0
    %3755 = vmatprep.mubr.f32.mxu0 0.0
    %3756 = vmatmul.mubr.f32.gmra.mxu0 %v3574
    %v3757 = vpop.f32.mrf.mxu0
    %v3758 = vadd.f32 %v3526, %v3757
    %v3759 = vpop.f32.mrf.mxu0
    %3760 = vdwg.mxu0
    %s3761 = scalar_lea.vmem [#allocation2], 3696
    %v3762 = vld [vmem:[%s3761] ss:$8 sm:$0x3]
    %v3763 = vld [vmem:[#allocation2 + $0xe78] ss:$0 sm:$0xff]
    %3765 = vset.pattern.permute.xlu0 64
    %3766 = vperm.xlu0 %3765, %v3763
    %v3767 = vpop.permute.xlu0 %3766
    %v3770 = vlaneseq
    %v3771 = vshrl.u32 %v3770, 7
    %v3772 = vsub.s32 0, %v3771
    %v3773 = vrot.slane %v3762, %v3772
    %v3774 = vlaneseq
    %v3775 = vshrl.u32 %v3774, 7
    %v3776 = vsub.s32 1, %v3775
    %v3777 = vrot.slane %v3762, %v3776
    %v3779 = vsel %vm764, %v3777, 0
    %3781 = vmatprep.subr.mxu0 0.0
    %3782 = vmatpush1.msra.mxu0 %v3718
    %3783 = vmatprep.subr.mxu0 0.0
    %3784 = vmatpush1.msra.mxu0 %v3713
    %3785 = vmatprep.subr.mxu0 0.0
    %3786 = vmatpush1.msra.mxu0 %v3708
    %3787 = vmatprep.subr.mxu0 0.0
    %3788 = vmatpush1.msra.mxu0 %v3703
    %3789 = vmatprep.subr.mxu0 0.0
    %3790 = vmatpush1.msra.mxu0 %v3698
    %3791 = vmatprep.subr.mxu0 0.0
    %3792 = vmatpush1.msra.mxu0 %v3693
    %3793 = vmatprep.subr.mxu0 0.0
    %3794 = vmatpush1.msra.mxu0 %v3688
    %3795 = vmatprep.subr.mxu0 0.0
    %3796 = vmatpush1.msra.mxu0 %v3683
    %3797 = vmatprep.subr.mxu0 0.0
    %3798 = vmatpush1.msra.mxu0 %v3678
    %3799 = vmatprep.subr.mxu0 0.0
    %3800 = vmatpush1.msra.mxu0 %v3673
    %3801 = vmatprep.subr.mxu0 0.0
    %3802 = vmatpush1.msra.mxu0 %v3668
    %3803 = vmatprep.subr.mxu0 0.0
    %3804 = vmatpush1.msra.mxu0 %v3663
    %3805 = vmatprep.subr.mxu0 0.0
    %3806 = vmatpush1.msra.mxu0 %v3658
    %3807 = vmatprep.subr.mxu0 0.0
    %3808 = vmatpush1.msra.mxu0 %v3653
    %3809 = vmatprep.subr.mxu0 0.0
    %3810 = vmatpush1.msra.mxu0 %v3648
    %3811 = vmatprep.subr.mxu0 0.0
    %3812 = vmatpush1.msra.mxu0 %v3643
    %3813 = vmatprep.subr.mxu0 0.0
    %3814 = vmatpush2.msra.mxu0 0.0
    %3815 = vmatprep.subr.mxu0 0.0
    %3816 = vmatpush2.msra.mxu0 0.0
    %3817 = vmatprep.subr.mxu0 0.0
    %3818 = vmatpush2.msra.mxu0 0.0
    %3819 = vmatprep.subr.mxu0 0.0
    %3820 = vmatpush2.msra.mxu0 0.0
    %3821 = vmatprep.subr.mxu0 0.0
    %3822 = vmatpush2.msra.mxu0 0.0
    %3823 = vmatprep.subr.mxu0 0.0
    %3824 = vmatpush2.msra.mxu0 0.0
    %3825 = vmatprep.subr.mxu0 0.0
    %3826 = vmatpush2.msra.mxu0 0.0
    %3827 = vmatprep.subr.mxu0 0.0
    %3828 = vmatpush2.msra.mxu0 0.0
    %3829 = vmatprep.subr.mxu0 0.0
    %3830 = vmatpush2.msra.mxu0 %v3758
    %3831 = vmatprep.subr.mxu0 0.0
    %3832 = vmatpush2.msra.mxu0 %v3753
    %3833 = vmatprep.subr.mxu0 0.0
    %3834 = vmatpush2.msra.mxu0 %v3748
    %3835 = vmatprep.subr.mxu0 0.0
    %3836 = vmatpush2.msra.mxu0 %v3743
    %3837 = vmatprep.subr.mxu0 0.0
    %3838 = vmatpush2.msra.mxu0 %v3738
    %3839 = vmatprep.subr.mxu0 0.0
    %3840 = vmatpush2.msra.mxu0 %v3733
    %3841 = vmatprep.subr.mxu0 0.0
    %3842 = vmatpush2.msra.mxu0 %v3728
    %3843 = vmatprep.subr.mxu0 0.0
    %3844 = vmatpush2.msra.mxu0 %v3723
    %3845 = vmatprep.mubr.f32.mxu0 %v3779
    %3846 = vmatmul.mubr.f32.gmra.mxu0 %v3773
    %v3847 = vpop.f32.mrf.mxu0
    %v3848 = vadd.f32 %v3767, %v3847
    %v3849 = vpop.f32.mrf.mxu0
    %3850 = vdwg.mxu0
    %v3851 = vsel %vm1223, %v3848, -inf
    %3852 = vmax.xlane.f32.xlu0 %v3851
    %v3853 = vpop.xlane.xlu0 %3852
    %v3854 = vsub.f32 %v3848, %v3853
    %v3855 = vmul.f32 %v3854, 1.442695
    %v3856 = vpow.pop %v3855
    %v3857 = vsel %vm1223, %v3856, 0.0
    %3858 = vadd.xlane.f32.xlu0 %v3857
    %v3859 = vpop.xlane.xlu0 %3858
    %v3860 = vrcp.pop %v3859
    %v3861 = vmul.f32 %v3856, %v3860
    %v3862 = vlaneseq
    %v3863 = vshrl.u32 %v3862, 7
    %v3864 = vsub.s32 0, %v3863
    %v3865 = vrot.slane %v3861, %v3864
    %v3866 = vmul.f32 %v3643, %v3865
    %v3867 = vmul.f32 %v3648, %v3865
    %v3868 = vmul.f32 %v3653, %v3865
    %v3869 = vmul.f32 %v3658, %v3865
    %v3870 = vmul.f32 %v3663, %v3865
    %v3871 = vmul.f32 %v3668, %v3865
    %v3872 = vmul.f32 %v3673, %v3865
    %v3873 = vmul.f32 %v3678, %v3865
    %v3874 = vmul.f32 %v3683, %v3865
    %v3875 = vmul.f32 %v3688, %v3865
    %v3876 = vmul.f32 %v3693, %v3865
    %v3877 = vmul.f32 %v3698, %v3865
    %v3878 = vmul.f32 %v3703, %v3865
    %v3879 = vmul.f32 %v3708, %v3865
    %v3880 = vmul.f32 %v3713, %v3865
    %v3881 = vmul.f32 %v3718, %v3865
    %v3882 = vmul.f32 %v3723, %v3865
    %v3883 = vmul.f32 %v3728, %v3865
    %v3884 = vmul.f32 %v3733, %v3865
    %v3885 = vmul.f32 %v3738, %v3865
    %v3886 = vmul.f32 %v3743, %v3865
    %v3887 = vmul.f32 %v3748, %v3865
    %v3888 = vmul.f32 %v3753, %v3865
    %v3889 = vmul.f32 %v3758, %v3865
    %3890 = vadd.xlane.f32.xlu0 %v3866
    %v3891 = vpop.xlane.xlu0 %3890
    %3892 = vadd.xlane.f32.xlu0 %v3867
    %v3893 = vpop.xlane.xlu0 %3892
    %3894 = vadd.xlane.f32.xlu0 %v3868
    %v3895 = vpop.xlane.xlu0 %3894
    %3896 = vadd.xlane.f32.xlu0 %v3869
    %v3897 = vpop.xlane.xlu0 %3896
    %3898 = vadd.xlane.f32.xlu0 %v3870
    %v3899 = vpop.xlane.xlu0 %3898
    %3900 = vadd.xlane.f32.xlu0 %v3871
    %v3901 = vpop.xlane.xlu0 %3900
    %3902 = vadd.xlane.f32.xlu0 %v3872
    %v3903 = vpop.xlane.xlu0 %3902
    %3904 = vadd.xlane.f32.xlu0 %v3873
    %v3905 = vpop.xlane.xlu0 %3904
    %3906 = vadd.xlane.f32.xlu0 %v3874
    %v3907 = vpop.xlane.xlu0 %3906
    %3908 = vadd.xlane.f32.xlu0 %v3875
    %v3909 = vpop.xlane.xlu0 %3908
    %3910 = vadd.xlane.f32.xlu0 %v3876
    %v3911 = vpop.xlane.xlu0 %3910
    %3912 = vadd.xlane.f32.xlu0 %v3877
    %v3913 = vpop.xlane.xlu0 %3912
    %3914 = vadd.xlane.f32.xlu0 %v3878
    %v3915 = vpop.xlane.xlu0 %3914
    %3916 = vadd.xlane.f32.xlu0 %v3879
    %v3917 = vpop.xlane.xlu0 %3916
    %3918 = vadd.xlane.f32.xlu0 %v3880
    %v3919 = vpop.xlane.xlu0 %3918
    %3920 = vadd.xlane.f32.xlu0 %v3881
    %v3921 = vpop.xlane.xlu0 %3920
    %3922 = vadd.xlane.f32.xlu0 %v3882
    %v3923 = vpop.xlane.xlu0 %3922
    %3924 = vadd.xlane.f32.xlu0 %v3883
    %v3925 = vpop.xlane.xlu0 %3924
    %3926 = vadd.xlane.f32.xlu0 %v3884
    %v3927 = vpop.xlane.xlu0 %3926
    %3928 = vadd.xlane.f32.xlu0 %v3885
    %v3929 = vpop.xlane.xlu0 %3928
    %3930 = vadd.xlane.f32.xlu0 %v3886
    %v3931 = vpop.xlane.xlu0 %3930
    %3932 = vadd.xlane.f32.xlu0 %v3887
    %v3933 = vpop.xlane.xlu0 %3932
    %3934 = vadd.xlane.f32.xlu0 %v3888
    %v3935 = vpop.xlane.xlu0 %3934
    %3936 = vadd.xlane.f32.xlu0 %v3889
    %v3937 = vpop.xlane.xlu0 %3936
    %v3938 = vld [vmem:[#allocation2 + $0xc60] sm:$0xff]
    %v3939 = vld [vmem:[#allocation2 + $0xc70] sm:$0xff]
    %v3940 = vld [vmem:[#allocation2 + $0xc80] sm:$0xff]
    %v3941 = vld [vmem:[#allocation2 + $0xc90] sm:$0xff]
    %v3942 = vld [vmem:[#allocation2 + $0xca0] sm:$0xff]
    %v3943 = vld [vmem:[#allocation2 + $0xcb0] sm:$0xff]
    %v3944 = vld [vmem:[#allocation2 + $0xcc0] sm:$0xff]
    %v3945 = vld [vmem:[#allocation2 + $0xcd0] sm:$0xff]
    %v3946 = vld [vmem:[#allocation2 + $0xce0] sm:$0xff]
    %v3947 = vld [vmem:[#allocation2 + $0xcf0] sm:$0xff]
    %v3948 = vld [vmem:[#allocation2 + $0xd00] sm:$0xff]
    %v3949 = vld [vmem:[#allocation2 + $0xd10] sm:$0xff]
    %v3950 = vld [vmem:[#allocation2 + $0xd20] sm:$0xff]
    %v3951 = vld [vmem:[#allocation2 + $0xd28] sm:$0xff]
    %v3952 = vld [vmem:[#allocation2 + $0xd30] sm:$0xff]
    %v3953 = vld [vmem:[#allocation2 + $0xd38] sm:$0xff]
    %v3954 = vld [vmem:[#allocation2 + $0xd40] sm:$0xff]
    %v3955 = vld [vmem:[#allocation2 + $0xd48] sm:$0xff]
    %v3956 = vld [vmem:[#allocation2 + $0xd50] sm:$0xff]
    %v3957 = vld [vmem:[#allocation2 + $0xd58] sm:$0xff]
    %v3958 = vld [vmem:[#allocation2 + $0xd60] sm:$0xff]
    %v3959 = vld [vmem:[#allocation2 + $0xd68] sm:$0xff]
    %v3960 = vld [vmem:[#allocation2 + $0xd70] sm:$0xff]
    %v3961 = vld [vmem:[#allocation2 + $0xd78] sm:$0xff]
    %v3962 = vld [vmem:[#allocation2 + $0xd80] sm:$0xff]
    %v3963 = vld [vmem:[#allocation2 + $0xd88] sm:$0xff]
    %v3964 = vld [vmem:[#allocation2 + $0xd90] sm:$0xff]
    %v3965 = vld [vmem:[#allocation2 + $0xd98] sm:$0xff]
    %v3966 = vld [vmem:[#allocation2 + $0xda0] sm:$0xff]
    %v3967 = vld [vmem:[#allocation2 + $0xda8] sm:$0xff]
    %v3968 = vld [vmem:[#allocation2 + $0xdb0] sm:$0xff]
    %v3969 = vld [vmem:[#allocation2 + $0xdb8] sm:$0xff]
    %v3970 = vld [vmem:[#allocation2 + $0xdc0] sm:$0xff]
    %v3971 = vld [vmem:[#allocation2 + $0xdc8] sm:$0xff]
    %v3972 = vld [vmem:[#allocation2 + $0xdd0] sm:$0xff]
    %v3973 = vld [vmem:[#allocation2 + $0xdd8] sm:$0xff]
    %v3975 = vsel %vm764, %v3951, 0
    %v3978 = vsel %vm764, %v3953, 0
    %v3981 = vsel %vm764, %v3955, 0
    %v3984 = vsel %vm764, %v3957, 0
    %v3987 = vsel %vm764, %v3959, 0
    %v3990 = vsel %vm764, %v3961, 0
    %v3993 = vsel %vm764, %v3963, 0
    %v3996 = vsel %vm764, %v3965, 0
    %v3999 = vsel %vm764, %v3967, 0
    %v4002 = vsel %vm764, %v3969, 0
    %v4005 = vsel %vm764, %v3971, 0
    %v4008 = vsel %vm764, %v3973, 0
    %4010 = vmatprep.subr.mxu0 0.0
    %4011 = vmatpush1.msra.mxu0 %v3921
    %4012 = vmatprep.subr.mxu0 0.0
    %4013 = vmatpush1.msra.mxu0 %v3919
    %4014 = vmatprep.subr.mxu0 0.0
    %4015 = vmatpush1.msra.mxu0 %v3917
    %4016 = vmatprep.subr.mxu0 0.0
    %4017 = vmatpush1.msra.mxu0 %v3915
    %4018 = vmatprep.subr.mxu0 0.0
    %4019 = vmatpush1.msra.mxu0 %v3913
    %4020 = vmatprep.subr.mxu0 0.0
    %4021 = vmatpush1.msra.mxu0 %v3911
    %4022 = vmatprep.subr.mxu0 0.0
    %4023 = vmatpush1.msra.mxu0 %v3909
    %4024 = vmatprep.subr.mxu0 0.0
    %4025 = vmatpush1.msra.mxu0 %v3907
    %4026 = vmatprep.subr.mxu0 0.0
    %4027 = vmatpush1.msra.mxu0 %v3905
    %4028 = vmatprep.subr.mxu0 0.0
    %4029 = vmatpush1.msra.mxu0 %v3903
    %4030 = vmatprep.subr.mxu0 0.0
    %4031 = vmatpush1.msra.mxu0 %v3901
    %4032 = vmatprep.subr.mxu0 0.0
    %4033 = vmatpush1.msra.mxu0 %v3899
    %4034 = vmatprep.subr.mxu0 0.0
    %4035 = vmatpush1.msra.mxu0 %v3897
    %4036 = vmatprep.subr.mxu0 0.0
    %4037 = vmatpush1.msra.mxu0 %v3895
    %4038 = vmatprep.subr.mxu0 0.0
    %4039 = vmatpush1.msra.mxu0 %v3893
    %4040 = vmatprep.subr.mxu0 0.0
    %4041 = vmatpush1.msra.mxu0 %v3891
    %4042 = vmatprep.subr.mxu0 0.0
    %4043 = vmatpush2.msra.mxu0 0.0
    %4044 = vmatprep.subr.mxu0 0.0
    %4045 = vmatpush2.msra.mxu0 0.0
    %4046 = vmatprep.subr.mxu0 0.0
    %4047 = vmatpush2.msra.mxu0 0.0
    %4048 = vmatprep.subr.mxu0 0.0
    %4049 = vmatpush2.msra.mxu0 0.0
    %4050 = vmatprep.subr.mxu0 0.0
    %4051 = vmatpush2.msra.mxu0 0.0
    %4052 = vmatprep.subr.mxu0 0.0
    %4053 = vmatpush2.msra.mxu0 0.0
    %4054 = vmatprep.subr.mxu0 0.0
    %4055 = vmatpush2.msra.mxu0 0.0
    %4056 = vmatprep.subr.mxu0 0.0
    %4057 = vmatpush2.msra.mxu0 0.0
    %4058 = vmatprep.subr.mxu0 0.0
    %4059 = vmatpush2.msra.mxu0 %v3937
    %4060 = vmatprep.subr.mxu0 0.0
    %4061 = vmatpush2.msra.mxu0 %v3935
    %4062 = vmatprep.subr.mxu0 0.0
    %4063 = vmatpush2.msra.mxu0 %v3933
    %4064 = vmatprep.subr.mxu0 0.0
    %4065 = vmatpush2.msra.mxu0 %v3931
    %4066 = vmatprep.subr.mxu0 0.0
    %4067 = vmatpush2.msra.mxu0 %v3929
    %4068 = vmatprep.subr.mxu0 0.0
    %4069 = vmatpush2.msra.mxu0 %v3927
    %4070 = vmatprep.subr.mxu0 0.0
    %4071 = vmatpush2.msra.mxu0 %v3925
    %4072 = vmatprep.subr.mxu0 0.0
    %4073 = vmatpush2.msra.mxu0 %v3923
    %4074 = vmatprep.mubr.f32.mxu0 %v3975
    %4075 = vmatmul.mubr.f32.gmra.mxu0 %v3950
    %v4076 = vpop.f32.mrf.mxu0
    %v4077 = vadd.f32 0.0, %v4076
    %v4078 = vpop.f32.mrf.mxu0
    %4079 = vmatprep.mubr.f32.mxu0 %v3978
    %4080 = vmatmul.mubr.f32.gmra.mxu0 %v3952
    %v4081 = vpop.f32.mrf.mxu0
    %v4082 = vadd.f32 0.0, %v4081
    %v4083 = vpop.f32.mrf.mxu0
    %4084 = vmatprep.mubr.f32.mxu0 %v3981
    %4085 = vmatmul.mubr.f32.gmra.mxu0 %v3954
    %v4086 = vpop.f32.mrf.mxu0
    %v4087 = vadd.f32 0.0, %v4086
    %v4088 = vpop.f32.mrf.mxu0
    %4089 = vmatprep.mubr.f32.mxu0 %v3984
    %4090 = vmatmul.mubr.f32.gmra.mxu0 %v3956
    %v4091 = vpop.f32.mrf.mxu0
    %v4092 = vadd.f32 0.0, %v4091
    %v4093 = vpop.f32.mrf.mxu0
    %4094 = vmatprep.mubr.f32.mxu0 %v3987
    %4095 = vmatmul.mubr.f32.gmra.mxu0 %v3958
    %v4096 = vpop.f32.mrf.mxu0
    %v4097 = vadd.f32 0.0, %v4096
    %v4098 = vpop.f32.mrf.mxu0
    %4099 = vmatprep.mubr.f32.mxu0 %v3990
    %4100 = vmatmul.mubr.f32.gmra.mxu0 %v3960
    %v4101 = vpop.f32.mrf.mxu0
    %v4102 = vadd.f32 0.0, %v4101
    %v4103 = vpop.f32.mrf.mxu0
    %4104 = vmatprep.mubr.f32.mxu0 %v3993
    %4105 = vmatmul.mubr.f32.gmra.mxu0 %v3962
    %v4106 = vpop.f32.mrf.mxu0
    %v4107 = vadd.f32 0.0, %v4106
    %v4108 = vpop.f32.mrf.mxu0
    %4109 = vmatprep.mubr.f32.mxu0 %v3996
    %4110 = vmatmul.mubr.f32.gmra.mxu0 %v3964
    %v4111 = vpop.f32.mrf.mxu0
    %v4112 = vadd.f32 0.0, %v4111
    %v4113 = vpop.f32.mrf.mxu0
    %4114 = vmatprep.mubr.f32.mxu0 %v3999
    %4115 = vmatmul.mubr.f32.gmra.mxu0 %v3966
    %v4116 = vpop.f32.mrf.mxu0
    %v4117 = vadd.f32 0.0, %v4116
    %v4118 = vpop.f32.mrf.mxu0
    %4119 = vmatprep.mubr.f32.mxu0 %v4002
    %4120 = vmatmul.mubr.f32.gmra.mxu0 %v3968
    %v4121 = vpop.f32.mrf.mxu0
    %v4122 = vadd.f32 0.0, %v4121
    %v4123 = vpop.f32.mrf.mxu0
    %4124 = vmatprep.mubr.f32.mxu0 %v4005
    %4125 = vmatmul.mubr.f32.gmra.mxu0 %v3970
    %v4126 = vpop.f32.mrf.mxu0
    %v4127 = vadd.f32 0.0, %v4126
    %v4128 = vpop.f32.mrf.mxu0
    %4129 = vmatprep.mubr.f32.mxu0 %v4008
    %4130 = vmatmul.mubr.f32.gmra.mxu0 %v3972
    %v4131 = vpop.f32.mrf.mxu0
    %v4132 = vadd.f32 0.0, %v4131
    %v4133 = vpop.f32.mrf.mxu0
    %4134 = vdwg.mxu0
    %4136 = vset.pattern.permute.xlu0 0
    %4137 = vperm.xlu0 %4136, %v4077
    %v4138 = vpop.permute.xlu0 %4137
    %4141 = vset.pattern.permute.xlu0 0
    %4142 = vperm.xlu0 %4141, %v4082
    %v4143 = vpop.permute.xlu0 %4142
    %4146 = vset.pattern.permute.xlu0 0
    %4147 = vperm.xlu0 %4146, %v4087
    %v4148 = vpop.permute.xlu0 %4147
    %4151 = vset.pattern.permute.xlu0 0
    %4152 = vperm.xlu0 %4151, %v4092
    %v4153 = vpop.permute.xlu0 %4152
    %4156 = vset.pattern.permute.xlu0 0
    %4157 = vperm.xlu0 %4156, %v4097
    %v4158 = vpop.permute.xlu0 %4157
    %4161 = vset.pattern.permute.xlu0 0
    %4162 = vperm.xlu0 %4161, %v4102
    %v4163 = vpop.permute.xlu0 %4162
    %4166 = vset.pattern.permute.xlu0 0
    %4167 = vperm.xlu0 %4166, %v4107
    %v4168 = vpop.permute.xlu0 %4167
    %4171 = vset.pattern.permute.xlu0 0
    %4172 = vperm.xlu0 %4171, %v4112
    %v4173 = vpop.permute.xlu0 %4172
    %4176 = vset.pattern.permute.xlu0 0
    %4177 = vperm.xlu0 %4176, %v4117
    %v4178 = vpop.permute.xlu0 %4177
    %4181 = vset.pattern.permute.xlu0 0
    %4182 = vperm.xlu0 %4181, %v4122
    %v4183 = vpop.permute.xlu0 %4182
    %4186 = vset.pattern.permute.xlu0 0
    %4187 = vperm.xlu0 %4186, %v4127
    %v4188 = vpop.permute.xlu0 %4187
    %4191 = vset.pattern.permute.xlu0 0
    %4192 = vperm.xlu0 %4191, %v4132
    %v4193 = vpop.permute.xlu0 %4192
    %v4196 = vsel %vm148, %v3938, 0
    %v4199 = vsel %vm148, %v3939, 0
    %v4202 = vsel %vm148, %v3940, 0
    %v4205 = vsel %vm148, %v3941, 0
    %v4208 = vsel %vm148, %v3942, 0
    %v4211 = vsel %vm148, %v3943, 0
    %v4214 = vsel %vm148, %v3944, 0
    %v4217 = vsel %vm148, %v3945, 0
    %v4220 = vsel %vm148, %v3946, 0
    %v4223 = vsel %vm148, %v3947, 0
    %v4226 = vsel %vm148, %v3948, 0
    %v4229 = vsel %vm148, %v3949, 0
    %4231 = vmatprep.subr.mxu0 0.0
    %4232 = vmatpush1.msra.mxu0 0.0
    %4233 = vmatprep.subr.mxu0 0.0
    %4234 = vmatpush1.msra.mxu0 0.0
    %4235 = vmatprep.subr.mxu0 0.0
    %4236 = vmatpush1.msra.mxu0 0.0
    %4237 = vmatprep.subr.mxu0 0.0
    %4238 = vmatpush1.msra.mxu0 0.0
    %4239 = vmatprep.subr.mxu0 0.0
    %4240 = vmatpush1.msra.mxu0 0.0
    %4241 = vmatprep.subr.mxu0 0.0
    %4242 = vmatpush1.msra.mxu0 0.0
    %4243 = vmatprep.subr.mxu0 0.0
    %4244 = vmatpush1.msra.mxu0 0.0
    %4245 = vmatprep.subr.mxu0 0.0
    %4246 = vmatpush1.msra.mxu0 0.0
    %4247 = vmatprep.subr.mxu0 0.0
    %4248 = vmatpush1.msra.mxu0 0.0
    %4249 = vmatprep.subr.mxu0 0.0
    %4250 = vmatpush1.msra.mxu0 0.0
    %4251 = vmatprep.subr.mxu0 0.0
    %4252 = vmatpush1.msra.mxu0 0.0
    %4253 = vmatprep.subr.mxu0 0.0
    %4254 = vmatpush1.msra.mxu0 0.0
    %4255 = vmatprep.subr.mxu0 0.0
    %4256 = vmatpush1.msra.mxu0 0.0
    %4257 = vmatprep.subr.mxu0 0.0
    %4258 = vmatpush1.msra.mxu0 0.0
    %4259 = vmatprep.subr.mxu0 0.0
    %4260 = vmatpush1.msra.mxu0 %v3299
    %4261 = vmatprep.subr.mxu0 0.0
    %4262 = vmatpush1.msra.mxu0 %v3266
    %4263 = vmatprep.subr.mxu0 0.0
    %4264 = vmatpush2.msra.mxu0 0.0
    %4265 = vmatprep.subr.mxu0 0.0
    %4266 = vmatpush2.msra.mxu0 0.0
    %4267 = vmatprep.subr.mxu0 0.0
    %4268 = vmatpush2.msra.mxu0 0.0
    %4269 = vmatprep.subr.mxu0 0.0
    %4270 = vmatpush2.msra.mxu0 0.0
    %4271 = vmatprep.subr.mxu0 0.0
    %4272 = vmatpush2.msra.mxu0 0.0
    %4273 = vmatprep.subr.mxu0 0.0
    %4274 = vmatpush2.msra.mxu0 0.0
    %4275 = vmatprep.subr.mxu0 0.0
    %4276 = vmatpush2.msra.mxu0 0.0
    %4277 = vmatprep.subr.mxu0 0.0
    %4278 = vmatpush2.msra.mxu0 0.0
    %4279 = vmatprep.subr.mxu0 0.0
    %4280 = vmatpush2.msra.mxu0 0.0
    %4281 = vmatprep.subr.mxu0 0.0
    %4282 = vmatpush2.msra.mxu0 0.0
    %4283 = vmatprep.subr.mxu0 0.0
    %4284 = vmatpush2.msra.mxu0 0.0
    %4285 = vmatprep.subr.mxu0 0.0
    %4286 = vmatpush2.msra.mxu0 0.0
    %4287 = vmatprep.subr.mxu0 0.0
    %4288 = vmatpush2.msra.mxu0 0.0
    %4289 = vmatprep.subr.mxu0 0.0
    %4290 = vmatpush2.msra.mxu0 0.0
    %4291 = vmatprep.subr.mxu0 0.0
    %4292 = vmatpush2.msra.mxu0 0.0
    %4293 = vmatprep.subr.mxu0 0.0
    %4294 = vmatpush2.msra.mxu0 0.0
    %4295 = vmatprep.mubr.f32.mxu0 0.0
    %4296 = vmatmul.mubr.f32.gmra.mxu0 %v4196
    %v4297 = vpop.f32.mrf.mxu0
    %v4298 = vadd.f32 %v4138, %v4297
    %v4299 = vpop.f32.mrf.mxu0
    %4300 = vmatprep.mubr.f32.mxu0 0.0
    %4301 = vmatmul.mubr.f32.gmra.mxu0 %v4199
    %v4302 = vpop.f32.mrf.mxu0
    %v4303 = vadd.f32 %v4143, %v4302
    %v4304 = vpop.f32.mrf.mxu0
    %4305 = vmatprep.mubr.f32.mxu0 0.0
    %4306 = vmatmul.mubr.f32.gmra.mxu0 %v4202
    %v4307 = vpop.f32.mrf.mxu0
    %v4308 = vadd.f32 %v4148, %v4307
    %v4309 = vpop.f32.mrf.mxu0
    %4310 = vmatprep.mubr.f32.mxu0 0.0
    %4311 = vmatmul.mubr.f32.gmra.mxu0 %v4205
    %v4312 = vpop.f32.mrf.mxu0
    %v4313 = vadd.f32 %v4153, %v4312
    %v4314 = vpop.f32.mrf.mxu0
    %4315 = vmatprep.mubr.f32.mxu0 0.0
    %4316 = vmatmul.mubr.f32.gmra.mxu0 %v4208
    %v4317 = vpop.f32.mrf.mxu0
    %v4318 = vadd.f32 %v4158, %v4317
    %v4319 = vpop.f32.mrf.mxu0
    %4320 = vmatprep.mubr.f32.mxu0 0.0
    %4321 = vmatmul.mubr.f32.gmra.mxu0 %v4211
    %v4322 = vpop.f32.mrf.mxu0
    %v4323 = vadd.f32 %v4163, %v4322
    %v4324 = vpop.f32.mrf.mxu0
    %4325 = vmatprep.mubr.f32.mxu0 0.0
    %4326 = vmatmul.mubr.f32.gmra.mxu0 %v4214
    %v4327 = vpop.f32.mrf.mxu0
    %v4328 = vadd.f32 %v4168, %v4327
    %v4329 = vpop.f32.mrf.mxu0
    %4330 = vmatprep.mubr.f32.mxu0 0.0
    %4331 = vmatmul.mubr.f32.gmra.mxu0 %v4217
    %v4332 = vpop.f32.mrf.mxu0
    %v4333 = vadd.f32 %v4173, %v4332
    %v4334 = vpop.f32.mrf.mxu0
    %4335 = vmatprep.mubr.f32.mxu0 0.0
    %4336 = vmatmul.mubr.f32.gmra.mxu0 %v4220
    %v4337 = vpop.f32.mrf.mxu0
    %v4338 = vadd.f32 %v4178, %v4337
    %v4339 = vpop.f32.mrf.mxu0
    %4340 = vmatprep.mubr.f32.mxu0 0.0
    %4341 = vmatmul.mubr.f32.gmra.mxu0 %v4223
    %v4342 = vpop.f32.mrf.mxu0
    %v4343 = vadd.f32 %v4183, %v4342
    %v4344 = vpop.f32.mrf.mxu0
    %4345 = vmatprep.mubr.f32.mxu0 0.0
    %4346 = vmatmul.mubr.f32.gmra.mxu0 %v4226
    %v4347 = vpop.f32.mrf.mxu0
    %v4348 = vadd.f32 %v4188, %v4347
    %v4349 = vpop.f32.mrf.mxu0
    %4350 = vmatprep.mubr.f32.mxu0 0.0
    %4351 = vmatmul.mubr.f32.gmra.mxu0 %v4229
    %v4352 = vpop.f32.mrf.mxu0
    %v4353 = vadd.f32 %v4193, %v4352
    %v4354 = vpop.f32.mrf.mxu0
    %4355 = vdwg.mxu0
    %4356 = vset.pattern.permute.xlu0 12
    %4357 = vperm.xlu0 %4356, %v3938
    %v4358 = vpop.permute.xlu0 %4357
    %4360 = vset.pattern.permute.xlu0 12
    %4361 = vperm.xlu0 %4360, %v3939
    %v4362 = vpop.permute.xlu0 %4361
    %4364 = vset.pattern.permute.xlu0 12
    %4365 = vperm.xlu0 %4364, %v3940
    %v4366 = vpop.permute.xlu0 %4365
    %4368 = vset.pattern.permute.xlu0 12
    %4369 = vperm.xlu0 %4368, %v3941
    %v4370 = vpop.permute.xlu0 %4369
    %4372 = vset.pattern.permute.xlu0 12
    %4373 = vperm.xlu0 %4372, %v3942
    %v4374 = vpop.permute.xlu0 %4373
    %4376 = vset.pattern.permute.xlu0 12
    %4377 = vperm.xlu0 %4376, %v3943
    %v4378 = vpop.permute.xlu0 %4377
    %4380 = vset.pattern.permute.xlu0 12
    %4381 = vperm.xlu0 %4380, %v3944
    %v4382 = vpop.permute.xlu0 %4381
    %4384 = vset.pattern.permute.xlu0 12
    %4385 = vperm.xlu0 %4384, %v3945
    %v4386 = vpop.permute.xlu0 %4385
    %4388 = vset.pattern.permute.xlu0 12
    %4389 = vperm.xlu0 %4388, %v3946
    %v4390 = vpop.permute.xlu0 %4389
    %4392 = vset.pattern.permute.xlu0 12
    %4393 = vperm.xlu0 %4392, %v3947
    %v4394 = vpop.permute.xlu0 %4393
    %4396 = vset.pattern.permute.xlu0 12
    %4397 = vperm.xlu0 %4396, %v3948
    %v4398 = vpop.permute.xlu0 %4397
    %4400 = vset.pattern.permute.xlu0 12
    %4401 = vperm.xlu0 %4400, %v3949
    %v4402 = vpop.permute.xlu0 %4401
    %v4404 = vadd.f32 %v4298, %v4358
    %v4405 = vadd.f32 %v4303, %v4362
    %v4406 = vadd.f32 %v4308, %v4366
    %v4407 = vadd.f32 %v4313, %v4370
    %v4408 = vadd.f32 %v4318, %v4374
    %v4409 = vadd.f32 %v4323, %v4378
    %v4410 = vadd.f32 %v4328, %v4382
    %v4411 = vadd.f32 %v4333, %v4386
    %v4412 = vadd.f32 %v4338, %v4390
    %v4413 = vadd.f32 %v4343, %v4394
    %v4414 = vadd.f32 %v4348, %v4398
    %v4415 = vadd.f32 %v4353, %v4402
    %v4416 = vmax.f32 %v4404, 0.0
    %v4417 = vmax.f32 %v4405, 0.0
    %v4418 = vmax.f32 %v4406, 0.0
    %v4419 = vmax.f32 %v4407, 0.0
    %v4420 = vmax.f32 %v4408, 0.0
    %v4421 = vmax.f32 %v4409, 0.0
    %v4422 = vmax.f32 %v4410, 0.0
    %v4423 = vmax.f32 %v4411, 0.0
    %v4424 = vmax.f32 %v4412, 0.0
    %v4425 = vmax.f32 %v4413, 0.0
    %v4426 = vmax.f32 %v4414, 0.0
    %v4427 = vmax.f32 %v4415, 0.0
    %v4428 = vld [vmem:[#allocation2 + $0xde0] sm:$0xff]
    %v4429 = vld [vmem:[#allocation2 + $0xdf0] sm:$0xff]
    %v4430 = vld [vmem:[#allocation2 + $0xe00] sm:$0xff]
    %v4431 = vld [vmem:[#allocation2 + $0xe10] sm:$0xff]
    %v4432 = vld [vmem:[#allocation2 + $0xe20] sm:$0xff]
    %v4433 = vld [vmem:[#allocation2 + $0xe30] sm:$0xff]
    %4435 = vset.pattern.permute.xlu0 96
    %4436 = vperm.xlu0 %4435, %v4428
    %v4437 = vpop.permute.xlu0 %4436
    %4440 = vset.pattern.permute.xlu0 96
    %4441 = vperm.xlu0 %4440, %v4429
    %v4442 = vpop.permute.xlu0 %4441
    %4445 = vset.pattern.permute.xlu0 96
    %4446 = vperm.xlu0 %4445, %v4430
    %v4447 = vpop.permute.xlu0 %4446
    %4450 = vset.pattern.permute.xlu0 96
    %4451 = vperm.xlu0 %4450, %v4431
    %v4452 = vpop.permute.xlu0 %4451
    %4455 = vset.pattern.permute.xlu0 96
    %4456 = vperm.xlu0 %4455, %v4432
    %v4457 = vpop.permute.xlu0 %4456
    %4460 = vset.pattern.permute.xlu0 96
    %4461 = vperm.xlu0 %4460, %v4433
    %v4462 = vpop.permute.xlu0 %4461
    %v4464 = vsel %vm956, %v4428, 0
    %v4466 = vsel %vm956, %v4429, 0
    %v4468 = vsel %vm956, %v4430, 0
    %v4470 = vsel %vm956, %v4431, 0
    %v4472 = vsel %vm956, %v4432, 0
    %v4474 = vsel %vm956, %v4433, 0
    %4476 = vmatprep.subr.mxu0 0.0
    %4477 = vmatpush1.msra.mxu0 0.0
    %4478 = vmatprep.subr.mxu0 0.0
    %4479 = vmatpush1.msra.mxu0 0.0
    %4480 = vmatprep.subr.mxu0 0.0
    %4481 = vmatpush1.msra.mxu0 0.0
    %4482 = vmatprep.subr.mxu0 0.0
    %4483 = vmatpush1.msra.mxu0 0.0
    %4484 = vmatprep.subr.mxu0 0.0
    %4485 = vmatpush1.msra.mxu0 %v4427
    %4486 = vmatprep.subr.mxu0 0.0
    %4487 = vmatpush1.msra.mxu0 %v4426
    %4488 = vmatprep.subr.mxu0 0.0
    %4489 = vmatpush1.msra.mxu0 %v4425
    %4490 = vmatprep.subr.mxu0 0.0
    %4491 = vmatpush1.msra.mxu0 %v4424
    %4492 = vmatprep.subr.mxu0 0.0
    %4493 = vmatpush1.msra.mxu0 %v4423
    %4494 = vmatprep.subr.mxu0 0.0
    %4495 = vmatpush1.msra.mxu0 %v4422
    %4496 = vmatprep.subr.mxu0 0.0
    %4497 = vmatpush1.msra.mxu0 %v4421
    %4498 = vmatprep.subr.mxu0 0.0
    %4499 = vmatpush1.msra.mxu0 %v4420
    %4500 = vmatprep.subr.mxu0 0.0
    %4501 = vmatpush1.msra.mxu0 %v4419
    %4502 = vmatprep.subr.mxu0 0.0
    %4503 = vmatpush1.msra.mxu0 %v4418
    %4504 = vmatprep.subr.mxu0 0.0
    %4505 = vmatpush1.msra.mxu0 %v4417
    %4506 = vmatprep.subr.mxu0 0.0
    %4507 = vmatpush1.msra.mxu0 %v4416
    %4508 = vmatprep.subr.mxu0 0.0
    %4509 = vmatpush2.msra.mxu0 0.0
    %4510 = vmatprep.subr.mxu0 0.0
    %4511 = vmatpush2.msra.mxu0 0.0
    %4512 = vmatprep.subr.mxu0 0.0
    %4513 = vmatpush2.msra.mxu0 0.0
    %4514 = vmatprep.subr.mxu0 0.0
    %4515 = vmatpush2.msra.mxu0 0.0
    %4516 = vmatprep.subr.mxu0 0.0
    %4517 = vmatpush2.msra.mxu0 0.0
    %4518 = vmatprep.subr.mxu0 0.0
    %4519 = vmatpush2.msra.mxu0 0.0
    %4520 = vmatprep.subr.mxu0 0.0
    %4521 = vmatpush2.msra.mxu0 0.0
    %4522 = vmatprep.subr.mxu0 0.0
    %4523 = vmatpush2.msra.mxu0 0.0
    %4524 = vmatprep.subr.mxu0 0.0
    %4525 = vmatpush2.msra.mxu0 0.0
    %4526 = vmatprep.subr.mxu0 0.0
    %4527 = vmatpush2.msra.mxu0 0.0
    %4528 = vmatprep.subr.mxu0 0.0
    %4529 = vmatpush2.msra.mxu0 0.0
    %4530 = vmatprep.subr.mxu0 0.0
    %4531 = vmatpush2.msra.mxu0 0.0
    %4532 = vmatprep.subr.mxu0 0.0
    %4533 = vmatpush2.msra.mxu0 0.0
    %4534 = vmatprep.subr.mxu0 0.0
    %4535 = vmatpush2.msra.mxu0 0.0
    %4536 = vmatprep.subr.mxu0 0.0
    %4537 = vmatpush2.msra.mxu0 0.0
    %4538 = vmatprep.subr.mxu0 0.0
    %4539 = vmatpush2.msra.mxu0 0.0
    %4540 = vmatprep.mubr.f32.mxu0 0.0
    %4541 = vmatmul.mubr.f32.gmra.mxu0 %v4464
    %v4542 = vpop.f32.mrf.mxu0
    %v4543 = vadd.f32 %v4437, %v4542
    %v4544 = vpop.f32.mrf.mxu0
    %4545 = vmatprep.mubr.f32.mxu0 0.0
    %4546 = vmatmul.mubr.f32.gmra.mxu0 %v4466
    %v4547 = vpop.f32.mrf.mxu0
    %v4548 = vadd.f32 %v4442, %v4547
    %v4549 = vpop.f32.mrf.mxu0
    %4550 = vmatprep.mubr.f32.mxu0 0.0
    %4551 = vmatmul.mubr.f32.gmra.mxu0 %v4468
    %v4552 = vpop.f32.mrf.mxu0
    %v4553 = vadd.f32 %v4447, %v4552
    %v4554 = vpop.f32.mrf.mxu0
    %4555 = vmatprep.mubr.f32.mxu0 0.0
    %4556 = vmatmul.mubr.f32.gmra.mxu0 %v4470
    %v4557 = vpop.f32.mrf.mxu0
    %v4558 = vadd.f32 %v4452, %v4557
    %v4559 = vpop.f32.mrf.mxu0
    %4560 = vmatprep.mubr.f32.mxu0 0.0
    %4561 = vmatmul.mubr.f32.gmra.mxu0 %v4472
    %v4562 = vpop.f32.mrf.mxu0
    %v4563 = vadd.f32 %v4457, %v4562
    %v4564 = vpop.f32.mrf.mxu0
    %4565 = vmatprep.mubr.f32.mxu0 0.0
    %4566 = vmatmul.mubr.f32.gmra.mxu0 %v4474
    %v4567 = vpop.f32.mrf.mxu0
    %v4568 = vadd.f32 %v4462, %v4567
    %v4569 = vpop.f32.mrf.mxu0
    %4570 = vdwg.mxu0
    %v4571 = vmax.f32 %v4543, 0.0
    %v4572 = vmax.f32 %v4548, 0.0
    %v4573 = vmax.f32 %v4553, 0.0
    %v4574 = vmax.f32 %v4558, 0.0
    %v4575 = vmax.f32 %v4563, 0.0
    %v4576 = vmax.f32 %v4568, 0.0
    %v4577 = vld [vmem:[#allocation2 + $0xe40] sm:$0xff]
    %v4578 = vld [vmem:[#allocation2 + $0xe50] sm:$0xff]
    %v4579 = vld [vmem:[#allocation2 + $0xe60] sm:$0xff]
    %4581 = vset.pattern.permute.xlu0 48
    %4582 = vperm.xlu0 %4581, %v4577
    %v4583 = vpop.permute.xlu0 %4582
    %4586 = vset.pattern.permute.xlu0 48
    %4587 = vperm.xlu0 %4586, %v4578
    %v4588 = vpop.permute.xlu0 %4587
    %4591 = vset.pattern.permute.xlu0 48
    %4592 = vperm.xlu0 %4591, %v4579
    %v4593 = vpop.permute.xlu0 %4592
    %v4595 = vsel %vm1090, %v4577, 0
    %v4597 = vsel %vm1090, %v4578, 0
    %v4599 = vsel %vm1090, %v4579, 0
    %4601 = vmatprep.subr.mxu0 0.0
    %4602 = vmatpush1.msra.mxu0 0.0
    %4603 = vmatprep.subr.mxu0 0.0
    %4604 = vmatpush1.msra.mxu0 0.0
    %4605 = vmatprep.subr.mxu0 0.0
    %4606 = vmatpush1.msra.mxu0 0.0
    %4607 = vmatprep.subr.mxu0 0.0
    %4608 = vmatpush1.msra.mxu0 0.0
    %4609 = vmatprep.subr.mxu0 0.0
    %4610 = vmatpush1.msra.mxu0 0.0
    %4611 = vmatprep.subr.mxu0 0.0
    %4612 = vmatpush1.msra.mxu0 0.0
    %4613 = vmatprep.subr.mxu0 0.0
    %4614 = vmatpush1.msra.mxu0 0.0
    %4615 = vmatprep.subr.mxu0 0.0
    %4616 = vmatpush1.msra.mxu0 0.0
    %4617 = vmatprep.subr.mxu0 0.0
    %4618 = vmatpush1.msra.mxu0 0.0
    %4619 = vmatprep.subr.mxu0 0.0
    %4620 = vmatpush1.msra.mxu0 0.0
    %4621 = vmatprep.subr.mxu0 0.0
    %4622 = vmatpush1.msra.mxu0 %v4576
    %4623 = vmatprep.subr.mxu0 0.0
    %4624 = vmatpush1.msra.mxu0 %v4575
    %4625 = vmatprep.subr.mxu0 0.0
    %4626 = vmatpush1.msra.mxu0 %v4574
    %4627 = vmatprep.subr.mxu0 0.0
    %4628 = vmatpush1.msra.mxu0 %v4573
    %4629 = vmatprep.subr.mxu0 0.0
    %4630 = vmatpush1.msra.mxu0 %v4572
    %4631 = vmatprep.subr.mxu0 0.0
    %4632 = vmatpush1.msra.mxu0 %v4571
    %4633 = vmatprep.subr.mxu0 0.0
    %4634 = vmatpush2.msra.mxu0 0.0
    %4635 = vmatprep.subr.mxu0 0.0
    %4636 = vmatpush2.msra.mxu0 0.0
    %4637 = vmatprep.subr.mxu0 0.0
    %4638 = vmatpush2.msra.mxu0 0.0
    %4639 = vmatprep.subr.mxu0 0.0
    %4640 = vmatpush2.msra.mxu0 0.0
    %4641 = vmatprep.subr.mxu0 0.0
    %4642 = vmatpush2.msra.mxu0 0.0
    %4643 = vmatprep.subr.mxu0 0.0
    %4644 = vmatpush2.msra.mxu0 0.0
    %4645 = vmatprep.subr.mxu0 0.0
    %4646 = vmatpush2.msra.mxu0 0.0
    %4647 = vmatprep.subr.mxu0 0.0
    %4648 = vmatpush2.msra.mxu0 0.0
    %4649 = vmatprep.subr.mxu0 0.0
    %4650 = vmatpush2.msra.mxu0 0.0
    %4651 = vmatprep.subr.mxu0 0.0
    %4652 = vmatpush2.msra.mxu0 0.0
    %4653 = vmatprep.subr.mxu0 0.0
    %4654 = vmatpush2.msra.mxu0 0.0
    %4655 = vmatprep.subr.mxu0 0.0
    %4656 = vmatpush2.msra.mxu0 0.0
    %4657 = vmatprep.subr.mxu0 0.0
    %4658 = vmatpush2.msra.mxu0 0.0
    %4659 = vmatprep.subr.mxu0 0.0
    %4660 = vmatpush2.msra.mxu0 0.0
    %4661 = vmatprep.subr.mxu0 0.0
    %4662 = vmatpush2.msra.mxu0 0.0
    %4663 = vmatprep.subr.mxu0 0.0
    %4664 = vmatpush2.msra.mxu0 0.0
    %4665 = vmatprep.mubr.f32.mxu0 0.0
    %4666 = vmatmul.mubr.f32.gmra.mxu0 %v4595
    %v4667 = vpop.f32.mrf.mxu0
    %v4668 = vadd.f32 %v4583, %v4667
    %v4669 = vpop.f32.mrf.mxu0
    %4670 = vmatprep.mubr.f32.mxu0 0.0
    %4671 = vmatmul.mubr.f32.gmra.mxu0 %v4597
    %v4672 = vpop.f32.mrf.mxu0
    %v4673 = vadd.f32 %v4588, %v4672
    %v4674 = vpop.f32.mrf.mxu0
    %4675 = vmatprep.mubr.f32.mxu0 0.0
    %4676 = vmatmul.mubr.f32.gmra.mxu0 %v4599
    %v4677 = vpop.f32.mrf.mxu0
    %v4678 = vadd.f32 %v4593, %v4677
    %v4679 = vpop.f32.mrf.mxu0
    %4680 = vdwg.mxu0
    %v4681 = vmax.f32 %v4668, 0.0
    %v4682 = vmax.f32 %v4673, 0.0
    %v4683 = vmax.f32 %v4678, 0.0
    %4684 = vst [vmem:[#allocation5] sm:$0xff] %v4681
    %4685 = vst [vmem:[#allocation5 + $0x8] sm:$0xff] %v4682
    %4686 = vst [vmem:[#allocation5 + $0x10] sm:$0xff] %v4683
    %vm4687 = vcmask 36864
    %4688 = vst.msk [vmem:[%s3] sm:$0x1f] %vm4687, %v1294
    %4689 = vst.msk [vmem:[%s4] sm:$0xff] %vm148, %v3086
    %vm4690 = vcmask 93184
    %4691 = vst.msk [vmem:[%s4 + $0x8] sm:$0xf] %vm4690, %v3091
    %4692 = vst [vmem:[#allocation6] sm:$0x1] %v3861
    %s4693 = scalar_lea.vmem %s0, 8
    %v4694 = vld [vmem:[%s4693] sm:$0x1f]
    %v4695 = vld [vmem:[#allocation2] sm:$0xff]
    %v4696 = vld [vmem:[#allocation2 + $0x10] sm:$0xf]
    %4698 = vset.pattern.permute.xlu0 5
    %4699 = vperm.xlu0 %4698, %v4695
    %v4700 = vpop.permute.xlu0 %4699
    %4703 = vset.pattern.permute.xlu0 5
    %4704 = vperm.xlu0 %4703, %v4696
    %v4705 = vpop.permute.xlu0 %4704
    %v4707 = vsel %vm44, %v4695, 0
    %v4709 = vsel %vm44, %v4696, 0
    %v4712 = vsel %vm49, %v4694, 0
    %4714 = vmatprep.subr.mxu0 0.0
    %4715 = vmatpush1.msra.mxu0 0.0
    %4716 = vmatprep.subr.mxu0 0.0
    %4717 = vmatpush1.msra.mxu0 0.0
    %4718 = vmatprep.subr.mxu0 0.0
    %4719 = vmatpush1.msra.mxu0 0.0
    %4720 = vmatprep.subr.mxu0 0.0
    %4721 = vmatpush1.msra.mxu0 0.0
    %4722 = vmatprep.subr.mxu0 0.0
    %4723 = vmatpush1.msra.mxu0 0.0
    %4724 = vmatprep.subr.mxu0 0.0
    %4725 = vmatpush1.msra.mxu0 0.0
    %4726 = vmatprep.subr.mxu0 0.0
    %4727 = vmatpush1.msra.mxu0 0.0
    %4728 = vmatprep.subr.mxu0 0.0
    %4729 = vmatpush1.msra.mxu0 0.0
    %4730 = vmatprep.subr.mxu0 0.0
    %4731 = vmatpush1.msra.mxu0 0.0
    %4732 = vmatprep.subr.mxu0 0.0
    %4733 = vmatpush1.msra.mxu0 0.0
    %4734 = vmatprep.subr.mxu0 0.0
    %4735 = vmatpush1.msra.mxu0 0.0
    %4736 = vmatprep.subr.mxu0 0.0
    %4737 = vmatpush1.msra.mxu0 0.0
    %4738 = vmatprep.subr.mxu0 0.0
    %4739 = vmatpush1.msra.mxu0 0.0
    %4740 = vmatprep.subr.mxu0 0.0
    %4741 = vmatpush1.msra.mxu0 0.0
    %4742 = vmatprep.subr.mxu0 0.0
    %4743 = vmatpush1.msra.mxu0 0.0
    %4744 = vmatprep.subr.mxu0 0.0
    %4745 = vmatpush1.msra.mxu0 %v4712
    %4746 = vmatprep.subr.mxu0 0.0
    %4747 = vmatpush2.msra.mxu0 0.0
    %4748 = vmatprep.subr.mxu0 0.0
    %4749 = vmatpush2.msra.mxu0 0.0
    %4750 = vmatprep.subr.mxu0 0.0
    %4751 = vmatpush2.msra.mxu0 0.0
    %4752 = vmatprep.subr.mxu0 0.0
    %4753 = vmatpush2.msra.mxu0 0.0
    %4754 = vmatprep.subr.mxu0 0.0
    %4755 = vmatpush2.msra.mxu0 0.0
    %4756 = vmatprep.subr.mxu0 0.0
    %4757 = vmatpush2.msra.mxu0 0.0
    %4758 = vmatprep.subr.mxu0 0.0
    %4759 = vmatpush2.msra.mxu0 0.0
    %4760 = vmatprep.subr.mxu0 0.0
    %4761 = vmatpush2.msra.mxu0 0.0
    %4762 = vmatprep.subr.mxu0 0.0
    %4763 = vmatpush2.msra.mxu0 0.0
    %4764 = vmatprep.subr.mxu0 0.0
    %4765 = vmatpush2.msra.mxu0 0.0
    %4766 = vmatprep.subr.mxu0 0.0
    %4767 = vmatpush2.msra.mxu0 0.0
    %4768 = vmatprep.subr.mxu0 0.0
    %4769 = vmatpush2.msra.mxu0 0.0
    %4770 = vmatprep.subr.mxu0 0.0
    %4771 = vmatpush2.msra.mxu0 0.0
    %4772 = vmatprep.subr.mxu0 0.0
    %4773 = vmatpush2.msra.mxu0 0.0
    %4774 = vmatprep.subr.mxu0 0.0
    %4775 = vmatpush2.msra.mxu0 0.0
    %4776 = vmatprep.subr.mxu0 0.0
    %4777 = vmatpush2.msra.mxu0 0.0
    %4778 = vmatprep.mubr.f32.mxu0 0.0
    %4779 = vmatmul.mubr.f32.gmra.mxu0 %v4707
    %v4780 = vpop.f32.mrf.mxu0
    %v4781 = vadd.f32 %v4700, %v4780
    %v4782 = vpop.f32.mrf.mxu0
    %4783 = vmatprep.mubr.f32.mxu0 0.0
    %4784 = vmatmul.mubr.f32.gmra.mxu0 %v4709
    %v4785 = vpop.f32.mrf.mxu0
    %v4786 = vadd.f32 %v4705, %v4785
    %v4787 = vpop.f32.mrf.mxu0
    %4788 = vdwg.mxu0
    %v4789 = vmax.f32 %v4781, 0.0
    %v4790 = vmax.f32 %v4786, 0.0
    %v4791 = vld [vmem:[#allocation2 + $0x20] sm:$0xff]
    %v4792 = vld [vmem:[#allocation2 + $0x30] sm:$0xff]
    %v4793 = vld [vmem:[#allocation2 + $0x40] sm:$0xff]
    %4795 = vset.pattern.permute.xlu0 12
    %4796 = vperm.xlu0 %4795, %v4791
    %v4797 = vpop.permute.xlu0 %4796
    %4800 = vset.pattern.permute.xlu0 12
    %4801 = vperm.xlu0 %4800, %v4792
    %v4802 = vpop.permute.xlu0 %4801
    %4805 = vset.pattern.permute.xlu0 12
    %4806 = vperm.xlu0 %4805, %v4793
    %v4807 = vpop.permute.xlu0 %4806
    %v4809 = vsel %vm148, %v4791, 0
    %v4811 = vsel %vm148, %v4792, 0
    %v4813 = vsel %vm148, %v4793, 0
    %v4816 = vsel %vm155, %v4790, 0
    %4818 = vmatprep.subr.mxu0 0.0
    %4819 = vmatpush1.msra.mxu0 0.0
    %4820 = vmatprep.subr.mxu0 0.0
    %4821 = vmatpush1.msra.mxu0 0.0
    %4822 = vmatprep.subr.mxu0 0.0
    %4823 = vmatpush1.msra.mxu0 0.0
    %4824 = vmatprep.subr.mxu0 0.0
    %4825 = vmatpush1.msra.mxu0 0.0
    %4826 = vmatprep.subr.mxu0 0.0
    %4827 = vmatpush1.msra.mxu0 0.0
    %4828 = vmatprep.subr.mxu0 0.0
    %4829 = vmatpush1.msra.mxu0 0.0
    %4830 = vmatprep.subr.mxu0 0.0
    %4831 = vmatpush1.msra.mxu0 0.0
    %4832 = vmatprep.subr.mxu0 0.0
    %4833 = vmatpush1.msra.mxu0 0.0
    %4834 = vmatprep.subr.mxu0 0.0
    %4835 = vmatpush1.msra.mxu0 0.0
    %4836 = vmatprep.subr.mxu0 0.0
    %4837 = vmatpush1.msra.mxu0 0.0
    %4838 = vmatprep.subr.mxu0 0.0
    %4839 = vmatpush1.msra.mxu0 0.0
    %4840 = vmatprep.subr.mxu0 0.0
    %4841 = vmatpush1.msra.mxu0 0.0
    %4842 = vmatprep.subr.mxu0 0.0
    %4843 = vmatpush1.msra.mxu0 0.0
    %4844 = vmatprep.subr.mxu0 0.0
    %4845 = vmatpush1.msra.mxu0 0.0
    %4846 = vmatprep.subr.mxu0 0.0
    %4847 = vmatpush1.msra.mxu0 %v4816
    %4848 = vmatprep.subr.mxu0 0.0
    %4849 = vmatpush1.msra.mxu0 %v4789
    %4850 = vmatprep.subr.mxu0 0.0
    %4851 = vmatpush2.msra.mxu0 0.0
    %4852 = vmatprep.subr.mxu0 0.0
    %4853 = vmatpush2.msra.mxu0 0.0
    %4854 = vmatprep.subr.mxu0 0.0
    %4855 = vmatpush2.msra.mxu0 0.0
    %4856 = vmatprep.subr.mxu0 0.0
    %4857 = vmatpush2.msra.mxu0 0.0
    %4858 = vmatprep.subr.mxu0 0.0
    %4859 = vmatpush2.msra.mxu0 0.0
    %4860 = vmatprep.subr.mxu0 0.0
    %4861 = vmatpush2.msra.mxu0 0.0
    %4862 = vmatprep.subr.mxu0 0.0
    %4863 = vmatpush2.msra.mxu0 0.0
    %4864 = vmatprep.subr.mxu0 0.0
    %4865 = vmatpush2.msra.mxu0 0.0
    %4866 = vmatprep.subr.mxu0 0.0
    %4867 = vmatpush2.msra.mxu0 0.0
    %4868 = vmatprep.subr.mxu0 0.0
    %4869 = vmatpush2.msra.mxu0 0.0
    %4870 = vmatprep.subr.mxu0 0.0
    %4871 = vmatpush2.msra.mxu0 0.0
    %4872 = vmatprep.subr.mxu0 0.0
    %4873 = vmatpush2.msra.mxu0 0.0
    %4874 = vmatprep.subr.mxu0 0.0
    %4875 = vmatpush2.msra.mxu0 0.0
    %4876 = vmatprep.subr.mxu0 0.0
    %4877 = vmatpush2.msra.mxu0 0.0
    %4878 = vmatprep.subr.mxu0 0.0
    %4879 = vmatpush2.msra.mxu0 0.0
    %4880 = vmatprep.subr.mxu0 0.0
    %4881 = vmatpush2.msra.mxu0 0.0
    %4882 = vmatprep.mubr.f32.mxu0 0.0
    %4883 = vmatmul.mubr.f32.gmra.mxu0 %v4809
    %v4884 = vpop.f32.mrf.mxu0
    %v4885 = vadd.f32 %v4797, %v4884
    %v4886 = vpop.f32.mrf.mxu0
    %4887 = vmatprep.mubr.f32.mxu0 0.0
    %4888 = vmatmul.mubr.f32.gmra.mxu0 %v4811
    %v4889 = vpop.f32.mrf.mxu0
    %v4890 = vadd.f32 %v4802, %v4889
    %v4891 = vpop.f32.mrf.mxu0
    %4892 = vmatprep.mubr.f32.mxu0 0.0
    %4893 = vmatmul.mubr.f32.gmra.mxu0 %v4813
    %v4894 = vpop.f32.mrf.mxu0
    %v4895 = vadd.f32 %v4807, %v4894
    %v4896 = vpop.f32.mrf.mxu0
    %4897 = vdwg.mxu0
    %v4898 = vmax.f32 %v4885, 0.0
    %v4899 = vmax.f32 %v4890, 0.0
    %v4900 = vmax.f32 %v4895, 0.0
    %v4901 = vld [vmem:[#allocation2 + $0x50] sm:$0xff]
    %v4902 = vld [vmem:[#allocation2 + $0x60] sm:$0xff]
    %v4903 = vld [vmem:[#allocation2 + $0x70] sm:$0xff]
    %v4904 = vld [vmem:[#allocation2 + $0x80] sm:$0xff]
    %v4905 = vld [vmem:[#allocation2 + $0x90] sm:$0xff]
    %v4906 = vld [vmem:[#allocation2 + $0xa0] sm:$0xff]
    %v4907 = vld [vmem:[#allocation2 + $0xb0] sm:$0xff]
    %v4908 = vld [vmem:[#allocation2 + $0xc0] sm:$0xff]
    %v4909 = vld [vmem:[#allocation2 + $0xd0] sm:$0xff]
    %v4910 = vld [vmem:[#allocation2 + $0xe0] sm:$0xff]
    %v4911 = vld [vmem:[#allocation2 + $0xf0] sm:$0xff]
    %v4912 = vld [vmem:[#allocation2 + $0x100] sm:$0xff]
    %v4913 = vld [vmem:[#allocation2 + $0x110] sm:$0xff]
    %v4914 = vld [vmem:[#allocation2 + $0x120] sm:$0xff]
    %v4915 = vld [vmem:[#allocation2 + $0x130] sm:$0xff]
    %v4916 = vld [vmem:[#allocation2 + $0x140] sm:$0xff]
    %v4917 = vld [vmem:[#allocation2 + $0x150] sm:$0xff]
    %v4918 = vld [vmem:[#allocation2 + $0x160] sm:$0xff]
    %v4919 = vld [vmem:[#allocation2 + $0x170] sm:$0xff]
    %v4920 = vld [vmem:[#allocation2 + $0x180] sm:$0xff]
    %v4921 = vld [vmem:[#allocation2 + $0x190] sm:$0xff]
    %v4922 = vld [vmem:[#allocation2 + $0x1a0] sm:$0xff]
    %v4923 = vld [vmem:[#allocation2 + $0x1b0] sm:$0xff]
    %v4924 = vld [vmem:[#allocation2 + $0x1c0] sm:$0xff]
    %4926 = vset.pattern.permute.xlu0 24
    %4927 = vperm.xlu0 %4926, %v4901
    %v4928 = vpop.permute.xlu0 %4927
    %4931 = vset.pattern.permute.xlu0 24
    %4932 = vperm.xlu0 %4931, %v4902
    %v4933 = vpop.permute.xlu0 %4932
    %4936 = vset.pattern.permute.xlu0 24
    %4937 = vperm.xlu0 %4936, %v4903
    %v4938 = vpop.permute.xlu0 %4937
    %4941 = vset.pattern.permute.xlu0 24
    %4942 = vperm.xlu0 %4941, %v4904
    %v4943 = vpop.permute.xlu0 %4942
    %4946 = vset.pattern.permute.xlu0 24
    %4947 = vperm.xlu0 %4946, %v4905
    %v4948 = vpop.permute.xlu0 %4947
    %4951 = vset.pattern.permute.xlu0 24
    %4952 = vperm.xlu0 %4951, %v4906
    %v4953 = vpop.permute.xlu0 %4952
    %4956 = vset.pattern.permute.xlu0 24
    %4957 = vperm.xlu0 %4956, %v4907
    %v4958 = vpop.permute.xlu0 %4957
    %4961 = vset.pattern.permute.xlu0 24
    %4962 = vperm.xlu0 %4961, %v4908
    %v4963 = vpop.permute.xlu0 %4962
    %4966 = vset.pattern.permute.xlu0 24
    %4967 = vperm.xlu0 %4966, %v4909
    %v4968 = vpop.permute.xlu0 %4967
    %4971 = vset.pattern.permute.xlu0 24
    %4972 = vperm.xlu0 %4971, %v4910
    %v4973 = vpop.permute.xlu0 %4972
    %4976 = vset.pattern.permute.xlu0 24
    %4977 = vperm.xlu0 %4976, %v4911
    %v4978 = vpop.permute.xlu0 %4977
    %4981 = vset.pattern.permute.xlu0 24
    %4982 = vperm.xlu0 %4981, %v4912
    %v4983 = vpop.permute.xlu0 %4982
    %4986 = vset.pattern.permute.xlu0 24
    %4987 = vperm.xlu0 %4986, %v4913
    %v4988 = vpop.permute.xlu0 %4987
    %4991 = vset.pattern.permute.xlu0 24
    %4992 = vperm.xlu0 %4991, %v4914
    %v4993 = vpop.permute.xlu0 %4992
    %4996 = vset.pattern.permute.xlu0 24
    %4997 = vperm.xlu0 %4996, %v4915
    %v4998 = vpop.permute.xlu0 %4997
    %5001 = vset.pattern.permute.xlu0 24
    %5002 = vperm.xlu0 %5001, %v4916
    %v5003 = vpop.permute.xlu0 %5002
    %5006 = vset.pattern.permute.xlu0 24
    %5007 = vperm.xlu0 %5006, %v4917
    %v5008 = vpop.permute.xlu0 %5007
    %5011 = vset.pattern.permute.xlu0 24
    %5012 = vperm.xlu0 %5011, %v4918
    %v5013 = vpop.permute.xlu0 %5012
    %5016 = vset.pattern.permute.xlu0 24
    %5017 = vperm.xlu0 %5016, %v4919
    %v5018 = vpop.permute.xlu0 %5017
    %5021 = vset.pattern.permute.xlu0 24
    %5022 = vperm.xlu0 %5021, %v4920
    %v5023 = vpop.permute.xlu0 %5022
    %5026 = vset.pattern.permute.xlu0 24
    %5027 = vperm.xlu0 %5026, %v4921
    %v5028 = vpop.permute.xlu0 %5027
    %5031 = vset.pattern.permute.xlu0 24
    %5032 = vperm.xlu0 %5031, %v4922
    %v5033 = vpop.permute.xlu0 %5032
    %5036 = vset.pattern.permute.xlu0 24
    %5037 = vperm.xlu0 %5036, %v4923
    %v5038 = vpop.permute.xlu0 %5037
    %5041 = vset.pattern.permute.xlu0 24
    %5042 = vperm.xlu0 %5041, %v4924
    %v5043 = vpop.permute.xlu0 %5042
    %v5045 = vsel %vm386, %v4901, 0
    %v5047 = vsel %vm386, %v4902, 0
    %v5049 = vsel %vm386, %v4903, 0
    %v5051 = vsel %vm386, %v4904, 0
    %v5053 = vsel %vm386, %v4905, 0
    %v5055 = vsel %vm386, %v4906, 0
    %v5057 = vsel %vm386, %v4907, 0
    %v5059 = vsel %vm386, %v4908, 0
    %v5061 = vsel %vm386, %v4909, 0
    %v5063 = vsel %vm386, %v4910, 0
    %v5065 = vsel %vm386, %v4911, 0
    %v5067 = vsel %vm386, %v4912, 0
    %v5069 = vsel %vm386, %v4913, 0
    %v5071 = vsel %vm386, %v4914, 0
    %v5073 = vsel %vm386, %v4915, 0
    %v5075 = vsel %vm386, %v4916, 0
    %v5077 = vsel %vm386, %v4917, 0
    %v5079 = vsel %vm386, %v4918, 0
    %v5081 = vsel %vm386, %v4919, 0
    %v5083 = vsel %vm386, %v4920, 0
    %v5085 = vsel %vm386, %v4921, 0
    %v5087 = vsel %vm386, %v4922, 0
    %v5089 = vsel %vm386, %v4923, 0
    %v5091 = vsel %vm386, %v4924, 0
    %5093 = vmatprep.subr.mxu0 0.0
    %5094 = vmatpush1.msra.mxu0 0.0
    %5095 = vmatprep.subr.mxu0 0.0
    %5096 = vmatpush1.msra.mxu0 0.0
    %5097 = vmatprep.subr.mxu0 0.0
    %5098 = vmatpush1.msra.mxu0 0.0
    %5099 = vmatprep.subr.mxu0 0.0
    %5100 = vmatpush1.msra.mxu0 0.0
    %5101 = vmatprep.subr.mxu0 0.0
    %5102 = vmatpush1.msra.mxu0 0.0
    %5103 = vmatprep.subr.mxu0 0.0
    %5104 = vmatpush1.msra.mxu0 0.0
    %5105 = vmatprep.subr.mxu0 0.0
    %5106 = vmatpush1.msra.mxu0 0.0
    %5107 = vmatprep.subr.mxu0 0.0
    %5108 = vmatpush1.msra.mxu0 0.0
    %5109 = vmatprep.subr.mxu0 0.0
    %5110 = vmatpush1.msra.mxu0 0.0
    %5111 = vmatprep.subr.mxu0 0.0
    %5112 = vmatpush1.msra.mxu0 0.0
    %5113 = vmatprep.subr.mxu0 0.0
    %5114 = vmatpush1.msra.mxu0 0.0
    %5115 = vmatprep.subr.mxu0 0.0
    %5116 = vmatpush1.msra.mxu0 0.0
    %5117 = vmatprep.subr.mxu0 0.0
    %5118 = vmatpush1.msra.mxu0 0.0
    %5119 = vmatprep.subr.mxu0 0.0
    %5120 = vmatpush1.msra.mxu0 %v4900
    %5121 = vmatprep.subr.mxu0 0.0
    %5122 = vmatpush1.msra.mxu0 %v4899
    %5123 = vmatprep.subr.mxu0 0.0
    %5124 = vmatpush1.msra.mxu0 %v4898
    %5125 = vmatprep.subr.mxu0 0.0
    %5126 = vmatpush2.msra.mxu0 0.0
    %5127 = vmatprep.subr.mxu0 0.0
    %5128 = vmatpush2.msra.mxu0 0.0
    %5129 = vmatprep.subr.mxu0 0.0
    %5130 = vmatpush2.msra.mxu0 0.0
    %5131 = vmatprep.subr.mxu0 0.0
    %5132 = vmatpush2.msra.mxu0 0.0
    %5133 = vmatprep.subr.mxu0 0.0
    %5134 = vmatpush2.msra.mxu0 0.0
    %5135 = vmatprep.subr.mxu0 0.0
    %5136 = vmatpush2.msra.mxu0 0.0
    %5137 = vmatprep.subr.mxu0 0.0
    %5138 = vmatpush2.msra.mxu0 0.0
    %5139 = vmatprep.subr.mxu0 0.0
    %5140 = vmatpush2.msra.mxu0 0.0
    %5141 = vmatprep.subr.mxu0 0.0
    %5142 = vmatpush2.msra.mxu0 0.0
    %5143 = vmatprep.subr.mxu0 0.0
    %5144 = vmatpush2.msra.mxu0 0.0
    %5145 = vmatprep.subr.mxu0 0.0
    %5146 = vmatpush2.msra.mxu0 0.0
    %5147 = vmatprep.subr.mxu0 0.0
    %5148 = vmatpush2.msra.mxu0 0.0
    %5149 = vmatprep.subr.mxu0 0.0
    %5150 = vmatpush2.msra.mxu0 0.0
    %5151 = vmatprep.subr.mxu0 0.0
    %5152 = vmatpush2.msra.mxu0 0.0
    %5153 = vmatprep.subr.mxu0 0.0
    %5154 = vmatpush2.msra.mxu0 0.0
    %5155 = vmatprep.subr.mxu0 0.0
    %5156 = vmatpush2.msra.mxu0 0.0
    %5157 = vmatprep.mubr.f32.mxu0 0.0
    %5158 = vmatmul.mubr.f32.gmra.mxu0 %v5045
    %v5159 = vpop.f32.mrf.mxu0
    %v5160 = vadd.f32 %v4928, %v5159
    %v5161 = vpop.f32.mrf.mxu0
    %5162 = vmatprep.mubr.f32.mxu0 0.0
    %5163 = vmatmul.mubr.f32.gmra.mxu0 %v5047
    %v5164 = vpop.f32.mrf.mxu0
    %v5165 = vadd.f32 %v4933, %v5164
    %v5166 = vpop.f32.mrf.mxu0
    %5167 = vmatprep.mubr.f32.mxu0 0.0
    %5168 = vmatmul.mubr.f32.gmra.mxu0 %v5049
    %v5169 = vpop.f32.mrf.mxu0
    %v5170 = vadd.f32 %v4938, %v5169
    %v5171 = vpop.f32.mrf.mxu0
    %5172 = vmatprep.mubr.f32.mxu0 0.0
    %5173 = vmatmul.mubr.f32.gmra.mxu0 %v5051
    %v5174 = vpop.f32.mrf.mxu0
    %v5175 = vadd.f32 %v4943, %v5174
    %v5176 = vpop.f32.mrf.mxu0
    %5177 = vmatprep.mubr.f32.mxu0 0.0
    %5178 = vmatmul.mubr.f32.gmra.mxu0 %v5053
    %v5179 = vpop.f32.mrf.mxu0
    %v5180 = vadd.f32 %v4948, %v5179
    %v5181 = vpop.f32.mrf.mxu0
    %5182 = vmatprep.mubr.f32.mxu0 0.0
    %5183 = vmatmul.mubr.f32.gmra.mxu0 %v5055
    %v5184 = vpop.f32.mrf.mxu0
    %v5185 = vadd.f32 %v4953, %v5184
    %v5186 = vpop.f32.mrf.mxu0
    %5187 = vmatprep.mubr.f32.mxu0 0.0
    %5188 = vmatmul.mubr.f32.gmra.mxu0 %v5057
    %v5189 = vpop.f32.mrf.mxu0
    %v5190 = vadd.f32 %v4958, %v5189
    %v5191 = vpop.f32.mrf.mxu0
    %5192 = vmatprep.mubr.f32.mxu0 0.0
    %5193 = vmatmul.mubr.f32.gmra.mxu0 %v5059
    %v5194 = vpop.f32.mrf.mxu0
    %v5195 = vadd.f32 %v4963, %v5194
    %v5196 = vpop.f32.mrf.mxu0
    %5197 = vmatprep.mubr.f32.mxu0 0.0
    %5198 = vmatmul.mubr.f32.gmra.mxu0 %v5061
    %v5199 = vpop.f32.mrf.mxu0
    %v5200 = vadd.f32 %v4968, %v5199
    %v5201 = vpop.f32.mrf.mxu0
    %5202 = vmatprep.mubr.f32.mxu0 0.0
    %5203 = vmatmul.mubr.f32.gmra.mxu0 %v5063
    %v5204 = vpop.f32.mrf.mxu0
    %v5205 = vadd.f32 %v4973, %v5204
    %v5206 = vpop.f32.mrf.mxu0
    %5207 = vmatprep.mubr.f32.mxu0 0.0
    %5208 = vmatmul.mubr.f32.gmra.mxu0 %v5065
    %v5209 = vpop.f32.mrf.mxu0
    %v5210 = vadd.f32 %v4978, %v5209
    %v5211 = vpop.f32.mrf.mxu0
    %5212 = vmatprep.mubr.f32.mxu0 0.0
    %5213 = vmatmul.mubr.f32.gmra.mxu0 %v5067
    %v5214 = vpop.f32.mrf.mxu0
    %v5215 = vadd.f32 %v4983, %v5214
    %v5216 = vpop.f32.mrf.mxu0
    %5217 = vmatprep.mubr.f32.mxu0 0.0
    %5218 = vmatmul.mubr.f32.gmra.mxu0 %v5069
    %v5219 = vpop.f32.mrf.mxu0
    %v5220 = vadd.f32 %v4988, %v5219
    %v5221 = vpop.f32.mrf.mxu0
    %5222 = vmatprep.mubr.f32.mxu0 0.0
    %5223 = vmatmul.mubr.f32.gmra.mxu0 %v5071
    %v5224 = vpop.f32.mrf.mxu0
    %v5225 = vadd.f32 %v4993, %v5224
    %v5226 = vpop.f32.mrf.mxu0
    %5227 = vmatprep.mubr.f32.mxu0 0.0
    %5228 = vmatmul.mubr.f32.gmra.mxu0 %v5073
    %v5229 = vpop.f32.mrf.mxu0
    %v5230 = vadd.f32 %v4998, %v5229
    %v5231 = vpop.f32.mrf.mxu0
    %5232 = vmatprep.mubr.f32.mxu0 0.0
    %5233 = vmatmul.mubr.f32.gmra.mxu0 %v5075
    %v5234 = vpop.f32.mrf.mxu0
    %v5235 = vadd.f32 %v5003, %v5234
    %v5236 = vpop.f32.mrf.mxu0
    %5237 = vmatprep.mubr.f32.mxu0 0.0
    %5238 = vmatmul.mubr.f32.gmra.mxu0 %v5077
    %v5239 = vpop.f32.mrf.mxu0
    %v5240 = vadd.f32 %v5008, %v5239
    %v5241 = vpop.f32.mrf.mxu0
    %5242 = vmatprep.mubr.f32.mxu0 0.0
    %5243 = vmatmul.mubr.f32.gmra.mxu0 %v5079
    %v5244 = vpop.f32.mrf.mxu0
    %v5245 = vadd.f32 %v5013, %v5244
    %v5246 = vpop.f32.mrf.mxu0
    %5247 = vmatprep.mubr.f32.mxu0 0.0
    %5248 = vmatmul.mubr.f32.gmra.mxu0 %v5081
    %v5249 = vpop.f32.mrf.mxu0
    %v5250 = vadd.f32 %v5018, %v5249
    %v5251 = vpop.f32.mrf.mxu0
    %5252 = vmatprep.mubr.f32.mxu0 0.0
    %5253 = vmatmul.mubr.f32.gmra.mxu0 %v5083
    %v5254 = vpop.f32.mrf.mxu0
    %v5255 = vadd.f32 %v5023, %v5254
    %v5256 = vpop.f32.mrf.mxu0
    %5257 = vmatprep.mubr.f32.mxu0 0.0
    %5258 = vmatmul.mubr.f32.gmra.mxu0 %v5085
    %v5259 = vpop.f32.mrf.mxu0
    %v5260 = vadd.f32 %v5028, %v5259
    %v5261 = vpop.f32.mrf.mxu0
    %5262 = vmatprep.mubr.f32.mxu0 0.0
    %5263 = vmatmul.mubr.f32.gmra.mxu0 %v5087
    %v5264 = vpop.f32.mrf.mxu0
    %v5265 = vadd.f32 %v5033, %v5264
    %v5266 = vpop.f32.mrf.mxu0
    %5267 = vmatprep.mubr.f32.mxu0 0.0
    %5268 = vmatmul.mubr.f32.gmra.mxu0 %v5089
    %v5269 = vpop.f32.mrf.mxu0
    %v5270 = vadd.f32 %v5038, %v5269
    %v5271 = vpop.f32.mrf.mxu0
    %5272 = vmatprep.mubr.f32.mxu0 0.0
    %5273 = vmatmul.mubr.f32.gmra.mxu0 %v5091
    %v5274 = vpop.f32.mrf.mxu0
    %v5275 = vadd.f32 %v5043, %v5274
    %v5276 = vpop.f32.mrf.mxu0
    %5277 = vdwg.mxu0
    %v5278 = vmax.f32 %v5160, 0.0
    %v5279 = vmax.f32 %v5165, 0.0
    %v5280 = vmax.f32 %v5170, 0.0
    %v5281 = vmax.f32 %v5175, 0.0
    %v5282 = vmax.f32 %v5180, 0.0
    %v5283 = vmax.f32 %v5185, 0.0
    %v5284 = vmax.f32 %v5190, 0.0
    %v5285 = vmax.f32 %v5195, 0.0
    %v5286 = vmax.f32 %v5200, 0.0
    %v5287 = vmax.f32 %v5205, 0.0
    %v5288 = vmax.f32 %v5210, 0.0
    %v5289 = vmax.f32 %v5215, 0.0
    %v5290 = vmax.f32 %v5220, 0.0
    %v5291 = vmax.f32 %v5225, 0.0
    %v5292 = vmax.f32 %v5230, 0.0
    %v5293 = vmax.f32 %v5235, 0.0
    %v5294 = vmax.f32 %v5240, 0.0
    %v5295 = vmax.f32 %v5245, 0.0
    %v5296 = vmax.f32 %v5250, 0.0
    %v5297 = vmax.f32 %v5255, 0.0
    %v5298 = vmax.f32 %v5260, 0.0
    %v5299 = vmax.f32 %v5265, 0.0
    %v5300 = vmax.f32 %v5270, 0.0
    %v5301 = vmax.f32 %v5275, 0.0
    %5302 = vmax.xlane.f32.xlu0 %v5278
    %v5303 = vpop.xlane.xlu0 %5302
    %5304 = vmax.xlane.f32.xlu0 %v5279
    %v5305 = vpop.xlane.xlu0 %5304
    %5306 = vmax.xlane.f32.xlu0 %v5280
    %v5307 = vpop.xlane.xlu0 %5306
    %5308 = vmax.xlane.f32.xlu0 %v5281
    %v5309 = vpop.xlane.xlu0 %5308
    %5310 = vmax.xlane.f32.xlu0 %v5282
    %v5311 = vpop.xlane.xlu0 %5310
    %5312 = vmax.xlane.f32.xlu0 %v5283
    %v5313 = vpop.xlane.xlu0 %5312
    %5314 = vmax.xlane.f32.xlu0 %v5284
    %v5315 = vpop.xlane.xlu0 %5314
    %5316 = vmax.xlane.f32.xlu0 %v5285
    %v5317 = vpop.xlane.xlu0 %5316
    %5318 = vmax.xlane.f32.xlu0 %v5286
    %v5319 = vpop.xlane.xlu0 %5318
    %5320 = vmax.xlane.f32.xlu0 %v5287
    %v5321 = vpop.xlane.xlu0 %5320
    %5322 = vmax.xlane.f32.xlu0 %v5288
    %v5323 = vpop.xlane.xlu0 %5322
    %5324 = vmax.xlane.f32.xlu0 %v5289
    %v5325 = vpop.xlane.xlu0 %5324
    %5326 = vmax.xlane.f32.xlu0 %v5290
    %v5327 = vpop.xlane.xlu0 %5326
    %5328 = vmax.xlane.f32.xlu0 %v5291
    %v5329 = vpop.xlane.xlu0 %5328
    %5330 = vmax.xlane.f32.xlu0 %v5292
    %v5331 = vpop.xlane.xlu0 %5330
    %5332 = vmax.xlane.f32.xlu0 %v5293
    %v5333 = vpop.xlane.xlu0 %5332
    %5334 = vmax.xlane.f32.xlu0 %v5294
    %v5335 = vpop.xlane.xlu0 %5334
    %5336 = vmax.xlane.f32.xlu0 %v5295
    %v5337 = vpop.xlane.xlu0 %5336
    %5338 = vmax.xlane.f32.xlu0 %v5296
    %v5339 = vpop.xlane.xlu0 %5338
    %5340 = vmax.xlane.f32.xlu0 %v5297
    %v5341 = vpop.xlane.xlu0 %5340
    %5342 = vmax.xlane.f32.xlu0 %v5298
    %v5343 = vpop.xlane.xlu0 %5342
    %5344 = vmax.xlane.f32.xlu0 %v5299
    %v5345 = vpop.xlane.xlu0 %5344
    %5346 = vmax.xlane.f32.xlu0 %v5300
    %v5347 = vpop.xlane.xlu0 %5346
    %5348 = vmax.xlane.f32.xlu0 %v5301
    %v5349 = vpop.xlane.xlu0 %5348
    %v5350 = vld [vmem:[#allocation2 + $0x1d0] sm:$0xff]
    %v5351 = vld [vmem:[#allocation2 + $0x1d8] sm:$0xff]
    %v5352 = vld [vmem:[#allocation2 + $0x1e0] sm:$0xff]
    %v5353 = vld [vmem:[#allocation2 + $0x1e8] sm:$0xff]
    %v5354 = vld [vmem:[#allocation2 + $0x1f0] sm:$0xff]
    %v5355 = vld [vmem:[#allocation2 + $0x1f8] sm:$0xff]
    %v5356 = vld [vmem:[#allocation2 + $0x200] sm:$0xff]
    %v5357 = vld [vmem:[#allocation2 + $0x208] sm:$0xff]
    %v5358 = vld [vmem:[#allocation2 + $0x210] sm:$0xff]
    %v5359 = vld [vmem:[#allocation2 + $0x218] sm:$0xff]
    %v5360 = vld [vmem:[#allocation2 + $0x220] sm:$0xff]
    %v5361 = vld [vmem:[#allocation2 + $0x228] sm:$0xff]
    %v5362 = vld [vmem:[#allocation2 + $0x230] sm:$0xff]
    %v5363 = vld [vmem:[#allocation2 + $0x238] sm:$0xff]
    %v5364 = vld [vmem:[#allocation2 + $0x240] sm:$0xff]
    %v5365 = vld [vmem:[#allocation2 + $0x248] sm:$0xff]
    %v5366 = vld [vmem:[#allocation2 + $0x250] sm:$0xff]
    %v5367 = vld [vmem:[#allocation2 + $0x258] sm:$0xff]
    %v5368 = vld [vmem:[#allocation2 + $0x260] sm:$0xff]
    %v5369 = vld [vmem:[#allocation2 + $0x268] sm:$0xff]
    %v5370 = vld [vmem:[#allocation2 + $0x270] sm:$0xff]
    %v5371 = vld [vmem:[#allocation2 + $0x278] sm:$0xff]
    %v5372 = vld [vmem:[#allocation2 + $0x280] sm:$0xff]
    %v5373 = vld [vmem:[#allocation2 + $0x288] sm:$0xff]
    %5386 = vrot.lane.b32.xlu0 %v5351, 64
    %v5387 = vpop.permute.xlu0 %5386
    %5388 = vrot.lane.b32.xlu0 %v5353, 64
    %v5389 = vpop.permute.xlu0 %5388
    %5390 = vrot.lane.b32.xlu0 %v5355, 64
    %v5391 = vpop.permute.xlu0 %5390
    %5392 = vrot.lane.b32.xlu0 %v5357, 64
    %v5393 = vpop.permute.xlu0 %5392
    %5394 = vrot.lane.b32.xlu0 %v5359, 64
    %v5395 = vpop.permute.xlu0 %5394
    %5396 = vrot.lane.b32.xlu0 %v5361, 64
    %v5397 = vpop.permute.xlu0 %5396
    %5398 = vrot.lane.b32.xlu0 %v5363, 64
    %v5399 = vpop.permute.xlu0 %5398
    %5400 = vrot.lane.b32.xlu0 %v5365, 64
    %v5401 = vpop.permute.xlu0 %5400
    %5402 = vrot.lane.b32.xlu0 %v5367, 64
    %v5403 = vpop.permute.xlu0 %5402
    %5404 = vrot.lane.b32.xlu0 %v5369, 64
    %v5405 = vpop.permute.xlu0 %5404
    %5406 = vrot.lane.b32.xlu0 %v5371, 64
    %v5407 = vpop.permute.xlu0 %5406
    %5408 = vrot.lane.b32.xlu0 %v5373, 64
    %v5409 = vpop.permute.xlu0 %5408
    %v5422 = vsel %vm764, %v5351, 0
    %v5424 = vsel %vm764, %v5353, 0
    %v5426 = vsel %vm764, %v5355, 0
    %v5428 = vsel %vm764, %v5357, 0
    %v5430 = vsel %vm764, %v5359, 0
    %v5432 = vsel %vm764, %v5361, 0
    %v5434 = vsel %vm764, %v5363, 0
    %v5436 = vsel %vm764, %v5365, 0
    %v5438 = vsel %vm764, %v5367, 0
    %v5440 = vsel %vm764, %v5369, 0
    %v5442 = vsel %vm764, %v5371, 0
    %v5444 = vsel %vm764, %v5373, 0
    %5446 = vmatprep.subr.mxu0 0.0
    %5447 = vmatpush1.msra.mxu0 %v5333
    %5448 = vmatprep.subr.mxu0 0.0
    %5449 = vmatpush1.msra.mxu0 %v5331
    %5450 = vmatprep.subr.mxu0 0.0
    %5451 = vmatpush1.msra.mxu0 %v5329
    %5452 = vmatprep.subr.mxu0 0.0
    %5453 = vmatpush1.msra.mxu0 %v5327
    %5454 = vmatprep.subr.mxu0 0.0
    %5455 = vmatpush1.msra.mxu0 %v5325
    %5456 = vmatprep.subr.mxu0 0.0
    %5457 = vmatpush1.msra.mxu0 %v5323
    %5458 = vmatprep.subr.mxu0 0.0
    %5459 = vmatpush1.msra.mxu0 %v5321
    %5460 = vmatprep.subr.mxu0 0.0
    %5461 = vmatpush1.msra.mxu0 %v5319
    %5462 = vmatprep.subr.mxu0 0.0
    %5463 = vmatpush1.msra.mxu0 %v5317
    %5464 = vmatprep.subr.mxu0 0.0
    %5465 = vmatpush1.msra.mxu0 %v5315
    %5466 = vmatprep.subr.mxu0 0.0
    %5467 = vmatpush1.msra.mxu0 %v5313
    %5468 = vmatprep.subr.mxu0 0.0
    %5469 = vmatpush1.msra.mxu0 %v5311
    %5470 = vmatprep.subr.mxu0 0.0
    %5471 = vmatpush1.msra.mxu0 %v5309
    %5472 = vmatprep.subr.mxu0 0.0
    %5473 = vmatpush1.msra.mxu0 %v5307
    %5474 = vmatprep.subr.mxu0 0.0
    %5475 = vmatpush1.msra.mxu0 %v5305
    %5476 = vmatprep.subr.mxu0 0.0
    %5477 = vmatpush1.msra.mxu0 %v5303
    %5478 = vmatprep.subr.mxu0 0.0
    %5479 = vmatpush2.msra.mxu0 0.0
    %5480 = vmatprep.subr.mxu0 0.0
    %5481 = vmatpush2.msra.mxu0 0.0
    %5482 = vmatprep.subr.mxu0 0.0
    %5483 = vmatpush2.msra.mxu0 0.0
    %5484 = vmatprep.subr.mxu0 0.0
    %5485 = vmatpush2.msra.mxu0 0.0
    %5486 = vmatprep.subr.mxu0 0.0
    %5487 = vmatpush2.msra.mxu0 0.0
    %5488 = vmatprep.subr.mxu0 0.0
    %5489 = vmatpush2.msra.mxu0 0.0
    %5490 = vmatprep.subr.mxu0 0.0
    %5491 = vmatpush2.msra.mxu0 0.0
    %5492 = vmatprep.subr.mxu0 0.0
    %5493 = vmatpush2.msra.mxu0 0.0
    %5494 = vmatprep.subr.mxu0 0.0
    %5495 = vmatpush2.msra.mxu0 %v5349
    %5496 = vmatprep.subr.mxu0 0.0
    %5497 = vmatpush2.msra.mxu0 %v5347
    %5498 = vmatprep.subr.mxu0 0.0
    %5499 = vmatpush2.msra.mxu0 %v5345
    %5500 = vmatprep.subr.mxu0 0.0
    %5501 = vmatpush2.msra.mxu0 %v5343
    %5502 = vmatprep.subr.mxu0 0.0
    %5503 = vmatpush2.msra.mxu0 %v5341
    %5504 = vmatprep.subr.mxu0 0.0
    %5505 = vmatpush2.msra.mxu0 %v5339
    %5506 = vmatprep.subr.mxu0 0.0
    %5507 = vmatpush2.msra.mxu0 %v5337
    %5508 = vmatprep.subr.mxu0 0.0
    %5509 = vmatpush2.msra.mxu0 %v5335
    %5510 = vmatprep.mubr.f32.mxu0 %v5422
    %5511 = vmatmul.mubr.f32.gmra.mxu0 %v5350
    %v5512 = vpop.f32.mrf.mxu0
    %v5513 = vadd.f32 %v5387, %v5512
    %v5514 = vpop.f32.mrf.mxu0
    %5515 = vmatprep.mubr.f32.mxu0 %v5424
    %5516 = vmatmul.mubr.f32.gmra.mxu0 %v5352
    %v5517 = vpop.f32.mrf.mxu0
    %v5518 = vadd.f32 %v5389, %v5517
    %v5519 = vpop.f32.mrf.mxu0
    %5520 = vmatprep.mubr.f32.mxu0 %v5426
    %5521 = vmatmul.mubr.f32.gmra.mxu0 %v5354
    %v5522 = vpop.f32.mrf.mxu0
    %v5523 = vadd.f32 %v5391, %v5522
    %v5524 = vpop.f32.mrf.mxu0
    %5525 = vmatprep.mubr.f32.mxu0 %v5428
    %5526 = vmatmul.mubr.f32.gmra.mxu0 %v5356
    %v5527 = vpop.f32.mrf.mxu0
    %v5528 = vadd.f32 %v5393, %v5527
    %v5529 = vpop.f32.mrf.mxu0
    %5530 = vmatprep.mubr.f32.mxu0 %v5430
    %5531 = vmatmul.mubr.f32.gmra.mxu0 %v5358
    %v5532 = vpop.f32.mrf.mxu0
    %v5533 = vadd.f32 %v5395, %v5532
    %v5534 = vpop.f32.mrf.mxu0
    %5535 = vmatprep.mubr.f32.mxu0 %v5432
    %5536 = vmatmul.mubr.f32.gmra.mxu0 %v5360
    %v5537 = vpop.f32.mrf.mxu0
    %v5538 = vadd.f32 %v5397, %v5537
    %v5539 = vpop.f32.mrf.mxu0
    %5540 = vmatprep.mubr.f32.mxu0 %v5434
    %5541 = vmatmul.mubr.f32.gmra.mxu0 %v5362
    %v5542 = vpop.f32.mrf.mxu0
    %v5543 = vadd.f32 %v5399, %v5542
    %v5544 = vpop.f32.mrf.mxu0
    %5545 = vmatprep.mubr.f32.mxu0 %v5436
    %5546 = vmatmul.mubr.f32.gmra.mxu0 %v5364
    %v5547 = vpop.f32.mrf.mxu0
    %v5548 = vadd.f32 %v5401, %v5547
    %v5549 = vpop.f32.mrf.mxu0
    %5550 = vmatprep.mubr.f32.mxu0 %v5438
    %5551 = vmatmul.mubr.f32.gmra.mxu0 %v5366
    %v5552 = vpop.f32.mrf.mxu0
    %v5553 = vadd.f32 %v5403, %v5552
    %v5554 = vpop.f32.mrf.mxu0
    %5555 = vmatprep.mubr.f32.mxu0 %v5440
    %5556 = vmatmul.mubr.f32.gmra.mxu0 %v5368
    %v5557 = vpop.f32.mrf.mxu0
    %v5558 = vadd.f32 %v5405, %v5557
    %v5559 = vpop.f32.mrf.mxu0
    %5560 = vmatprep.mubr.f32.mxu0 %v5442
    %5561 = vmatmul.mubr.f32.gmra.mxu0 %v5370
    %v5562 = vpop.f32.mrf.mxu0
    %v5563 = vadd.f32 %v5407, %v5562
    %v5564 = vpop.f32.mrf.mxu0
    %5565 = vmatprep.mubr.f32.mxu0 %v5444
    %5566 = vmatmul.mubr.f32.gmra.mxu0 %v5372
    %v5567 = vpop.f32.mrf.mxu0
    %v5568 = vadd.f32 %v5409, %v5567
    %v5569 = vpop.f32.mrf.mxu0
    %5570 = vdwg.mxu0
    %v5571 = vmax.f32 %v5513, 0.0
    %v5572 = vmax.f32 %v5518, 0.0
    %v5573 = vmax.f32 %v5523, 0.0
    %v5574 = vmax.f32 %v5528, 0.0
    %v5575 = vmax.f32 %v5533, 0.0
    %v5576 = vmax.f32 %v5538, 0.0
    %v5577 = vmax.f32 %v5543, 0.0
    %v5578 = vmax.f32 %v5548, 0.0
    %v5579 = vmax.f32 %v5553, 0.0
    %v5580 = vmax.f32 %v5558, 0.0
    %v5581 = vmax.f32 %v5563, 0.0
    %v5582 = vmax.f32 %v5568, 0.0
    %v5583 = vld [vmem:[#allocation2 + $0x290] sm:$0xff]
    %v5584 = vld [vmem:[#allocation2 + $0x2a0] sm:$0xff]
    %v5585 = vld [vmem:[#allocation2 + $0x2b0] sm:$0xff]
    %v5586 = vld [vmem:[#allocation2 + $0x2c0] sm:$0xff]
    %v5587 = vld [vmem:[#allocation2 + $0x2d0] sm:$0xff]
    %v5588 = vld [vmem:[#allocation2 + $0x2e0] sm:$0xff]
    %5595 = vrot.lane.b32.xlu0 %v5583, 32
    %v5596 = vpop.permute.xlu0 %5595
    %5597 = vrot.lane.b32.xlu0 %v5584, 32
    %v5598 = vpop.permute.xlu0 %5597
    %5599 = vrot.lane.b32.xlu0 %v5585, 32
    %v5600 = vpop.permute.xlu0 %5599
    %5601 = vrot.lane.b32.xlu0 %v5586, 32
    %v5602 = vpop.permute.xlu0 %5601
    %5603 = vrot.lane.b32.xlu0 %v5587, 32
    %v5604 = vpop.permute.xlu0 %5603
    %5605 = vrot.lane.b32.xlu0 %v5588, 32
    %v5606 = vpop.permute.xlu0 %5605
    %v5613 = vsel %vm956, %v5583, 0
    %v5615 = vsel %vm956, %v5584, 0
    %v5617 = vsel %vm956, %v5585, 0
    %v5619 = vsel %vm956, %v5586, 0
    %v5621 = vsel %vm956, %v5587, 0
    %v5623 = vsel %vm956, %v5588, 0
    %5625 = vmatprep.subr.mxu0 0.0
    %5626 = vmatpush1.msra.mxu0 0.0
    %5627 = vmatprep.subr.mxu0 0.0
    %5628 = vmatpush1.msra.mxu0 0.0
    %5629 = vmatprep.subr.mxu0 0.0
    %5630 = vmatpush1.msra.mxu0 0.0
    %5631 = vmatprep.subr.mxu0 0.0
    %5632 = vmatpush1.msra.mxu0 0.0
    %5633 = vmatprep.subr.mxu0 0.0
    %5634 = vmatpush1.msra.mxu0 %v5582
    %5635 = vmatprep.subr.mxu0 0.0
    %5636 = vmatpush1.msra.mxu0 %v5581
    %5637 = vmatprep.subr.mxu0 0.0
    %5638 = vmatpush1.msra.mxu0 %v5580
    %5639 = vmatprep.subr.mxu0 0.0
    %5640 = vmatpush1.msra.mxu0 %v5579
    %5641 = vmatprep.subr.mxu0 0.0
    %5642 = vmatpush1.msra.mxu0 %v5578
    %5643 = vmatprep.subr.mxu0 0.0
    %5644 = vmatpush1.msra.mxu0 %v5577
    %5645 = vmatprep.subr.mxu0 0.0
    %5646 = vmatpush1.msra.mxu0 %v5576
    %5647 = vmatprep.subr.mxu0 0.0
    %5648 = vmatpush1.msra.mxu0 %v5575
    %5649 = vmatprep.subr.mxu0 0.0
    %5650 = vmatpush1.msra.mxu0 %v5574
    %5651 = vmatprep.subr.mxu0 0.0
    %5652 = vmatpush1.msra.mxu0 %v5573
    %5653 = vmatprep.subr.mxu0 0.0
    %5654 = vmatpush1.msra.mxu0 %v5572
    %5655 = vmatprep.subr.mxu0 0.0
    %5656 = vmatpush1.msra.mxu0 %v5571
    %5657 = vmatprep.subr.mxu0 0.0
    %5658 = vmatpush2.msra.mxu0 0.0
    %5659 = vmatprep.subr.mxu0 0.0
    %5660 = vmatpush2.msra.mxu0 0.0
    %5661 = vmatprep.subr.mxu0 0.0
    %5662 = vmatpush2.msra.mxu0 0.0
    %5663 = vmatprep.subr.mxu0 0.0
    %5664 = vmatpush2.msra.mxu0 0.0
    %5665 = vmatprep.subr.mxu0 0.0
    %5666 = vmatpush2.msra.mxu0 0.0
    %5667 = vmatprep.subr.mxu0 0.0
    %5668 = vmatpush2.msra.mxu0 0.0
    %5669 = vmatprep.subr.mxu0 0.0
    %5670 = vmatpush2.msra.mxu0 0.0
    %5671 = vmatprep.subr.mxu0 0.0
    %5672 = vmatpush2.msra.mxu0 0.0
    %5673 = vmatprep.subr.mxu0 0.0
    %5674 = vmatpush2.msra.mxu0 0.0
    %5675 = vmatprep.subr.mxu0 0.0
    %5676 = vmatpush2.msra.mxu0 0.0
    %5677 = vmatprep.subr.mxu0 0.0
    %5678 = vmatpush2.msra.mxu0 0.0
    %5679 = vmatprep.subr.mxu0 0.0
    %5680 = vmatpush2.msra.mxu0 0.0
    %5681 = vmatprep.subr.mxu0 0.0
    %5682 = vmatpush2.msra.mxu0 0.0
    %5683 = vmatprep.subr.mxu0 0.0
    %5684 = vmatpush2.msra.mxu0 0.0
    %5685 = vmatprep.subr.mxu0 0.0
    %5686 = vmatpush2.msra.mxu0 0.0
    %5687 = vmatprep.subr.mxu0 0.0
    %5688 = vmatpush2.msra.mxu0 0.0
    %5689 = vmatprep.mubr.f32.mxu0 0.0
    %5690 = vmatmul.mubr.f32.gmra.mxu0 %v5613
    %v5691 = vpop.f32.mrf.mxu0
    %v5692 = vadd.f32 %v5596, %v5691
    %v5693 = vpop.f32.mrf.mxu0
    %5694 = vmatprep.mubr.f32.mxu0 0.0
    %5695 = vmatmul.mubr.f32.gmra.mxu0 %v5615
    %v5696 = vpop.f32.mrf.mxu0
    %v5697 = vadd.f32 %v5598, %v5696
    %v5698 = vpop.f32.mrf.mxu0
    %5699 = vmatprep.mubr.f32.mxu0 0.0
    %5700 = vmatmul.mubr.f32.gmra.mxu0 %v5617
    %v5701 = vpop.f32.mrf.mxu0
    %v5702 = vadd.f32 %v5600, %v5701
    %v5703 = vpop.f32.mrf.mxu0
    %5704 = vmatprep.mubr.f32.mxu0 0.0
    %5705 = vmatmul.mubr.f32.gmra.mxu0 %v5619
    %v5706 = vpop.f32.mrf.mxu0
    %v5707 = vadd.f32 %v5602, %v5706
    %v5708 = vpop.f32.mrf.mxu0
    %5709 = vmatprep.mubr.f32.mxu0 0.0
    %5710 = vmatmul.mubr.f32.gmra.mxu0 %v5621
    %v5711 = vpop.f32.mrf.mxu0
    %v5712 = vadd.f32 %v5604, %v5711
    %v5713 = vpop.f32.mrf.mxu0
    %5714 = vmatprep.mubr.f32.mxu0 0.0
    %5715 = vmatmul.mubr.f32.gmra.mxu0 %v5623
    %v5716 = vpop.f32.mrf.mxu0
    %v5717 = vadd.f32 %v5606, %v5716
    %v5718 = vpop.f32.mrf.mxu0
    %5719 = vdwg.mxu0
    %v5720 = vmax.f32 %v5692, 0.0
    %v5721 = vmax.f32 %v5697, 0.0
    %v5722 = vmax.f32 %v5702, 0.0
    %v5723 = vmax.f32 %v5707, 0.0
    %v5724 = vmax.f32 %v5712, 0.0
    %v5725 = vmax.f32 %v5717, 0.0
    %v5726 = vld [vmem:[#allocation2 + $0x2f0] sm:$0xff]
    %v5727 = vld [vmem:[#allocation2 + $0x300] sm:$0xff]
    %v5728 = vld [vmem:[#allocation2 + $0x310] sm:$0xff]
    %v5729 = vld [vmem:[#allocation2 + $0x320] sm:$0x1]
    %5734 = vrot.lane.b32.xlu0 %v5726, 80
    %v5735 = vpop.permute.xlu0 %5734
    %5736 = vrot.lane.b32.xlu0 %v5727, 80
    %v5737 = vpop.permute.xlu0 %5736
    %5738 = vrot.lane.b32.xlu0 %v5728, 80
    %v5739 = vpop.permute.xlu0 %5738
    %5740 = vrot.lane.b32.xlu0 %v5729, 80
    %v5741 = vpop.permute.xlu0 %5740
    %v5746 = vsel %vm1090, %v5726, 0
    %v5748 = vsel %vm1090, %v5727, 0
    %v5750 = vsel %vm1090, %v5728, 0
    %v5752 = vsel %vm1090, %v5729, 0
    %5754 = vmatprep.subr.mxu0 0.0
    %5755 = vmatpush1.msra.mxu0 0.0
    %5756 = vmatprep.subr.mxu0 0.0
    %5757 = vmatpush1.msra.mxu0 0.0
    %5758 = vmatprep.subr.mxu0 0.0
    %5759 = vmatpush1.msra.mxu0 0.0
    %5760 = vmatprep.subr.mxu0 0.0
    %5761 = vmatpush1.msra.mxu0 0.0
    %5762 = vmatprep.subr.mxu0 0.0
    %5763 = vmatpush1.msra.mxu0 0.0
    %5764 = vmatprep.subr.mxu0 0.0
    %5765 = vmatpush1.msra.mxu0 0.0
    %5766 = vmatprep.subr.mxu0 0.0
    %5767 = vmatpush1.msra.mxu0 0.0
    %5768 = vmatprep.subr.mxu0 0.0
    %5769 = vmatpush1.msra.mxu0 0.0
    %5770 = vmatprep.subr.mxu0 0.0
    %5771 = vmatpush1.msra.mxu0 0.0
    %5772 = vmatprep.subr.mxu0 0.0
    %5773 = vmatpush1.msra.mxu0 0.0
    %5774 = vmatprep.subr.mxu0 0.0
    %5775 = vmatpush1.msra.mxu0 %v5725
    %5776 = vmatprep.subr.mxu0 0.0
    %5777 = vmatpush1.msra.mxu0 %v5724
    %5778 = vmatprep.subr.mxu0 0.0
    %5779 = vmatpush1.msra.mxu0 %v5723
    %5780 = vmatprep.subr.mxu0 0.0
    %5781 = vmatpush1.msra.mxu0 %v5722
    %5782 = vmatprep.subr.mxu0 0.0
    %5783 = vmatpush1.msra.mxu0 %v5721
    %5784 = vmatprep.subr.mxu0 0.0
    %5785 = vmatpush1.msra.mxu0 %v5720
    %5786 = vmatprep.subr.mxu0 0.0
    %5787 = vmatpush2.msra.mxu0 0.0
    %5788 = vmatprep.subr.mxu0 0.0
    %5789 = vmatpush2.msra.mxu0 0.0
    %5790 = vmatprep.subr.mxu0 0.0
    %5791 = vmatpush2.msra.mxu0 0.0
    %5792 = vmatprep.subr.mxu0 0.0
    %5793 = vmatpush2.msra.mxu0 0.0
    %5794 = vmatprep.subr.mxu0 0.0
    %5795 = vmatpush2.msra.mxu0 0.0
    %5796 = vmatprep.subr.mxu0 0.0
    %5797 = vmatpush2.msra.mxu0 0.0
    %5798 = vmatprep.subr.mxu0 0.0
    %5799 = vmatpush2.msra.mxu0 0.0
    %5800 = vmatprep.subr.mxu0 0.0
    %5801 = vmatpush2.msra.mxu0 0.0
    %5802 = vmatprep.subr.mxu0 0.0
    %5803 = vmatpush2.msra.mxu0 0.0
    %5804 = vmatprep.subr.mxu0 0.0
    %5805 = vmatpush2.msra.mxu0 0.0
    %5806 = vmatprep.subr.mxu0 0.0
    %5807 = vmatpush2.msra.mxu0 0.0
    %5808 = vmatprep.subr.mxu0 0.0
    %5809 = vmatpush2.msra.mxu0 0.0
    %5810 = vmatprep.subr.mxu0 0.0
    %5811 = vmatpush2.msra.mxu0 0.0
    %5812 = vmatprep.subr.mxu0 0.0
    %5813 = vmatpush2.msra.mxu0 0.0
    %5814 = vmatprep.subr.mxu0 0.0
    %5815 = vmatpush2.msra.mxu0 0.0
    %5816 = vmatprep.subr.mxu0 0.0
    %5817 = vmatpush2.msra.mxu0 0.0
    %5818 = vmatprep.mubr.f32.mxu0 0.0
    %5819 = vmatmul.mubr.f32.gmra.mxu0 %v5746
    %v5820 = vpop.f32.mrf.mxu0
    %v5821 = vadd.f32 %v5735, %v5820
    %v5822 = vpop.f32.mrf.mxu0
    %5823 = vmatprep.mubr.f32.mxu0 0.0
    %5824 = vmatmul.mubr.f32.gmra.mxu0 %v5748
    %v5825 = vpop.f32.mrf.mxu0
    %v5826 = vadd.f32 %v5737, %v5825
    %v5827 = vpop.f32.mrf.mxu0
    %5828 = vmatprep.mubr.f32.mxu0 0.0
    %5829 = vmatmul.mubr.f32.gmra.mxu0 %v5750
    %v5830 = vpop.f32.mrf.mxu0
    %v5831 = vadd.f32 %v5739, %v5830
    %v5832 = vpop.f32.mrf.mxu0
    %5833 = vmatprep.mubr.f32.mxu0 0.0
    %5834 = vmatmul.mubr.f32.gmra.mxu0 %v5752
    %v5835 = vpop.f32.mrf.mxu0
    %v5836 = vadd.f32 %v5741, %v5835
    %v5837 = vpop.f32.mrf.mxu0
    %5838 = vdwg.mxu0
    %v5839 = vld [vmem:[#allocation2 + $0x330] sm:$0x1f]
    %v5840 = vld [vmem:[#allocation2 + $0x340] sm:$0xff]
    %v5841 = vld [vmem:[#allocation2 + $0x350] sm:$0xff]
    %v5842 = vld [vmem:[#allocation2 + $0x360] sm:$0xff]
    %v5843 = vld [vmem:[#allocation2 + $0x370] sm:$0x1]
    %v5844 = vld [vmem:[#allocation2 + $0x380] sm:$0x1f]
    %v5845 = vld [vmem:[#allocation2 + $0x390] sm:$0xff]
    %v5846 = vld [vmem:[#allocation2 + $0x3a0] sm:$0xff]
    %v5847 = vld [vmem:[#allocation2 + $0x3b0] sm:$0xff]
    %v5848 = vld [vmem:[#allocation2 + $0x3c0] sm:$0x1]
    %v5849 = vld [vmem:[#allocation2 + $0x3d0] sm:$0x1f]
    %5851 = vset.pattern.permute.xlu0 0
    %5852 = vperm.xlu0 %5851, %v5821
    %v5853 = vpop.permute.xlu0 %5852
    %5856 = vset.pattern.permute.xlu0 0
    %5857 = vperm.xlu0 %5856, %v5826
    %v5858 = vpop.permute.xlu0 %5857
    %5861 = vset.pattern.permute.xlu0 0
    %5862 = vperm.xlu0 %5861, %v5831
    %v5863 = vpop.permute.xlu0 %5862
    %5866 = vset.pattern.permute.xlu0 0
    %5867 = vperm.xlu0 %5866, %v5836
    %v5868 = vpop.permute.xlu0 %5867
    %v5870 = vmul.f32 %v5853, %v5840
    %v5871 = vmul.f32 %v5858, %v5841
    %v5872 = vmul.f32 %v5863, %v5842
    %v5873 = vmul.f32 %v5868, %v5843
    %v5875 = vsel %vm1219, %v5839, 0
    %v5878 = vsel %vm1223, %v5873, 0
    %5880 = vmatprep.subr.mxu0 0.0
    %5881 = vmatpush1.msra.mxu0 0.0
    %5882 = vmatprep.subr.mxu0 0.0
    %5883 = vmatpush1.msra.mxu0 0.0
    %5884 = vmatprep.subr.mxu0 0.0
    %5885 = vmatpush1.msra.mxu0 0.0
    %5886 = vmatprep.subr.mxu0 0.0
    %5887 = vmatpush1.msra.mxu0 0.0
    %5888 = vmatprep.subr.mxu0 0.0
    %5889 = vmatpush1.msra.mxu0 0.0
    %5890 = vmatprep.subr.mxu0 0.0
    %5891 = vmatpush1.msra.mxu0 0.0
    %5892 = vmatprep.subr.mxu0 0.0
    %5893 = vmatpush1.msra.mxu0 0.0
    %5894 = vmatprep.subr.mxu0 0.0
    %5895 = vmatpush1.msra.mxu0 0.0
    %5896 = vmatprep.subr.mxu0 0.0
    %5897 = vmatpush1.msra.mxu0 0.0
    %5898 = vmatprep.subr.mxu0 0.0
    %5899 = vmatpush1.msra.mxu0 0.0
    %5900 = vmatprep.subr.mxu0 0.0
    %5901 = vmatpush1.msra.mxu0 0.0
    %5902 = vmatprep.subr.mxu0 0.0
    %5903 = vmatpush1.msra.mxu0 0.0
    %5904 = vmatprep.subr.mxu0 0.0
    %5905 = vmatpush1.msra.mxu0 %v5878
    %5906 = vmatprep.subr.mxu0 0.0
    %5907 = vmatpush1.msra.mxu0 %v5872
    %5908 = vmatprep.subr.mxu0 0.0
    %5909 = vmatpush1.msra.mxu0 %v5871
    %5910 = vmatprep.subr.mxu0 0.0
    %5911 = vmatpush1.msra.mxu0 %v5870
    %5912 = vmatprep.subr.mxu0 0.0
    %5913 = vmatpush2.msra.mxu0 0.0
    %5914 = vmatprep.subr.mxu0 0.0
    %5915 = vmatpush2.msra.mxu0 0.0
    %5916 = vmatprep.subr.mxu0 0.0
    %5917 = vmatpush2.msra.mxu0 0.0
    %5918 = vmatprep.subr.mxu0 0.0
    %5919 = vmatpush2.msra.mxu0 0.0
    %5920 = vmatprep.subr.mxu0 0.0
    %5921 = vmatpush2.msra.mxu0 0.0
    %5922 = vmatprep.subr.mxu0 0.0
    %5923 = vmatpush2.msra.mxu0 0.0
    %5924 = vmatprep.subr.mxu0 0.0
    %5925 = vmatpush2.msra.mxu0 0.0
    %5926 = vmatprep.subr.mxu0 0.0
    %5927 = vmatpush2.msra.mxu0 0.0
    %5928 = vmatprep.subr.mxu0 0.0
    %5929 = vmatpush2.msra.mxu0 0.0
    %5930 = vmatprep.subr.mxu0 0.0
    %5931 = vmatpush2.msra.mxu0 0.0
    %5932 = vmatprep.subr.mxu0 0.0
    %5933 = vmatpush2.msra.mxu0 0.0
    %5934 = vmatprep.subr.mxu0 0.0
    %5935 = vmatpush2.msra.mxu0 0.0
    %5936 = vmatprep.subr.mxu0 0.0
    %5937 = vmatpush2.msra.mxu0 0.0
    %5938 = vmatprep.subr.mxu0 0.0
    %5939 = vmatpush2.msra.mxu0 0.0
    %5940 = vmatprep.subr.mxu0 0.0
    %5941 = vmatpush2.msra.mxu0 0.0
    %5942 = vmatprep.subr.mxu0 0.0
    %5943 = vmatpush2.msra.mxu0 0.0
    %5944 = vmatprep.mubr.f32.mxu0 0.0
    %5945 = vmatmul.mubr.f32.gmra.mxu0 %v5875
    %v5946 = vpop.f32.mrf.mxu0
    %v5947 = vadd.f32 %v5849, %v5946
    %v5948 = vpop.f32.mrf.mxu0
    %5949 = vdwg.mxu0
    %v5950 = vmul.f32 %v5853, %v5845
    %v5951 = vmul.f32 %v5858, %v5846
    %v5952 = vmul.f32 %v5863, %v5847
    %v5953 = vmul.f32 %v5868, %v5848
    %v5955 = vsel %vm1219, %v5844, 0
    %v5958 = vsel %vm1223, %v5953, 0
    %5960 = vmatprep.subr.mxu0 0.0
    %5961 = vmatpush1.msra.mxu0 0.0
    %5962 = vmatprep.subr.mxu0 0.0
    %5963 = vmatpush1.msra.mxu0 0.0
    %5964 = vmatprep.subr.mxu0 0.0
    %5965 = vmatpush1.msra.mxu0 0.0
    %5966 = vmatprep.subr.mxu0 0.0
    %5967 = vmatpush1.msra.mxu0 0.0
    %5968 = vmatprep.subr.mxu0 0.0
    %5969 = vmatpush1.msra.mxu0 0.0
    %5970 = vmatprep.subr.mxu0 0.0
    %5971 = vmatpush1.msra.mxu0 0.0
    %5972 = vmatprep.subr.mxu0 0.0
    %5973 = vmatpush1.msra.mxu0 0.0
    %5974 = vmatprep.subr.mxu0 0.0
    %5975 = vmatpush1.msra.mxu0 0.0
    %5976 = vmatprep.subr.mxu0 0.0
    %5977 = vmatpush1.msra.mxu0 0.0
    %5978 = vmatprep.subr.mxu0 0.0
    %5979 = vmatpush1.msra.mxu0 0.0
    %5980 = vmatprep.subr.mxu0 0.0
    %5981 = vmatpush1.msra.mxu0 0.0
    %5982 = vmatprep.subr.mxu0 0.0
    %5983 = vmatpush1.msra.mxu0 0.0
    %5984 = vmatprep.subr.mxu0 0.0
    %5985 = vmatpush1.msra.mxu0 %v5958
    %5986 = vmatprep.subr.mxu0 0.0
    %5987 = vmatpush1.msra.mxu0 %v5952
    %5988 = vmatprep.subr.mxu0 0.0
    %5989 = vmatpush1.msra.mxu0 %v5951
    %5990 = vmatprep.subr.mxu0 0.0
    %5991 = vmatpush1.msra.mxu0 %v5950
    %5992 = vmatprep.subr.mxu0 0.0
    %5993 = vmatpush2.msra.mxu0 0.0
    %5994 = vmatprep.subr.mxu0 0.0
    %5995 = vmatpush2.msra.mxu0 0.0
    %5996 = vmatprep.subr.mxu0 0.0
    %5997 = vmatpush2.msra.mxu0 0.0
    %5998 = vmatprep.subr.mxu0 0.0
    %5999 = vmatpush2.msra.mxu0 0.0
    %6000 = vmatprep.subr.mxu0 0.0
    %6001 = vmatpush2.msra.mxu0 0.0
    %6002 = vmatprep.subr.mxu0 0.0
    %6003 = vmatpush2.msra.mxu0 0.0
    %6004 = vmatprep.subr.mxu0 0.0
    %6005 = vmatpush2.msra.mxu0 0.0
    %6006 = vmatprep.subr.mxu0 0.0
    %6007 = vmatpush2.msra.mxu0 0.0
    %6008 = vmatprep.subr.mxu0 0.0
    %6009 = vmatpush2.msra.mxu0 0.0
    %6010 = vmatprep.subr.mxu0 0.0
    %6011 = vmatpush2.msra.mxu0 0.0
    %6012 = vmatprep.subr.mxu0 0.0
    %6013 = vmatpush2.msra.mxu0 0.0
    %6014 = vmatprep.subr.mxu0 0.0
    %6015 = vmatpush2.msra.mxu0 0.0
    %6016 = vmatprep.subr.mxu0 0.0
    %6017 = vmatpush2.msra.mxu0 0.0
    %6018 = vmatprep.subr.mxu0 0.0
    %6019 = vmatpush2.msra.mxu0 0.0
    %6020 = vmatprep.subr.mxu0 0.0
    %6021 = vmatpush2.msra.mxu0 0.0
    %6022 = vmatprep.subr.mxu0 0.0
    %6023 = vmatpush2.msra.mxu0 0.0
    %6024 = vmatprep.mubr.f32.mxu0 0.0
    %6025 = vmatmul.mubr.f32.gmra.mxu0 %v5955
    %v6026 = vpop.f32.mrf.mxu0
    %v6027 = vadd.f32 %v5849, %v6026
    %v6028 = vpop.f32.mrf.mxu0
    %6029 = vdwg.mxu0
    %v6031 = vsel %vm44, %v6027, 0
    %6033 = vmatprep.subr.mxu0 0.0
    %6034 = vmatpush1.msra.mxu0 0.0
    %6035 = vmatprep.subr.mxu0 0.0
    %6036 = vmatpush1.msra.mxu0 0.0
    %6037 = vmatprep.subr.mxu0 0.0
    %6038 = vmatpush1.msra.mxu0 0.0
    %6039 = vmatprep.subr.mxu0 0.0
    %6040 = vmatpush1.msra.mxu0 0.0
    %6041 = vmatprep.subr.mxu0 0.0
    %6042 = vmatpush1.msra.mxu0 0.0
    %6043 = vmatprep.subr.mxu0 0.0
    %6044 = vmatpush1.msra.mxu0 0.0
    %6045 = vmatprep.subr.mxu0 0.0
    %6046 = vmatpush1.msra.mxu0 0.0
    %6047 = vmatprep.subr.mxu0 0.0
    %6048 = vmatpush1.msra.mxu0 0.0
    %6049 = vmatprep.subr.mxu0 0.0
    %6050 = vmatpush1.msra.mxu0 0.0
    %6051 = vmatprep.subr.mxu0 0.0
    %6052 = vmatpush1.msra.mxu0 0.0
    %6053 = vmatprep.subr.mxu0 0.0
    %6054 = vmatpush1.msra.mxu0 0.0
    %6055 = vmatprep.subr.mxu0 0.0
    %6056 = vmatpush1.msra.mxu0 0.0
    %6057 = vmatprep.subr.mxu0 0.0
    %6058 = vmatpush1.msra.mxu0 0.0
    %6059 = vmatprep.subr.mxu0 0.0
    %6060 = vmatpush1.msra.mxu0 0.0
    %6061 = vmatprep.subr.mxu0 0.0
    %6062 = vmatpush1.msra.mxu0 0.0
    %6063 = vmatprep.subr.mxu0 0.0
    %6064 = vmatpush1.msra.mxu0 %v4712
    %6065 = vmatprep.subr.mxu0 0.0
    %6066 = vmatpush2.msra.mxu0 0.0
    %6067 = vmatprep.subr.mxu0 0.0
    %6068 = vmatpush2.msra.mxu0 0.0
    %6069 = vmatprep.subr.mxu0 0.0
    %6070 = vmatpush2.msra.mxu0 0.0
    %6071 = vmatprep.subr.mxu0 0.0
    %6072 = vmatpush2.msra.mxu0 0.0
    %6073 = vmatprep.subr.mxu0 0.0
    %6074 = vmatpush2.msra.mxu0 0.0
    %6075 = vmatprep.subr.mxu0 0.0
    %6076 = vmatpush2.msra.mxu0 0.0
    %6077 = vmatprep.subr.mxu0 0.0
    %6078 = vmatpush2.msra.mxu0 0.0
    %6079 = vmatprep.subr.mxu0 0.0
    %6080 = vmatpush2.msra.mxu0 0.0
    %6081 = vmatprep.subr.mxu0 0.0
    %6082 = vmatpush2.msra.mxu0 0.0
    %6083 = vmatprep.subr.mxu0 0.0
    %6084 = vmatpush2.msra.mxu0 0.0
    %6085 = vmatprep.subr.mxu0 0.0
    %6086 = vmatpush2.msra.mxu0 0.0
    %6087 = vmatprep.subr.mxu0 0.0
    %6088 = vmatpush2.msra.mxu0 0.0
    %6089 = vmatprep.subr.mxu0 0.0
    %6090 = vmatpush2.msra.mxu0 0.0
    %6091 = vmatprep.subr.mxu0 0.0
    %6092 = vmatpush2.msra.mxu0 0.0
    %6093 = vmatprep.subr.mxu0 0.0
    %6094 = vmatpush2.msra.mxu0 0.0
    %6095 = vmatprep.subr.mxu0 0.0
    %6096 = vmatpush2.msra.mxu0 0.0
    %6097 = vmatprep.mubr.f32.mxu0 0.0
    %6098 = vmatmul.mubr.f32.gmra.mxu0 %v6031
    %v6099 = vpop.f32.mrf.mxu0
    %v6100 = vadd.f32 0.0, %v6099
    %v6101 = vpop.f32.mrf.mxu0
    %6102 = vdwg.mxu0
    %v6103 = vld [vmem:[#allocation2 + $0xa90] sm:$0xff]
    %v6104 = vld [vmem:[#allocation2 + $0xaa0] sm:$0xf]
    %6106 = vset.pattern.permute.xlu0 5
    %6107 = vperm.xlu0 %6106, %v6103
    %v6108 = vpop.permute.xlu0 %6107
    %6111 = vset.pattern.permute.xlu0 5
    %6112 = vperm.xlu0 %6111, %v6104
    %v6113 = vpop.permute.xlu0 %6112
    %v6115 = vsel %vm44, %v6103, 0
    %v6117 = vsel %vm44, %v6104, 0
    %v6120 = vsel %vm49, %v6100, 0
    %6122 = vmatprep.subr.mxu0 0.0
    %6123 = vmatpush1.msra.mxu0 0.0
    %6124 = vmatprep.subr.mxu0 0.0
    %6125 = vmatpush1.msra.mxu0 0.0
    %6126 = vmatprep.subr.mxu0 0.0
    %6127 = vmatpush1.msra.mxu0 0.0
    %6128 = vmatprep.subr.mxu0 0.0
    %6129 = vmatpush1.msra.mxu0 0.0
    %6130 = vmatprep.subr.mxu0 0.0
    %6131 = vmatpush1.msra.mxu0 0.0
    %6132 = vmatprep.subr.mxu0 0.0
    %6133 = vmatpush1.msra.mxu0 0.0
    %6134 = vmatprep.subr.mxu0 0.0
    %6135 = vmatpush1.msra.mxu0 0.0
    %6136 = vmatprep.subr.mxu0 0.0
    %6137 = vmatpush1.msra.mxu0 0.0
    %6138 = vmatprep.subr.mxu0 0.0
    %6139 = vmatpush1.msra.mxu0 0.0
    %6140 = vmatprep.subr.mxu0 0.0
    %6141 = vmatpush1.msra.mxu0 0.0
    %6142 = vmatprep.subr.mxu0 0.0
    %6143 = vmatpush1.msra.mxu0 0.0
    %6144 = vmatprep.subr.mxu0 0.0
    %6145 = vmatpush1.msra.mxu0 0.0
    %6146 = vmatprep.subr.mxu0 0.0
    %6147 = vmatpush1.msra.mxu0 0.0
    %6148 = vmatprep.subr.mxu0 0.0
    %6149 = vmatpush1.msra.mxu0 0.0
    %6150 = vmatprep.subr.mxu0 0.0
    %6151 = vmatpush1.msra.mxu0 0.0
    %6152 = vmatprep.subr.mxu0 0.0
    %6153 = vmatpush1.msra.mxu0 %v6120
    %6154 = vmatprep.subr.mxu0 0.0
    %6155 = vmatpush2.msra.mxu0 0.0
    %6156 = vmatprep.subr.mxu0 0.0
    %6157 = vmatpush2.msra.mxu0 0.0
    %6158 = vmatprep.subr.mxu0 0.0
    %6159 = vmatpush2.msra.mxu0 0.0
    %6160 = vmatprep.subr.mxu0 0.0
    %6161 = vmatpush2.msra.mxu0 0.0
    %6162 = vmatprep.subr.mxu0 0.0
    %6163 = vmatpush2.msra.mxu0 0.0
    %6164 = vmatprep.subr.mxu0 0.0
    %6165 = vmatpush2.msra.mxu0 0.0
    %6166 = vmatprep.subr.mxu0 0.0
    %6167 = vmatpush2.msra.mxu0 0.0
    %6168 = vmatprep.subr.mxu0 0.0
    %6169 = vmatpush2.msra.mxu0 0.0
    %6170 = vmatprep.subr.mxu0 0.0
    %6171 = vmatpush2.msra.mxu0 0.0
    %6172 = vmatprep.subr.mxu0 0.0
    %6173 = vmatpush2.msra.mxu0 0.0
    %6174 = vmatprep.subr.mxu0 0.0
    %6175 = vmatpush2.msra.mxu0 0.0
    %6176 = vmatprep.subr.mxu0 0.0
    %6177 = vmatpush2.msra.mxu0 0.0
    %6178 = vmatprep.subr.mxu0 0.0
    %6179 = vmatpush2.msra.mxu0 0.0
    %6180 = vmatprep.subr.mxu0 0.0
    %6181 = vmatpush2.msra.mxu0 0.0
    %6182 = vmatprep.subr.mxu0 0.0
    %6183 = vmatpush2.msra.mxu0 0.0
    %6184 = vmatprep.subr.mxu0 0.0
    %6185 = vmatpush2.msra.mxu0 0.0
    %6186 = vmatprep.mubr.f32.mxu0 0.0
    %6187 = vmatmul.mubr.f32.gmra.mxu0 %v6115
    %v6188 = vpop.f32.mrf.mxu0
    %v6189 = vadd.f32 %v6108, %v6188
    %v6190 = vpop.f32.mrf.mxu0
    %6191 = vmatprep.mubr.f32.mxu0 0.0
    %6192 = vmatmul.mubr.f32.gmra.mxu0 %v6117
    %v6193 = vpop.f32.mrf.mxu0
    %v6194 = vadd.f32 %v6113, %v6193
    %v6195 = vpop.f32.mrf.mxu0
    %6196 = vdwg.mxu0
    %v6197 = vmax.f32 %v6189, 0.0
    %v6198 = vmax.f32 %v6194, 0.0
    %v6199 = vld [vmem:[#allocation2 + $0x3e0] sm:$0xff]
    %v6200 = vld [vmem:[#allocation2 + $0x3f0] sm:$0xf]
    %6202 = vset.pattern.permute.xlu0 12
    %6203 = vperm.xlu0 %6202, %v6199
    %v6204 = vpop.permute.xlu0 %6203
    %6207 = vset.pattern.permute.xlu0 12
    %6208 = vperm.xlu0 %6207, %v6200
    %v6209 = vpop.permute.xlu0 %6208
    %v6211 = vsel %vm148, %v6199, 0
    %v6213 = vsel %vm148, %v6200, 0
    %v6216 = vsel %vm155, %v6198, 0
    %6218 = vmatprep.subr.mxu0 0.0
    %6219 = vmatpush1.msra.mxu0 0.0
    %6220 = vmatprep.subr.mxu0 0.0
    %6221 = vmatpush1.msra.mxu0 0.0
    %6222 = vmatprep.subr.mxu0 0.0
    %6223 = vmatpush1.msra.mxu0 0.0
    %6224 = vmatprep.subr.mxu0 0.0
    %6225 = vmatpush1.msra.mxu0 0.0
    %6226 = vmatprep.subr.mxu0 0.0
    %6227 = vmatpush1.msra.mxu0 0.0
    %6228 = vmatprep.subr.mxu0 0.0
    %6229 = vmatpush1.msra.mxu0 0.0
    %6230 = vmatprep.subr.mxu0 0.0
    %6231 = vmatpush1.msra.mxu0 0.0
    %6232 = vmatprep.subr.mxu0 0.0
    %6233 = vmatpush1.msra.mxu0 0.0
    %6234 = vmatprep.subr.mxu0 0.0
    %6235 = vmatpush1.msra.mxu0 0.0
    %6236 = vmatprep.subr.mxu0 0.0
    %6237 = vmatpush1.msra.mxu0 0.0
    %6238 = vmatprep.subr.mxu0 0.0
    %6239 = vmatpush1.msra.mxu0 0.0
    %6240 = vmatprep.subr.mxu0 0.0
    %6241 = vmatpush1.msra.mxu0 0.0
    %6242 = vmatprep.subr.mxu0 0.0
    %6243 = vmatpush1.msra.mxu0 0.0
    %6244 = vmatprep.subr.mxu0 0.0
    %6245 = vmatpush1.msra.mxu0 0.0
    %6246 = vmatprep.subr.mxu0 0.0
    %6247 = vmatpush1.msra.mxu0 %v6216
    %6248 = vmatprep.subr.mxu0 0.0
    %6249 = vmatpush1.msra.mxu0 %v6197
    %6250 = vmatprep.subr.mxu0 0.0
    %6251 = vmatpush2.msra.mxu0 0.0
    %6252 = vmatprep.subr.mxu0 0.0
    %6253 = vmatpush2.msra.mxu0 0.0
    %6254 = vmatprep.subr.mxu0 0.0
    %6255 = vmatpush2.msra.mxu0 0.0
    %6256 = vmatprep.subr.mxu0 0.0
    %6257 = vmatpush2.msra.mxu0 0.0
    %6258 = vmatprep.subr.mxu0 0.0
    %6259 = vmatpush2.msra.mxu0 0.0
    %6260 = vmatprep.subr.mxu0 0.0
    %6261 = vmatpush2.msra.mxu0 0.0
    %6262 = vmatprep.subr.mxu0 0.0
    %6263 = vmatpush2.msra.mxu0 0.0
    %6264 = vmatprep.subr.mxu0 0.0
    %6265 = vmatpush2.msra.mxu0 0.0
    %6266 = vmatprep.subr.mxu0 0.0
    %6267 = vmatpush2.msra.mxu0 0.0
    %6268 = vmatprep.subr.mxu0 0.0
    %6269 = vmatpush2.msra.mxu0 0.0
    %6270 = vmatprep.subr.mxu0 0.0
    %6271 = vmatpush2.msra.mxu0 0.0
    %6272 = vmatprep.subr.mxu0 0.0
    %6273 = vmatpush2.msra.mxu0 0.0
    %6274 = vmatprep.subr.mxu0 0.0
    %6275 = vmatpush2.msra.mxu0 0.0
    %6276 = vmatprep.subr.mxu0 0.0
    %6277 = vmatpush2.msra.mxu0 0.0
    %6278 = vmatprep.subr.mxu0 0.0
    %6279 = vmatpush2.msra.mxu0 0.0
    %6280 = vmatprep.subr.mxu0 0.0
    %6281 = vmatpush2.msra.mxu0 0.0
    %6282 = vmatprep.mubr.f32.mxu0 0.0
    %6283 = vmatmul.mubr.f32.gmra.mxu0 %v6211
    %v6284 = vpop.f32.mrf.mxu0
    %v6285 = vadd.f32 %v6204, %v6284
    %v6286 = vpop.f32.mrf.mxu0
    %6287 = vmatprep.mubr.f32.mxu0 0.0
    %6288 = vmatmul.mubr.f32.gmra.mxu0 %v6213
    %v6289 = vpop.f32.mrf.mxu0
    %v6290 = vadd.f32 %v6209, %v6289
    %v6291 = vpop.f32.mrf.mxu0
    %6292 = vdwg.mxu0
    %v6293 = vmax.f32 %v6285, 0.0
    %v6294 = vmax.f32 %v6290, 0.0
    %v6295 = vld [vmem:[#allocation2 + $0x400] sm:$0xff]
    %v6296 = vld [vmem:[#allocation2 + $0x410] sm:$0xff]
    %v6297 = vld [vmem:[#allocation2 + $0x420] sm:$0xff]
    %6299 = vset.pattern.permute.xlu0 12
    %6300 = vperm.xlu0 %6299, %v6295
    %v6301 = vpop.permute.xlu0 %6300
    %6304 = vset.pattern.permute.xlu0 12
    %6305 = vperm.xlu0 %6304, %v6296
    %v6306 = vpop.permute.xlu0 %6305
    %6309 = vset.pattern.permute.xlu0 12
    %6310 = vperm.xlu0 %6309, %v6297
    %v6311 = vpop.permute.xlu0 %6310
    %v6313 = vsel %vm148, %v6295, 0
    %v6315 = vsel %vm148, %v6296, 0
    %v6317 = vsel %vm148, %v6297, 0
    %v6320 = vsel %vm155, %v6294, 0
    %6322 = vmatprep.subr.mxu0 0.0
    %6323 = vmatpush1.msra.mxu0 0.0
    %6324 = vmatprep.subr.mxu0 0.0
    %6325 = vmatpush1.msra.mxu0 0.0
    %6326 = vmatprep.subr.mxu0 0.0
    %6327 = vmatpush1.msra.mxu0 0.0
    %6328 = vmatprep.subr.mxu0 0.0
    %6329 = vmatpush1.msra.mxu0 0.0
    %6330 = vmatprep.subr.mxu0 0.0
    %6331 = vmatpush1.msra.mxu0 0.0
    %6332 = vmatprep.subr.mxu0 0.0
    %6333 = vmatpush1.msra.mxu0 0.0
    %6334 = vmatprep.subr.mxu0 0.0
    %6335 = vmatpush1.msra.mxu0 0.0
    %6336 = vmatprep.subr.mxu0 0.0
    %6337 = vmatpush1.msra.mxu0 0.0
    %6338 = vmatprep.subr.mxu0 0.0
    %6339 = vmatpush1.msra.mxu0 0.0
    %6340 = vmatprep.subr.mxu0 0.0
    %6341 = vmatpush1.msra.mxu0 0.0
    %6342 = vmatprep.subr.mxu0 0.0
    %6343 = vmatpush1.msra.mxu0 0.0
    %6344 = vmatprep.subr.mxu0 0.0
    %6345 = vmatpush1.msra.mxu0 0.0
    %6346 = vmatprep.subr.mxu0 0.0
    %6347 = vmatpush1.msra.mxu0 0.0
    %6348 = vmatprep.subr.mxu0 0.0
    %6349 = vmatpush1.msra.mxu0 0.0
    %6350 = vmatprep.subr.mxu0 0.0
    %6351 = vmatpush1.msra.mxu0 %v6320
    %6352 = vmatprep.subr.mxu0 0.0
    %6353 = vmatpush1.msra.mxu0 %v6293
    %6354 = vmatprep.subr.mxu0 0.0
    %6355 = vmatpush2.msra.mxu0 0.0
    %6356 = vmatprep.subr.mxu0 0.0
    %6357 = vmatpush2.msra.mxu0 0.0
    %6358 = vmatprep.subr.mxu0 0.0
    %6359 = vmatpush2.msra.mxu0 0.0
    %6360 = vmatprep.subr.mxu0 0.0
    %6361 = vmatpush2.msra.mxu0 0.0
    %6362 = vmatprep.subr.mxu0 0.0
    %6363 = vmatpush2.msra.mxu0 0.0
    %6364 = vmatprep.subr.mxu0 0.0
    %6365 = vmatpush2.msra.mxu0 0.0
    %6366 = vmatprep.subr.mxu0 0.0
    %6367 = vmatpush2.msra.mxu0 0.0
    %6368 = vmatprep.subr.mxu0 0.0
    %6369 = vmatpush2.msra.mxu0 0.0
    %6370 = vmatprep.subr.mxu0 0.0
    %6371 = vmatpush2.msra.mxu0 0.0
    %6372 = vmatprep.subr.mxu0 0.0
    %6373 = vmatpush2.msra.mxu0 0.0
    %6374 = vmatprep.subr.mxu0 0.0
    %6375 = vmatpush2.msra.mxu0 0.0
    %6376 = vmatprep.subr.mxu0 0.0
    %6377 = vmatpush2.msra.mxu0 0.0
    %6378 = vmatprep.subr.mxu0 0.0
    %6379 = vmatpush2.msra.mxu0 0.0
    %6380 = vmatprep.subr.mxu0 0.0
    %6381 = vmatpush2.msra.mxu0 0.0
    %6382 = vmatprep.subr.mxu0 0.0
    %6383 = vmatpush2.msra.mxu0 0.0
    %6384 = vmatprep.subr.mxu0 0.0
    %6385 = vmatpush2.msra.mxu0 0.0
    %6386 = vmatprep.mubr.f32.mxu0 0.0
    %6387 = vmatmul.mubr.f32.gmra.mxu0 %v6313
    %v6388 = vpop.f32.mrf.mxu0
    %v6389 = vadd.f32 %v6301, %v6388
    %v6390 = vpop.f32.mrf.mxu0
    %6391 = vmatprep.mubr.f32.mxu0 0.0
    %6392 = vmatmul.mubr.f32.gmra.mxu0 %v6315
    %v6393 = vpop.f32.mrf.mxu0
    %v6394 = vadd.f32 %v6306, %v6393
    %v6395 = vpop.f32.mrf.mxu0
    %6396 = vmatprep.mubr.f32.mxu0 0.0
    %6397 = vmatmul.mubr.f32.gmra.mxu0 %v6317
    %v6398 = vpop.f32.mrf.mxu0
    %v6399 = vadd.f32 %v6311, %v6398
    %v6400 = vpop.f32.mrf.mxu0
    %6401 = vdwg.mxu0
    %v6402 = vmax.f32 %v6389, 0.0
    %v6403 = vmax.f32 %v6394, 0.0
    %v6404 = vmax.f32 %v6399, 0.0
    %v6405 = vld [vmem:[#allocation2 + $0x430] sm:$0xff]
    %v6406 = vld [vmem:[#allocation2 + $0x440] sm:$0xff]
    %v6407 = vld [vmem:[#allocation2 + $0x450] sm:$0xff]
    %v6408 = vld [vmem:[#allocation2 + $0x460] sm:$0xff]
    %v6409 = vld [vmem:[#allocation2 + $0x470] sm:$0xff]
    %v6410 = vld [vmem:[#allocation2 + $0x480] sm:$0xff]
    %v6411 = vld [vmem:[#allocation2 + $0x490] sm:$0xff]
    %v6412 = vld [vmem:[#allocation2 + $0x4a0] sm:$0xff]
    %v6413 = vld [vmem:[#allocation2 + $0x4b0] sm:$0xff]
    %v6414 = vld [vmem:[#allocation2 + $0x4c0] sm:$0xff]
    %v6415 = vld [vmem:[#allocation2 + $0x4d0] sm:$0xff]
    %v6416 = vld [vmem:[#allocation2 + $0x4e0] sm:$0xff]
    %v6417 = vld [vmem:[#allocation2 + $0x4f0] sm:$0xff]
    %v6418 = vld [vmem:[#allocation2 + $0x500] sm:$0xff]
    %v6419 = vld [vmem:[#allocation2 + $0x510] sm:$0xff]
    %v6420 = vld [vmem:[#allocation2 + $0x520] sm:$0xff]
    %v6421 = vld [vmem:[#allocation2 + $0x530] sm:$0xff]
    %v6422 = vld [vmem:[#allocation2 + $0x540] sm:$0xff]
    %v6423 = vld [vmem:[#allocation2 + $0x550] sm:$0xff]
    %v6424 = vld [vmem:[#allocation2 + $0x560] sm:$0xff]
    %v6425 = vld [vmem:[#allocation2 + $0x570] sm:$0xff]
    %v6426 = vld [vmem:[#allocation2 + $0x580] sm:$0xff]
    %v6427 = vld [vmem:[#allocation2 + $0x590] sm:$0xff]
    %v6428 = vld [vmem:[#allocation2 + $0x5a0] sm:$0xff]
    %6430 = vset.pattern.permute.xlu0 24
    %6431 = vperm.xlu0 %6430, %v6405
    %v6432 = vpop.permute.xlu0 %6431
    %6435 = vset.pattern.permute.xlu0 24
    %6436 = vperm.xlu0 %6435, %v6406
    %v6437 = vpop.permute.xlu0 %6436
    %6440 = vset.pattern.permute.xlu0 24
    %6441 = vperm.xlu0 %6440, %v6407
    %v6442 = vpop.permute.xlu0 %6441
    %6445 = vset.pattern.permute.xlu0 24
    %6446 = vperm.xlu0 %6445, %v6408
    %v6447 = vpop.permute.xlu0 %6446
    %6450 = vset.pattern.permute.xlu0 24
    %6451 = vperm.xlu0 %6450, %v6409
    %v6452 = vpop.permute.xlu0 %6451
    %6455 = vset.pattern.permute.xlu0 24
    %6456 = vperm.xlu0 %6455, %v6410
    %v6457 = vpop.permute.xlu0 %6456
    %6460 = vset.pattern.permute.xlu0 24
    %6461 = vperm.xlu0 %6460, %v6411
    %v6462 = vpop.permute.xlu0 %6461
    %6465 = vset.pattern.permute.xlu0 24
    %6466 = vperm.xlu0 %6465, %v6412
    %v6467 = vpop.permute.xlu0 %6466
    %6470 = vset.pattern.permute.xlu0 24
    %6471 = vperm.xlu0 %6470, %v6413
    %v6472 = vpop.permute.xlu0 %6471
    %6475 = vset.pattern.permute.xlu0 24
    %6476 = vperm.xlu0 %6475, %v6414
    %v6477 = vpop.permute.xlu0 %6476
    %6480 = vset.pattern.permute.xlu0 24
    %6481 = vperm.xlu0 %6480, %v6415
    %v6482 = vpop.permute.xlu0 %6481
    %6485 = vset.pattern.permute.xlu0 24
    %6486 = vperm.xlu0 %6485, %v6416
    %v6487 = vpop.permute.xlu0 %6486
    %6490 = vset.pattern.permute.xlu0 24
    %6491 = vperm.xlu0 %6490, %v6417
    %v6492 = vpop.permute.xlu0 %6491
    %6495 = vset.pattern.permute.xlu0 24
    %6496 = vperm.xlu0 %6495, %v6418
    %v6497 = vpop.permute.xlu0 %6496
    %6500 = vset.pattern.permute.xlu0 24
    %6501 = vperm.xlu0 %6500, %v6419
    %v6502 = vpop.permute.xlu0 %6501
    %6505 = vset.pattern.permute.xlu0 24
    %6506 = vperm.xlu0 %6505, %v6420
    %v6507 = vpop.permute.xlu0 %6506
    %6510 = vset.pattern.permute.xlu0 24
    %6511 = vperm.xlu0 %6510, %v6421
    %v6512 = vpop.permute.xlu0 %6511
    %6515 = vset.pattern.permute.xlu0 24
    %6516 = vperm.xlu0 %6515, %v6422
    %v6517 = vpop.permute.xlu0 %6516
    %6520 = vset.pattern.permute.xlu0 24
    %6521 = vperm.xlu0 %6520, %v6423
    %v6522 = vpop.permute.xlu0 %6521
    %6525 = vset.pattern.permute.xlu0 24
    %6526 = vperm.xlu0 %6525, %v6424
    %v6527 = vpop.permute.xlu0 %6526
    %6530 = vset.pattern.permute.xlu0 24
    %6531 = vperm.xlu0 %6530, %v6425
    %v6532 = vpop.permute.xlu0 %6531
    %6535 = vset.pattern.permute.xlu0 24
    %6536 = vperm.xlu0 %6535, %v6426
    %v6537 = vpop.permute.xlu0 %6536
    %6540 = vset.pattern.permute.xlu0 24
    %6541 = vperm.xlu0 %6540, %v6427
    %v6542 = vpop.permute.xlu0 %6541
    %6545 = vset.pattern.permute.xlu0 24
    %6546 = vperm.xlu0 %6545, %v6428
    %v6547 = vpop.permute.xlu0 %6546
    %v6549 = vsel %vm386, %v6405, 0
    %v6551 = vsel %vm386, %v6406, 0
    %v6553 = vsel %vm386, %v6407, 0
    %v6555 = vsel %vm386, %v6408, 0
    %v6557 = vsel %vm386, %v6409, 0
    %v6559 = vsel %vm386, %v6410, 0
    %v6561 = vsel %vm386, %v6411, 0
    %v6563 = vsel %vm386, %v6412, 0
    %v6565 = vsel %vm386, %v6413, 0
    %v6567 = vsel %vm386, %v6414, 0
    %v6569 = vsel %vm386, %v6415, 0
    %v6571 = vsel %vm386, %v6416, 0
    %v6573 = vsel %vm386, %v6417, 0
    %v6575 = vsel %vm386, %v6418, 0
    %v6577 = vsel %vm386, %v6419, 0
    %v6579 = vsel %vm386, %v6420, 0
    %v6581 = vsel %vm386, %v6421, 0
    %v6583 = vsel %vm386, %v6422, 0
    %v6585 = vsel %vm386, %v6423, 0
    %v6587 = vsel %vm386, %v6424, 0
    %v6589 = vsel %vm386, %v6425, 0
    %v6591 = vsel %vm386, %v6426, 0
    %v6593 = vsel %vm386, %v6427, 0
    %v6595 = vsel %vm386, %v6428, 0
    %6597 = vmatprep.subr.mxu0 0.0
    %6598 = vmatpush1.msra.mxu0 0.0
    %6599 = vmatprep.subr.mxu0 0.0
    %6600 = vmatpush1.msra.mxu0 0.0
    %6601 = vmatprep.subr.mxu0 0.0
    %6602 = vmatpush1.msra.mxu0 0.0
    %6603 = vmatprep.subr.mxu0 0.0
    %6604 = vmatpush1.msra.mxu0 0.0
    %6605 = vmatprep.subr.mxu0 0.0
    %6606 = vmatpush1.msra.mxu0 0.0
    %6607 = vmatprep.subr.mxu0 0.0
    %6608 = vmatpush1.msra.mxu0 0.0
    %6609 = vmatprep.subr.mxu0 0.0
    %6610 = vmatpush1.msra.mxu0 0.0
    %6611 = vmatprep.subr.mxu0 0.0
    %6612 = vmatpush1.msra.mxu0 0.0
    %6613 = vmatprep.subr.mxu0 0.0
    %6614 = vmatpush1.msra.mxu0 0.0
    %6615 = vmatprep.subr.mxu0 0.0
    %6616 = vmatpush1.msra.mxu0 0.0
    %6617 = vmatprep.subr.mxu0 0.0
    %6618 = vmatpush1.msra.mxu0 0.0
    %6619 = vmatprep.subr.mxu0 0.0
    %6620 = vmatpush1.msra.mxu0 0.0
    %6621 = vmatprep.subr.mxu0 0.0
    %6622 = vmatpush1.msra.mxu0 0.0
    %6623 = vmatprep.subr.mxu0 0.0
    %6624 = vmatpush1.msra.mxu0 %v6404
    %6625 = vmatprep.subr.mxu0 0.0
    %6626 = vmatpush1.msra.mxu0 %v6403
    %6627 = vmatprep.subr.mxu0 0.0
    %6628 = vmatpush1.msra.mxu0 %v6402
    %6629 = vmatprep.subr.mxu0 0.0
    %6630 = vmatpush2.msra.mxu0 0.0
    %6631 = vmatprep.subr.mxu0 0.0
    %6632 = vmatpush2.msra.mxu0 0.0
    %6633 = vmatprep.subr.mxu0 0.0
    %6634 = vmatpush2.msra.mxu0 0.0
    %6635 = vmatprep.subr.mxu0 0.0
    %6636 = vmatpush2.msra.mxu0 0.0
    %6637 = vmatprep.subr.mxu0 0.0
    %6638 = vmatpush2.msra.mxu0 0.0
    %6639 = vmatprep.subr.mxu0 0.0
    %6640 = vmatpush2.msra.mxu0 0.0
    %6641 = vmatprep.subr.mxu0 0.0
    %6642 = vmatpush2.msra.mxu0 0.0
    %6643 = vmatprep.subr.mxu0 0.0
    %6644 = vmatpush2.msra.mxu0 0.0
    %6645 = vmatprep.subr.mxu0 0.0
    %6646 = vmatpush2.msra.mxu0 0.0
    %6647 = vmatprep.subr.mxu0 0.0
    %6648 = vmatpush2.msra.mxu0 0.0
    %6649 = vmatprep.subr.mxu0 0.0
    %6650 = vmatpush2.msra.mxu0 0.0
    %6651 = vmatprep.subr.mxu0 0.0
    %6652 = vmatpush2.msra.mxu0 0.0
    %6653 = vmatprep.subr.mxu0 0.0
    %6654 = vmatpush2.msra.mxu0 0.0
    %6655 = vmatprep.subr.mxu0 0.0
    %6656 = vmatpush2.msra.mxu0 0.0
    %6657 = vmatprep.subr.mxu0 0.0
    %6658 = vmatpush2.msra.mxu0 0.0
    %6659 = vmatprep.subr.mxu0 0.0
    %6660 = vmatpush2.msra.mxu0 0.0
    %6661 = vmatprep.mubr.f32.mxu0 0.0
    %6662 = vmatmul.mubr.f32.gmra.mxu0 %v6549
    %v6663 = vpop.f32.mrf.mxu0
    %v6664 = vadd.f32 %v6432, %v6663
    %v6665 = vpop.f32.mrf.mxu0
    %6666 = vmatprep.mubr.f32.mxu0 0.0
    %6667 = vmatmul.mubr.f32.gmra.mxu0 %v6551
    %v6668 = vpop.f32.mrf.mxu0
    %v6669 = vadd.f32 %v6437, %v6668
    %v6670 = vpop.f32.mrf.mxu0
    %6671 = vmatprep.mubr.f32.mxu0 0.0
    %6672 = vmatmul.mubr.f32.gmra.mxu0 %v6553
    %v6673 = vpop.f32.mrf.mxu0
    %v6674 = vadd.f32 %v6442, %v6673
    %v6675 = vpop.f32.mrf.mxu0
    %6676 = vmatprep.mubr.f32.mxu0 0.0
    %6677 = vmatmul.mubr.f32.gmra.mxu0 %v6555
    %v6678 = vpop.f32.mrf.mxu0
    %v6679 = vadd.f32 %v6447, %v6678
    %v6680 = vpop.f32.mrf.mxu0
    %6681 = vmatprep.mubr.f32.mxu0 0.0
    %6682 = vmatmul.mubr.f32.gmra.mxu0 %v6557
    %v6683 = vpop.f32.mrf.mxu0
    %v6684 = vadd.f32 %v6452, %v6683
    %v6685 = vpop.f32.mrf.mxu0
    %6686 = vmatprep.mubr.f32.mxu0 0.0
    %6687 = vmatmul.mubr.f32.gmra.mxu0 %v6559
    %v6688 = vpop.f32.mrf.mxu0
    %v6689 = vadd.f32 %v6457, %v6688
    %v6690 = vpop.f32.mrf.mxu0
    %6691 = vmatprep.mubr.f32.mxu0 0.0
    %6692 = vmatmul.mubr.f32.gmra.mxu0 %v6561
    %v6693 = vpop.f32.mrf.mxu0
    %v6694 = vadd.f32 %v6462, %v6693
    %v6695 = vpop.f32.mrf.mxu0
    %6696 = vmatprep.mubr.f32.mxu0 0.0
    %6697 = vmatmul.mubr.f32.gmra.mxu0 %v6563
    %v6698 = vpop.f32.mrf.mxu0
    %v6699 = vadd.f32 %v6467, %v6698
    %v6700 = vpop.f32.mrf.mxu0
    %6701 = vmatprep.mubr.f32.mxu0 0.0
    %6702 = vmatmul.mubr.f32.gmra.mxu0 %v6565
    %v6703 = vpop.f32.mrf.mxu0
    %v6704 = vadd.f32 %v6472, %v6703
    %v6705 = vpop.f32.mrf.mxu0
    %6706 = vmatprep.mubr.f32.mxu0 0.0
    %6707 = vmatmul.mubr.f32.gmra.mxu0 %v6567
    %v6708 = vpop.f32.mrf.mxu0
    %v6709 = vadd.f32 %v6477, %v6708
    %v6710 = vpop.f32.mrf.mxu0
    %6711 = vmatprep.mubr.f32.mxu0 0.0
    %6712 = vmatmul.mubr.f32.gmra.mxu0 %v6569
    %v6713 = vpop.f32.mrf.mxu0
    %v6714 = vadd.f32 %v6482, %v6713
    %v6715 = vpop.f32.mrf.mxu0
    %6716 = vmatprep.mubr.f32.mxu0 0.0
    %6717 = vmatmul.mubr.f32.gmra.mxu0 %v6571
    %v6718 = vpop.f32.mrf.mxu0
    %v6719 = vadd.f32 %v6487, %v6718
    %v6720 = vpop.f32.mrf.mxu0
    %6721 = vmatprep.mubr.f32.mxu0 0.0
    %6722 = vmatmul.mubr.f32.gmra.mxu0 %v6573
    %v6723 = vpop.f32.mrf.mxu0
    %v6724 = vadd.f32 %v6492, %v6723
    %v6725 = vpop.f32.mrf.mxu0
    %6726 = vmatprep.mubr.f32.mxu0 0.0
    %6727 = vmatmul.mubr.f32.gmra.mxu0 %v6575
    %v6728 = vpop.f32.mrf.mxu0
    %v6729 = vadd.f32 %v6497, %v6728
    %v6730 = vpop.f32.mrf.mxu0
    %6731 = vmatprep.mubr.f32.mxu0 0.0
    %6732 = vmatmul.mubr.f32.gmra.mxu0 %v6577
    %v6733 = vpop.f32.mrf.mxu0
    %v6734 = vadd.f32 %v6502, %v6733
    %v6735 = vpop.f32.mrf.mxu0
    %6736 = vmatprep.mubr.f32.mxu0 0.0
    %6737 = vmatmul.mubr.f32.gmra.mxu0 %v6579
    %v6738 = vpop.f32.mrf.mxu0
    %v6739 = vadd.f32 %v6507, %v6738
    %v6740 = vpop.f32.mrf.mxu0
    %6741 = vmatprep.mubr.f32.mxu0 0.0
    %6742 = vmatmul.mubr.f32.gmra.mxu0 %v6581
    %v6743 = vpop.f32.mrf.mxu0
    %v6744 = vadd.f32 %v6512, %v6743
    %v6745 = vpop.f32.mrf.mxu0
    %6746 = vmatprep.mubr.f32.mxu0 0.0
    %6747 = vmatmul.mubr.f32.gmra.mxu0 %v6583
    %v6748 = vpop.f32.mrf.mxu0
    %v6749 = vadd.f32 %v6517, %v6748
    %v6750 = vpop.f32.mrf.mxu0
    %6751 = vmatprep.mubr.f32.mxu0 0.0
    %6752 = vmatmul.mubr.f32.gmra.mxu0 %v6585
    %v6753 = vpop.f32.mrf.mxu0
    %v6754 = vadd.f32 %v6522, %v6753
    %v6755 = vpop.f32.mrf.mxu0
    %6756 = vmatprep.mubr.f32.mxu0 0.0
    %6757 = vmatmul.mubr.f32.gmra.mxu0 %v6587
    %v6758 = vpop.f32.mrf.mxu0
    %v6759 = vadd.f32 %v6527, %v6758
    %v6760 = vpop.f32.mrf.mxu0
    %6761 = vmatprep.mubr.f32.mxu0 0.0
    %6762 = vmatmul.mubr.f32.gmra.mxu0 %v6589
    %v6763 = vpop.f32.mrf.mxu0
    %v6764 = vadd.f32 %v6532, %v6763
    %v6765 = vpop.f32.mrf.mxu0
    %6766 = vmatprep.mubr.f32.mxu0 0.0
    %6767 = vmatmul.mubr.f32.gmra.mxu0 %v6591
    %v6768 = vpop.f32.mrf.mxu0
    %v6769 = vadd.f32 %v6537, %v6768
    %v6770 = vpop.f32.mrf.mxu0
    %6771 = vmatprep.mubr.f32.mxu0 0.0
    %6772 = vmatmul.mubr.f32.gmra.mxu0 %v6593
    %v6773 = vpop.f32.mrf.mxu0
    %v6774 = vadd.f32 %v6542, %v6773
    %v6775 = vpop.f32.mrf.mxu0
    %6776 = vmatprep.mubr.f32.mxu0 0.0
    %6777 = vmatmul.mubr.f32.gmra.mxu0 %v6595
    %v6778 = vpop.f32.mrf.mxu0
    %v6779 = vadd.f32 %v6547, %v6778
    %v6780 = vpop.f32.mrf.mxu0
    %6781 = vdwg.mxu0
    %v6782 = vmax.f32 %v6664, 0.0
    %v6783 = vmax.f32 %v6669, 0.0
    %v6784 = vmax.f32 %v6674, 0.0
    %v6785 = vmax.f32 %v6679, 0.0
    %v6786 = vmax.f32 %v6684, 0.0
    %v6787 = vmax.f32 %v6689, 0.0
    %v6788 = vmax.f32 %v6694, 0.0
    %v6789 = vmax.f32 %v6699, 0.0
    %v6790 = vmax.f32 %v6704, 0.0
    %v6791 = vmax.f32 %v6709, 0.0
    %v6792 = vmax.f32 %v6714, 0.0
    %v6793 = vmax.f32 %v6719, 0.0
    %v6794 = vmax.f32 %v6724, 0.0
    %v6795 = vmax.f32 %v6729, 0.0
    %v6796 = vmax.f32 %v6734, 0.0
    %v6797 = vmax.f32 %v6739, 0.0
    %v6798 = vmax.f32 %v6744, 0.0
    %v6799 = vmax.f32 %v6749, 0.0
    %v6800 = vmax.f32 %v6754, 0.0
    %v6801 = vmax.f32 %v6759, 0.0
    %v6802 = vmax.f32 %v6764, 0.0
    %v6803 = vmax.f32 %v6769, 0.0
    %v6804 = vmax.f32 %v6774, 0.0
    %v6805 = vmax.f32 %v6779, 0.0
    %6806 = vmax.xlane.f32.xlu0 %v6782
    %v6807 = vpop.xlane.xlu0 %6806
    %6808 = vmax.xlane.f32.xlu0 %v6783
    %v6809 = vpop.xlane.xlu0 %6808
    %6810 = vmax.xlane.f32.xlu0 %v6784
    %v6811 = vpop.xlane.xlu0 %6810
    %6812 = vmax.xlane.f32.xlu0 %v6785
    %v6813 = vpop.xlane.xlu0 %6812
    %6814 = vmax.xlane.f32.xlu0 %v6786
    %v6815 = vpop.xlane.xlu0 %6814
    %6816 = vmax.xlane.f32.xlu0 %v6787
    %v6817 = vpop.xlane.xlu0 %6816
    %6818 = vmax.xlane.f32.xlu0 %v6788
    %v6819 = vpop.xlane.xlu0 %6818
    %6820 = vmax.xlane.f32.xlu0 %v6789
    %v6821 = vpop.xlane.xlu0 %6820
    %6822 = vmax.xlane.f32.xlu0 %v6790
    %v6823 = vpop.xlane.xlu0 %6822
    %6824 = vmax.xlane.f32.xlu0 %v6791
    %v6825 = vpop.xlane.xlu0 %6824
    %6826 = vmax.xlane.f32.xlu0 %v6792
    %v6827 = vpop.xlane.xlu0 %6826
    %6828 = vmax.xlane.f32.xlu0 %v6793
    %v6829 = vpop.xlane.xlu0 %6828
    %6830 = vmax.xlane.f32.xlu0 %v6794
    %v6831 = vpop.xlane.xlu0 %6830
    %6832 = vmax.xlane.f32.xlu0 %v6795
    %v6833 = vpop.xlane.xlu0 %6832
    %6834 = vmax.xlane.f32.xlu0 %v6796
    %v6835 = vpop.xlane.xlu0 %6834
    %6836 = vmax.xlane.f32.xlu0 %v6797
    %v6837 = vpop.xlane.xlu0 %6836
    %6838 = vmax.xlane.f32.xlu0 %v6798
    %v6839 = vpop.xlane.xlu0 %6838
    %6840 = vmax.xlane.f32.xlu0 %v6799
    %v6841 = vpop.xlane.xlu0 %6840
    %6842 = vmax.xlane.f32.xlu0 %v6800
    %v6843 = vpop.xlane.xlu0 %6842
    %6844 = vmax.xlane.f32.xlu0 %v6801
    %v6845 = vpop.xlane.xlu0 %6844
    %6846 = vmax.xlane.f32.xlu0 %v6802
    %v6847 = vpop.xlane.xlu0 %6846
    %6848 = vmax.xlane.f32.xlu0 %v6803
    %v6849 = vpop.xlane.xlu0 %6848
    %6850 = vmax.xlane.f32.xlu0 %v6804
    %v6851 = vpop.xlane.xlu0 %6850
    %6852 = vmax.xlane.f32.xlu0 %v6805
    %v6853 = vpop.xlane.xlu0 %6852
    %v6854 = vld [vmem:[#allocation2 + $0x5b0] sm:$0xff]
    %v6855 = vld [vmem:[#allocation2 + $0x5b8] sm:$0xff]
    %v6856 = vld [vmem:[#allocation2 + $0x5c0] sm:$0xff]
    %v6857 = vld [vmem:[#allocation2 + $0x5c8] sm:$0xff]
    %v6858 = vld [vmem:[#allocation2 + $0x5d0] sm:$0xff]
    %v6859 = vld [vmem:[#allocation2 + $0x5d8] sm:$0xff]
    %v6860 = vld [vmem:[#allocation2 + $0x5e0] sm:$0xff]
    %v6861 = vld [vmem:[#allocation2 + $0x5e8] sm:$0xff]
    %v6862 = vld [vmem:[#allocation2 + $0x5f0] sm:$0xff]
    %v6863 = vld [vmem:[#allocation2 + $0x5f8] sm:$0xff]
    %v6864 = vld [vmem:[#allocation2 + $0x600] sm:$0xff]
    %v6865 = vld [vmem:[#allocation2 + $0x608] sm:$0xff]
    %v6866 = vld [vmem:[#allocation2 + $0x610] sm:$0xff]
    %v6867 = vld [vmem:[#allocation2 + $0x618] sm:$0xff]
    %v6868 = vld [vmem:[#allocation2 + $0x620] sm:$0xff]
    %v6869 = vld [vmem:[#allocation2 + $0x628] sm:$0xff]
    %v6870 = vld [vmem:[#allocation2 + $0x630] sm:$0xff]
    %v6871 = vld [vmem:[#allocation2 + $0x638] sm:$0xff]
    %v6872 = vld [vmem:[#allocation2 + $0x640] sm:$0xff]
    %v6873 = vld [vmem:[#allocation2 + $0x648] sm:$0xff]
    %v6874 = vld [vmem:[#allocation2 + $0x650] sm:$0xff]
    %v6875 = vld [vmem:[#allocation2 + $0x658] sm:$0xff]
    %v6876 = vld [vmem:[#allocation2 + $0x660] sm:$0xff]
    %v6877 = vld [vmem:[#allocation2 + $0x668] sm:$0xff]
    %6890 = vrot.lane.b32.xlu0 %v6855, 64
    %v6891 = vpop.permute.xlu0 %6890
    %6892 = vrot.lane.b32.xlu0 %v6857, 64
    %v6893 = vpop.permute.xlu0 %6892
    %6894 = vrot.lane.b32.xlu0 %v6859, 64
    %v6895 = vpop.permute.xlu0 %6894
    %6896 = vrot.lane.b32.xlu0 %v6861, 64
    %v6897 = vpop.permute.xlu0 %6896
    %6898 = vrot.lane.b32.xlu0 %v6863, 64
    %v6899 = vpop.permute.xlu0 %6898
    %6900 = vrot.lane.b32.xlu0 %v6865, 64
    %v6901 = vpop.permute.xlu0 %6900
    %6902 = vrot.lane.b32.xlu0 %v6867, 64
    %v6903 = vpop.permute.xlu0 %6902
    %6904 = vrot.lane.b32.xlu0 %v6869, 64
    %v6905 = vpop.permute.xlu0 %6904
    %6906 = vrot.lane.b32.xlu0 %v6871, 64
    %v6907 = vpop.permute.xlu0 %6906
    %6908 = vrot.lane.b32.xlu0 %v6873, 64
    %v6909 = vpop.permute.xlu0 %6908
    %6910 = vrot.lane.b32.xlu0 %v6875, 64
    %v6911 = vpop.permute.xlu0 %6910
    %6912 = vrot.lane.b32.xlu0 %v6877, 64
    %v6913 = vpop.permute.xlu0 %6912
    %v6926 = vsel %vm764, %v6855, 0
    %v6928 = vsel %vm764, %v6857, 0
    %v6930 = vsel %vm764, %v6859, 0
    %v6932 = vsel %vm764, %v6861, 0
    %v6934 = vsel %vm764, %v6863, 0
    %v6936 = vsel %vm764, %v6865, 0
    %v6938 = vsel %vm764, %v6867, 0
    %v6940 = vsel %vm764, %v6869, 0
    %v6942 = vsel %vm764, %v6871, 0
    %v6944 = vsel %vm764, %v6873, 0
    %v6946 = vsel %vm764, %v6875, 0
    %v6948 = vsel %vm764, %v6877, 0
    %6950 = vmatprep.subr.mxu0 0.0
    %6951 = vmatpush1.msra.mxu0 %v6837
    %6952 = vmatprep.subr.mxu0 0.0
    %6953 = vmatpush1.msra.mxu0 %v6835
    %6954 = vmatprep.subr.mxu0 0.0
    %6955 = vmatpush1.msra.mxu0 %v6833
    %6956 = vmatprep.subr.mxu0 0.0
    %6957 = vmatpush1.msra.mxu0 %v6831
    %6958 = vmatprep.subr.mxu0 0.0
    %6959 = vmatpush1.msra.mxu0 %v6829
    %6960 = vmatprep.subr.mxu0 0.0
    %6961 = vmatpush1.msra.mxu0 %v6827
    %6962 = vmatprep.subr.mxu0 0.0
    %6963 = vmatpush1.msra.mxu0 %v6825
    %6964 = vmatprep.subr.mxu0 0.0
    %6965 = vmatpush1.msra.mxu0 %v6823
    %6966 = vmatprep.subr.mxu0 0.0
    %6967 = vmatpush1.msra.mxu0 %v6821
    %6968 = vmatprep.subr.mxu0 0.0
    %6969 = vmatpush1.msra.mxu0 %v6819
    %6970 = vmatprep.subr.mxu0 0.0
    %6971 = vmatpush1.msra.mxu0 %v6817
    %6972 = vmatprep.subr.mxu0 0.0
    %6973 = vmatpush1.msra.mxu0 %v6815
    %6974 = vmatprep.subr.mxu0 0.0
    %6975 = vmatpush1.msra.mxu0 %v6813
    %6976 = vmatprep.subr.mxu0 0.0
    %6977 = vmatpush1.msra.mxu0 %v6811
    %6978 = vmatprep.subr.mxu0 0.0
    %6979 = vmatpush1.msra.mxu0 %v6809
    %6980 = vmatprep.subr.mxu0 0.0
    %6981 = vmatpush1.msra.mxu0 %v6807
    %6982 = vmatprep.subr.mxu0 0.0
    %6983 = vmatpush2.msra.mxu0 0.0
    %6984 = vmatprep.subr.mxu0 0.0
    %6985 = vmatpush2.msra.mxu0 0.0
    %6986 = vmatprep.subr.mxu0 0.0
    %6987 = vmatpush2.msra.mxu0 0.0
    %6988 = vmatprep.subr.mxu0 0.0
    %6989 = vmatpush2.msra.mxu0 0.0
    %6990 = vmatprep.subr.mxu0 0.0
    %6991 = vmatpush2.msra.mxu0 0.0
    %6992 = vmatprep.subr.mxu0 0.0
    %6993 = vmatpush2.msra.mxu0 0.0
    %6994 = vmatprep.subr.mxu0 0.0
    %6995 = vmatpush2.msra.mxu0 0.0
    %6996 = vmatprep.subr.mxu0 0.0
    %6997 = vmatpush2.msra.mxu0 0.0
    %6998 = vmatprep.subr.mxu0 0.0
    %6999 = vmatpush2.msra.mxu0 %v6853
    %7000 = vmatprep.subr.mxu0 0.0
    %7001 = vmatpush2.msra.mxu0 %v6851
    %7002 = vmatprep.subr.mxu0 0.0
    %7003 = vmatpush2.msra.mxu0 %v6849
    %7004 = vmatprep.subr.mxu0 0.0
    %7005 = vmatpush2.msra.mxu0 %v6847
    %7006 = vmatprep.subr.mxu0 0.0
    %7007 = vmatpush2.msra.mxu0 %v6845
    %7008 = vmatprep.subr.mxu0 0.0
    %7009 = vmatpush2.msra.mxu0 %v6843
    %7010 = vmatprep.subr.mxu0 0.0
    %7011 = vmatpush2.msra.mxu0 %v6841
    %7012 = vmatprep.subr.mxu0 0.0
    %7013 = vmatpush2.msra.mxu0 %v6839
    %7014 = vmatprep.mubr.f32.mxu0 %v6926
    %7015 = vmatmul.mubr.f32.gmra.mxu0 %v6854
    %v7016 = vpop.f32.mrf.mxu0
    %v7017 = vadd.f32 %v6891, %v7016
    %v7018 = vpop.f32.mrf.mxu0
    %7019 = vmatprep.mubr.f32.mxu0 %v6928
    %7020 = vmatmul.mubr.f32.gmra.mxu0 %v6856
    %v7021 = vpop.f32.mrf.mxu0
    %v7022 = vadd.f32 %v6893, %v7021
    %v7023 = vpop.f32.mrf.mxu0
    %7024 = vmatprep.mubr.f32.mxu0 %v6930
    %7025 = vmatmul.mubr.f32.gmra.mxu0 %v6858
    %v7026 = vpop.f32.mrf.mxu0
    %v7027 = vadd.f32 %v6895, %v7026
    %v7028 = vpop.f32.mrf.mxu0
    %7029 = vmatprep.mubr.f32.mxu0 %v6932
    %7030 = vmatmul.mubr.f32.gmra.mxu0 %v6860
    %v7031 = vpop.f32.mrf.mxu0
    %v7032 = vadd.f32 %v6897, %v7031
    %v7033 = vpop.f32.mrf.mxu0
    %7034 = vmatprep.mubr.f32.mxu0 %v6934
    %7035 = vmatmul.mubr.f32.gmra.mxu0 %v6862
    %v7036 = vpop.f32.mrf.mxu0
    %v7037 = vadd.f32 %v6899, %v7036
    %v7038 = vpop.f32.mrf.mxu0
    %7039 = vmatprep.mubr.f32.mxu0 %v6936
    %7040 = vmatmul.mubr.f32.gmra.mxu0 %v6864
    %v7041 = vpop.f32.mrf.mxu0
    %v7042 = vadd.f32 %v6901, %v7041
    %v7043 = vpop.f32.mrf.mxu0
    %7044 = vmatprep.mubr.f32.mxu0 %v6938
    %7045 = vmatmul.mubr.f32.gmra.mxu0 %v6866
    %v7046 = vpop.f32.mrf.mxu0
    %v7047 = vadd.f32 %v6903, %v7046
    %v7048 = vpop.f32.mrf.mxu0
    %7049 = vmatprep.mubr.f32.mxu0 %v6940
    %7050 = vmatmul.mubr.f32.gmra.mxu0 %v6868
    %v7051 = vpop.f32.mrf.mxu0
    %v7052 = vadd.f32 %v6905, %v7051
    %v7053 = vpop.f32.mrf.mxu0
    %7054 = vmatprep.mubr.f32.mxu0 %v6942
    %7055 = vmatmul.mubr.f32.gmra.mxu0 %v6870
    %v7056 = vpop.f32.mrf.mxu0
    %v7057 = vadd.f32 %v6907, %v7056
    %v7058 = vpop.f32.mrf.mxu0
    %7059 = vmatprep.mubr.f32.mxu0 %v6944
    %7060 = vmatmul.mubr.f32.gmra.mxu0 %v6872
    %v7061 = vpop.f32.mrf.mxu0
    %v7062 = vadd.f32 %v6909, %v7061
    %v7063 = vpop.f32.mrf.mxu0
    %7064 = vmatprep.mubr.f32.mxu0 %v6946
    %7065 = vmatmul.mubr.f32.gmra.mxu0 %v6874
    %v7066 = vpop.f32.mrf.mxu0
    %v7067 = vadd.f32 %v6911, %v7066
    %v7068 = vpop.f32.mrf.mxu0
    %7069 = vmatprep.mubr.f32.mxu0 %v6948
    %7070 = vmatmul.mubr.f32.gmra.mxu0 %v6876
    %v7071 = vpop.f32.mrf.mxu0
    %v7072 = vadd.f32 %v6913, %v7071
    %v7073 = vpop.f32.mrf.mxu0
    %7074 = vdwg.mxu0
    %v7075 = vmax.f32 %v7017, 0.0
    %v7076 = vmax.f32 %v7022, 0.0
    %v7077 = vmax.f32 %v7027, 0.0
    %v7078 = vmax.f32 %v7032, 0.0
    %v7079 = vmax.f32 %v7037, 0.0
    %v7080 = vmax.f32 %v7042, 0.0
    %v7081 = vmax.f32 %v7047, 0.0
    %v7082 = vmax.f32 %v7052, 0.0
    %v7083 = vmax.f32 %v7057, 0.0
    %v7084 = vmax.f32 %v7062, 0.0
    %v7085 = vmax.f32 %v7067, 0.0
    %v7086 = vmax.f32 %v7072, 0.0
    %v7087 = vld [vmem:[#allocation2 + $0x670] sm:$0xff]
    %v7088 = vld [vmem:[#allocation2 + $0x680] sm:$0xff]
    %v7089 = vld [vmem:[#allocation2 + $0x690] sm:$0xff]
    %v7090 = vld [vmem:[#allocation2 + $0x6a0] sm:$0xff]
    %v7091 = vld [vmem:[#allocation2 + $0x6b0] sm:$0xff]
    %v7092 = vld [vmem:[#allocation2 + $0x6c0] sm:$0xff]
    %7099 = vrot.lane.b32.xlu0 %v7087, 32
    %v7100 = vpop.permute.xlu0 %7099
    %7101 = vrot.lane.b32.xlu0 %v7088, 32
    %v7102 = vpop.permute.xlu0 %7101
    %7103 = vrot.lane.b32.xlu0 %v7089, 32
    %v7104 = vpop.permute.xlu0 %7103
    %7105 = vrot.lane.b32.xlu0 %v7090, 32
    %v7106 = vpop.permute.xlu0 %7105
    %7107 = vrot.lane.b32.xlu0 %v7091, 32
    %v7108 = vpop.permute.xlu0 %7107
    %7109 = vrot.lane.b32.xlu0 %v7092, 32
    %v7110 = vpop.permute.xlu0 %7109
    %v7117 = vsel %vm956, %v7087, 0
    %v7119 = vsel %vm956, %v7088, 0
    %v7121 = vsel %vm956, %v7089, 0
    %v7123 = vsel %vm956, %v7090, 0
    %v7125 = vsel %vm956, %v7091, 0
    %v7127 = vsel %vm956, %v7092, 0
    %7129 = vmatprep.subr.mxu0 0.0
    %7130 = vmatpush1.msra.mxu0 0.0
    %7131 = vmatprep.subr.mxu0 0.0
    %7132 = vmatpush1.msra.mxu0 0.0
    %7133 = vmatprep.subr.mxu0 0.0
    %7134 = vmatpush1.msra.mxu0 0.0
    %7135 = vmatprep.subr.mxu0 0.0
    %7136 = vmatpush1.msra.mxu0 0.0
    %7137 = vmatprep.subr.mxu0 0.0
    %7138 = vmatpush1.msra.mxu0 %v7086
    %7139 = vmatprep.subr.mxu0 0.0
    %7140 = vmatpush1.msra.mxu0 %v7085
    %7141 = vmatprep.subr.mxu0 0.0
    %7142 = vmatpush1.msra.mxu0 %v7084
    %7143 = vmatprep.subr.mxu0 0.0
    %7144 = vmatpush1.msra.mxu0 %v7083
    %7145 = vmatprep.subr.mxu0 0.0
    %7146 = vmatpush1.msra.mxu0 %v7082
    %7147 = vmatprep.subr.mxu0 0.0
    %7148 = vmatpush1.msra.mxu0 %v7081
    %7149 = vmatprep.subr.mxu0 0.0
    %7150 = vmatpush1.msra.mxu0 %v7080
    %7151 = vmatprep.subr.mxu0 0.0
    %7152 = vmatpush1.msra.mxu0 %v7079
    %7153 = vmatprep.subr.mxu0 0.0
    %7154 = vmatpush1.msra.mxu0 %v7078
    %7155 = vmatprep.subr.mxu0 0.0
    %7156 = vmatpush1.msra.mxu0 %v7077
    %7157 = vmatprep.subr.mxu0 0.0
    %7158 = vmatpush1.msra.mxu0 %v7076
    %7159 = vmatprep.subr.mxu0 0.0
    %7160 = vmatpush1.msra.mxu0 %v7075
    %7161 = vmatprep.subr.mxu0 0.0
    %7162 = vmatpush2.msra.mxu0 0.0
    %7163 = vmatprep.subr.mxu0 0.0
    %7164 = vmatpush2.msra.mxu0 0.0
    %7165 = vmatprep.subr.mxu0 0.0
    %7166 = vmatpush2.msra.mxu0 0.0
    %7167 = vmatprep.subr.mxu0 0.0
    %7168 = vmatpush2.msra.mxu0 0.0
    %7169 = vmatprep.subr.mxu0 0.0
    %7170 = vmatpush2.msra.mxu0 0.0
    %7171 = vmatprep.subr.mxu0 0.0
    %7172 = vmatpush2.msra.mxu0 0.0
    %7173 = vmatprep.subr.mxu0 0.0
    %7174 = vmatpush2.msra.mxu0 0.0
    %7175 = vmatprep.subr.mxu0 0.0
    %7176 = vmatpush2.msra.mxu0 0.0
    %7177 = vmatprep.subr.mxu0 0.0
    %7178 = vmatpush2.msra.mxu0 0.0
    %7179 = vmatprep.subr.mxu0 0.0
    %7180 = vmatpush2.msra.mxu0 0.0
    %7181 = vmatprep.subr.mxu0 0.0
    %7182 = vmatpush2.msra.mxu0 0.0
    %7183 = vmatprep.subr.mxu0 0.0
    %7184 = vmatpush2.msra.mxu0 0.0
    %7185 = vmatprep.subr.mxu0 0.0
    %7186 = vmatpush2.msra.mxu0 0.0
    %7187 = vmatprep.subr.mxu0 0.0
    %7188 = vmatpush2.msra.mxu0 0.0
    %7189 = vmatprep.subr.mxu0 0.0
    %7190 = vmatpush2.msra.mxu0 0.0
    %7191 = vmatprep.subr.mxu0 0.0
    %7192 = vmatpush2.msra.mxu0 0.0
    %7193 = vmatprep.mubr.f32.mxu0 0.0
    %7194 = vmatmul.mubr.f32.gmra.mxu0 %v7117
    %v7195 = vpop.f32.mrf.mxu0
    %v7196 = vadd.f32 %v7100, %v7195
    %v7197 = vpop.f32.mrf.mxu0
    %7198 = vmatprep.mubr.f32.mxu0 0.0
    %7199 = vmatmul.mubr.f32.gmra.mxu0 %v7119
    %v7200 = vpop.f32.mrf.mxu0
    %v7201 = vadd.f32 %v7102, %v7200
    %v7202 = vpop.f32.mrf.mxu0
    %7203 = vmatprep.mubr.f32.mxu0 0.0
    %7204 = vmatmul.mubr.f32.gmra.mxu0 %v7121
    %v7205 = vpop.f32.mrf.mxu0
    %v7206 = vadd.f32 %v7104, %v7205
    %v7207 = vpop.f32.mrf.mxu0
    %7208 = vmatprep.mubr.f32.mxu0 0.0
    %7209 = vmatmul.mubr.f32.gmra.mxu0 %v7123
    %v7210 = vpop.f32.mrf.mxu0
    %v7211 = vadd.f32 %v7106, %v7210
    %v7212 = vpop.f32.mrf.mxu0
    %7213 = vmatprep.mubr.f32.mxu0 0.0
    %7214 = vmatmul.mubr.f32.gmra.mxu0 %v7125
    %v7215 = vpop.f32.mrf.mxu0
    %v7216 = vadd.f32 %v7108, %v7215
    %v7217 = vpop.f32.mrf.mxu0
    %7218 = vmatprep.mubr.f32.mxu0 0.0
    %7219 = vmatmul.mubr.f32.gmra.mxu0 %v7127
    %v7220 = vpop.f32.mrf.mxu0
    %v7221 = vadd.f32 %v7110, %v7220
    %v7222 = vpop.f32.mrf.mxu0
    %7223 = vdwg.mxu0
    %v7224 = vmax.f32 %v7196, 0.0
    %v7225 = vmax.f32 %v7201, 0.0
    %v7226 = vmax.f32 %v7206, 0.0
    %v7227 = vmax.f32 %v7211, 0.0
    %v7228 = vmax.f32 %v7216, 0.0
    %v7229 = vmax.f32 %v7221, 0.0
    %v7230 = vld [vmem:[#allocation2 + $0x6d0] sm:$0xff]
    %v7231 = vld [vmem:[#allocation2 + $0x6e0] sm:$0xff]
    %v7232 = vld [vmem:[#allocation2 + $0x6f0] sm:$0xff]
    %v7233 = vld [vmem:[#allocation2 + $0x700] sm:$0xff]
    %v7234 = vld [vmem:[#allocation2 + $0x710] sm:$0xff]
    %v7235 = vld [vmem:[#allocation2 + $0x720] sm:$0xff]
    %v7236 = vld [vmem:[#allocation2 + $0x730] sm:$0xff]
    %v7237 = vld [vmem:[#allocation2 + $0x740] sm:$0xff]
    %v7238 = vld [vmem:[#allocation2 + $0x750] sm:$0xff]
    %v7239 = vld [vmem:[#allocation2 + $0x760] sm:$0xff]
    %v7240 = vld [vmem:[#allocation2 + $0x770] sm:$0xff]
    %v7241 = vld [vmem:[#allocation2 + $0x780] sm:$0xff]
    %v7242 = vld [vmem:[#allocation2 + $0x790] sm:$0xff]
    %v7243 = vld [vmem:[#allocation2 + $0x7a0] sm:$0xff]
    %v7244 = vld [vmem:[#allocation2 + $0x7b0] sm:$0xff]
    %v7245 = vld [vmem:[#allocation2 + $0x7c0] sm:$0xff]
    %v7246 = vld [vmem:[#allocation2 + $0x7d0] sm:$0xff]
    %v7247 = vld [vmem:[#allocation2 + $0x7e0] sm:$0xff]
    %7266 = vrot.lane.b32.xlu0 %v7230, 80
    %v7267 = vpop.permute.xlu0 %7266
    %7268 = vrot.lane.b32.xlu0 %v7231, 80
    %v7269 = vpop.permute.xlu0 %7268
    %7270 = vrot.lane.b32.xlu0 %v7232, 80
    %v7271 = vpop.permute.xlu0 %7270
    %7272 = vrot.lane.b32.xlu0 %v7233, 80
    %v7273 = vpop.permute.xlu0 %7272
    %7274 = vrot.lane.b32.xlu0 %v7234, 80
    %v7275 = vpop.permute.xlu0 %7274
    %7276 = vrot.lane.b32.xlu0 %v7235, 80
    %v7277 = vpop.permute.xlu0 %7276
    %7278 = vrot.lane.b32.xlu0 %v7236, 80
    %v7279 = vpop.permute.xlu0 %7278
    %7280 = vrot.lane.b32.xlu0 %v7237, 80
    %v7281 = vpop.permute.xlu0 %7280
    %7282 = vrot.lane.b32.xlu0 %v7238, 80
    %v7283 = vpop.permute.xlu0 %7282
    %7284 = vrot.lane.b32.xlu0 %v7239, 80
    %v7285 = vpop.permute.xlu0 %7284
    %7286 = vrot.lane.b32.xlu0 %v7240, 80
    %v7287 = vpop.permute.xlu0 %7286
    %7288 = vrot.lane.b32.xlu0 %v7241, 80
    %v7289 = vpop.permute.xlu0 %7288
    %7290 = vrot.lane.b32.xlu0 %v7242, 80
    %v7291 = vpop.permute.xlu0 %7290
    %7292 = vrot.lane.b32.xlu0 %v7243, 80
    %v7293 = vpop.permute.xlu0 %7292
    %7294 = vrot.lane.b32.xlu0 %v7244, 80
    %v7295 = vpop.permute.xlu0 %7294
    %7296 = vrot.lane.b32.xlu0 %v7245, 80
    %v7297 = vpop.permute.xlu0 %7296
    %7298 = vrot.lane.b32.xlu0 %v7246, 80
    %v7299 = vpop.permute.xlu0 %7298
    %7300 = vrot.lane.b32.xlu0 %v7247, 80
    %v7301 = vpop.permute.xlu0 %7300
    %v7320 = vsel %vm1090, %v7230, 0
    %v7322 = vsel %vm1090, %v7231, 0
    %v7324 = vsel %vm1090, %v7232, 0
    %v7326 = vsel %vm1090, %v7233, 0
    %v7328 = vsel %vm1090, %v7234, 0
    %v7330 = vsel %vm1090, %v7235, 0
    %v7332 = vsel %vm1090, %v7236, 0
    %v7334 = vsel %vm1090, %v7237, 0
    %v7336 = vsel %vm1090, %v7238, 0
    %v7338 = vsel %vm1090, %v7239, 0
    %v7340 = vsel %vm1090, %v7240, 0
    %v7342 = vsel %vm1090, %v7241, 0
    %v7344 = vsel %vm1090, %v7242, 0
    %v7346 = vsel %vm1090, %v7243, 0
    %v7348 = vsel %vm1090, %v7244, 0
    %v7350 = vsel %vm1090, %v7245, 0
    %v7352 = vsel %vm1090, %v7246, 0
    %v7354 = vsel %vm1090, %v7247, 0
    %7356 = vmatprep.subr.mxu0 0.0
    %7357 = vmatpush1.msra.mxu0 0.0
    %7358 = vmatprep.subr.mxu0 0.0
    %7359 = vmatpush1.msra.mxu0 0.0
    %7360 = vmatprep.subr.mxu0 0.0
    %7361 = vmatpush1.msra.mxu0 0.0
    %7362 = vmatprep.subr.mxu0 0.0
    %7363 = vmatpush1.msra.mxu0 0.0
    %7364 = vmatprep.subr.mxu0 0.0
    %7365 = vmatpush1.msra.mxu0 0.0
    %7366 = vmatprep.subr.mxu0 0.0
    %7367 = vmatpush1.msra.mxu0 0.0
    %7368 = vmatprep.subr.mxu0 0.0
    %7369 = vmatpush1.msra.mxu0 0.0
    %7370 = vmatprep.subr.mxu0 0.0
    %7371 = vmatpush1.msra.mxu0 0.0
    %7372 = vmatprep.subr.mxu0 0.0
    %7373 = vmatpush1.msra.mxu0 0.0
    %7374 = vmatprep.subr.mxu0 0.0
    %7375 = vmatpush1.msra.mxu0 0.0
    %7376 = vmatprep.subr.mxu0 0.0
    %7377 = vmatpush1.msra.mxu0 %v7229
    %7378 = vmatprep.subr.mxu0 0.0
    %7379 = vmatpush1.msra.mxu0 %v7228
    %7380 = vmatprep.subr.mxu0 0.0
    %7381 = vmatpush1.msra.mxu0 %v7227
    %7382 = vmatprep.subr.mxu0 0.0
    %7383 = vmatpush1.msra.mxu0 %v7226
    %7384 = vmatprep.subr.mxu0 0.0
    %7385 = vmatpush1.msra.mxu0 %v7225
    %7386 = vmatprep.subr.mxu0 0.0
    %7387 = vmatpush1.msra.mxu0 %v7224
    %7388 = vmatprep.subr.mxu0 0.0
    %7389 = vmatpush2.msra.mxu0 0.0
    %7390 = vmatprep.subr.mxu0 0.0
    %7391 = vmatpush2.msra.mxu0 0.0
    %7392 = vmatprep.subr.mxu0 0.0
    %7393 = vmatpush2.msra.mxu0 0.0
    %7394 = vmatprep.subr.mxu0 0.0
    %7395 = vmatpush2.msra.mxu0 0.0
    %7396 = vmatprep.subr.mxu0 0.0
    %7397 = vmatpush2.msra.mxu0 0.0
    %7398 = vmatprep.subr.mxu0 0.0
    %7399 = vmatpush2.msra.mxu0 0.0
    %7400 = vmatprep.subr.mxu0 0.0
    %7401 = vmatpush2.msra.mxu0 0.0
    %7402 = vmatprep.subr.mxu0 0.0
    %7403 = vmatpush2.msra.mxu0 0.0
    %7404 = vmatprep.subr.mxu0 0.0
    %7405 = vmatpush2.msra.mxu0 0.0
    %7406 = vmatprep.subr.mxu0 0.0
    %7407 = vmatpush2.msra.mxu0 0.0
    %7408 = vmatprep.subr.mxu0 0.0
    %7409 = vmatpush2.msra.mxu0 0.0
    %7410 = vmatprep.subr.mxu0 0.0
    %7411 = vmatpush2.msra.mxu0 0.0
    %7412 = vmatprep.subr.mxu0 0.0
    %7413 = vmatpush2.msra.mxu0 0.0
    %7414 = vmatprep.subr.mxu0 0.0
    %7415 = vmatpush2.msra.mxu0 0.0
    %7416 = vmatprep.subr.mxu0 0.0
    %7417 = vmatpush2.msra.mxu0 0.0
    %7418 = vmatprep.subr.mxu0 0.0
    %7419 = vmatpush2.msra.mxu0 0.0
    %7420 = vmatprep.mubr.f32.mxu0 0.0
    %7421 = vmatmul.mubr.f32.gmra.mxu0 %v7320
    %v7422 = vpop.f32.mrf.mxu0
    %v7423 = vadd.f32 %v7267, %v7422
    %v7424 = vpop.f32.mrf.mxu0
    %7425 = vmatprep.mubr.f32.mxu0 0.0
    %7426 = vmatmul.mubr.f32.gmra.mxu0 %v7322
    %v7427 = vpop.f32.mrf.mxu0
    %v7428 = vadd.f32 %v7269, %v7427
    %v7429 = vpop.f32.mrf.mxu0
    %7430 = vmatprep.mubr.f32.mxu0 0.0
    %7431 = vmatmul.mubr.f32.gmra.mxu0 %v7324
    %v7432 = vpop.f32.mrf.mxu0
    %v7433 = vadd.f32 %v7271, %v7432
    %v7434 = vpop.f32.mrf.mxu0
    %7435 = vmatprep.mubr.f32.mxu0 0.0
    %7436 = vmatmul.mubr.f32.gmra.mxu0 %v7326
    %v7437 = vpop.f32.mrf.mxu0
    %v7438 = vadd.f32 %v7273, %v7437
    %v7439 = vpop.f32.mrf.mxu0
    %7440 = vmatprep.mubr.f32.mxu0 0.0
    %7441 = vmatmul.mubr.f32.gmra.mxu0 %v7328
    %v7442 = vpop.f32.mrf.mxu0
    %v7443 = vadd.f32 %v7275, %v7442
    %v7444 = vpop.f32.mrf.mxu0
    %7445 = vmatprep.mubr.f32.mxu0 0.0
    %7446 = vmatmul.mubr.f32.gmra.mxu0 %v7330
    %v7447 = vpop.f32.mrf.mxu0
    %v7448 = vadd.f32 %v7277, %v7447
    %v7449 = vpop.f32.mrf.mxu0
    %7450 = vmatprep.mubr.f32.mxu0 0.0
    %7451 = vmatmul.mubr.f32.gmra.mxu0 %v7332
    %v7452 = vpop.f32.mrf.mxu0
    %v7453 = vadd.f32 %v7279, %v7452
    %v7454 = vpop.f32.mrf.mxu0
    %7455 = vmatprep.mubr.f32.mxu0 0.0
    %7456 = vmatmul.mubr.f32.gmra.mxu0 %v7334
    %v7457 = vpop.f32.mrf.mxu0
    %v7458 = vadd.f32 %v7281, %v7457
    %v7459 = vpop.f32.mrf.mxu0
    %7460 = vmatprep.mubr.f32.mxu0 0.0
    %7461 = vmatmul.mubr.f32.gmra.mxu0 %v7336
    %v7462 = vpop.f32.mrf.mxu0
    %v7463 = vadd.f32 %v7283, %v7462
    %v7464 = vpop.f32.mrf.mxu0
    %7465 = vmatprep.mubr.f32.mxu0 0.0
    %7466 = vmatmul.mubr.f32.gmra.mxu0 %v7338
    %v7467 = vpop.f32.mrf.mxu0
    %v7468 = vadd.f32 %v7285, %v7467
    %v7469 = vpop.f32.mrf.mxu0
    %7470 = vmatprep.mubr.f32.mxu0 0.0
    %7471 = vmatmul.mubr.f32.gmra.mxu0 %v7340
    %v7472 = vpop.f32.mrf.mxu0
    %v7473 = vadd.f32 %v7287, %v7472
    %v7474 = vpop.f32.mrf.mxu0
    %7475 = vmatprep.mubr.f32.mxu0 0.0
    %7476 = vmatmul.mubr.f32.gmra.mxu0 %v7342
    %v7477 = vpop.f32.mrf.mxu0
    %v7478 = vadd.f32 %v7289, %v7477
    %v7479 = vpop.f32.mrf.mxu0
    %7480 = vmatprep.mubr.f32.mxu0 0.0
    %7481 = vmatmul.mubr.f32.gmra.mxu0 %v7344
    %v7482 = vpop.f32.mrf.mxu0
    %v7483 = vadd.f32 %v7291, %v7482
    %v7484 = vpop.f32.mrf.mxu0
    %7485 = vmatprep.mubr.f32.mxu0 0.0
    %7486 = vmatmul.mubr.f32.gmra.mxu0 %v7346
    %v7487 = vpop.f32.mrf.mxu0
    %v7488 = vadd.f32 %v7293, %v7487
    %v7489 = vpop.f32.mrf.mxu0
    %7490 = vmatprep.mubr.f32.mxu0 0.0
    %7491 = vmatmul.mubr.f32.gmra.mxu0 %v7348
    %v7492 = vpop.f32.mrf.mxu0
    %v7493 = vadd.f32 %v7295, %v7492
    %v7494 = vpop.f32.mrf.mxu0
    %7495 = vmatprep.mubr.f32.mxu0 0.0
    %7496 = vmatmul.mubr.f32.gmra.mxu0 %v7350
    %v7497 = vpop.f32.mrf.mxu0
    %v7498 = vadd.f32 %v7297, %v7497
    %v7499 = vpop.f32.mrf.mxu0
    %7500 = vmatprep.mubr.f32.mxu0 0.0
    %7501 = vmatmul.mubr.f32.gmra.mxu0 %v7352
    %v7502 = vpop.f32.mrf.mxu0
    %v7503 = vadd.f32 %v7299, %v7502
    %v7504 = vpop.f32.mrf.mxu0
    %7505 = vmatprep.mubr.f32.mxu0 0.0
    %7506 = vmatmul.mubr.f32.gmra.mxu0 %v7354
    %v7507 = vpop.f32.mrf.mxu0
    %v7508 = vadd.f32 %v7301, %v7507
    %v7509 = vpop.f32.mrf.mxu0
    %7510 = vdwg.mxu0
    %v7511 = vld [vmem:[#allocation2 + $0x7f0] sm:$0xff]
    %v7512 = vld [vmem:[#allocation2 + $0x7f8] sm:$0xff]
    %v7513 = vld [vmem:[#allocation2 + $0x800] sm:$0xf]
    %v7514 = vld [vmem:[#allocation2 + $0x808] sm:$0xf]
    %v7515 = vld [vmem:[#allocation2 + $0x810] sm:$0xff]
    %v7516 = vld [vmem:[#allocation2 + $0x820] sm:$0xff]
    %v7517 = vld [vmem:[#allocation2 + $0x830] sm:$0xff]
    %v7518 = vld [vmem:[#allocation2 + $0x840] sm:$0xff]
    %v7519 = vld [vmem:[#allocation2 + $0x850] sm:$0xff]
    %v7520 = vld [vmem:[#allocation2 + $0x860] sm:$0xff]
    %v7521 = vld [vmem:[#allocation2 + $0x870] sm:$0xff]
    %v7522 = vld [vmem:[#allocation2 + $0x880] sm:$0xff]
    %v7523 = vld [vmem:[#allocation2 + $0x890] sm:$0xff]
    %v7524 = vld [vmem:[#allocation2 + $0x8a0] sm:$0xff]
    %v7525 = vld [vmem:[#allocation2 + $0x8b0] sm:$0xff]
    %v7526 = vld [vmem:[#allocation2 + $0x8c0] sm:$0xff]
    %v7527 = vld [vmem:[#allocation2 + $0x8d0] sm:$0xff]
    %v7528 = vld [vmem:[#allocation2 + $0x8e0] sm:$0xff]
    %v7529 = vld [vmem:[#allocation2 + $0x8f0] sm:$0xff]
    %v7530 = vld [vmem:[#allocation2 + $0x900] sm:$0xff]
    %v7531 = vld [vmem:[#allocation2 + $0x910] sm:$0xff]
    %v7532 = vld [vmem:[#allocation2 + $0x920] sm:$0xff]
    %v7533 = vld [vmem:[#allocation2 + $0x930] sm:$0xff]
    %v7534 = vld [vmem:[#allocation2 + $0x938] sm:$0xff]
    %v7535 = vld [vmem:[#allocation2 + $0x940] sm:$0xf]
    %v7536 = vld [vmem:[#allocation2 + $0x948] sm:$0xf]
    %v7537 = vld [vmem:[#allocation2 + $0x950] sm:$0xff]
    %v7538 = vld [vmem:[#allocation2 + $0x960] sm:$0xff]
    %v7539 = vld [vmem:[#allocation2 + $0x970] sm:$0xff]
    %v7540 = vld [vmem:[#allocation2 + $0x980] sm:$0xff]
    %v7541 = vld [vmem:[#allocation2 + $0x990] sm:$0xff]
    %v7542 = vld [vmem:[#allocation2 + $0x9a0] sm:$0xff]
    %v7543 = vld [vmem:[#allocation2 + $0x9b0] sm:$0xff]
    %v7544 = vld [vmem:[#allocation2 + $0x9c0] sm:$0xff]
    %v7545 = vld [vmem:[#allocation2 + $0x9d0] sm:$0xff]
    %v7546 = vld [vmem:[#allocation2 + $0x9e0] sm:$0xff]
    %v7547 = vld [vmem:[#allocation2 + $0x9f0] sm:$0xff]
    %v7548 = vld [vmem:[#allocation2 + $0xa00] sm:$0xff]
    %v7549 = vld [vmem:[#allocation2 + $0xa10] sm:$0xff]
    %v7550 = vld [vmem:[#allocation2 + $0xa20] sm:$0xff]
    %v7551 = vld [vmem:[#allocation2 + $0xa30] sm:$0xff]
    %v7552 = vld [vmem:[#allocation2 + $0xa40] sm:$0xff]
    %v7553 = vld [vmem:[#allocation2 + $0xa50] sm:$0xff]
    %v7554 = vld [vmem:[#allocation2 + $0xa60] sm:$0xff]
    %v7555 = vld [vmem:[#allocation2 + $0xa70] sm:$0xff]
    %v7556 = vld [vmem:[#allocation2 + $0xa80] sm:$0xf]
    %7558 = vset.pattern.permute.xlu0 0
    %7559 = vperm.xlu0 %7558, %v7423
    %v7560 = vpop.permute.xlu0 %7559
    %7563 = vset.pattern.permute.xlu0 0
    %7564 = vperm.xlu0 %7563, %v7428
    %v7565 = vpop.permute.xlu0 %7564
    %7568 = vset.pattern.permute.xlu0 0
    %7569 = vperm.xlu0 %7568, %v7433
    %v7570 = vpop.permute.xlu0 %7569
    %7573 = vset.pattern.permute.xlu0 0
    %7574 = vperm.xlu0 %7573, %v7438
    %v7575 = vpop.permute.xlu0 %7574
    %7578 = vset.pattern.permute.xlu0 0
    %7579 = vperm.xlu0 %7578, %v7443
    %v7580 = vpop.permute.xlu0 %7579
    %7583 = vset.pattern.permute.xlu0 0
    %7584 = vperm.xlu0 %7583, %v7448
    %v7585 = vpop.permute.xlu0 %7584
    %7588 = vset.pattern.permute.xlu0 0
    %7589 = vperm.xlu0 %7588, %v7453
    %v7590 = vpop.permute.xlu0 %7589
    %7593 = vset.pattern.permute.xlu0 0
    %7594 = vperm.xlu0 %7593, %v7458
    %v7595 = vpop.permute.xlu0 %7594
    %7598 = vset.pattern.permute.xlu0 0
    %7599 = vperm.xlu0 %7598, %v7463
    %v7600 = vpop.permute.xlu0 %7599
    %7603 = vset.pattern.permute.xlu0 0
    %7604 = vperm.xlu0 %7603, %v7468
    %v7605 = vpop.permute.xlu0 %7604
    %7608 = vset.pattern.permute.xlu0 0
    %7609 = vperm.xlu0 %7608, %v7473
    %v7610 = vpop.permute.xlu0 %7609
    %7613 = vset.pattern.permute.xlu0 0
    %7614 = vperm.xlu0 %7613, %v7478
    %v7615 = vpop.permute.xlu0 %7614
    %7618 = vset.pattern.permute.xlu0 0
    %7619 = vperm.xlu0 %7618, %v7483
    %v7620 = vpop.permute.xlu0 %7619
    %7623 = vset.pattern.permute.xlu0 0
    %7624 = vperm.xlu0 %7623, %v7488
    %v7625 = vpop.permute.xlu0 %7624
    %7628 = vset.pattern.permute.xlu0 0
    %7629 = vperm.xlu0 %7628, %v7493
    %v7630 = vpop.permute.xlu0 %7629
    %7633 = vset.pattern.permute.xlu0 0
    %7634 = vperm.xlu0 %7633, %v7498
    %v7635 = vpop.permute.xlu0 %7634
    %7638 = vset.pattern.permute.xlu0 0
    %7639 = vperm.xlu0 %7638, %v7503
    %v7640 = vpop.permute.xlu0 %7639
    %7643 = vset.pattern.permute.xlu0 0
    %7644 = vperm.xlu0 %7643, %v7508
    %v7645 = vpop.permute.xlu0 %7644
    %v7647 = vmul.f32 %v7560, %v7515
    %v7648 = vmul.f32 %v7565, %v7516
    %v7649 = vmul.f32 %v7570, %v7517
    %v7650 = vmul.f32 %v7575, %v7518
    %v7651 = vmul.f32 %v7580, %v7519
    %v7652 = vmul.f32 %v7585, %v7520
    %v7653 = vmul.f32 %v7590, %v7521
    %v7654 = vmul.f32 %v7595, %v7522
    %v7655 = vmul.f32 %v7600, %v7523
    %v7656 = vmul.f32 %v7605, %v7524
    %v7657 = vmul.f32 %v7610, %v7525
    %v7658 = vmul.f32 %v7615, %v7526
    %v7659 = vmul.f32 %v7620, %v7527
    %v7660 = vmul.f32 %v7625, %v7528
    %v7661 = vmul.f32 %v7630, %v7529
    %v7662 = vmul.f32 %v7635, %v7530
    %v7663 = vmul.f32 %v7640, %v7531
    %v7664 = vmul.f32 %v7645, %v7532
    %v7666 = vsel %vm3012, %v7512, 0
    %v7669 = vsel %vm3012, %v7514, 0
    %7671 = vmatprep.subr.mxu0 0.0
    %7672 = vmatpush1.msra.mxu0 %v7662
    %7673 = vmatprep.subr.mxu0 0.0
    %7674 = vmatpush1.msra.mxu0 %v7661
    %7675 = vmatprep.subr.mxu0 0.0
    %7676 = vmatpush1.msra.mxu0 %v7660
    %7677 = vmatprep.subr.mxu0 0.0
    %7678 = vmatpush1.msra.mxu0 %v7659
    %7679 = vmatprep.subr.mxu0 0.0
    %7680 = vmatpush1.msra.mxu0 %v7658
    %7681 = vmatprep.subr.mxu0 0.0
    %7682 = vmatpush1.msra.mxu0 %v7657
    %7683 = vmatprep.subr.mxu0 0.0
    %7684 = vmatpush1.msra.mxu0 %v7656
    %7685 = vmatprep.subr.mxu0 0.0
    %7686 = vmatpush1.msra.mxu0 %v7655
    %7687 = vmatprep.subr.mxu0 0.0
    %7688 = vmatpush1.msra.mxu0 %v7654
    %7689 = vmatprep.subr.mxu0 0.0
    %7690 = vmatpush1.msra.mxu0 %v7653
    %7691 = vmatprep.subr.mxu0 0.0
    %7692 = vmatpush1.msra.mxu0 %v7652
    %7693 = vmatprep.subr.mxu0 0.0
    %7694 = vmatpush1.msra.mxu0 %v7651
    %7695 = vmatprep.subr.mxu0 0.0
    %7696 = vmatpush1.msra.mxu0 %v7650
    %7697 = vmatprep.subr.mxu0 0.0
    %7698 = vmatpush1.msra.mxu0 %v7649
    %7699 = vmatprep.subr.mxu0 0.0
    %7700 = vmatpush1.msra.mxu0 %v7648
    %7701 = vmatprep.subr.mxu0 0.0
    %7702 = vmatpush1.msra.mxu0 %v7647
    %7703 = vmatprep.subr.mxu0 0.0
    %7704 = vmatpush2.msra.mxu0 0.0
    %7705 = vmatprep.subr.mxu0 0.0
    %7706 = vmatpush2.msra.mxu0 0.0
    %7707 = vmatprep.subr.mxu0 0.0
    %7708 = vmatpush2.msra.mxu0 0.0
    %7709 = vmatprep.subr.mxu0 0.0
    %7710 = vmatpush2.msra.mxu0 0.0
    %7711 = vmatprep.subr.mxu0 0.0
    %7712 = vmatpush2.msra.mxu0 0.0
    %7713 = vmatprep.subr.mxu0 0.0
    %7714 = vmatpush2.msra.mxu0 0.0
    %7715 = vmatprep.subr.mxu0 0.0
    %7716 = vmatpush2.msra.mxu0 0.0
    %7717 = vmatprep.subr.mxu0 0.0
    %7718 = vmatpush2.msra.mxu0 0.0
    %7719 = vmatprep.subr.mxu0 0.0
    %7720 = vmatpush2.msra.mxu0 0.0
    %7721 = vmatprep.subr.mxu0 0.0
    %7722 = vmatpush2.msra.mxu0 0.0
    %7723 = vmatprep.subr.mxu0 0.0
    %7724 = vmatpush2.msra.mxu0 0.0
    %7725 = vmatprep.subr.mxu0 0.0
    %7726 = vmatpush2.msra.mxu0 0.0
    %7727 = vmatprep.subr.mxu0 0.0
    %7728 = vmatpush2.msra.mxu0 0.0
    %7729 = vmatprep.subr.mxu0 0.0
    %7730 = vmatpush2.msra.mxu0 0.0
    %7731 = vmatprep.subr.mxu0 0.0
    %7732 = vmatpush2.msra.mxu0 %v7664
    %7733 = vmatprep.subr.mxu0 0.0
    %7734 = vmatpush2.msra.mxu0 %v7663
    %7735 = vmatprep.mubr.f32.mxu0 %v7666
    %7736 = vmatmul.mubr.f32.gmra.mxu0 %v7511
    %v7737 = vpop.f32.mrf.mxu0
    %v7738 = vadd.f32 %v7555, %v7737
    %v7739 = vpop.f32.mrf.mxu0
    %7740 = vmatprep.mubr.f32.mxu0 %v7669
    %7741 = vmatmul.mubr.f32.gmra.mxu0 %v7513
    %v7742 = vpop.f32.mrf.mxu0
    %v7743 = vadd.f32 %v7556, %v7742
    %v7744 = vpop.f32.mrf.mxu0
    %7745 = vdwg.mxu0
    %v7746 = vmul.f32 %v7560, %v7537
    %v7747 = vmul.f32 %v7565, %v7538
    %v7748 = vmul.f32 %v7570, %v7539
    %v7749 = vmul.f32 %v7575, %v7540
    %v7750 = vmul.f32 %v7580, %v7541
    %v7751 = vmul.f32 %v7585, %v7542
    %v7752 = vmul.f32 %v7590, %v7543
    %v7753 = vmul.f32 %v7595, %v7544
    %v7754 = vmul.f32 %v7600, %v7545
    %v7755 = vmul.f32 %v7605, %v7546
    %v7756 = vmul.f32 %v7610, %v7547
    %v7757 = vmul.f32 %v7615, %v7548
    %v7758 = vmul.f32 %v7620, %v7549
    %v7759 = vmul.f32 %v7625, %v7550
    %v7760 = vmul.f32 %v7630, %v7551
    %v7761 = vmul.f32 %v7635, %v7552
    %v7762 = vmul.f32 %v7640, %v7553
    %v7763 = vmul.f32 %v7645, %v7554
    %v7765 = vsel %vm3012, %v7534, 0
    %v7768 = vsel %vm3012, %v7536, 0
    %7770 = vmatprep.subr.mxu0 0.0
    %7771 = vmatpush1.msra.mxu0 %v7761
    %7772 = vmatprep.subr.mxu0 0.0
    %7773 = vmatpush1.msra.mxu0 %v7760
    %7774 = vmatprep.subr.mxu0 0.0
    %7775 = vmatpush1.msra.mxu0 %v7759
    %7776 = vmatprep.subr.mxu0 0.0
    %7777 = vmatpush1.msra.mxu0 %v7758
    %7778 = vmatprep.subr.mxu0 0.0
    %7779 = vmatpush1.msra.mxu0 %v7757
    %7780 = vmatprep.subr.mxu0 0.0
    %7781 = vmatpush1.msra.mxu0 %v7756
    %7782 = vmatprep.subr.mxu0 0.0
    %7783 = vmatpush1.msra.mxu0 %v7755
    %7784 = vmatprep.subr.mxu0 0.0
    %7785 = vmatpush1.msra.mxu0 %v7754
    %7786 = vmatprep.subr.mxu0 0.0
    %7787 = vmatpush1.msra.mxu0 %v7753
    %7788 = vmatprep.subr.mxu0 0.0
    %7789 = vmatpush1.msra.mxu0 %v7752
    %7790 = vmatprep.subr.mxu0 0.0
    %7791 = vmatpush1.msra.mxu0 %v7751
    %7792 = vmatprep.subr.mxu0 0.0
    %7793 = vmatpush1.msra.mxu0 %v7750
    %7794 = vmatprep.subr.mxu0 0.0
    %7795 = vmatpush1.msra.mxu0 %v7749
    %7796 = vmatprep.subr.mxu0 0.0
    %7797 = vmatpush1.msra.mxu0 %v7748
    %7798 = vmatprep.subr.mxu0 0.0
    %7799 = vmatpush1.msra.mxu0 %v7747
    %7800 = vmatprep.subr.mxu0 0.0
    %7801 = vmatpush1.msra.mxu0 %v7746
    %7802 = vmatprep.subr.mxu0 0.0
    %7803 = vmatpush2.msra.mxu0 0.0
    %7804 = vmatprep.subr.mxu0 0.0
    %7805 = vmatpush2.msra.mxu0 0.0
    %7806 = vmatprep.subr.mxu0 0.0
    %7807 = vmatpush2.msra.mxu0 0.0
    %7808 = vmatprep.subr.mxu0 0.0
    %7809 = vmatpush2.msra.mxu0 0.0
    %7810 = vmatprep.subr.mxu0 0.0
    %7811 = vmatpush2.msra.mxu0 0.0
    %7812 = vmatprep.subr.mxu0 0.0
    %7813 = vmatpush2.msra.mxu0 0.0
    %7814 = vmatprep.subr.mxu0 0.0
    %7815 = vmatpush2.msra.mxu0 0.0
    %7816 = vmatprep.subr.mxu0 0.0
    %7817 = vmatpush2.msra.mxu0 0.0
    %7818 = vmatprep.subr.mxu0 0.0
    %7819 = vmatpush2.msra.mxu0 0.0
    %7820 = vmatprep.subr.mxu0 0.0
    %7821 = vmatpush2.msra.mxu0 0.0
    %7822 = vmatprep.subr.mxu0 0.0
    %7823 = vmatpush2.msra.mxu0 0.0
    %7824 = vmatprep.subr.mxu0 0.0
    %7825 = vmatpush2.msra.mxu0 0.0
    %7826 = vmatprep.subr.mxu0 0.0
    %7827 = vmatpush2.msra.mxu0 0.0
    %7828 = vmatprep.subr.mxu0 0.0
    %7829 = vmatpush2.msra.mxu0 0.0
    %7830 = vmatprep.subr.mxu0 0.0
    %7831 = vmatpush2.msra.mxu0 %v7763
    %7832 = vmatprep.subr.mxu0 0.0
    %7833 = vmatpush2.msra.mxu0 %v7762
    %7834 = vmatprep.mubr.f32.mxu0 %v7765
    %7835 = vmatmul.mubr.f32.gmra.mxu0 %v7533
    %v7836 = vpop.f32.mrf.mxu0
    %v7837 = vadd.f32 %v7555, %v7836
    %v7838 = vpop.f32.mrf.mxu0
    %7839 = vmatprep.mubr.f32.mxu0 %v7768
    %7840 = vmatmul.mubr.f32.gmra.mxu0 %v7535
    %v7841 = vpop.f32.mrf.mxu0
    %v7842 = vadd.f32 %v7556, %v7841
    %v7843 = vpop.f32.mrf.mxu0
    %7844 = vdwg.mxu0
    %v7846 = vsel %vm148, %v7837, 0
    %v7849 = vsel %vm148, %v7842, 0
    %7851 = vmatprep.subr.mxu0 0.0
    %7852 = vmatpush1.msra.mxu0 0.0
    %7853 = vmatprep.subr.mxu0 0.0
    %7854 = vmatpush1.msra.mxu0 0.0
    %7855 = vmatprep.subr.mxu0 0.0
    %7856 = vmatpush1.msra.mxu0 0.0
    %7857 = vmatprep.subr.mxu0 0.0
    %7858 = vmatpush1.msra.mxu0 0.0
    %7859 = vmatprep.subr.mxu0 0.0
    %7860 = vmatpush1.msra.mxu0 0.0
    %7861 = vmatprep.subr.mxu0 0.0
    %7862 = vmatpush1.msra.mxu0 0.0
    %7863 = vmatprep.subr.mxu0 0.0
    %7864 = vmatpush1.msra.mxu0 0.0
    %7865 = vmatprep.subr.mxu0 0.0
    %7866 = vmatpush1.msra.mxu0 0.0
    %7867 = vmatprep.subr.mxu0 0.0
    %7868 = vmatpush1.msra.mxu0 0.0
    %7869 = vmatprep.subr.mxu0 0.0
    %7870 = vmatpush1.msra.mxu0 0.0
    %7871 = vmatprep.subr.mxu0 0.0
    %7872 = vmatpush1.msra.mxu0 0.0
    %7873 = vmatprep.subr.mxu0 0.0
    %7874 = vmatpush1.msra.mxu0 0.0
    %7875 = vmatprep.subr.mxu0 0.0
    %7876 = vmatpush1.msra.mxu0 0.0
    %7877 = vmatprep.subr.mxu0 0.0
    %7878 = vmatpush1.msra.mxu0 0.0
    %7879 = vmatprep.subr.mxu0 0.0
    %7880 = vmatpush1.msra.mxu0 %v6216
    %7881 = vmatprep.subr.mxu0 0.0
    %7882 = vmatpush1.msra.mxu0 %v6197
    %7883 = vmatprep.subr.mxu0 0.0
    %7884 = vmatpush2.msra.mxu0 0.0
    %7885 = vmatprep.subr.mxu0 0.0
    %7886 = vmatpush2.msra.mxu0 0.0
    %7887 = vmatprep.subr.mxu0 0.0
    %7888 = vmatpush2.msra.mxu0 0.0
    %7889 = vmatprep.subr.mxu0 0.0
    %7890 = vmatpush2.msra.mxu0 0.0
    %7891 = vmatprep.subr.mxu0 0.0
    %7892 = vmatpush2.msra.mxu0 0.0
    %7893 = vmatprep.subr.mxu0 0.0
    %7894 = vmatpush2.msra.mxu0 0.0
    %7895 = vmatprep.subr.mxu0 0.0
    %7896 = vmatpush2.msra.mxu0 0.0
    %7897 = vmatprep.subr.mxu0 0.0
    %7898 = vmatpush2.msra.mxu0 0.0
    %7899 = vmatprep.subr.mxu0 0.0
    %7900 = vmatpush2.msra.mxu0 0.0
    %7901 = vmatprep.subr.mxu0 0.0
    %7902 = vmatpush2.msra.mxu0 0.0
    %7903 = vmatprep.subr.mxu0 0.0
    %7904 = vmatpush2.msra.mxu0 0.0
    %7905 = vmatprep.subr.mxu0 0.0
    %7906 = vmatpush2.msra.mxu0 0.0
    %7907 = vmatprep.subr.mxu0 0.0
    %7908 = vmatpush2.msra.mxu0 0.0
    %7909 = vmatprep.subr.mxu0 0.0
    %7910 = vmatpush2.msra.mxu0 0.0
    %7911 = vmatprep.subr.mxu0 0.0
    %7912 = vmatpush2.msra.mxu0 0.0
    %7913 = vmatprep.subr.mxu0 0.0
    %7914 = vmatpush2.msra.mxu0 0.0
    %7915 = vmatprep.mubr.f32.mxu0 0.0
    %7916 = vmatmul.mubr.f32.gmra.mxu0 %v7846
    %v7917 = vpop.f32.mrf.mxu0
    %v7918 = vadd.f32 0.0, %v7917
    %v7919 = vpop.f32.mrf.mxu0
    %7920 = vmatprep.mubr.f32.mxu0 0.0
    %7921 = vmatmul.mubr.f32.gmra.mxu0 %v7849
    %v7922 = vpop.f32.mrf.mxu0
    %v7923 = vadd.f32 0.0, %v7922
    %v7924 = vpop.f32.mrf.mxu0
    %7925 = vdwg.mxu0
    %v7926 = vld [vmem:[#allocation2 + $0xab0] sm:$0xff]
    %v7927 = vld [vmem:[#allocation2 + $0xac0] sm:$0xff]
    %v7928 = vld [vmem:[#allocation2 + $0xad0] sm:$0xff]
    %7930 = vset.pattern.permute.xlu0 12
    %7931 = vperm.xlu0 %7930, %v7926
    %v7932 = vpop.permute.xlu0 %7931
    %7935 = vset.pattern.permute.xlu0 12
    %7936 = vperm.xlu0 %7935, %v7927
    %v7937 = vpop.permute.xlu0 %7936
    %7940 = vset.pattern.permute.xlu0 12
    %7941 = vperm.xlu0 %7940, %v7928
    %v7942 = vpop.permute.xlu0 %7941
    %v7944 = vsel %vm148, %v7926, 0
    %v7946 = vsel %vm148, %v7927, 0
    %v7948 = vsel %vm148, %v7928, 0
    %v7951 = vsel %vm155, %v7923, 0
    %7953 = vmatprep.subr.mxu0 0.0
    %7954 = vmatpush1.msra.mxu0 0.0
    %7955 = vmatprep.subr.mxu0 0.0
    %7956 = vmatpush1.msra.mxu0 0.0
    %7957 = vmatprep.subr.mxu0 0.0
    %7958 = vmatpush1.msra.mxu0 0.0
    %7959 = vmatprep.subr.mxu0 0.0
    %7960 = vmatpush1.msra.mxu0 0.0
    %7961 = vmatprep.subr.mxu0 0.0
    %7962 = vmatpush1.msra.mxu0 0.0
    %7963 = vmatprep.subr.mxu0 0.0
    %7964 = vmatpush1.msra.mxu0 0.0
    %7965 = vmatprep.subr.mxu0 0.0
    %7966 = vmatpush1.msra.mxu0 0.0
    %7967 = vmatprep.subr.mxu0 0.0
    %7968 = vmatpush1.msra.mxu0 0.0
    %7969 = vmatprep.subr.mxu0 0.0
    %7970 = vmatpush1.msra.mxu0 0.0
    %7971 = vmatprep.subr.mxu0 0.0
    %7972 = vmatpush1.msra.mxu0 0.0
    %7973 = vmatprep.subr.mxu0 0.0
    %7974 = vmatpush1.msra.mxu0 0.0
    %7975 = vmatprep.subr.mxu0 0.0
    %7976 = vmatpush1.msra.mxu0 0.0
    %7977 = vmatprep.subr.mxu0 0.0
    %7978 = vmatpush1.msra.mxu0 0.0
    %7979 = vmatprep.subr.mxu0 0.0
    %7980 = vmatpush1.msra.mxu0 0.0
    %7981 = vmatprep.subr.mxu0 0.0
    %7982 = vmatpush1.msra.mxu0 %v7951
    %7983 = vmatprep.subr.mxu0 0.0
    %7984 = vmatpush1.msra.mxu0 %v7918
    %7985 = vmatprep.subr.mxu0 0.0
    %7986 = vmatpush2.msra.mxu0 0.0
    %7987 = vmatprep.subr.mxu0 0.0
    %7988 = vmatpush2.msra.mxu0 0.0
    %7989 = vmatprep.subr.mxu0 0.0
    %7990 = vmatpush2.msra.mxu0 0.0
    %7991 = vmatprep.subr.mxu0 0.0
    %7992 = vmatpush2.msra.mxu0 0.0
    %7993 = vmatprep.subr.mxu0 0.0
    %7994 = vmatpush2.msra.mxu0 0.0
    %7995 = vmatprep.subr.mxu0 0.0
    %7996 = vmatpush2.msra.mxu0 0.0
    %7997 = vmatprep.subr.mxu0 0.0
    %7998 = vmatpush2.msra.mxu0 0.0
    %7999 = vmatprep.subr.mxu0 0.0
    %8000 = vmatpush2.msra.mxu0 0.0
    %8001 = vmatprep.subr.mxu0 0.0
    %8002 = vmatpush2.msra.mxu0 0.0
    %8003 = vmatprep.subr.mxu0 0.0
    %8004 = vmatpush2.msra.mxu0 0.0
    %8005 = vmatprep.subr.mxu0 0.0
    %8006 = vmatpush2.msra.mxu0 0.0
    %8007 = vmatprep.subr.mxu0 0.0
    %8008 = vmatpush2.msra.mxu0 0.0
    %8009 = vmatprep.subr.mxu0 0.0
    %8010 = vmatpush2.msra.mxu0 0.0
    %8011 = vmatprep.subr.mxu0 0.0
    %8012 = vmatpush2.msra.mxu0 0.0
    %8013 = vmatprep.subr.mxu0 0.0
    %8014 = vmatpush2.msra.mxu0 0.0
    %8015 = vmatprep.subr.mxu0 0.0
    %8016 = vmatpush2.msra.mxu0 0.0
    %8017 = vmatprep.mubr.f32.mxu0 0.0
    %8018 = vmatmul.mubr.f32.gmra.mxu0 %v7944
    %v8019 = vpop.f32.mrf.mxu0
    %v8020 = vadd.f32 %v7932, %v8019
    %v8021 = vpop.f32.mrf.mxu0
    %8022 = vmatprep.mubr.f32.mxu0 0.0
    %8023 = vmatmul.mubr.f32.gmra.mxu0 %v7946
    %v8024 = vpop.f32.mrf.mxu0
    %v8025 = vadd.f32 %v7937, %v8024
    %v8026 = vpop.f32.mrf.mxu0
    %8027 = vmatprep.mubr.f32.mxu0 0.0
    %8028 = vmatmul.mubr.f32.gmra.mxu0 %v7948
    %v8029 = vpop.f32.mrf.mxu0
    %v8030 = vadd.f32 %v7942, %v8029
    %v8031 = vpop.f32.mrf.mxu0
    %8032 = vdwg.mxu0
    %v8033 = vmax.f32 %v8020, 0.0
    %v8034 = vmax.f32 %v8025, 0.0
    %v8035 = vmax.f32 %v8030, 0.0
    %v8036 = vld [vmem:[#allocation2 + $0xae0] sm:$0xff]
    %v8037 = vld [vmem:[#allocation2 + $0xaf0] sm:$0xff]
    %v8038 = vld [vmem:[#allocation2 + $0xb00] sm:$0xff]
    %v8039 = vld [vmem:[#allocation2 + $0xb10] sm:$0xff]
    %v8040 = vld [vmem:[#allocation2 + $0xb20] sm:$0xff]
    %v8041 = vld [vmem:[#allocation2 + $0xb30] sm:$0xff]
    %v8042 = vld [vmem:[#allocation2 + $0xb40] sm:$0xff]
    %v8043 = vld [vmem:[#allocation2 + $0xb50] sm:$0xff]
    %v8044 = vld [vmem:[#allocation2 + $0xb60] sm:$0xff]
    %v8045 = vld [vmem:[#allocation2 + $0xb70] sm:$0xff]
    %v8046 = vld [vmem:[#allocation2 + $0xb80] sm:$0xff]
    %v8047 = vld [vmem:[#allocation2 + $0xb90] sm:$0xff]
    %v8048 = vld [vmem:[#allocation2 + $0xba0] sm:$0xff]
    %v8049 = vld [vmem:[#allocation2 + $0xbb0] sm:$0xff]
    %v8050 = vld [vmem:[#allocation2 + $0xbc0] sm:$0xff]
    %v8051 = vld [vmem:[#allocation2 + $0xbd0] sm:$0xff]
    %v8052 = vld [vmem:[#allocation2 + $0xbe0] sm:$0xff]
    %v8053 = vld [vmem:[#allocation2 + $0xbf0] sm:$0xff]
    %v8054 = vld [vmem:[#allocation2 + $0xc00] sm:$0xff]
    %v8055 = vld [vmem:[#allocation2 + $0xc10] sm:$0xff]
    %v8056 = vld [vmem:[#allocation2 + $0xc20] sm:$0xff]
    %v8057 = vld [vmem:[#allocation2 + $0xc30] sm:$0xff]
    %v8058 = vld [vmem:[#allocation2 + $0xc40] sm:$0xff]
    %v8059 = vld [vmem:[#allocation2 + $0xc50] sm:$0xff]
    %8061 = vset.pattern.permute.xlu0 24
    %8062 = vperm.xlu0 %8061, %v8036
    %v8063 = vpop.permute.xlu0 %8062
    %8066 = vset.pattern.permute.xlu0 24
    %8067 = vperm.xlu0 %8066, %v8037
    %v8068 = vpop.permute.xlu0 %8067
    %8071 = vset.pattern.permute.xlu0 24
    %8072 = vperm.xlu0 %8071, %v8038
    %v8073 = vpop.permute.xlu0 %8072
    %8076 = vset.pattern.permute.xlu0 24
    %8077 = vperm.xlu0 %8076, %v8039
    %v8078 = vpop.permute.xlu0 %8077
    %8081 = vset.pattern.permute.xlu0 24
    %8082 = vperm.xlu0 %8081, %v8040
    %v8083 = vpop.permute.xlu0 %8082
    %8086 = vset.pattern.permute.xlu0 24
    %8087 = vperm.xlu0 %8086, %v8041
    %v8088 = vpop.permute.xlu0 %8087
    %8091 = vset.pattern.permute.xlu0 24
    %8092 = vperm.xlu0 %8091, %v8042
    %v8093 = vpop.permute.xlu0 %8092
    %8096 = vset.pattern.permute.xlu0 24
    %8097 = vperm.xlu0 %8096, %v8043
    %v8098 = vpop.permute.xlu0 %8097
    %8101 = vset.pattern.permute.xlu0 24
    %8102 = vperm.xlu0 %8101, %v8044
    %v8103 = vpop.permute.xlu0 %8102
    %8106 = vset.pattern.permute.xlu0 24
    %8107 = vperm.xlu0 %8106, %v8045
    %v8108 = vpop.permute.xlu0 %8107
    %8111 = vset.pattern.permute.xlu0 24
    %8112 = vperm.xlu0 %8111, %v8046
    %v8113 = vpop.permute.xlu0 %8112
    %8116 = vset.pattern.permute.xlu0 24
    %8117 = vperm.xlu0 %8116, %v8047
    %v8118 = vpop.permute.xlu0 %8117
    %8121 = vset.pattern.permute.xlu0 24
    %8122 = vperm.xlu0 %8121, %v8048
    %v8123 = vpop.permute.xlu0 %8122
    %8126 = vset.pattern.permute.xlu0 24
    %8127 = vperm.xlu0 %8126, %v8049
    %v8128 = vpop.permute.xlu0 %8127
    %8131 = vset.pattern.permute.xlu0 24
    %8132 = vperm.xlu0 %8131, %v8050
    %v8133 = vpop.permute.xlu0 %8132
    %8136 = vset.pattern.permute.xlu0 24
    %8137 = vperm.xlu0 %8136, %v8051
    %v8138 = vpop.permute.xlu0 %8137
    %8141 = vset.pattern.permute.xlu0 24
    %8142 = vperm.xlu0 %8141, %v8052
    %v8143 = vpop.permute.xlu0 %8142
    %8146 = vset.pattern.permute.xlu0 24
    %8147 = vperm.xlu0 %8146, %v8053
    %v8148 = vpop.permute.xlu0 %8147
    %8151 = vset.pattern.permute.xlu0 24
    %8152 = vperm.xlu0 %8151, %v8054
    %v8153 = vpop.permute.xlu0 %8152
    %8156 = vset.pattern.permute.xlu0 24
    %8157 = vperm.xlu0 %8156, %v8055
    %v8158 = vpop.permute.xlu0 %8157
    %8161 = vset.pattern.permute.xlu0 24
    %8162 = vperm.xlu0 %8161, %v8056
    %v8163 = vpop.permute.xlu0 %8162
    %8166 = vset.pattern.permute.xlu0 24
    %8167 = vperm.xlu0 %8166, %v8057
    %v8168 = vpop.permute.xlu0 %8167
    %8171 = vset.pattern.permute.xlu0 24
    %8172 = vperm.xlu0 %8171, %v8058
    %v8173 = vpop.permute.xlu0 %8172
    %8176 = vset.pattern.permute.xlu0 24
    %8177 = vperm.xlu0 %8176, %v8059
    %v8178 = vpop.permute.xlu0 %8177
    %v8180 = vsel %vm386, %v8036, 0
    %v8182 = vsel %vm386, %v8037, 0
    %v8184 = vsel %vm386, %v8038, 0
    %v8186 = vsel %vm386, %v8039, 0
    %v8188 = vsel %vm386, %v8040, 0
    %v8190 = vsel %vm386, %v8041, 0
    %v8192 = vsel %vm386, %v8042, 0
    %v8194 = vsel %vm386, %v8043, 0
    %v8196 = vsel %vm386, %v8044, 0
    %v8198 = vsel %vm386, %v8045, 0
    %v8200 = vsel %vm386, %v8046, 0
    %v8202 = vsel %vm386, %v8047, 0
    %v8204 = vsel %vm386, %v8048, 0
    %v8206 = vsel %vm386, %v8049, 0
    %v8208 = vsel %vm386, %v8050, 0
    %v8210 = vsel %vm386, %v8051, 0
    %v8212 = vsel %vm386, %v8052, 0
    %v8214 = vsel %vm386, %v8053, 0
    %v8216 = vsel %vm386, %v8054, 0
    %v8218 = vsel %vm386, %v8055, 0
    %v8220 = vsel %vm386, %v8056, 0
    %v8222 = vsel %vm386, %v8057, 0
    %v8224 = vsel %vm386, %v8058, 0
    %v8226 = vsel %vm386, %v8059, 0
    %8228 = vmatprep.subr.mxu0 0.0
    %8229 = vmatpush1.msra.mxu0 0.0
    %8230 = vmatprep.subr.mxu0 0.0
    %8231 = vmatpush1.msra.mxu0 0.0
    %8232 = vmatprep.subr.mxu0 0.0
    %8233 = vmatpush1.msra.mxu0 0.0
    %8234 = vmatprep.subr.mxu0 0.0
    %8235 = vmatpush1.msra.mxu0 0.0
    %8236 = vmatprep.subr.mxu0 0.0
    %8237 = vmatpush1.msra.mxu0 0.0
    %8238 = vmatprep.subr.mxu0 0.0
    %8239 = vmatpush1.msra.mxu0 0.0
    %8240 = vmatprep.subr.mxu0 0.0
    %8241 = vmatpush1.msra.mxu0 0.0
    %8242 = vmatprep.subr.mxu0 0.0
    %8243 = vmatpush1.msra.mxu0 0.0
    %8244 = vmatprep.subr.mxu0 0.0
    %8245 = vmatpush1.msra.mxu0 0.0
    %8246 = vmatprep.subr.mxu0 0.0
    %8247 = vmatpush1.msra.mxu0 0.0
    %8248 = vmatprep.subr.mxu0 0.0
    %8249 = vmatpush1.msra.mxu0 0.0
    %8250 = vmatprep.subr.mxu0 0.0
    %8251 = vmatpush1.msra.mxu0 0.0
    %8252 = vmatprep.subr.mxu0 0.0
    %8253 = vmatpush1.msra.mxu0 0.0
    %8254 = vmatprep.subr.mxu0 0.0
    %8255 = vmatpush1.msra.mxu0 %v8035
    %8256 = vmatprep.subr.mxu0 0.0
    %8257 = vmatpush1.msra.mxu0 %v8034
    %8258 = vmatprep.subr.mxu0 0.0
    %8259 = vmatpush1.msra.mxu0 %v8033
    %8260 = vmatprep.subr.mxu0 0.0
    %8261 = vmatpush2.msra.mxu0 0.0
    %8262 = vmatprep.subr.mxu0 0.0
    %8263 = vmatpush2.msra.mxu0 0.0
    %8264 = vmatprep.subr.mxu0 0.0
    %8265 = vmatpush2.msra.mxu0 0.0
    %8266 = vmatprep.subr.mxu0 0.0
    %8267 = vmatpush2.msra.mxu0 0.0
    %8268 = vmatprep.subr.mxu0 0.0
    %8269 = vmatpush2.msra.mxu0 0.0
    %8270 = vmatprep.subr.mxu0 0.0
    %8271 = vmatpush2.msra.mxu0 0.0
    %8272 = vmatprep.subr.mxu0 0.0
    %8273 = vmatpush2.msra.mxu0 0.0
    %8274 = vmatprep.subr.mxu0 0.0
    %8275 = vmatpush2.msra.mxu0 0.0
    %8276 = vmatprep.subr.mxu0 0.0
    %8277 = vmatpush2.msra.mxu0 0.0
    %8278 = vmatprep.subr.mxu0 0.0
    %8279 = vmatpush2.msra.mxu0 0.0
    %8280 = vmatprep.subr.mxu0 0.0
    %8281 = vmatpush2.msra.mxu0 0.0
    %8282 = vmatprep.subr.mxu0 0.0
    %8283 = vmatpush2.msra.mxu0 0.0
    %8284 = vmatprep.subr.mxu0 0.0
    %8285 = vmatpush2.msra.mxu0 0.0
    %8286 = vmatprep.subr.mxu0 0.0
    %8287 = vmatpush2.msra.mxu0 0.0
    %8288 = vmatprep.subr.mxu0 0.0
    %8289 = vmatpush2.msra.mxu0 0.0
    %8290 = vmatprep.subr.mxu0 0.0
    %8291 = vmatpush2.msra.mxu0 0.0
    %8292 = vmatprep.mubr.f32.mxu0 0.0
    %8293 = vmatmul.mubr.f32.gmra.mxu0 %v8180
    %v8294 = vpop.f32.mrf.mxu0
    %v8295 = vadd.f32 %v8063, %v8294
    %v8296 = vpop.f32.mrf.mxu0
    %8297 = vmatprep.mubr.f32.mxu0 0.0
    %8298 = vmatmul.mubr.f32.gmra.mxu0 %v8182
    %v8299 = vpop.f32.mrf.mxu0
    %v8300 = vadd.f32 %v8068, %v8299
    %v8301 = vpop.f32.mrf.mxu0
    %8302 = vmatprep.mubr.f32.mxu0 0.0
    %8303 = vmatmul.mubr.f32.gmra.mxu0 %v8184
    %v8304 = vpop.f32.mrf.mxu0
    %v8305 = vadd.f32 %v8073, %v8304
    %v8306 = vpop.f32.mrf.mxu0
    %8307 = vmatprep.mubr.f32.mxu0 0.0
    %8308 = vmatmul.mubr.f32.gmra.mxu0 %v8186
    %v8309 = vpop.f32.mrf.mxu0
    %v8310 = vadd.f32 %v8078, %v8309
    %v8311 = vpop.f32.mrf.mxu0
    %8312 = vmatprep.mubr.f32.mxu0 0.0
    %8313 = vmatmul.mubr.f32.gmra.mxu0 %v8188
    %v8314 = vpop.f32.mrf.mxu0
    %v8315 = vadd.f32 %v8083, %v8314
    %v8316 = vpop.f32.mrf.mxu0
    %8317 = vmatprep.mubr.f32.mxu0 0.0
    %8318 = vmatmul.mubr.f32.gmra.mxu0 %v8190
    %v8319 = vpop.f32.mrf.mxu0
    %v8320 = vadd.f32 %v8088, %v8319
    %v8321 = vpop.f32.mrf.mxu0
    %8322 = vmatprep.mubr.f32.mxu0 0.0
    %8323 = vmatmul.mubr.f32.gmra.mxu0 %v8192
    %v8324 = vpop.f32.mrf.mxu0
    %v8325 = vadd.f32 %v8093, %v8324
    %v8326 = vpop.f32.mrf.mxu0
    %8327 = vmatprep.mubr.f32.mxu0 0.0
    %8328 = vmatmul.mubr.f32.gmra.mxu0 %v8194
    %v8329 = vpop.f32.mrf.mxu0
    %v8330 = vadd.f32 %v8098, %v8329
    %v8331 = vpop.f32.mrf.mxu0
    %8332 = vmatprep.mubr.f32.mxu0 0.0
    %8333 = vmatmul.mubr.f32.gmra.mxu0 %v8196
    %v8334 = vpop.f32.mrf.mxu0
    %v8335 = vadd.f32 %v8103, %v8334
    %v8336 = vpop.f32.mrf.mxu0
    %8337 = vmatprep.mubr.f32.mxu0 0.0
    %8338 = vmatmul.mubr.f32.gmra.mxu0 %v8198
    %v8339 = vpop.f32.mrf.mxu0
    %v8340 = vadd.f32 %v8108, %v8339
    %v8341 = vpop.f32.mrf.mxu0
    %8342 = vmatprep.mubr.f32.mxu0 0.0
    %8343 = vmatmul.mubr.f32.gmra.mxu0 %v8200
    %v8344 = vpop.f32.mrf.mxu0
    %v8345 = vadd.f32 %v8113, %v8344
    %v8346 = vpop.f32.mrf.mxu0
    %8347 = vmatprep.mubr.f32.mxu0 0.0
    %8348 = vmatmul.mubr.f32.gmra.mxu0 %v8202
    %v8349 = vpop.f32.mrf.mxu0
    %v8350 = vadd.f32 %v8118, %v8349
    %v8351 = vpop.f32.mrf.mxu0
    %8352 = vmatprep.mubr.f32.mxu0 0.0
    %8353 = vmatmul.mubr.f32.gmra.mxu0 %v8204
    %v8354 = vpop.f32.mrf.mxu0
    %v8355 = vadd.f32 %v8123, %v8354
    %v8356 = vpop.f32.mrf.mxu0
    %8357 = vmatprep.mubr.f32.mxu0 0.0
    %8358 = vmatmul.mubr.f32.gmra.mxu0 %v8206
    %v8359 = vpop.f32.mrf.mxu0
    %v8360 = vadd.f32 %v8128, %v8359
    %v8361 = vpop.f32.mrf.mxu0
    %8362 = vmatprep.mubr.f32.mxu0 0.0
    %8363 = vmatmul.mubr.f32.gmra.mxu0 %v8208
    %v8364 = vpop.f32.mrf.mxu0
    %v8365 = vadd.f32 %v8133, %v8364
    %v8366 = vpop.f32.mrf.mxu0
    %8367 = vmatprep.mubr.f32.mxu0 0.0
    %8368 = vmatmul.mubr.f32.gmra.mxu0 %v8210
    %v8369 = vpop.f32.mrf.mxu0
    %v8370 = vadd.f32 %v8138, %v8369
    %v8371 = vpop.f32.mrf.mxu0
    %8372 = vmatprep.mubr.f32.mxu0 0.0
    %8373 = vmatmul.mubr.f32.gmra.mxu0 %v8212
    %v8374 = vpop.f32.mrf.mxu0
    %v8375 = vadd.f32 %v8143, %v8374
    %v8376 = vpop.f32.mrf.mxu0
    %8377 = vmatprep.mubr.f32.mxu0 0.0
    %8378 = vmatmul.mubr.f32.gmra.mxu0 %v8214
    %v8379 = vpop.f32.mrf.mxu0
    %v8380 = vadd.f32 %v8148, %v8379
    %v8381 = vpop.f32.mrf.mxu0
    %8382 = vmatprep.mubr.f32.mxu0 0.0
    %8383 = vmatmul.mubr.f32.gmra.mxu0 %v8216
    %v8384 = vpop.f32.mrf.mxu0
    %v8385 = vadd.f32 %v8153, %v8384
    %v8386 = vpop.f32.mrf.mxu0
    %8387 = vmatprep.mubr.f32.mxu0 0.0
    %8388 = vmatmul.mubr.f32.gmra.mxu0 %v8218
    %v8389 = vpop.f32.mrf.mxu0
    %v8390 = vadd.f32 %v8158, %v8389
    %v8391 = vpop.f32.mrf.mxu0
    %8392 = vmatprep.mubr.f32.mxu0 0.0
    %8393 = vmatmul.mubr.f32.gmra.mxu0 %v8220
    %v8394 = vpop.f32.mrf.mxu0
    %v8395 = vadd.f32 %v8163, %v8394
    %v8396 = vpop.f32.mrf.mxu0
    %8397 = vmatprep.mubr.f32.mxu0 0.0
    %8398 = vmatmul.mubr.f32.gmra.mxu0 %v8222
    %v8399 = vpop.f32.mrf.mxu0
    %v8400 = vadd.f32 %v8168, %v8399
    %v8401 = vpop.f32.mrf.mxu0
    %8402 = vmatprep.mubr.f32.mxu0 0.0
    %8403 = vmatmul.mubr.f32.gmra.mxu0 %v8224
    %v8404 = vpop.f32.mrf.mxu0
    %v8405 = vadd.f32 %v8173, %v8404
    %v8406 = vpop.f32.mrf.mxu0
    %8407 = vmatprep.mubr.f32.mxu0 0.0
    %8408 = vmatmul.mubr.f32.gmra.mxu0 %v8226
    %v8409 = vpop.f32.mrf.mxu0
    %v8410 = vadd.f32 %v8178, %v8409
    %v8411 = vpop.f32.mrf.mxu0
    %8412 = vdwg.mxu0
    %v8413 = vld [vmem:[%s3761] ss:$8 sm:$0x3]
    %v8414 = vld [vmem:[#allocation2 + $0xe78] ss:$0 sm:$0xff]
    %8416 = vset.pattern.permute.xlu0 64
    %8417 = vperm.xlu0 %8416, %v8414
    %v8418 = vpop.permute.xlu0 %8417
    %v8421 = vlaneseq
    %v8422 = vshrl.u32 %v8421, 7
    %v8423 = vsub.s32 0, %v8422
    %v8424 = vrot.slane %v8413, %v8423
    %v8425 = vlaneseq
    %v8426 = vshrl.u32 %v8425, 7
    %v8427 = vsub.s32 1, %v8426
    %v8428 = vrot.slane %v8413, %v8427
    %v8430 = vsel %vm764, %v8428, 0
    %8432 = vmatprep.subr.mxu0 0.0
    %8433 = vmatpush1.msra.mxu0 %v8370
    %8434 = vmatprep.subr.mxu0 0.0
    %8435 = vmatpush1.msra.mxu0 %v8365
    %8436 = vmatprep.subr.mxu0 0.0
    %8437 = vmatpush1.msra.mxu0 %v8360
    %8438 = vmatprep.subr.mxu0 0.0
    %8439 = vmatpush1.msra.mxu0 %v8355
    %8440 = vmatprep.subr.mxu0 0.0
    %8441 = vmatpush1.msra.mxu0 %v8350
    %8442 = vmatprep.subr.mxu0 0.0
    %8443 = vmatpush1.msra.mxu0 %v8345
    %8444 = vmatprep.subr.mxu0 0.0
    %8445 = vmatpush1.msra.mxu0 %v8340
    %8446 = vmatprep.subr.mxu0 0.0
    %8447 = vmatpush1.msra.mxu0 %v8335
    %8448 = vmatprep.subr.mxu0 0.0
    %8449 = vmatpush1.msra.mxu0 %v8330
    %8450 = vmatprep.subr.mxu0 0.0
    %8451 = vmatpush1.msra.mxu0 %v8325
    %8452 = vmatprep.subr.mxu0 0.0
    %8453 = vmatpush1.msra.mxu0 %v8320
    %8454 = vmatprep.subr.mxu0 0.0
    %8455 = vmatpush1.msra.mxu0 %v8315
    %8456 = vmatprep.subr.mxu0 0.0
    %8457 = vmatpush1.msra.mxu0 %v8310
    %8458 = vmatprep.subr.mxu0 0.0
    %8459 = vmatpush1.msra.mxu0 %v8305
    %8460 = vmatprep.subr.mxu0 0.0
    %8461 = vmatpush1.msra.mxu0 %v8300
    %8462 = vmatprep.subr.mxu0 0.0
    %8463 = vmatpush1.msra.mxu0 %v8295
    %8464 = vmatprep.subr.mxu0 0.0
    %8465 = vmatpush2.msra.mxu0 0.0
    %8466 = vmatprep.subr.mxu0 0.0
    %8467 = vmatpush2.msra.mxu0 0.0
    %8468 = vmatprep.subr.mxu0 0.0
    %8469 = vmatpush2.msra.mxu0 0.0
    %8470 = vmatprep.subr.mxu0 0.0
    %8471 = vmatpush2.msra.mxu0 0.0
    %8472 = vmatprep.subr.mxu0 0.0
    %8473 = vmatpush2.msra.mxu0 0.0
    %8474 = vmatprep.subr.mxu0 0.0
    %8475 = vmatpush2.msra.mxu0 0.0
    %8476 = vmatprep.subr.mxu0 0.0
    %8477 = vmatpush2.msra.mxu0 0.0
    %8478 = vmatprep.subr.mxu0 0.0
    %8479 = vmatpush2.msra.mxu0 0.0
    %8480 = vmatprep.subr.mxu0 0.0
    %8481 = vmatpush2.msra.mxu0 %v8410
    %8482 = vmatprep.subr.mxu0 0.0
    %8483 = vmatpush2.msra.mxu0 %v8405
    %8484 = vmatprep.subr.mxu0 0.0
    %8485 = vmatpush2.msra.mxu0 %v8400
    %8486 = vmatprep.subr.mxu0 0.0
    %8487 = vmatpush2.msra.mxu0 %v8395
    %8488 = vmatprep.subr.mxu0 0.0
    %8489 = vmatpush2.msra.mxu0 %v8390
    %8490 = vmatprep.subr.mxu0 0.0
    %8491 = vmatpush2.msra.mxu0 %v8385
    %8492 = vmatprep.subr.mxu0 0.0
    %8493 = vmatpush2.msra.mxu0 %v8380
    %8494 = vmatprep.subr.mxu0 0.0
    %8495 = vmatpush2.msra.mxu0 %v8375
    %8496 = vmatprep.mubr.f32.mxu0 %v8430
    %8497 = vmatmul.mubr.f32.gmra.mxu0 %v8424
    %v8498 = vpop.f32.mrf.mxu0
    %v8499 = vadd.f32 %v8418, %v8498
    %v8500 = vpop.f32.mrf.mxu0
    %8501 = vdwg.mxu0
    %v8502 = vsel %vm1223, %v8499, -inf
    %8503 = vmax.xlane.f32.xlu0 %v8502
    %v8504 = vpop.xlane.xlu0 %8503
    %v8505 = vsub.f32 %v8499, %v8504
    %v8506 = vmul.f32 %v8505, 1.442695
    %v8507 = vpow.pop %v8506
    %v8508 = vsel %vm1223, %v8507, 0.0
    %8509 = vadd.xlane.f32.xlu0 %v8508
    %v8510 = vpop.xlane.xlu0 %8509
    %v8511 = vrcp.pop %v8510
    %v8512 = vmul.f32 %v8507, %v8511
    %v8513 = vlaneseq
    %v8514 = vshrl.u32 %v8513, 7
    %v8515 = vsub.s32 0, %v8514
    %v8516 = vrot.slane %v8512, %v8515
    %v8517 = vmul.f32 %v8295, %v8516
    %v8518 = vmul.f32 %v8300, %v8516
    %v8519 = vmul.f32 %v8305, %v8516
    %v8520 = vmul.f32 %v8310, %v8516
    %v8521 = vmul.f32 %v8315, %v8516
    %v8522 = vmul.f32 %v8320, %v8516
    %v8523 = vmul.f32 %v8325, %v8516
    %v8524 = vmul.f32 %v8330, %v8516
    %v8525 = vmul.f32 %v8335, %v8516
    %v8526 = vmul.f32 %v8340, %v8516
    %v8527 = vmul.f32 %v8345, %v8516
    %v8528 = vmul.f32 %v8350, %v8516
    %v8529 = vmul.f32 %v8355, %v8516
    %v8530 = vmul.f32 %v8360, %v8516
    %v8531 = vmul.f32 %v8365, %v8516
    %v8532 = vmul.f32 %v8370, %v8516
    %v8533 = vmul.f32 %v8375, %v8516
    %v8534 = vmul.f32 %v8380, %v8516
    %v8535 = vmul.f32 %v8385, %v8516
    %v8536 = vmul.f32 %v8390, %v8516
    %v8537 = vmul.f32 %v8395, %v8516
    %v8538 = vmul.f32 %v8400, %v8516
    %v8539 = vmul.f32 %v8405, %v8516
    %v8540 = vmul.f32 %v8410, %v8516
    %8541 = vadd.xlane.f32.xlu0 %v8517
    %v8542 = vpop.xlane.xlu0 %8541
    %8543 = vadd.xlane.f32.xlu0 %v8518
    %v8544 = vpop.xlane.xlu0 %8543
    %8545 = vadd.xlane.f32.xlu0 %v8519
    %v8546 = vpop.xlane.xlu0 %8545
    %8547 = vadd.xlane.f32.xlu0 %v8520
    %v8548 = vpop.xlane.xlu0 %8547
    %8549 = vadd.xlane.f32.xlu0 %v8521
    %v8550 = vpop.xlane.xlu0 %8549
    %8551 = vadd.xlane.f32.xlu0 %v8522
    %v8552 = vpop.xlane.xlu0 %8551
    %8553 = vadd.xlane.f32.xlu0 %v8523
    %v8554 = vpop.xlane.xlu0 %8553
    %8555 = vadd.xlane.f32.xlu0 %v8524
    %v8556 = vpop.xlane.xlu0 %8555
    %8557 = vadd.xlane.f32.xlu0 %v8525
    %v8558 = vpop.xlane.xlu0 %8557
    %8559 = vadd.xlane.f32.xlu0 %v8526
    %v8560 = vpop.xlane.xlu0 %8559
    %8561 = vadd.xlane.f32.xlu0 %v8527
    %v8562 = vpop.xlane.xlu0 %8561
    %8563 = vadd.xlane.f32.xlu0 %v8528
    %v8564 = vpop.xlane.xlu0 %8563
    %8565 = vadd.xlane.f32.xlu0 %v8529
    %v8566 = vpop.xlane.xlu0 %8565
    %8567 = vadd.xlane.f32.xlu0 %v8530
    %v8568 = vpop.xlane.xlu0 %8567
    %8569 = vadd.xlane.f32.xlu0 %v8531
    %v8570 = vpop.xlane.xlu0 %8569
    %8571 = vadd.xlane.f32.xlu0 %v8532
    %v8572 = vpop.xlane.xlu0 %8571
    %8573 = vadd.xlane.f32.xlu0 %v8533
    %v8574 = vpop.xlane.xlu0 %8573
    %8575 = vadd.xlane.f32.xlu0 %v8534
    %v8576 = vpop.xlane.xlu0 %8575
    %8577 = vadd.xlane.f32.xlu0 %v8535
    %v8578 = vpop.xlane.xlu0 %8577
    %8579 = vadd.xlane.f32.xlu0 %v8536
    %v8580 = vpop.xlane.xlu0 %8579
    %8581 = vadd.xlane.f32.xlu0 %v8537
    %v8582 = vpop.xlane.xlu0 %8581
    %8583 = vadd.xlane.f32.xlu0 %v8538
    %v8584 = vpop.xlane.xlu0 %8583
    %8585 = vadd.xlane.f32.xlu0 %v8539
    %v8586 = vpop.xlane.xlu0 %8585
    %8587 = vadd.xlane.f32.xlu0 %v8540
    %v8588 = vpop.xlane.xlu0 %8587
    %v8589 = vld [vmem:[#allocation2 + $0xc60] sm:$0xff]
    %v8590 = vld [vmem:[#allocation2 + $0xc70] sm:$0xff]
    %v8591 = vld [vmem:[#allocation2 + $0xc80] sm:$0xff]
    %v8592 = vld [vmem:[#allocation2 + $0xc90] sm:$0xff]
    %v8593 = vld [vmem:[#allocation2 + $0xca0] sm:$0xff]
    %v8594 = vld [vmem:[#allocation2 + $0xcb0] sm:$0xff]
    %v8595 = vld [vmem:[#allocation2 + $0xcc0] sm:$0xff]
    %v8596 = vld [vmem:[#allocation2 + $0xcd0] sm:$0xff]
    %v8597 = vld [vmem:[#allocation2 + $0xce0] sm:$0xff]
    %v8598 = vld [vmem:[#allocation2 + $0xcf0] sm:$0xff]
    %v8599 = vld [vmem:[#allocation2 + $0xd00] sm:$0xff]
    %v8600 = vld [vmem:[#allocation2 + $0xd10] sm:$0xff]
    %v8601 = vld [vmem:[#allocation2 + $0xd20] sm:$0xff]
    %v8602 = vld [vmem:[#allocation2 + $0xd28] sm:$0xff]
    %v8603 = vld [vmem:[#allocation2 + $0xd30] sm:$0xff]
    %v8604 = vld [vmem:[#allocation2 + $0xd38] sm:$0xff]
    %v8605 = vld [vmem:[#allocation2 + $0xd40] sm:$0xff]
    %v8606 = vld [vmem:[#allocation2 + $0xd48] sm:$0xff]
    %v8607 = vld [vmem:[#allocation2 + $0xd50] sm:$0xff]
    %v8608 = vld [vmem:[#allocation2 + $0xd58] sm:$0xff]
    %v8609 = vld [vmem:[#allocation2 + $0xd60] sm:$0xff]
    %v8610 = vld [vmem:[#allocation2 + $0xd68] sm:$0xff]
    %v8611 = vld [vmem:[#allocation2 + $0xd70] sm:$0xff]
    %v8612 = vld [vmem:[#allocation2 + $0xd78] sm:$0xff]
    %v8613 = vld [vmem:[#allocation2 + $0xd80] sm:$0xff]
    %v8614 = vld [vmem:[#allocation2 + $0xd88] sm:$0xff]
    %v8615 = vld [vmem:[#allocation2 + $0xd90] sm:$0xff]
    %v8616 = vld [vmem:[#allocation2 + $0xd98] sm:$0xff]
    %v8617 = vld [vmem:[#allocation2 + $0xda0] sm:$0xff]
    %v8618 = vld [vmem:[#allocation2 + $0xda8] sm:$0xff]
    %v8619 = vld [vmem:[#allocation2 + $0xdb0] sm:$0xff]
    %v8620 = vld [vmem:[#allocation2 + $0xdb8] sm:$0xff]
    %v8621 = vld [vmem:[#allocation2 + $0xdc0] sm:$0xff]
    %v8622 = vld [vmem:[#allocation2 + $0xdc8] sm:$0xff]
    %v8623 = vld [vmem:[#allocation2 + $0xdd0] sm:$0xff]
    %v8624 = vld [vmem:[#allocation2 + $0xdd8] sm:$0xff]
    %v8626 = vsel %vm764, %v8602, 0
    %v8629 = vsel %vm764, %v8604, 0
    %v8632 = vsel %vm764, %v8606, 0
    %v8635 = vsel %vm764, %v8608, 0
    %v8638 = vsel %vm764, %v8610, 0
    %v8641 = vsel %vm764, %v8612, 0
    %v8644 = vsel %vm764, %v8614, 0
    %v8647 = vsel %vm764, %v8616, 0
    %v8650 = vsel %vm764, %v8618, 0
    %v8653 = vsel %vm764, %v8620, 0
    %v8656 = vsel %vm764, %v8622, 0
    %v8659 = vsel %vm764, %v8624, 0
    %8661 = vmatprep.subr.mxu0 0.0
    %8662 = vmatpush1.msra.mxu0 %v8572
    %8663 = vmatprep.subr.mxu0 0.0
    %8664 = vmatpush1.msra.mxu0 %v8570
    %8665 = vmatprep.subr.mxu0 0.0
    %8666 = vmatpush1.msra.mxu0 %v8568
    %8667 = vmatprep.subr.mxu0 0.0
    %8668 = vmatpush1.msra.mxu0 %v8566
    %8669 = vmatprep.subr.mxu0 0.0
    %8670 = vmatpush1.msra.mxu0 %v8564
    %8671 = vmatprep.subr.mxu0 0.0
    %8672 = vmatpush1.msra.mxu0 %v8562
    %8673 = vmatprep.subr.mxu0 0.0
    %8674 = vmatpush1.msra.mxu0 %v8560
    %8675 = vmatprep.subr.mxu0 0.0
    %8676 = vmatpush1.msra.mxu0 %v8558
    %8677 = vmatprep.subr.mxu0 0.0
    %8678 = vmatpush1.msra.mxu0 %v8556
    %8679 = vmatprep.subr.mxu0 0.0
    %8680 = vmatpush1.msra.mxu0 %v8554
    %8681 = vmatprep.subr.mxu0 0.0
    %8682 = vmatpush1.msra.mxu0 %v8552
    %8683 = vmatprep.subr.mxu0 0.0
    %8684 = vmatpush1.msra.mxu0 %v8550
    %8685 = vmatprep.subr.mxu0 0.0
    %8686 = vmatpush1.msra.mxu0 %v8548
    %8687 = vmatprep.subr.mxu0 0.0
    %8688 = vmatpush1.msra.mxu0 %v8546
    %8689 = vmatprep.subr.mxu0 0.0
    %8690 = vmatpush1.msra.mxu0 %v8544
    %8691 = vmatprep.subr.mxu0 0.0
    %8692 = vmatpush1.msra.mxu0 %v8542
    %8693 = vmatprep.subr.mxu0 0.0
    %8694 = vmatpush2.msra.mxu0 0.0
    %8695 = vmatprep.subr.mxu0 0.0
    %8696 = vmatpush2.msra.mxu0 0.0
    %8697 = vmatprep.subr.mxu0 0.0
    %8698 = vmatpush2.msra.mxu0 0.0
    %8699 = vmatprep.subr.mxu0 0.0
    %8700 = vmatpush2.msra.mxu0 0.0
    %8701 = vmatprep.subr.mxu0 0.0
    %8702 = vmatpush2.msra.mxu0 0.0
    %8703 = vmatprep.subr.mxu0 0.0
    %8704 = vmatpush2.msra.mxu0 0.0
    %8705 = vmatprep.subr.mxu0 0.0
    %8706 = vmatpush2.msra.mxu0 0.0
    %8707 = vmatprep.subr.mxu0 0.0
    %8708 = vmatpush2.msra.mxu0 0.0
    %8709 = vmatprep.subr.mxu0 0.0
    %8710 = vmatpush2.msra.mxu0 %v8588
    %8711 = vmatprep.subr.mxu0 0.0
    %8712 = vmatpush2.msra.mxu0 %v8586
    %8713 = vmatprep.subr.mxu0 0.0
    %8714 = vmatpush2.msra.mxu0 %v8584
    %8715 = vmatprep.subr.mxu0 0.0
    %8716 = vmatpush2.msra.mxu0 %v8582
    %8717 = vmatprep.subr.mxu0 0.0
    %8718 = vmatpush2.msra.mxu0 %v8580
    %8719 = vmatprep.subr.mxu0 0.0
    %8720 = vmatpush2.msra.mxu0 %v8578
    %8721 = vmatprep.subr.mxu0 0.0
    %8722 = vmatpush2.msra.mxu0 %v8576
    %8723 = vmatprep.subr.mxu0 0.0
    %8724 = vmatpush2.msra.mxu0 %v8574
    %8725 = vmatprep.mubr.f32.mxu0 %v8626
    %8726 = vmatmul.mubr.f32.gmra.mxu0 %v8601
    %v8727 = vpop.f32.mrf.mxu0
    %v8728 = vadd.f32 0.0, %v8727
    %v8729 = vpop.f32.mrf.mxu0
    %8730 = vmatprep.mubr.f32.mxu0 %v8629
    %8731 = vmatmul.mubr.f32.gmra.mxu0 %v8603
    %v8732 = vpop.f32.mrf.mxu0
    %v8733 = vadd.f32 0.0, %v8732
    %v8734 = vpop.f32.mrf.mxu0
    %8735 = vmatprep.mubr.f32.mxu0 %v8632
    %8736 = vmatmul.mubr.f32.gmra.mxu0 %v8605
    %v8737 = vpop.f32.mrf.mxu0
    %v8738 = vadd.f32 0.0, %v8737
    %v8739 = vpop.f32.mrf.mxu0
    %8740 = vmatprep.mubr.f32.mxu0 %v8635
    %8741 = vmatmul.mubr.f32.gmra.mxu0 %v8607
    %v8742 = vpop.f32.mrf.mxu0
    %v8743 = vadd.f32 0.0, %v8742
    %v8744 = vpop.f32.mrf.mxu0
    %8745 = vmatprep.mubr.f32.mxu0 %v8638
    %8746 = vmatmul.mubr.f32.gmra.mxu0 %v8609
    %v8747 = vpop.f32.mrf.mxu0
    %v8748 = vadd.f32 0.0, %v8747
    %v8749 = vpop.f32.mrf.mxu0
    %8750 = vmatprep.mubr.f32.mxu0 %v8641
    %8751 = vmatmul.mubr.f32.gmra.mxu0 %v8611
    %v8752 = vpop.f32.mrf.mxu0
    %v8753 = vadd.f32 0.0, %v8752
    %v8754 = vpop.f32.mrf.mxu0
    %8755 = vmatprep.mubr.f32.mxu0 %v8644
    %8756 = vmatmul.mubr.f32.gmra.mxu0 %v8613
    %v8757 = vpop.f32.mrf.mxu0
    %v8758 = vadd.f32 0.0, %v8757
    %v8759 = vpop.f32.mrf.mxu0
    %8760 = vmatprep.mubr.f32.mxu0 %v8647
    %8761 = vmatmul.mubr.f32.gmra.mxu0 %v8615
    %v8762 = vpop.f32.mrf.mxu0
    %v8763 = vadd.f32 0.0, %v8762
    %v8764 = vpop.f32.mrf.mxu0
    %8765 = vmatprep.mubr.f32.mxu0 %v8650
    %8766 = vmatmul.mubr.f32.gmra.mxu0 %v8617
    %v8767 = vpop.f32.mrf.mxu0
    %v8768 = vadd.f32 0.0, %v8767
    %v8769 = vpop.f32.mrf.mxu0
    %8770 = vmatprep.mubr.f32.mxu0 %v8653
    %8771 = vmatmul.mubr.f32.gmra.mxu0 %v8619
    %v8772 = vpop.f32.mrf.mxu0
    %v8773 = vadd.f32 0.0, %v8772
    %v8774 = vpop.f32.mrf.mxu0
    %8775 = vmatprep.mubr.f32.mxu0 %v8656
    %8776 = vmatmul.mubr.f32.gmra.mxu0 %v8621
    %v8777 = vpop.f32.mrf.mxu0
    %v8778 = vadd.f32 0.0, %v8777
    %v8779 = vpop.f32.mrf.mxu0
    %8780 = vmatprep.mubr.f32.mxu0 %v8659
    %8781 = vmatmul.mubr.f32.gmra.mxu0 %v8623
    %v8782 = vpop.f32.mrf.mxu0
    %v8783 = vadd.f32 0.0, %v8782
    %v8784 = vpop.f32.mrf.mxu0
    %8785 = vdwg.mxu0
    %8787 = vset.pattern.permute.xlu0 0
    %8788 = vperm.xlu0 %8787, %v8728
    %v8789 = vpop.permute.xlu0 %8788
    %8792 = vset.pattern.permute.xlu0 0
    %8793 = vperm.xlu0 %8792, %v8733
    %v8794 = vpop.permute.xlu0 %8793
    %8797 = vset.pattern.permute.xlu0 0
    %8798 = vperm.xlu0 %8797, %v8738
    %v8799 = vpop.permute.xlu0 %8798
    %8802 = vset.pattern.permute.xlu0 0
    %8803 = vperm.xlu0 %8802, %v8743
    %v8804 = vpop.permute.xlu0 %8803
    %8807 = vset.pattern.permute.xlu0 0
    %8808 = vperm.xlu0 %8807, %v8748
    %v8809 = vpop.permute.xlu0 %8808
    %8812 = vset.pattern.permute.xlu0 0
    %8813 = vperm.xlu0 %8812, %v8753
    %v8814 = vpop.permute.xlu0 %8813
    %8817 = vset.pattern.permute.xlu0 0
    %8818 = vperm.xlu0 %8817, %v8758
    %v8819 = vpop.permute.xlu0 %8818
    %8822 = vset.pattern.permute.xlu0 0
    %8823 = vperm.xlu0 %8822, %v8763
    %v8824 = vpop.permute.xlu0 %8823
    %8827 = vset.pattern.permute.xlu0 0
    %8828 = vperm.xlu0 %8827, %v8768
    %v8829 = vpop.permute.xlu0 %8828
    %8832 = vset.pattern.permute.xlu0 0
    %8833 = vperm.xlu0 %8832, %v8773
    %v8834 = vpop.permute.xlu0 %8833
    %8837 = vset.pattern.permute.xlu0 0
    %8838 = vperm.xlu0 %8837, %v8778
    %v8839 = vpop.permute.xlu0 %8838
    %8842 = vset.pattern.permute.xlu0 0
    %8843 = vperm.xlu0 %8842, %v8783
    %v8844 = vpop.permute.xlu0 %8843
    %v8847 = vsel %vm148, %v8589, 0
    %v8850 = vsel %vm148, %v8590, 0
    %v8853 = vsel %vm148, %v8591, 0
    %v8856 = vsel %vm148, %v8592, 0
    %v8859 = vsel %vm148, %v8593, 0
    %v8862 = vsel %vm148, %v8594, 0
    %v8865 = vsel %vm148, %v8595, 0
    %v8868 = vsel %vm148, %v8596, 0
    %v8871 = vsel %vm148, %v8597, 0
    %v8874 = vsel %vm148, %v8598, 0
    %v8877 = vsel %vm148, %v8599, 0
    %v8880 = vsel %vm148, %v8600, 0
    %8882 = vmatprep.subr.mxu0 0.0
    %8883 = vmatpush1.msra.mxu0 0.0
    %8884 = vmatprep.subr.mxu0 0.0
    %8885 = vmatpush1.msra.mxu0 0.0
    %8886 = vmatprep.subr.mxu0 0.0
    %8887 = vmatpush1.msra.mxu0 0.0
    %8888 = vmatprep.subr.mxu0 0.0
    %8889 = vmatpush1.msra.mxu0 0.0
    %8890 = vmatprep.subr.mxu0 0.0
    %8891 = vmatpush1.msra.mxu0 0.0
    %8892 = vmatprep.subr.mxu0 0.0
    %8893 = vmatpush1.msra.mxu0 0.0
    %8894 = vmatprep.subr.mxu0 0.0
    %8895 = vmatpush1.msra.mxu0 0.0
    %8896 = vmatprep.subr.mxu0 0.0
    %8897 = vmatpush1.msra.mxu0 0.0
    %8898 = vmatprep.subr.mxu0 0.0
    %8899 = vmatpush1.msra.mxu0 0.0
    %8900 = vmatprep.subr.mxu0 0.0
    %8901 = vmatpush1.msra.mxu0 0.0
    %8902 = vmatprep.subr.mxu0 0.0
    %8903 = vmatpush1.msra.mxu0 0.0
    %8904 = vmatprep.subr.mxu0 0.0
    %8905 = vmatpush1.msra.mxu0 0.0
    %8906 = vmatprep.subr.mxu0 0.0
    %8907 = vmatpush1.msra.mxu0 0.0
    %8908 = vmatprep.subr.mxu0 0.0
    %8909 = vmatpush1.msra.mxu0 0.0
    %8910 = vmatprep.subr.mxu0 0.0
    %8911 = vmatpush1.msra.mxu0 %v7951
    %8912 = vmatprep.subr.mxu0 0.0
    %8913 = vmatpush1.msra.mxu0 %v7918
    %8914 = vmatprep.subr.mxu0 0.0
    %8915 = vmatpush2.msra.mxu0 0.0
    %8916 = vmatprep.subr.mxu0 0.0
    %8917 = vmatpush2.msra.mxu0 0.0
    %8918 = vmatprep.subr.mxu0 0.0
    %8919 = vmatpush2.msra.mxu0 0.0
    %8920 = vmatprep.subr.mxu0 0.0
    %8921 = vmatpush2.msra.mxu0 0.0
    %8922 = vmatprep.subr.mxu0 0.0
    %8923 = vmatpush2.msra.mxu0 0.0
    %8924 = vmatprep.subr.mxu0 0.0
    %8925 = vmatpush2.msra.mxu0 0.0
    %8926 = vmatprep.subr.mxu0 0.0
    %8927 = vmatpush2.msra.mxu0 0.0
    %8928 = vmatprep.subr.mxu0 0.0
    %8929 = vmatpush2.msra.mxu0 0.0
    %8930 = vmatprep.subr.mxu0 0.0
    %8931 = vmatpush2.msra.mxu0 0.0
    %8932 = vmatprep.subr.mxu0 0.0
    %8933 = vmatpush2.msra.mxu0 0.0
    %8934 = vmatprep.subr.mxu0 0.0
    %8935 = vmatpush2.msra.mxu0 0.0
    %8936 = vmatprep.subr.mxu0 0.0
    %8937 = vmatpush2.msra.mxu0 0.0
    %8938 = vmatprep.subr.mxu0 0.0
    %8939 = vmatpush2.msra.mxu0 0.0
    %8940 = vmatprep.subr.mxu0 0.0
    %8941 = vmatpush2.msra.mxu0 0.0
    %8942 = vmatprep.subr.mxu0 0.0
    %8943 = vmatpush2.msra.mxu0 0.0
    %8944 = vmatprep.subr.mxu0 0.0
    %8945 = vmatpush2.msra.mxu0 0.0
    %8946 = vmatprep.mubr.f32.mxu0 0.0
    %8947 = vmatmul.mubr.f32.gmra.mxu0 %v8847
    %v8948 = vpop.f32.mrf.mxu0
    %v8949 = vadd.f32 %v8789, %v8948
    %v8950 = vpop.f32.mrf.mxu0
    %8951 = vmatprep.mubr.f32.mxu0 0.0
    %8952 = vmatmul.mubr.f32.gmra.mxu0 %v8850
    %v8953 = vpop.f32.mrf.mxu0
    %v8954 = vadd.f32 %v8794, %v8953
    %v8955 = vpop.f32.mrf.mxu0
    %8956 = vmatprep.mubr.f32.mxu0 0.0
    %8957 = vmatmul.mubr.f32.gmra.mxu0 %v8853
    %v8958 = vpop.f32.mrf.mxu0
    %v8959 = vadd.f32 %v8799, %v8958
    %v8960 = vpop.f32.mrf.mxu0
    %8961 = vmatprep.mubr.f32.mxu0 0.0
    %8962 = vmatmul.mubr.f32.gmra.mxu0 %v8856
    %v8963 = vpop.f32.mrf.mxu0
    %v8964 = vadd.f32 %v8804, %v8963
    %v8965 = vpop.f32.mrf.mxu0
    %8966 = vmatprep.mubr.f32.mxu0 0.0
    %8967 = vmatmul.mubr.f32.gmra.mxu0 %v8859
    %v8968 = vpop.f32.mrf.mxu0
    %v8969 = vadd.f32 %v8809, %v8968
    %v8970 = vpop.f32.mrf.mxu0
    %8971 = vmatprep.mubr.f32.mxu0 0.0
    %8972 = vmatmul.mubr.f32.gmra.mxu0 %v8862
    %v8973 = vpop.f32.mrf.mxu0
    %v8974 = vadd.f32 %v8814, %v8973
    %v8975 = vpop.f32.mrf.mxu0
    %8976 = vmatprep.mubr.f32.mxu0 0.0
    %8977 = vmatmul.mubr.f32.gmra.mxu0 %v8865
    %v8978 = vpop.f32.mrf.mxu0
    %v8979 = vadd.f32 %v8819, %v8978
    %v8980 = vpop.f32.mrf.mxu0
    %8981 = vmatprep.mubr.f32.mxu0 0.0
    %8982 = vmatmul.mubr.f32.gmra.mxu0 %v8868
    %v8983 = vpop.f32.mrf.mxu0
    %v8984 = vadd.f32 %v8824, %v8983
    %v8985 = vpop.f32.mrf.mxu0
    %8986 = vmatprep.mubr.f32.mxu0 0.0
    %8987 = vmatmul.mubr.f32.gmra.mxu0 %v8871
    %v8988 = vpop.f32.mrf.mxu0
    %v8989 = vadd.f32 %v8829, %v8988
    %v8990 = vpop.f32.mrf.mxu0
    %8991 = vmatprep.mubr.f32.mxu0 0.0
    %8992 = vmatmul.mubr.f32.gmra.mxu0 %v8874
    %v8993 = vpop.f32.mrf.mxu0
    %v8994 = vadd.f32 %v8834, %v8993
    %v8995 = vpop.f32.mrf.mxu0
    %8996 = vmatprep.mubr.f32.mxu0 0.0
    %8997 = vmatmul.mubr.f32.gmra.mxu0 %v8877
    %v8998 = vpop.f32.mrf.mxu0
    %v8999 = vadd.f32 %v8839, %v8998
    %v9000 = vpop.f32.mrf.mxu0
    %9001 = vmatprep.mubr.f32.mxu0 0.0
    %9002 = vmatmul.mubr.f32.gmra.mxu0 %v8880
    %v9003 = vpop.f32.mrf.mxu0
    %v9004 = vadd.f32 %v8844, %v9003
    %v9005 = vpop.f32.mrf.mxu0
    %9006 = vdwg.mxu0
    %9007 = vset.pattern.permute.xlu0 12
    %9008 = vperm.xlu0 %9007, %v8589
    %v9009 = vpop.permute.xlu0 %9008
    %9011 = vset.pattern.permute.xlu0 12
    %9012 = vperm.xlu0 %9011, %v8590
    %v9013 = vpop.permute.xlu0 %9012
    %9015 = vset.pattern.permute.xlu0 12
    %9016 = vperm.xlu0 %9015, %v8591
    %v9017 = vpop.permute.xlu0 %9016
    %9019 = vset.pattern.permute.xlu0 12
    %9020 = vperm.xlu0 %9019, %v8592
    %v9021 = vpop.permute.xlu0 %9020
    %9023 = vset.pattern.permute.xlu0 12
    %9024 = vperm.xlu0 %9023, %v8593
    %v9025 = vpop.permute.xlu0 %9024
    %9027 = vset.pattern.permute.xlu0 12
    %9028 = vperm.xlu0 %9027, %v8594
    %v9029 = vpop.permute.xlu0 %9028
    %9031 = vset.pattern.permute.xlu0 12
    %9032 = vperm.xlu0 %9031, %v8595
    %v9033 = vpop.permute.xlu0 %9032
    %9035 = vset.pattern.permute.xlu0 12
    %9036 = vperm.xlu0 %9035, %v8596
    %v9037 = vpop.permute.xlu0 %9036
    %9039 = vset.pattern.permute.xlu0 12
    %9040 = vperm.xlu0 %9039, %v8597
    %v9041 = vpop.permute.xlu0 %9040
    %9043 = vset.pattern.permute.xlu0 12
    %9044 = vperm.xlu0 %9043, %v8598
    %v9045 = vpop.permute.xlu0 %9044
    %9047 = vset.pattern.permute.xlu0 12
    %9048 = vperm.xlu0 %9047, %v8599
    %v9049 = vpop.permute.xlu0 %9048
    %9051 = vset.pattern.permute.xlu0 12
    %9052 = vperm.xlu0 %9051, %v8600
    %v9053 = vpop.permute.xlu0 %9052
    %v9055 = vadd.f32 %v8949, %v9009
    %v9056 = vadd.f32 %v8954, %v9013
    %v9057 = vadd.f32 %v8959, %v9017
    %v9058 = vadd.f32 %v8964, %v9021
    %v9059 = vadd.f32 %v8969, %v9025
    %v9060 = vadd.f32 %v8974, %v9029
    %v9061 = vadd.f32 %v8979, %v9033
    %v9062 = vadd.f32 %v8984, %v9037
    %v9063 = vadd.f32 %v8989, %v9041
    %v9064 = vadd.f32 %v8994, %v9045
    %v9065 = vadd.f32 %v8999, %v9049
    %v9066 = vadd.f32 %v9004, %v9053
    %v9067 = vmax.f32 %v9055, 0.0
    %v9068 = vmax.f32 %v9056, 0.0
    %v9069 = vmax.f32 %v9057, 0.0
    %v9070 = vmax.f32 %v9058, 0.0
    %v9071 = vmax.f32 %v9059, 0.0
    %v9072 = vmax.f32 %v9060, 0.0
    %v9073 = vmax.f32 %v9061, 0.0
    %v9074 = vmax.f32 %v9062, 0.0
    %v9075 = vmax.f32 %v9063, 0.0
    %v9076 = vmax.f32 %v9064, 0.0
    %v9077 = vmax.f32 %v9065, 0.0
    %v9078 = vmax.f32 %v9066, 0.0
    %v9079 = vld [vmem:[#allocation2 + $0xde0] sm:$0xff]
    %v9080 = vld [vmem:[#allocation2 + $0xdf0] sm:$0xff]
    %v9081 = vld [vmem:[#allocation2 + $0xe00] sm:$0xff]
    %v9082 = vld [vmem:[#allocation2 + $0xe10] sm:$0xff]
    %v9083 = vld [vmem:[#allocation2 + $0xe20] sm:$0xff]
    %v9084 = vld [vmem:[#allocation2 + $0xe30] sm:$0xff]
    %9086 = vset.pattern.permute.xlu0 96
    %9087 = vperm.xlu0 %9086, %v9079
    %v9088 = vpop.permute.xlu0 %9087
    %9091 = vset.pattern.permute.xlu0 96
    %9092 = vperm.xlu0 %9091, %v9080
    %v9093 = vpop.permute.xlu0 %9092
    %9096 = vset.pattern.permute.xlu0 96
    %9097 = vperm.xlu0 %9096, %v9081
    %v9098 = vpop.permute.xlu0 %9097
    %9101 = vset.pattern.permute.xlu0 96
    %9102 = vperm.xlu0 %9101, %v9082
    %v9103 = vpop.permute.xlu0 %9102
    %9106 = vset.pattern.permute.xlu0 96
    %9107 = vperm.xlu0 %9106, %v9083
    %v9108 = vpop.permute.xlu0 %9107
    %9111 = vset.pattern.permute.xlu0 96
    %9112 = vperm.xlu0 %9111, %v9084
    %v9113 = vpop.permute.xlu0 %9112
    %v9115 = vsel %vm956, %v9079, 0
    %v9117 = vsel %vm956, %v9080, 0
    %v9119 = vsel %vm956, %v9081, 0
    %v9121 = vsel %vm956, %v9082, 0
    %v9123 = vsel %vm956, %v9083, 0
    %v9125 = vsel %vm956, %v9084, 0
    %9127 = vmatprep.subr.mxu0 0.0
    %9128 = vmatpush1.msra.mxu0 0.0
    %9129 = vmatprep.subr.mxu0 0.0
    %9130 = vmatpush1.msra.mxu0 0.0
    %9131 = vmatprep.subr.mxu0 0.0
    %9132 = vmatpush1.msra.mxu0 0.0
    %9133 = vmatprep.subr.mxu0 0.0
    %9134 = vmatpush1.msra.mxu0 0.0
    %9135 = vmatprep.subr.mxu0 0.0
    %9136 = vmatpush1.msra.mxu0 %v9078
    %9137 = vmatprep.subr.mxu0 0.0
    %9138 = vmatpush1.msra.mxu0 %v9077
    %9139 = vmatprep.subr.mxu0 0.0
    %9140 = vmatpush1.msra.mxu0 %v9076
    %9141 = vmatprep.subr.mxu0 0.0
    %9142 = vmatpush1.msra.mxu0 %v9075
    %9143 = vmatprep.subr.mxu0 0.0
    %9144 = vmatpush1.msra.mxu0 %v9074
    %9145 = vmatprep.subr.mxu0 0.0
    %9146 = vmatpush1.msra.mxu0 %v9073
    %9147 = vmatprep.subr.mxu0 0.0
    %9148 = vmatpush1.msra.mxu0 %v9072
    %9149 = vmatprep.subr.mxu0 0.0
    %9150 = vmatpush1.msra.mxu0 %v9071
    %9151 = vmatprep.subr.mxu0 0.0
    %9152 = vmatpush1.msra.mxu0 %v9070
    %9153 = vmatprep.subr.mxu0 0.0
    %9154 = vmatpush1.msra.mxu0 %v9069
    %9155 = vmatprep.subr.mxu0 0.0
    %9156 = vmatpush1.msra.mxu0 %v9068
    %9157 = vmatprep.subr.mxu0 0.0
    %9158 = vmatpush1.msra.mxu0 %v9067
    %9159 = vmatprep.subr.mxu0 0.0
    %9160 = vmatpush2.msra.mxu0 0.0
    %9161 = vmatprep.subr.mxu0 0.0
    %9162 = vmatpush2.msra.mxu0 0.0
    %9163 = vmatprep.subr.mxu0 0.0
    %9164 = vmatpush2.msra.mxu0 0.0
    %9165 = vmatprep.subr.mxu0 0.0
    %9166 = vmatpush2.msra.mxu0 0.0
    %9167 = vmatprep.subr.mxu0 0.0
    %9168 = vmatpush2.msra.mxu0 0.0
    %9169 = vmatprep.subr.mxu0 0.0
    %9170 = vmatpush2.msra.mxu0 0.0
    %9171 = vmatprep.subr.mxu0 0.0
    %9172 = vmatpush2.msra.mxu0 0.0
    %9173 = vmatprep.subr.mxu0 0.0
    %9174 = vmatpush2.msra.mxu0 0.0
    %9175 = vmatprep.subr.mxu0 0.0
    %9176 = vmatpush2.msra.mxu0 0.0
    %9177 = vmatprep.subr.mxu0 0.0
    %9178 = vmatpush2.msra.mxu0 0.0
    %9179 = vmatprep.subr.mxu0 0.0
    %9180 = vmatpush2.msra.mxu0 0.0
    %9181 = vmatprep.subr.mxu0 0.0
    %9182 = vmatpush2.msra.mxu0 0.0
    %9183 = vmatprep.subr.mxu0 0.0
    %9184 = vmatpush2.msra.mxu0 0.0
    %9185 = vmatprep.subr.mxu0 0.0
    %9186 = vmatpush2.msra.mxu0 0.0
    %9187 = vmatprep.subr.mxu0 0.0
    %9188 = vmatpush2.msra.mxu0 0.0
    %9189 = vmatprep.subr.mxu0 0.0
    %9190 = vmatpush2.msra.mxu0 0.0
    %9191 = vmatprep.mubr.f32.mxu0 0.0
    %9192 = vmatmul.mubr.f32.gmra.mxu0 %v9115
    %v9193 = vpop.f32.mrf.mxu0
    %v9194 = vadd.f32 %v9088, %v9193
    %v9195 = vpop.f32.mrf.mxu0
    %9196 = vmatprep.mubr.f32.mxu0 0.0
    %9197 = vmatmul.mubr.f32.gmra.mxu0 %v9117
    %v9198 = vpop.f32.mrf.mxu0
    %v9199 = vadd.f32 %v9093, %v9198
    %v9200 = vpop.f32.mrf.mxu0
    %9201 = vmatprep.mubr.f32.mxu0 0.0
    %9202 = vmatmul.mubr.f32.gmra.mxu0 %v9119
    %v9203 = vpop.f32.mrf.mxu0
    %v9204 = vadd.f32 %v9098, %v9203
    %v9205 = vpop.f32.mrf.mxu0
    %9206 = vmatprep.mubr.f32.mxu0 0.0
    %9207 = vmatmul.mubr.f32.gmra.mxu0 %v9121
    %v9208 = vpop.f32.mrf.mxu0
    %v9209 = vadd.f32 %v9103, %v9208
    %v9210 = vpop.f32.mrf.mxu0
    %9211 = vmatprep.mubr.f32.mxu0 0.0
    %9212 = vmatmul.mubr.f32.gmra.mxu0 %v9123
    %v9213 = vpop.f32.mrf.mxu0
    %v9214 = vadd.f32 %v9108, %v9213
    %v9215 = vpop.f32.mrf.mxu0
    %9216 = vmatprep.mubr.f32.mxu0 0.0
    %9217 = vmatmul.mubr.f32.gmra.mxu0 %v9125
    %v9218 = vpop.f32.mrf.mxu0
    %v9219 = vadd.f32 %v9113, %v9218
    %v9220 = vpop.f32.mrf.mxu0
    %9221 = vdwg.mxu0
    %v9222 = vmax.f32 %v9194, 0.0
    %v9223 = vmax.f32 %v9199, 0.0
    %v9224 = vmax.f32 %v9204, 0.0
    %v9225 = vmax.f32 %v9209, 0.0
    %v9226 = vmax.f32 %v9214, 0.0
    %v9227 = vmax.f32 %v9219, 0.0
    %v9228 = vld [vmem:[#allocation2 + $0xe40] sm:$0xff]
    %v9229 = vld [vmem:[#allocation2 + $0xe50] sm:$0xff]
    %v9230 = vld [vmem:[#allocation2 + $0xe60] sm:$0xff]
    %9232 = vset.pattern.permute.xlu0 48
    %9233 = vperm.xlu0 %9232, %v9228
    %v9234 = vpop.permute.xlu0 %9233
    %9237 = vset.pattern.permute.xlu0 48
    %9238 = vperm.xlu0 %9237, %v9229
    %v9239 = vpop.permute.xlu0 %9238
    %9242 = vset.pattern.permute.xlu0 48
    %9243 = vperm.xlu0 %9242, %v9230
    %v9244 = vpop.permute.xlu0 %9243
    %v9246 = vsel %vm1090, %v9228, 0
    %v9248 = vsel %vm1090, %v9229, 0
    %v9250 = vsel %vm1090, %v9230, 0
    %9252 = vmatprep.subr.mxu0 0.0
    %9253 = vmatpush1.msra.mxu0 0.0
    %9254 = vmatprep.subr.mxu0 0.0
    %9255 = vmatpush1.msra.mxu0 0.0
    %9256 = vmatprep.subr.mxu0 0.0
    %9257 = vmatpush1.msra.mxu0 0.0
    %9258 = vmatprep.subr.mxu0 0.0
    %9259 = vmatpush1.msra.mxu0 0.0
    %9260 = vmatprep.subr.mxu0 0.0
    %9261 = vmatpush1.msra.mxu0 0.0
    %9262 = vmatprep.subr.mxu0 0.0
    %9263 = vmatpush1.msra.mxu0 0.0
    %9264 = vmatprep.subr.mxu0 0.0
    %9265 = vmatpush1.msra.mxu0 0.0
    %9266 = vmatprep.subr.mxu0 0.0
    %9267 = vmatpush1.msra.mxu0 0.0
    %9268 = vmatprep.subr.mxu0 0.0
    %9269 = vmatpush1.msra.mxu0 0.0
    %9270 = vmatprep.subr.mxu0 0.0
    %9271 = vmatpush1.msra.mxu0 0.0
    %9272 = vmatprep.subr.mxu0 0.0
    %9273 = vmatpush1.msra.mxu0 %v9227
    %9274 = vmatprep.subr.mxu0 0.0
    %9275 = vmatpush1.msra.mxu0 %v9226
    %9276 = vmatprep.subr.mxu0 0.0
    %9277 = vmatpush1.msra.mxu0 %v9225
    %9278 = vmatprep.subr.mxu0 0.0
    %9279 = vmatpush1.msra.mxu0 %v9224
    %9280 = vmatprep.subr.mxu0 0.0
    %9281 = vmatpush1.msra.mxu0 %v9223
    %9282 = vmatprep.subr.mxu0 0.0
    %9283 = vmatpush1.msra.mxu0 %v9222
    %9284 = vmatprep.subr.mxu0 0.0
    %9285 = vmatpush2.msra.mxu0 0.0
    %9286 = vmatprep.subr.mxu0 0.0
    %9287 = vmatpush2.msra.mxu0 0.0
    %9288 = vmatprep.subr.mxu0 0.0
    %9289 = vmatpush2.msra.mxu0 0.0
    %9290 = vmatprep.subr.mxu0 0.0
    %9291 = vmatpush2.msra.mxu0 0.0
    %9292 = vmatprep.subr.mxu0 0.0
    %9293 = vmatpush2.msra.mxu0 0.0
    %9294 = vmatprep.subr.mxu0 0.0
    %9295 = vmatpush2.msra.mxu0 0.0
    %9296 = vmatprep.subr.mxu0 0.0
    %9297 = vmatpush2.msra.mxu0 0.0
    %9298 = vmatprep.subr.mxu0 0.0
    %9299 = vmatpush2.msra.mxu0 0.0
    %9300 = vmatprep.subr.mxu0 0.0
    %9301 = vmatpush2.msra.mxu0 0.0
    %9302 = vmatprep.subr.mxu0 0.0
    %9303 = vmatpush2.msra.mxu0 0.0
    %9304 = vmatprep.subr.mxu0 0.0
    %9305 = vmatpush2.msra.mxu0 0.0
    %9306 = vmatprep.subr.mxu0 0.0
    %9307 = vmatpush2.msra.mxu0 0.0
    %9308 = vmatprep.subr.mxu0 0.0
    %9309 = vmatpush2.msra.mxu0 0.0
    %9310 = vmatprep.subr.mxu0 0.0
    %9311 = vmatpush2.msra.mxu0 0.0
    %9312 = vmatprep.subr.mxu0 0.0
    %9313 = vmatpush2.msra.mxu0 0.0
    %9314 = vmatprep.subr.mxu0 0.0
    %9315 = vmatpush2.msra.mxu0 0.0
    %9316 = vmatprep.mubr.f32.mxu0 0.0
    %9317 = vmatmul.mubr.f32.gmra.mxu0 %v9246
    %v9318 = vpop.f32.mrf.mxu0
    %v9319 = vadd.f32 %v9234, %v9318
    %v9320 = vpop.f32.mrf.mxu0
    %9321 = vmatprep.mubr.f32.mxu0 0.0
    %9322 = vmatmul.mubr.f32.gmra.mxu0 %v9248
    %v9323 = vpop.f32.mrf.mxu0
    %v9324 = vadd.f32 %v9239, %v9323
    %v9325 = vpop.f32.mrf.mxu0
    %9326 = vmatprep.mubr.f32.mxu0 0.0
    %9327 = vmatmul.mubr.f32.gmra.mxu0 %v9250
    %v9328 = vpop.f32.mrf.mxu0
    %v9329 = vadd.f32 %v9244, %v9328
    %v9330 = vpop.f32.mrf.mxu0
    %9331 = vdwg.mxu0
    %v9332 = vmax.f32 %v9319, 0.0
    %v9333 = vmax.f32 %v9324, 0.0
    %v9334 = vmax.f32 %v9329, 0.0
    %s9335 = scalar_lea.vmem [#allocation5], 24
    %9336 = vst [vmem:[%s9335] sm:$0xff] %v9332
    %9337 = vst [vmem:[%s9335 + $0x8] sm:$0xff] %v9333
    %9338 = vst [vmem:[%s9335 + $0x10] sm:$0xff] %v9334
    %s9339 = scalar_lea.vmem %s3, 8
    %9340 = vst.msk [vmem:[%s9339] sm:$0x1f] %vm4687, %v5947
    %s9341 = scalar_lea.vmem %s4, 16
    %9342 = vst.msk [vmem:[%s9341] sm:$0xff] %vm148, %v7738
    %9343 = vst.msk [vmem:[%s9341 + $0x8] sm:$0xf] %vm4690, %v7743
    %s9344 = scalar_lea.vmem [#allocation6], 1
    %9345 = vst [vmem:[%s9344] sm:$0x1] %v8512
    // Predicated region
    $region14: #{tpu_custom_call.1} parent=1 // pred_check
      _
    $region15: #{tpu_custom_call.1} parent=1 // pred_check_branch
      %9347 = sbr.rel (0) target = $region17
    $region16: #{tpu_custom_call.1} parent=1 // pred_region
      %s9349 = ssub.s32 768, 768
      %9350 = vsyncadd [#allocation4], %s9349
      %s9351 = sshll.u32 [#allocation5], 4
      %s9352 = int_to_ptr.vmem [resolvable:$true] %s9351
      %9357 = dma.vmem_to_hbm [thread:$0]  %s9352, 768, %s2, [#allocation4], 128, 128, 8
    $region17: #{tpu_custom_call.1} parent=1 // pred_fallthru
      _
    // Predicated region
    $region18: #{tpu_custom_call.1} parent=1 // pred_check
      _
    $region19: #{tpu_custom_call.1} parent=1 // pred_check_branch
      %9359 = sbr.rel (0) target = $region21
    $region20: #{tpu_custom_call.1} parent=1 // pred_region
      _
    $region21: #{tpu_custom_call.1} parent=1 // pred_fallthru
      _
    // Predicated region
    $region22: #{tpu_custom_call.1} parent=1 // pred_check
      _
    $region23: #{tpu_custom_call.1} parent=1 // pred_check_branch
      %9361 = sbr.rel (0) target = $region25
    $region24: #{tpu_custom_call.1} parent=1 // pred_region
      _
    $region25: #{tpu_custom_call.1} parent=1 // pred_fallthru
      _
    // Predicated region
    $region26: #{tpu_custom_call.1} parent=1 // pred_check
      _
    $region27: #{tpu_custom_call.1} parent=1 // pred_check_branch
      %9363 = sbr.rel (0) target = $region29
    $region28: #{tpu_custom_call.1} parent=1 // pred_region
      %s9365 = ssub.s32 32, 32
      %9366 = vsyncadd [#allocation7], %s9365
      %s9367 = sshll.u32 [#allocation6], 4
      %s9368 = int_to_ptr.vmem [resolvable:$true] %s9367
      %9373 = dma.vmem_to_hbm [thread:$0]  %s9368, 32, %s5, [#allocation7], 16, 16, 1
    $region29: #{tpu_custom_call.1} parent=1 // pred_fallthru
      _
    // Predicated region
    $region30: #{tpu_custom_call.1} parent=1 // pred_check
      _
    $region31: #{tpu_custom_call.1} parent=1 // pred_check_branch
      %9375 = sbr.rel (0) target = $region33
    $region32: #{tpu_custom_call.1} parent=1 // pred_region
      %9376 = dma.done [#allocation4], 768
    $region33: #{tpu_custom_call.1} parent=1 // pred_fallthru
      _
    // Predicated region
    $region34: #{tpu_custom_call.1} parent=1 // pred_check
      _
    $region35: #{tpu_custom_call.1} parent=1 // pred_check_branch
      %9378 = sbr.rel (0) target = $region37
    $region36: #{tpu_custom_call.1} parent=1 // pred_region
      _
    $region37: #{tpu_custom_call.1} parent=1 // pred_fallthru
      _
    // Predicated region
    $region38: #{tpu_custom_call.1} parent=1 // pred_check
      _
    $region39: #{tpu_custom_call.1} parent=1 // pred_check_branch
      %9380 = sbr.rel (0) target = $region41
    $region40: #{tpu_custom_call.1} parent=1 // pred_region
      _
    $region41: #{tpu_custom_call.1} parent=1 // pred_fallthru
      _
    // Predicated region
    $region42: #{tpu_custom_call.1} parent=1 // pred_check
      _
    $region43: #{tpu_custom_call.1} parent=1 // pred_check_branch
      %9382 = sbr.rel (0) target = $region45
    $region44: #{tpu_custom_call.1} parent=1 // pred_region
      %9383 = dma.done [#allocation7], 32
    $region45: #{tpu_custom_call.1} parent=1 // pred_fallthru
      _
    %9384 = vsyncpa [#allocation3], 1
    %9385 = vsyncpa [#allocation4], 1
    %9386 = vsyncpa [#allocation7], 1

</llo_original>
